<compile_context>
chip_gen: v7x
topology: tpu7x:2x2x1
jax: 0.10.0
libtpu: 0.0.40
codegen_flags: <defaults>
</compile_context>

<pallas_src>
import functools

import jax
import jax.numpy as jnp
from jax import lax
from jax.experimental import pallas as pl
from jax.experimental.pallas import tpu as pltpu

VOCAB = 80
EMBED = 8
HIDDEN = 256
NUM_LAYERS = 2

VOCAB_PAD = 128    # lane-dense output width
BATCH_TILE = 16    # bf16 packs 2 rows per sublane -> 16 rows = full bf16 LHS tile


def _round_up(x, m):
    return (x + m - 1) // m * m


def char_lstm_kernel(gx_ref,     # (T, Bt, 4H) f32  precomputed layer-0 gate pre-activations
                     whh0_ref,   # (H, 4H)     bf16 layer-0 recurrent weights
                     w1a_ref,    # (H, 4H)     bf16 layer-1 input weights  (w_ih_l1.T)
                     w1b_ref,    # (H, 4H)     bf16 layer-1 recurrent wts  (w_hh_l1.T)
                     b1_ref,     # (1, 4H)     f32  (b_ih_l1 + b_hh_l1)
                     wout_ref,   # (H, Vpad)   bf16 (zero-padded 80 -> 128)
                     bout_ref,   # (1, Vpad)   f32
                     out_ref,    # (Bt, Vpad)  f32
                     *, seq_len, batch_tile):
    H = HIDDEN

    # Hoist loop-invariant bias load + broadcast (JAX does not CSE broadcast_in_dim).
    b1_full = jnp.broadcast_to(b1_ref[...], (batch_tile, 4 * H))

    def layer0_step(t, h0, c0):
        # Input projection (embedding @ Wih + biases) is precomputed in gx_ref;
        # only the recurrent matmul runs here.
        g0 = gx_ref[t] + jnp.dot(h0.astype(jnp.bfloat16), whh0_ref[...],
                                 preferred_element_type=jnp.float32)
        i = jax.nn.sigmoid(g0[:, 0 * H:1 * H])
        f = jax.nn.sigmoid(g0[:, 1 * H:2 * H])
        g = jnp.tanh(g0[:, 2 * H:3 * H])
        o = jax.nn.sigmoid(g0[:, 3 * H:4 * H])
        c_new = f * c0 + i * g
        h_new = o * jnp.tanh(c_new)
        return h_new, c_new

    def layer1_step(h0, h1, c1):
        # No concat: two accumulating dots (each K=256, the native MXU K-tile).
        g1 = (jnp.dot(h0.astype(jnp.bfloat16), w1a_ref[...],
                      preferred_element_type=jnp.float32)
              + jnp.dot(h1.astype(jnp.bfloat16), w1b_ref[...],
                        preferred_element_type=jnp.float32)
              + b1_full)
        i = jax.nn.sigmoid(g1[:, 0 * H:1 * H])
        f = jax.nn.sigmoid(g1[:, 1 * H:2 * H])
        g = jnp.tanh(g1[:, 2 * H:3 * H])
        o = jax.nn.sigmoid(g1[:, 3 * H:4 * H])
        c_new = f * c1 + i * g
        h_new = o * jnp.tanh(c_new)
        return h_new, c_new

    # Prologue: layer-0 for step 0.
    z = jnp.zeros((batch_tile, H), jnp.float32)
    h0, c0 = layer0_step(0, z, z)
    h1, c1 = z, z

    if seq_len > 1:
        def body(t, carry):
            h0, c0, h1, c1 = carry
            # Skewed pipeline: layer-1 for step t only depends on h0[t] (already in
            # the carry), so layer-0's MXU push for step t+1 and layer-1's EUP/VPU
            # gate math for step t are independent and can overlap.
            h0n, c0n = layer0_step(t + 1, h0, c0)
            h1n, c1n = layer1_step(h0, h1, c1)
            return h0n, c0n, h1n, c1n

        trip = seq_len - 1
        unroll = True if trip <= 32 else 8   # partial unroll for long sequences
        h0, c0, h1, c1 = lax.fori_loop(0, trip, body, (h0, c0, h1, c1),
                                       unroll=unroll)

    # Epilogue: layer-1 for the last step.
    h1_last, _ = layer1_step(h0, h1, c1)

    # Final projection of the last step's top-layer hidden state.
    # Dropout is identity in eval mode.
    # TODO(synk): train-mode dropout (p=0.5, inverted scaling) not implemented.
    out_ref[...] = (jnp.dot(h1_last.astype(jnp.bfloat16), wout_ref[...],
                            preferred_element_type=jnp.float32)
                    + bout_ref[...])


def char_lstm_forward(x_tokens, params):
    """x_tokens: (B, T) int32 in [0, VOCAB). Returns (B, VOCAB) float32."""
    B, T = x_tokens.shape
    Bp = _round_up(max(B, 1), BATCH_TILE)
    n_tiles = Bp // BATCH_TILE

    # Glue: fold embedding + layer-0 input projection + layer-0 biases into one
    # (VOCAB, 4H) table, then gather per-token rows (removes the in-kernel K=8
    # pre-pass and the T-scaled gate scratch slab).
    gate_table = (params["embed"] @ params["w_ih_l0"].T
                  + params["b_ih_l0"] + params["b_hh_l0"]).astype(jnp.float32)  # (80, 4H)
    gx = jnp.take(gate_table, x_tokens, axis=0)           # (B, T, 4H)
    gx = jnp.transpose(gx, (1, 0, 2))                      # (T, B, 4H) time-major
    gx = jnp.pad(gx, ((0, 0), (0, Bp - B), (0, 0)))        # (T, Bp, 4H)

    # Glue: weight prep — transpose to x@W form, bf16 cast, pad vocab lanes to 128.
    whh0 = params["w_hh_l0"].T.astype(jnp.bfloat16)        # (H, 4H)
    w1a = params["w_ih_l1"].T.astype(jnp.bfloat16)         # (H, 4H)
    w1b = params["w_hh_l1"].T.astype(jnp.bfloat16)         # (H, 4H)
    b1 = (params["b_ih_l1"] + params["b_hh_l1"]).reshape(1, 4 * HIDDEN).astype(jnp.float32)
    wout = jnp.zeros((HIDDEN, VOCAB_PAD), jnp.float32).at[:, :VOCAB].set(params["w_out"].T)
    wout = wout.astype(jnp.bfloat16)                       # (H, 128)
    bout = jnp.zeros((1, VOCAB_PAD), jnp.float32).at[:, :VOCAB].set(params["b_out"][None, :])

    kernel = functools.partial(char_lstm_kernel, seq_len=T, batch_tile=BATCH_TILE)

    # Explicit VMEM budget (per-tile working set + headroom), capped well below
    # v7x's 64 MiB physical VMEM.
    per_tile_bytes = (T * BATCH_TILE * 4 * HIDDEN * 4        # gx tile (f32)
                      + 3 * HIDDEN * 4 * HIDDEN * 2          # whh0, w1a, w1b (bf16)
                      + 4 * HIDDEN * 4                        # b1
                      + HIDDEN * VOCAB_PAD * 2                # wout
                      + VOCAB_PAD * 4                         # bout
                      + BATCH_TILE * VOCAB_PAD * 4)           # out tile
    vmem_limit = int(min(2 * per_tile_bytes + (4 << 20), 56 << 20))

    out = pl.pallas_call(
        kernel,
        out_shape=jax.ShapeDtypeStruct((Bp, VOCAB_PAD), jnp.float32),
        grid_spec=pltpu.PrefetchScalarGridSpec(
            num_scalar_prefetch=0,
            grid=(n_tiles,),
            in_specs=[
                pl.BlockSpec((T, BATCH_TILE, 4 * HIDDEN), lambda b: (0, b, 0)),
                pl.BlockSpec((HIDDEN, 4 * HIDDEN), lambda b: (0, 0)),
                pl.BlockSpec((HIDDEN, 4 * HIDDEN), lambda b: (0, 0)),
                pl.BlockSpec((HIDDEN, 4 * HIDDEN), lambda b: (0, 0)),
                pl.BlockSpec((1, 4 * HIDDEN), lambda b: (0, 0)),
                pl.BlockSpec((HIDDEN, VOCAB_PAD), lambda b: (0, 0)),
                pl.BlockSpec((1, VOCAB_PAD), lambda b: (0, 0)),
            ],
            out_specs=pl.BlockSpec((BATCH_TILE, VOCAB_PAD), lambda b: (b, 0)),
        ),
        compiler_params=pltpu.CompilerParams(
            dimension_semantics=("parallel",),   # batch tiles independent -> 2nd TC on v7x
            vmem_limit_bytes=vmem_limit,
        ),
    )(gx, whh0, w1a, w1b, b1, wout, bout)

    return out[:B, :VOCAB]


def ref_forward(x_tokens, params):
    """Pure-JAX reference matching PyTorch CharLSTM.forward (eval mode), all f32."""
    emb = jnp.take(params["embed"], x_tokens, axis=0)  # (B, T, E)
    B = x_tokens.shape[0]

    def run_layer(inputs, wih, whh, bih, bhh):
        h = jnp.zeros((B, HIDDEN), jnp.float32)
        c = jnp.zeros((B, HIDDEN), jnp.float32)

        def step(carry, x_t):
            h, c = carry
            g = x_t @ wih.T + bih + h @ whh.T + bhh
            i = jax.nn.sigmoid(g[:, :HIDDEN])
            f = jax.nn.sigmoid(g[:, HIDDEN:2 * HIDDEN])
            gg = jnp.tanh(g[:, 2 * HIDDEN:3 * HIDDEN])
            o = jax.nn.sigmoid(g[:, 3 * HIDDEN:])
            c = f * c + i * gg
            h = o * jnp.tanh(c)
            return (h, c), h

        (_, _), hs = jax.lax.scan(step, (h, c), jnp.transpose(inputs, (1, 0, 2)))
        return jnp.transpose(hs, (1, 0, 2))  # (B, T, H)

    y0 = run_layer(emb, params["w_ih_l0"], params["w_hh_l0"],
                   params["b_ih_l0"], params["b_hh_l0"])
    y1 = run_layer(y0, params["w_ih_l1"], params["w_hh_l1"],
                   params["b_ih_l1"], params["b_hh_l1"])
    last = y1[:, -1, :]
    return last @ params["w_out"].T + params["b_out"]


def init_params(key):
    ks = jax.random.split(key, 16)
    s = 1.0 / jnp.sqrt(HIDDEN)  # PyTorch LSTM / Linear init scale
    u = lambda k, shape, sc: jax.random.uniform(k, shape, jnp.float32, -sc, sc)
    return {
        "embed":   jax.random.normal(ks[0], (VOCAB, EMBED), jnp.float32),
        "w_ih_l0": u(ks[1], (4 * HIDDEN, EMBED), s),
        "w_hh_l0": u(ks[2], (4 * HIDDEN, HIDDEN), s),
        "b_ih_l0": u(ks[3], (4 * HIDDEN,), s),
        "b_hh_l0": u(ks[4], (4 * HIDDEN,), s),
        "w_ih_l1": u(ks[5], (4 * HIDDEN, HIDDEN), s),
        "w_hh_l1": u(ks[6], (4 * HIDDEN, HIDDEN), s),
        "b_ih_l1": u(ks[7], (4 * HIDDEN,), s),
        "b_hh_l1": u(ks[8], (4 * HIDDEN,), s),
        "w_out":   u(ks[9], (VOCAB, HIDDEN), s),
        "b_out":   u(ks[10], (VOCAB,), s),
    }


if __name__ == "__main__":
    key = jax.random.PRNGKey(0)
    pkey, xkey = jax.random.split(key)
    params = init_params(pkey)

    B, T = 2, 8
    x_tokens = jax.random.randint(xkey, (B, T), 0, VOCAB, dtype=jnp.int32)

    out = jax.block_until_ready(char_lstm_forward(x_tokens, params))
    ref = jax.block_until_ready(ref_forward(x_tokens, params))

    assert out.shape == (B, VOCAB), out.shape
    max_err = float(jnp.max(jnp.abs(out - ref)))
    assert jnp.allclose(out, ref, atol=5e-2, rtol=5e-2), max_err

    print("KERNEL_OK")
</pallas_src>

<mosaic_0001>
module attributes {stable_mosaic.version = 11 : i64} {
  func.func @char_lstm_kernel(%arg0: i32, %arg1: memref<8x16x1024xf32, #tpu.memory_space<vmem>>, %arg2: memref<256x1024xbf16, #tpu.memory_space<vmem>>, %arg3: memref<256x1024xbf16, #tpu.memory_space<vmem>>, %arg4: memref<256x1024xbf16, #tpu.memory_space<vmem>>, %arg5: memref<1x1024xf32, #tpu.memory_space<vmem>>, %arg6: memref<256x128xbf16, #tpu.memory_space<vmem>>, %arg7: memref<1x128xf32, #tpu.memory_space<vmem>>, %arg8: memref<16x128xf32, #tpu.memory_space<vmem>>) attributes {dimension_semantics = [#tpu.dimension_semantics<parallel>], iteration_bounds = array<i64: 1>, scalar_prefetch = 0 : i64, scratch_operands = 0 : i64, tpu.core_type = #tpu.core_type<tc>, window_params = [{transform_indices = @transform_0, window_bounds = array<i64: 8, 16, 1024>}, {pipeline_mode = #tpu.pipeline_mode<synchronous>, transform_indices = @transform_1, window_bounds = array<i64: 256, 1024>}, {pipeline_mode = #tpu.pipeline_mode<synchronous>, transform_indices = @transform_2, window_bounds = array<i64: 256, 1024>}, {pipeline_mode = #tpu.pipeline_mode<synchronous>, transform_indices = @transform_3, window_bounds = array<i64: 256, 1024>}, {pipeline_mode = #tpu.pipeline_mode<synchronous>, transform_indices = @transform_4, window_bounds = array<i64: 1, 1024>}, {pipeline_mode = #tpu.pipeline_mode<synchronous>, transform_indices = @transform_5, window_bounds = array<i64: 256, 128>}, {pipeline_mode = #tpu.pipeline_mode<synchronous>, transform_indices = @transform_6, window_bounds = array<i64: 1, 128>}, {transform_indices = @transform_7, window_bounds = array<i64: 16, 128>}]} {
    %c0 = arith.constant 0 : index
    %c0_0 = arith.constant 0 : index
    %0 = vector.load %arg5[%c0, %c0_0] : memref<1x1024xf32, #tpu.memory_space<vmem>>, vector<1x1024xf32>
    %1 = vector.shape_cast %0 : vector<1x1024xf32> to vector<1x1024xf32>
    %2 = vector.broadcast %1 : vector<1x1024xf32> to vector<16x1024xf32>
    %cst = arith.constant 0.000000e+00 : f32
    %3 = vector.broadcast %cst : f32 to vector<16x256xf32>
    %c0_1 = arith.constant 0 : index
    %c0_2 = arith.constant 0 : index
    %c0_3 = arith.constant 0 : index
    %4 = vector.load %arg1[%c0_1, %c0_2, %c0_3] : memref<8x16x1024xf32, #tpu.memory_space<vmem>>, vector<1x16x1024xf32>
    %5 = vector.shape_cast %4 : vector<1x16x1024xf32> to vector<16x1024xf32>
    %6 = arith.truncf %3 : vector<16x256xf32> to vector<16x256xbf16>
    %c0_4 = arith.constant 0 : index
    %c0_5 = arith.constant 0 : index
    %7 = vector.load %arg2[%c0_4, %c0_5] : memref<256x1024xbf16, #tpu.memory_space<vmem>>, vector<256x1024xbf16>
    %cst_6 = arith.constant dense<0.000000e+00> : vector<16x1024xf32>
    %8 = tpu.matmul %6, %7, %cst_6 {dimension_numbers = #tpu.dot_dimension_numbers<[1], [0], [0], [1], [0, 0, 1, 1], [], []>} : vector<16x256xbf16>, vector<256x1024xbf16>, vector<16x1024xf32> -> vector<16x1024xf32>
    %9 = arith.addf %5, %8 : vector<16x1024xf32>
    %10 = vector.extract_strided_slice %9 {offsets = [0, 0], sizes = [16, 256], strides = [1, 1]} : vector<16x1024xf32> to vector<16x256xf32>
    %11 = arith.negf %10 : vector<16x256xf32>
    %12 = math.exp %11 : vector<16x256xf32>
    %cst_7 = arith.constant 1.000000e+00 : f32
    %13 = vector.broadcast %cst_7 : f32 to vector<16x256xf32>
    %14 = arith.addf %13, %12 : vector<16x256xf32>
    %15 = arith.divf %13, %14 : vector<16x256xf32>
    %16 = vector.extract_strided_slice %9 {offsets = [0, 256], sizes = [16, 256], strides = [1, 1]} : vector<16x1024xf32> to vector<16x256xf32>
    %17 = arith.negf %16 : vector<16x256xf32>
    %18 = math.exp %17 : vector<16x256xf32>
    %cst_8 = arith.constant 1.000000e+00 : f32
    %19 = vector.broadcast %cst_8 : f32 to vector<16x256xf32>
    %20 = arith.addf %19, %18 : vector<16x256xf32>
    %21 = arith.divf %19, %20 : vector<16x256xf32>
    %22 = vector.extract_strided_slice %9 {offsets = [0, 512], sizes = [16, 256], strides = [1, 1]} : vector<16x1024xf32> to vector<16x256xf32>
    %23 = math.tanh %22 : vector<16x256xf32>
    %24 = vector.extract_strided_slice %9 {offsets = [0, 768], sizes = [16, 256], strides = [1, 1]} : vector<16x1024xf32> to vector<16x256xf32>
    %25 = arith.negf %24 : vector<16x256xf32>
    %26 = math.exp %25 : vector<16x256xf32>
    %cst_9 = arith.constant 1.000000e+00 : f32
    %27 = vector.broadcast %cst_9 : f32 to vector<16x256xf32>
    %28 = arith.addf %27, %26 : vector<16x256xf32>
    %29 = arith.divf %27, %28 : vector<16x256xf32>
    %30 = arith.mulf %21, %3 : vector<16x256xf32>
    %31 = arith.mulf %15, %23 : vector<16x256xf32>
    %32 = arith.addf %30, %31 : vector<16x256xf32>
    %33 = math.tanh %32 : vector<16x256xf32>
    %34 = arith.mulf %29, %33 : vector<16x256xf32>
    %c0_i32 = arith.constant 0 : i32
    %c1_i32 = arith.constant 1 : i32
    %35 = arith.addi %c0_i32, %c1_i32 : i32
    %36 = arith.index_cast %35 : i32 to index
    %c0_10 = arith.constant 0 : index
    %c0_11 = arith.constant 0 : index
    %37 = vector.load %arg1[%36, %c0_10, %c0_11] : memref<8x16x1024xf32, #tpu.memory_space<vmem>>, vector<1x16x1024xf32>
    %38 = vector.shape_cast %37 : vector<1x16x1024xf32> to vector<16x1024xf32>
    %39 = arith.truncf %34 : vector<16x256xf32> to vector<16x256xbf16>
    %c0_12 = arith.constant 0 : index
    %c0_13 = arith.constant 0 : index
    %40 = vector.load %arg2[%c0_12, %c0_13] : memref<256x1024xbf16, #tpu.memory_space<vmem>>, vector<256x1024xbf16>
    %cst_14 = arith.constant dense<0.000000e+00> : vector<16x1024xf32>
    %41 = tpu.matmul %39, %40, %cst_14 {dimension_numbers = #tpu.dot_dimension_numbers<[1], [0], [0], [1], [0, 0, 1, 1], [], []>} : vector<16x256xbf16>, vector<256x1024xbf16>, vector<16x1024xf32> -> vector<16x1024xf32>
    %42 = arith.addf %38, %41 : vector<16x1024xf32>
    %43 = vector.extract_strided_slice %42 {offsets = [0, 0], sizes = [16, 256], strides = [1, 1]} : vector<16x1024xf32> to vector<16x256xf32>
    %44 = arith.negf %43 : vector<16x256xf32>
    %45 = math.exp %44 : vector<16x256xf32>
    %cst_15 = arith.constant 1.000000e+00 : f32
    %46 = vector.broadcast %cst_15 : f32 to vector<16x256xf32>
    %47 = arith.addf %46, %45 : vector<16x256xf32>
    %48 = arith.divf %46, %47 : vector<16x256xf32>
    %49 = vector.extract_strided_slice %42 {offsets = [0, 256], sizes = [16, 256], strides = [1, 1]} : vector<16x1024xf32> to vector<16x256xf32>
    %50 = arith.negf %49 : vector<16x256xf32>
    %51 = math.exp %50 : vector<16x256xf32>
    %cst_16 = arith.constant 1.000000e+00 : f32
    %52 = vector.broadcast %cst_16 : f32 to vector<16x256xf32>
    %53 = arith.addf %52, %51 : vector<16x256xf32>
    %54 = arith.divf %52, %53 : vector<16x256xf32>
    %55 = vector.extract_strided_slice %42 {offsets = [0, 512], sizes = [16, 256], strides = [1, 1]} : vector<16x1024xf32> to vector<16x256xf32>
    %56 = math.tanh %55 : vector<16x256xf32>
    %57 = vector.extract_strided_slice %42 {offsets = [0, 768], sizes = [16, 256], strides = [1, 1]} : vector<16x1024xf32> to vector<16x256xf32>
    %58 = arith.negf %57 : vector<16x256xf32>
    %59 = math.exp %58 : vector<16x256xf32>
    %cst_17 = arith.constant 1.000000e+00 : f32
    %60 = vector.broadcast %cst_17 : f32 to vector<16x256xf32>
    %61 = arith.addf %60, %59 : vector<16x256xf32>
    %62 = arith.divf %60, %61 : vector<16x256xf32>
    %63 = arith.mulf %54, %32 : vector<16x256xf32>
    %64 = arith.mulf %48, %56 : vector<16x256xf32>
    %65 = arith.addf %63, %64 : vector<16x256xf32>
    %66 = math.tanh %65 : vector<16x256xf32>
    %67 = arith.mulf %62, %66 : vector<16x256xf32>
    %68 = arith.truncf %34 : vector<16x256xf32> to vector<16x256xbf16>
    %c0_18 = arith.constant 0 : index
    %c0_19 = arith.constant 0 : index
    %69 = vector.load %arg3[%c0_18, %c0_19] : memref<256x1024xbf16, #tpu.memory_space<vmem>>, vector<256x1024xbf16>
    %cst_20 = arith.constant dense<0.000000e+00> : vector<16x1024xf32>
    %70 = tpu.matmul %68, %69, %cst_20 {dimension_numbers = #tpu.dot_dimension_numbers<[1], [0], [0], [1], [0, 0, 1, 1], [], []>} : vector<16x256xbf16>, vector<256x1024xbf16>, vector<16x1024xf32> -> vector<16x1024xf32>
    %71 = arith.truncf %3 : vector<16x256xf32> to vector<16x256xbf16>
    %c0_21 = arith.constant 0 : index
    %c0_22 = arith.constant 0 : index
    %72 = vector.load %arg4[%c0_21, %c0_22] : memref<256x1024xbf16, #tpu.memory_space<vmem>>, vector<256x1024xbf16>
    %cst_23 = arith.constant dense<0.000000e+00> : vector<16x1024xf32>
    %73 = tpu.matmul %71, %72, %cst_23 {dimension_numbers = #tpu.dot_dimension_numbers<[1], [0], [0], [1], [0, 0, 1, 1], [], []>} : vector<16x256xbf16>, vector<256x1024xbf16>, vector<16x1024xf32> -> vector<16x1024xf32>
    %74 = arith.addf %70, %73 : vector<16x1024xf32>
    %75 = arith.addf %74, %2 : vector<16x1024xf32>
    %76 = vector.extract_strided_slice %75 {offsets = [0, 0], sizes = [16, 256], strides = [1, 1]} : vector<16x1024xf32> to vector<16x256xf32>
    %77 = arith.negf %76 : vector<16x256xf32>
    %78 = math.exp %77 : vector<16x256xf32>
    %cst_24 = arith.constant 1.000000e+00 : f32
    %79 = vector.broadcast %cst_24 : f32 to vector<16x256xf32>
    %80 = arith.addf %79, %78 : vector<16x256xf32>
    %81 = arith.divf %79, %80 : vector<16x256xf32>
    %82 = vector.extract_strided_slice %75 {offsets = [0, 256], sizes = [16, 256], strides = [1, 1]} : vector<16x1024xf32> to vector<16x256xf32>
    %83 = arith.negf %82 : vector<16x256xf32>
    %84 = math.exp %83 : vector<16x256xf32>
    %cst_25 = arith.constant 1.000000e+00 : f32
    %85 = vector.broadcast %cst_25 : f32 to vector<16x256xf32>
    %86 = arith.addf %85, %84 : vector<16x256xf32>
    %87 = arith.divf %85, %86 : vector<16x256xf32>
    %88 = vector.extract_strided_slice %75 {offsets = [0, 512], sizes = [16, 256], strides = [1, 1]} : vector<16x1024xf32> to vector<16x256xf32>
    %89 = math.tanh %88 : vector<16x256xf32>
    %90 = vector.extract_strided_slice %75 {offsets = [0, 768], sizes = [16, 256], strides = [1, 1]} : vector<16x1024xf32> to vector<16x256xf32>
    %91 = arith.negf %90 : vector<16x256xf32>
    %92 = math.exp %91 : vector<16x256xf32>
    %cst_26 = arith.constant 1.000000e+00 : f32
    %93 = vector.broadcast %cst_26 : f32 to vector<16x256xf32>
    %94 = arith.addf %93, %92 : vector<16x256xf32>
    %95 = arith.divf %93, %94 : vector<16x256xf32>
    %96 = arith.mulf %87, %3 : vector<16x256xf32>
    %97 = arith.mulf %81, %89 : vector<16x256xf32>
    %98 = arith.addf %96, %97 : vector<16x256xf32>
    %99 = math.tanh %98 : vector<16x256xf32>
    %100 = arith.mulf %95, %99 : vector<16x256xf32>
    %c1_i32_27 = arith.constant 1 : i32
    %c1_i32_28 = arith.constant 1 : i32
    %101 = arith.addi %c1_i32_27, %c1_i32_28 : i32
    %102 = arith.index_cast %101 : i32 to index
    %c0_29 = arith.constant 0 : index
    %c0_30 = arith.constant 0 : index
    %103 = vector.load %arg1[%102, %c0_29, %c0_30] : memref<8x16x1024xf32, #tpu.memory_space<vmem>>, vector<1x16x1024xf32>
    %104 = vector.shape_cast %103 : vector<1x16x1024xf32> to vector<16x1024xf32>
    %105 = arith.truncf %67 : vector<16x256xf32> to vector<16x256xbf16>
    %c0_31 = arith.constant 0 : index
    %c0_32 = arith.constant 0 : index
    %106 = vector.load %arg2[%c0_31, %c0_32] : memref<256x1024xbf16, #tpu.memory_space<vmem>>, vector<256x1024xbf16>
    %cst_33 = arith.constant dense<0.000000e+00> : vector<16x1024xf32>
    %107 = tpu.matmul %105, %106, %cst_33 {dimension_numbers = #tpu.dot_dimension_numbers<[1], [0], [0], [1], [0, 0, 1, 1], [], []>} : vector<16x256xbf16>, vector<256x1024xbf16>, vector<16x1024xf32> -> vector<16x1024xf32>
    %108 = arith.addf %104, %107 : vector<16x1024xf32>
    %109 = vector.extract_strided_slice %108 {offsets = [0, 0], sizes = [16, 256], strides = [1, 1]} : vector<16x1024xf32> to vector<16x256xf32>
    %110 = arith.negf %109 : vector<16x256xf32>
    %111 = math.exp %110 : vector<16x256xf32>
    %cst_34 = arith.constant 1.000000e+00 : f32
    %112 = vector.broadcast %cst_34 : f32 to vector<16x256xf32>
    %113 = arith.addf %112, %111 : vector<16x256xf32>
    %114 = arith.divf %112, %113 : vector<16x256xf32>
    %115 = vector.extract_strided_slice %108 {offsets = [0, 256], sizes = [16, 256], strides = [1, 1]} : vector<16x1024xf32> to vector<16x256xf32>
    %116 = arith.negf %115 : vector<16x256xf32>
    %117 = math.exp %116 : vector<16x256xf32>
    %cst_35 = arith.constant 1.000000e+00 : f32
    %118 = vector.broadcast %cst_35 : f32 to vector<16x256xf32>
    %119 = arith.addf %118, %117 : vector<16x256xf32>
    %120 = arith.divf %118, %119 : vector<16x256xf32>
    %121 = vector.extract_strided_slice %108 {offsets = [0, 512], sizes = [16, 256], strides = [1, 1]} : vector<16x1024xf32> to vector<16x256xf32>
    %122 = math.tanh %121 : vector<16x256xf32>
    %123 = vector.extract_strided_slice %108 {offsets = [0, 768], sizes = [16, 256], strides = [1, 1]} : vector<16x1024xf32> to vector<16x256xf32>
    %124 = arith.negf %123 : vector<16x256xf32>
    %125 = math.exp %124 : vector<16x256xf32>
    %cst_36 = arith.constant 1.000000e+00 : f32
    %126 = vector.broadcast %cst_36 : f32 to vector<16x256xf32>
    %127 = arith.addf %126, %125 : vector<16x256xf32>
    %128 = arith.divf %126, %127 : vector<16x256xf32>
    %129 = arith.mulf %120, %65 : vector<16x256xf32>
    %130 = arith.mulf %114, %122 : vector<16x256xf32>
    %131 = arith.addf %129, %130 : vector<16x256xf32>
    %132 = math.tanh %131 : vector<16x256xf32>
    %133 = arith.mulf %128, %132 : vector<16x256xf32>
    %134 = arith.truncf %67 : vector<16x256xf32> to vector<16x256xbf16>
    %c0_37 = arith.constant 0 : index
    %c0_38 = arith.constant 0 : index
    %135 = vector.load %arg3[%c0_37, %c0_38] : memref<256x1024xbf16, #tpu.memory_space<vmem>>, vector<256x1024xbf16>
    %cst_39 = arith.constant dense<0.000000e+00> : vector<16x1024xf32>
    %136 = tpu.matmul %134, %135, %cst_39 {dimension_numbers = #tpu.dot_dimension_numbers<[1], [0], [0], [1], [0, 0, 1, 1], [], []>} : vector<16x256xbf16>, vector<256x1024xbf16>, vector<16x1024xf32> -> vector<16x1024xf32>
    %137 = arith.truncf %100 : vector<16x256xf32> to vector<16x256xbf16>
    %c0_40 = arith.constant 0 : index
    %c0_41 = arith.constant 0 : index
    %138 = vector.load %arg4[%c0_40, %c0_41] : memref<256x1024xbf16, #tpu.memory_space<vmem>>, vector<256x1024xbf16>
    %cst_42 = arith.constant dense<0.000000e+00> : vector<16x1024xf32>
    %139 = tpu.matmul %137, %138, %cst_42 {dimension_numbers = #tpu.dot_dimension_numbers<[1], [0], [0], [1], [0, 0, 1, 1], [], []>} : vector<16x256xbf16>, vector<256x1024xbf16>, vector<16x1024xf32> -> vector<16x1024xf32>
    %140 = arith.addf %136, %139 : vector<16x1024xf32>
    %141 = arith.addf %140, %2 : vector<16x1024xf32>
    %142 = vector.extract_strided_slice %141 {offsets = [0, 0], sizes = [16, 256], strides = [1, 1]} : vector<16x1024xf32> to vector<16x256xf32>
    %143 = arith.negf %142 : vector<16x256xf32>
    %144 = math.exp %143 : vector<16x256xf32>
    %cst_43 = arith.constant 1.000000e+00 : f32
    %145 = vector.broadcast %cst_43 : f32 to vector<16x256xf32>
    %146 = arith.addf %145, %144 : vector<16x256xf32>
    %147 = arith.divf %145, %146 : vector<16x256xf32>
    %148 = vector.extract_strided_slice %141 {offsets = [0, 256], sizes = [16, 256], strides = [1, 1]} : vector<16x1024xf32> to vector<16x256xf32>
    %149 = arith.negf %148 : vector<16x256xf32>
    %150 = math.exp %149 : vector<16x256xf32>
    %cst_44 = arith.constant 1.000000e+00 : f32
    %151 = vector.broadcast %cst_44 : f32 to vector<16x256xf32>
    %152 = arith.addf %151, %150 : vector<16x256xf32>
    %153 = arith.divf %151, %152 : vector<16x256xf32>
    %154 = vector.extract_strided_slice %141 {offsets = [0, 512], sizes = [16, 256], strides = [1, 1]} : vector<16x1024xf32> to vector<16x256xf32>
    %155 = math.tanh %154 : vector<16x256xf32>
    %156 = vector.extract_strided_slice %141 {offsets = [0, 768], sizes = [16, 256], strides = [1, 1]} : vector<16x1024xf32> to vector<16x256xf32>
    %157 = arith.negf %156 : vector<16x256xf32>
    %158 = math.exp %157 : vector<16x256xf32>
    %cst_45 = arith.constant 1.000000e+00 : f32
    %159 = vector.broadcast %cst_45 : f32 to vector<16x256xf32>
    %160 = arith.addf %159, %158 : vector<16x256xf32>
    %161 = arith.divf %159, %160 : vector<16x256xf32>
    %162 = arith.mulf %153, %98 : vector<16x256xf32>
    %163 = arith.mulf %147, %155 : vector<16x256xf32>
    %164 = arith.addf %162, %163 : vector<16x256xf32>
    %165 = math.tanh %164 : vector<16x256xf32>
    %166 = arith.mulf %161, %165 : vector<16x256xf32>
    %c2_i32 = arith.constant 2 : i32
    %c1_i32_46 = arith.constant 1 : i32
    %167 = arith.addi %c2_i32, %c1_i32_46 : i32
    %168 = arith.index_cast %167 : i32 to index
    %c0_47 = arith.constant 0 : index
    %c0_48 = arith.constant 0 : index
    %169 = vector.load %arg1[%168, %c0_47, %c0_48] : memref<8x16x1024xf32, #tpu.memory_space<vmem>>, vector<1x16x1024xf32>
    %170 = vector.shape_cast %169 : vector<1x16x1024xf32> to vector<16x1024xf32>
    %171 = arith.truncf %133 : vector<16x256xf32> to vector<16x256xbf16>
    %c0_49 = arith.constant 0 : index
    %c0_50 = arith.constant 0 : index
    %172 = vector.load %arg2[%c0_49, %c0_50] : memref<256x1024xbf16, #tpu.memory_space<vmem>>, vector<256x1024xbf16>
    %cst_51 = arith.constant dense<0.000000e+00> : vector<16x1024xf32>
    %173 = tpu.matmul %171, %172, %cst_51 {dimension_numbers = #tpu.dot_dimension_numbers<[1], [0], [0], [1], [0, 0, 1, 1], [], []>} : vector<16x256xbf16>, vector<256x1024xbf16>, vector<16x1024xf32> -> vector<16x1024xf32>
    %174 = arith.addf %170, %173 : vector<16x1024xf32>
    %175 = vector.extract_strided_slice %174 {offsets = [0, 0], sizes = [16, 256], strides = [1, 1]} : vector<16x1024xf32> to vector<16x256xf32>
    %176 = arith.negf %175 : vector<16x256xf32>
    %177 = math.exp %176 : vector<16x256xf32>
    %cst_52 = arith.constant 1.000000e+00 : f32
    %178 = vector.broadcast %cst_52 : f32 to vector<16x256xf32>
    %179 = arith.addf %178, %177 : vector<16x256xf32>
    %180 = arith.divf %178, %179 : vector<16x256xf32>
    %181 = vector.extract_strided_slice %174 {offsets = [0, 256], sizes = [16, 256], strides = [1, 1]} : vector<16x1024xf32> to vector<16x256xf32>
    %182 = arith.negf %181 : vector<16x256xf32>
    %183 = math.exp %182 : vector<16x256xf32>
    %cst_53 = arith.constant 1.000000e+00 : f32
    %184 = vector.broadcast %cst_53 : f32 to vector<16x256xf32>
    %185 = arith.addf %184, %183 : vector<16x256xf32>
    %186 = arith.divf %184, %185 : vector<16x256xf32>
    %187 = vector.extract_strided_slice %174 {offsets = [0, 512], sizes = [16, 256], strides = [1, 1]} : vector<16x1024xf32> to vector<16x256xf32>
    %188 = math.tanh %187 : vector<16x256xf32>
    %189 = vector.extract_strided_slice %174 {offsets = [0, 768], sizes = [16, 256], strides = [1, 1]} : vector<16x1024xf32> to vector<16x256xf32>
    %190 = arith.negf %189 : vector<16x256xf32>
    %191 = math.exp %190 : vector<16x256xf32>
    %cst_54 = arith.constant 1.000000e+00 : f32
    %192 = vector.broadcast %cst_54 : f32 to vector<16x256xf32>
    %193 = arith.addf %192, %191 : vector<16x256xf32>
    %194 = arith.divf %192, %193 : vector<16x256xf32>
    %195 = arith.mulf %186, %131 : vector<16x256xf32>
    %196 = arith.mulf %180, %188 : vector<16x256xf32>
    %197 = arith.addf %195, %196 : vector<16x256xf32>
    %198 = math.tanh %197 : vector<16x256xf32>
    %199 = arith.mulf %194, %198 : vector<16x256xf32>
    %200 = arith.truncf %133 : vector<16x256xf32> to vector<16x256xbf16>
    %c0_55 = arith.constant 0 : index
    %c0_56 = arith.constant 0 : index
    %201 = vector.load %arg3[%c0_55, %c0_56] : memref<256x1024xbf16, #tpu.memory_space<vmem>>, vector<256x1024xbf16>
    %cst_57 = arith.constant dense<0.000000e+00> : vector<16x1024xf32>
    %202 = tpu.matmul %200, %201, %cst_57 {dimension_numbers = #tpu.dot_dimension_numbers<[1], [0], [0], [1], [0, 0, 1, 1], [], []>} : vector<16x256xbf16>, vector<256x1024xbf16>, vector<16x1024xf32> -> vector<16x1024xf32>
    %203 = arith.truncf %166 : vector<16x256xf32> to vector<16x256xbf16>
    %c0_58 = arith.constant 0 : index
    %c0_59 = arith.constant 0 : index
    %204 = vector.load %arg4[%c0_58, %c0_59] : memref<256x1024xbf16, #tpu.memory_space<vmem>>, vector<256x1024xbf16>
    %cst_60 = arith.constant dense<0.000000e+00> : vector<16x1024xf32>
    %205 = tpu.matmul %203, %204, %cst_60 {dimension_numbers = #tpu.dot_dimension_numbers<[1], [0], [0], [1], [0, 0, 1, 1], [], []>} : vector<16x256xbf16>, vector<256x1024xbf16>, vector<16x1024xf32> -> vector<16x1024xf32>
    %206 = arith.addf %202, %205 : vector<16x1024xf32>
    %207 = arith.addf %206, %2 : vector<16x1024xf32>
    %208 = vector.extract_strided_slice %207 {offsets = [0, 0], sizes = [16, 256], strides = [1, 1]} : vector<16x1024xf32> to vector<16x256xf32>
    %209 = arith.negf %208 : vector<16x256xf32>
    %210 = math.exp %209 : vector<16x256xf32>
    %cst_61 = arith.constant 1.000000e+00 : f32
    %211 = vector.broadcast %cst_61 : f32 to vector<16x256xf32>
    %212 = arith.addf %211, %210 : vector<16x256xf32>
    %213 = arith.divf %211, %212 : vector<16x256xf32>
    %214 = vector.extract_strided_slice %207 {offsets = [0, 256], sizes = [16, 256], strides = [1, 1]} : vector<16x1024xf32> to vector<16x256xf32>
    %215 = arith.negf %214 : vector<16x256xf32>
    %216 = math.exp %215 : vector<16x256xf32>
    %cst_62 = arith.constant 1.000000e+00 : f32
    %217 = vector.broadcast %cst_62 : f32 to vector<16x256xf32>
    %218 = arith.addf %217, %216 : vector<16x256xf32>
    %219 = arith.divf %217, %218 : vector<16x256xf32>
    %220 = vector.extract_strided_slice %207 {offsets = [0, 512], sizes = [16, 256], strides = [1, 1]} : vector<16x1024xf32> to vector<16x256xf32>
    %221 = math.tanh %220 : vector<16x256xf32>
    %222 = vector.extract_strided_slice %207 {offsets = [0, 768], sizes = [16, 256], strides = [1, 1]} : vector<16x1024xf32> to vector<16x256xf32>
    %223 = arith.negf %222 : vector<16x256xf32>
    %224 = math.exp %223 : vector<16x256xf32>
    %cst_63 = arith.constant 1.000000e+00 : f32
    %225 = vector.broadcast %cst_63 : f32 to vector<16x256xf32>
    %226 = arith.addf %225, %224 : vector<16x256xf32>
    %227 = arith.divf %225, %226 : vector<16x256xf32>
    %228 = arith.mulf %219, %164 : vector<16x256xf32>
    %229 = arith.mulf %213, %221 : vector<16x256xf32>
    %230 = arith.addf %228, %229 : vector<16x256xf32>
    %231 = math.tanh %230 : vector<16x256xf32>
    %232 = arith.mulf %227, %231 : vector<16x256xf32>
    %c3_i32 = arith.constant 3 : i32
    %c1_i32_64 = arith.constant 1 : i32
    %233 = arith.addi %c3_i32, %c1_i32_64 : i32
    %234 = arith.index_cast %233 : i32 to index
    %c0_65 = arith.constant 0 : index
    %c0_66 = arith.constant 0 : index
    %235 = vector.load %arg1[%234, %c0_65, %c0_66] : memref<8x16x1024xf32, #tpu.memory_space<vmem>>, vector<1x16x1024xf32>
    %236 = vector.shape_cast %235 : vector<1x16x1024xf32> to vector<16x1024xf32>
    %237 = arith.truncf %199 : vector<16x256xf32> to vector<16x256xbf16>
    %c0_67 = arith.constant 0 : index
    %c0_68 = arith.constant 0 : index
    %238 = vector.load %arg2[%c0_67, %c0_68] : memref<256x1024xbf16, #tpu.memory_space<vmem>>, vector<256x1024xbf16>
    %cst_69 = arith.constant dense<0.000000e+00> : vector<16x1024xf32>
    %239 = tpu.matmul %237, %238, %cst_69 {dimension_numbers = #tpu.dot_dimension_numbers<[1], [0], [0], [1], [0, 0, 1, 1], [], []>} : vector<16x256xbf16>, vector<256x1024xbf16>, vector<16x1024xf32> -> vector<16x1024xf32>
    %240 = arith.addf %236, %239 : vector<16x1024xf32>
    %241 = vector.extract_strided_slice %240 {offsets = [0, 0], sizes = [16, 256], strides = [1, 1]} : vector<16x1024xf32> to vector<16x256xf32>
    %242 = arith.negf %241 : vector<16x256xf32>
    %243 = math.exp %242 : vector<16x256xf32>
    %cst_70 = arith.constant 1.000000e+00 : f32
    %244 = vector.broadcast %cst_70 : f32 to vector<16x256xf32>
    %245 = arith.addf %244, %243 : vector<16x256xf32>
    %246 = arith.divf %244, %245 : vector<16x256xf32>
    %247 = vector.extract_strided_slice %240 {offsets = [0, 256], sizes = [16, 256], strides = [1, 1]} : vector<16x1024xf32> to vector<16x256xf32>
    %248 = arith.negf %247 : vector<16x256xf32>
    %249 = math.exp %248 : vector<16x256xf32>
    %cst_71 = arith.constant 1.000000e+00 : f32
    %250 = vector.broadcast %cst_71 : f32 to vector<16x256xf32>
    %251 = arith.addf %250, %249 : vector<16x256xf32>
    %252 = arith.divf %250, %251 : vector<16x256xf32>
    %253 = vector.extract_strided_slice %240 {offsets = [0, 512], sizes = [16, 256], strides = [1, 1]} : vector<16x1024xf32> to vector<16x256xf32>
    %254 = math.tanh %253 : vector<16x256xf32>
    %255 = vector.extract_strided_slice %240 {offsets = [0, 768], sizes = [16, 256], strides = [1, 1]} : vector<16x1024xf32> to vector<16x256xf32>
    %256 = arith.negf %255 : vector<16x256xf32>
    %257 = math.exp %256 : vector<16x256xf32>
    %cst_72 = arith.constant 1.000000e+00 : f32
    %258 = vector.broadcast %cst_72 : f32 to vector<16x256xf32>
    %259 = arith.addf %258, %257 : vector<16x256xf32>
    %260 = arith.divf %258, %259 : vector<16x256xf32>
    %261 = arith.mulf %252, %197 : vector<16x256xf32>
    %262 = arith.mulf %246, %254 : vector<16x256xf32>
    %263 = arith.addf %261, %262 : vector<16x256xf32>
    %264 = math.tanh %263 : vector<16x256xf32>
    %265 = arith.mulf %260, %264 : vector<16x256xf32>
    %266 = arith.truncf %199 : vector<16x256xf32> to vector<16x256xbf16>
    %c0_73 = arith.constant 0 : index
    %c0_74 = arith.constant 0 : index
    %267 = vector.load %arg3[%c0_73, %c0_74] : memref<256x1024xbf16, #tpu.memory_space<vmem>>, vector<256x1024xbf16>
    %cst_75 = arith.constant dense<0.000000e+00> : vector<16x1024xf32>
    %268 = tpu.matmul %266, %267, %cst_75 {dimension_numbers = #tpu.dot_dimension_numbers<[1], [0], [0], [1], [0, 0, 1, 1], [], []>} : vector<16x256xbf16>, vector<256x1024xbf16>, vector<16x1024xf32> -> vector<16x1024xf32>
    %269 = arith.truncf %232 : vector<16x256xf32> to vector<16x256xbf16>
    %c0_76 = arith.constant 0 : index
    %c0_77 = arith.constant 0 : index
    %270 = vector.load %arg4[%c0_76, %c0_77] : memref<256x1024xbf16, #tpu.memory_space<vmem>>, vector<256x1024xbf16>
    %cst_78 = arith.constant dense<0.000000e+00> : vector<16x1024xf32>
    %271 = tpu.matmul %269, %270, %cst_78 {dimension_numbers = #tpu.dot_dimension_numbers<[1], [0], [0], [1], [0, 0, 1, 1], [], []>} : vector<16x256xbf16>, vector<256x1024xbf16>, vector<16x1024xf32> -> vector<16x1024xf32>
    %272 = arith.addf %268, %271 : vector<16x1024xf32>
    %273 = arith.addf %272, %2 : vector<16x1024xf32>
    %274 = vector.extract_strided_slice %273 {offsets = [0, 0], sizes = [16, 256], strides = [1, 1]} : vector<16x1024xf32> to vector<16x256xf32>
    %275 = arith.negf %274 : vector<16x256xf32>
    %276 = math.exp %275 : vector<16x256xf32>
    %cst_79 = arith.constant 1.000000e+00 : f32
    %277 = vector.broadcast %cst_79 : f32 to vector<16x256xf32>
    %278 = arith.addf %277, %276 : vector<16x256xf32>
    %279 = arith.divf %277, %278 : vector<16x256xf32>
    %280 = vector.extract_strided_slice %273 {offsets = [0, 256], sizes = [16, 256], strides = [1, 1]} : vector<16x1024xf32> to vector<16x256xf32>
    %281 = arith.negf %280 : vector<16x256xf32>
    %282 = math.exp %281 : vector<16x256xf32>
    %cst_80 = arith.constant 1.000000e+00 : f32
    %283 = vector.broadcast %cst_80 : f32 to vector<16x256xf32>
    %284 = arith.addf %283, %282 : vector<16x256xf32>
    %285 = arith.divf %283, %284 : vector<16x256xf32>
    %286 = vector.extract_strided_slice %273 {offsets = [0, 512], sizes = [16, 256], strides = [1, 1]} : vector<16x1024xf32> to vector<16x256xf32>
    %287 = math.tanh %286 : vector<16x256xf32>
    %288 = vector.extract_strided_slice %273 {offsets = [0, 768], sizes = [16, 256], strides = [1, 1]} : vector<16x1024xf32> to vector<16x256xf32>
    %289 = arith.negf %288 : vector<16x256xf32>
    %290 = math.exp %289 : vector<16x256xf32>
    %cst_81 = arith.constant 1.000000e+00 : f32
    %291 = vector.broadcast %cst_81 : f32 to vector<16x256xf32>
    %292 = arith.addf %291, %290 : vector<16x256xf32>
    %293 = arith.divf %291, %292 : vector<16x256xf32>
    %294 = arith.mulf %285, %230 : vector<16x256xf32>
    %295 = arith.mulf %279, %287 : vector<16x256xf32>
    %296 = arith.addf %294, %295 : vector<16x256xf32>
    %297 = math.tanh %296 : vector<16x256xf32>
    %298 = arith.mulf %293, %297 : vector<16x256xf32>
    %c4_i32 = arith.constant 4 : i32
    %c1_i32_82 = arith.constant 1 : i32
    %299 = arith.addi %c4_i32, %c1_i32_82 : i32
    %300 = arith.index_cast %299 : i32 to index
    %c0_83 = arith.constant 0 : index
    %c0_84 = arith.constant 0 : index
    %301 = vector.load %arg1[%300, %c0_83, %c0_84] : memref<8x16x1024xf32, #tpu.memory_space<vmem>>, vector<1x16x1024xf32>
    %302 = vector.shape_cast %301 : vector<1x16x1024xf32> to vector<16x1024xf32>
    %303 = arith.truncf %265 : vector<16x256xf32> to vector<16x256xbf16>
    %c0_85 = arith.constant 0 : index
    %c0_86 = arith.constant 0 : index
    %304 = vector.load %arg2[%c0_85, %c0_86] : memref<256x1024xbf16, #tpu.memory_space<vmem>>, vector<256x1024xbf16>
    %cst_87 = arith.constant dense<0.000000e+00> : vector<16x1024xf32>
    %305 = tpu.matmul %303, %304, %cst_87 {dimension_numbers = #tpu.dot_dimension_numbers<[1], [0], [0], [1], [0, 0, 1, 1], [], []>} : vector<16x256xbf16>, vector<256x1024xbf16>, vector<16x1024xf32> -> vector<16x1024xf32>
    %306 = arith.addf %302, %305 : vector<16x1024xf32>
    %307 = vector.extract_strided_slice %306 {offsets = [0, 0], sizes = [16, 256], strides = [1, 1]} : vector<16x1024xf32> to vector<16x256xf32>
    %308 = arith.negf %307 : vector<16x256xf32>
    %309 = math.exp %308 : vector<16x256xf32>
    %cst_88 = arith.constant 1.000000e+00 : f32
    %310 = vector.broadcast %cst_88 : f32 to vector<16x256xf32>
    %311 = arith.addf %310, %309 : vector<16x256xf32>
    %312 = arith.divf %310, %311 : vector<16x256xf32>
    %313 = vector.extract_strided_slice %306 {offsets = [0, 256], sizes = [16, 256], strides = [1, 1]} : vector<16x1024xf32> to vector<16x256xf32>
    %314 = arith.negf %313 : vector<16x256xf32>
    %315 = math.exp %314 : vector<16x256xf32>
    %cst_89 = arith.constant 1.000000e+00 : f32
    %316 = vector.broadcast %cst_89 : f32 to vector<16x256xf32>
    %317 = arith.addf %316, %315 : vector<16x256xf32>
    %318 = arith.divf %316, %317 : vector<16x256xf32>
    %319 = vector.extract_strided_slice %306 {offsets = [0, 512], sizes = [16, 256], strides = [1, 1]} : vector<16x1024xf32> to vector<16x256xf32>
    %320 = math.tanh %319 : vector<16x256xf32>
    %321 = vector.extract_strided_slice %306 {offsets = [0, 768], sizes = [16, 256], strides = [1, 1]} : vector<16x1024xf32> to vector<16x256xf32>
    %322 = arith.negf %321 : vector<16x256xf32>
    %323 = math.exp %322 : vector<16x256xf32>
    %cst_90 = arith.constant 1.000000e+00 : f32
    %324 = vector.broadcast %cst_90 : f32 to vector<16x256xf32>
    %325 = arith.addf %324, %323 : vector<16x256xf32>
    %326 = arith.divf %324, %325 : vector<16x256xf32>
    %327 = arith.mulf %318, %263 : vector<16x256xf32>
    %328 = arith.mulf %312, %320 : vector<16x256xf32>
    %329 = arith.addf %327, %328 : vector<16x256xf32>
    %330 = math.tanh %329 : vector<16x256xf32>
    %331 = arith.mulf %326, %330 : vector<16x256xf32>
    %332 = arith.truncf %265 : vector<16x256xf32> to vector<16x256xbf16>
    %c0_91 = arith.constant 0 : index
    %c0_92 = arith.constant 0 : index
    %333 = vector.load %arg3[%c0_91, %c0_92] : memref<256x1024xbf16, #tpu.memory_space<vmem>>, vector<256x1024xbf16>
    %cst_93 = arith.constant dense<0.000000e+00> : vector<16x1024xf32>
    %334 = tpu.matmul %332, %333, %cst_93 {dimension_numbers = #tpu.dot_dimension_numbers<[1], [0], [0], [1], [0, 0, 1, 1], [], []>} : vector<16x256xbf16>, vector<256x1024xbf16>, vector<16x1024xf32> -> vector<16x1024xf32>
    %335 = arith.truncf %298 : vector<16x256xf32> to vector<16x256xbf16>
    %c0_94 = arith.constant 0 : index
    %c0_95 = arith.constant 0 : index
    %336 = vector.load %arg4[%c0_94, %c0_95] : memref<256x1024xbf16, #tpu.memory_space<vmem>>, vector<256x1024xbf16>
    %cst_96 = arith.constant dense<0.000000e+00> : vector<16x1024xf32>
    %337 = tpu.matmul %335, %336, %cst_96 {dimension_numbers = #tpu.dot_dimension_numbers<[1], [0], [0], [1], [0, 0, 1, 1], [], []>} : vector<16x256xbf16>, vector<256x1024xbf16>, vector<16x1024xf32> -> vector<16x1024xf32>
    %338 = arith.addf %334, %337 : vector<16x1024xf32>
    %339 = arith.addf %338, %2 : vector<16x1024xf32>
    %340 = vector.extract_strided_slice %339 {offsets = [0, 0], sizes = [16, 256], strides = [1, 1]} : vector<16x1024xf32> to vector<16x256xf32>
    %341 = arith.negf %340 : vector<16x256xf32>
    %342 = math.exp %341 : vector<16x256xf32>
    %cst_97 = arith.constant 1.000000e+00 : f32
    %343 = vector.broadcast %cst_97 : f32 to vector<16x256xf32>
    %344 = arith.addf %343, %342 : vector<16x256xf32>
    %345 = arith.divf %343, %344 : vector<16x256xf32>
    %346 = vector.extract_strided_slice %339 {offsets = [0, 256], sizes = [16, 256], strides = [1, 1]} : vector<16x1024xf32> to vector<16x256xf32>
    %347 = arith.negf %346 : vector<16x256xf32>
    %348 = math.exp %347 : vector<16x256xf32>
    %cst_98 = arith.constant 1.000000e+00 : f32
    %349 = vector.broadcast %cst_98 : f32 to vector<16x256xf32>
    %350 = arith.addf %349, %348 : vector<16x256xf32>
    %351 = arith.divf %349, %350 : vector<16x256xf32>
    %352 = vector.extract_strided_slice %339 {offsets = [0, 512], sizes = [16, 256], strides = [1, 1]} : vector<16x1024xf32> to vector<16x256xf32>
    %353 = math.tanh %352 : vector<16x256xf32>
    %354 = vector.extract_strided_slice %339 {offsets = [0, 768], sizes = [16, 256], strides = [1, 1]} : vector<16x1024xf32> to vector<16x256xf32>
    %355 = arith.negf %354 : vector<16x256xf32>
    %356 = math.exp %355 : vector<16x256xf32>
    %cst_99 = arith.constant 1.000000e+00 : f32
    %357 = vector.broadcast %cst_99 : f32 to vector<16x256xf32>
    %358 = arith.addf %357, %356 : vector<16x256xf32>
    %359 = arith.divf %357, %358 : vector<16x256xf32>
    %360 = arith.mulf %351, %296 : vector<16x256xf32>
    %361 = arith.mulf %345, %353 : vector<16x256xf32>
    %362 = arith.addf %360, %361 : vector<16x256xf32>
    %363 = math.tanh %362 : vector<16x256xf32>
    %364 = arith.mulf %359, %363 : vector<16x256xf32>
    %c5_i32 = arith.constant 5 : i32
    %c1_i32_100 = arith.constant 1 : i32
    %365 = arith.addi %c5_i32, %c1_i32_100 : i32
    %366 = arith.index_cast %365 : i32 to index
    %c0_101 = arith.constant 0 : index
    %c0_102 = arith.constant 0 : index
    %367 = vector.load %arg1[%366, %c0_101, %c0_102] : memref<8x16x1024xf32, #tpu.memory_space<vmem>>, vector<1x16x1024xf32>
    %368 = vector.shape_cast %367 : vector<1x16x1024xf32> to vector<16x1024xf32>
    %369 = arith.truncf %331 : vector<16x256xf32> to vector<16x256xbf16>
    %c0_103 = arith.constant 0 : index
    %c0_104 = arith.constant 0 : index
    %370 = vector.load %arg2[%c0_103, %c0_104] : memref<256x1024xbf16, #tpu.memory_space<vmem>>, vector<256x1024xbf16>
    %cst_105 = arith.constant dense<0.000000e+00> : vector<16x1024xf32>
    %371 = tpu.matmul %369, %370, %cst_105 {dimension_numbers = #tpu.dot_dimension_numbers<[1], [0], [0], [1], [0, 0, 1, 1], [], []>} : vector<16x256xbf16>, vector<256x1024xbf16>, vector<16x1024xf32> -> vector<16x1024xf32>
    %372 = arith.addf %368, %371 : vector<16x1024xf32>
    %373 = vector.extract_strided_slice %372 {offsets = [0, 0], sizes = [16, 256], strides = [1, 1]} : vector<16x1024xf32> to vector<16x256xf32>
    %374 = arith.negf %373 : vector<16x256xf32>
    %375 = math.exp %374 : vector<16x256xf32>
    %cst_106 = arith.constant 1.000000e+00 : f32
    %376 = vector.broadcast %cst_106 : f32 to vector<16x256xf32>
    %377 = arith.addf %376, %375 : vector<16x256xf32>
    %378 = arith.divf %376, %377 : vector<16x256xf32>
    %379 = vector.extract_strided_slice %372 {offsets = [0, 256], sizes = [16, 256], strides = [1, 1]} : vector<16x1024xf32> to vector<16x256xf32>
    %380 = arith.negf %379 : vector<16x256xf32>
    %381 = math.exp %380 : vector<16x256xf32>
    %cst_107 = arith.constant 1.000000e+00 : f32
    %382 = vector.broadcast %cst_107 : f32 to vector<16x256xf32>
    %383 = arith.addf %382, %381 : vector<16x256xf32>
    %384 = arith.divf %382, %383 : vector<16x256xf32>
    %385 = vector.extract_strided_slice %372 {offsets = [0, 512], sizes = [16, 256], strides = [1, 1]} : vector<16x1024xf32> to vector<16x256xf32>
    %386 = math.tanh %385 : vector<16x256xf32>
    %387 = vector.extract_strided_slice %372 {offsets = [0, 768], sizes = [16, 256], strides = [1, 1]} : vector<16x1024xf32> to vector<16x256xf32>
    %388 = arith.negf %387 : vector<16x256xf32>
    %389 = math.exp %388 : vector<16x256xf32>
    %cst_108 = arith.constant 1.000000e+00 : f32
    %390 = vector.broadcast %cst_108 : f32 to vector<16x256xf32>
    %391 = arith.addf %390, %389 : vector<16x256xf32>
    %392 = arith.divf %390, %391 : vector<16x256xf32>
    %393 = arith.mulf %384, %329 : vector<16x256xf32>
    %394 = arith.mulf %378, %386 : vector<16x256xf32>
    %395 = arith.addf %393, %394 : vector<16x256xf32>
    %396 = math.tanh %395 : vector<16x256xf32>
    %397 = arith.mulf %392, %396 : vector<16x256xf32>
    %398 = arith.truncf %331 : vector<16x256xf32> to vector<16x256xbf16>
    %c0_109 = arith.constant 0 : index
    %c0_110 = arith.constant 0 : index
    %399 = vector.load %arg3[%c0_109, %c0_110] : memref<256x1024xbf16, #tpu.memory_space<vmem>>, vector<256x1024xbf16>
    %cst_111 = arith.constant dense<0.000000e+00> : vector<16x1024xf32>
    %400 = tpu.matmul %398, %399, %cst_111 {dimension_numbers = #tpu.dot_dimension_numbers<[1], [0], [0], [1], [0, 0, 1, 1], [], []>} : vector<16x256xbf16>, vector<256x1024xbf16>, vector<16x1024xf32> -> vector<16x1024xf32>
    %401 = arith.truncf %364 : vector<16x256xf32> to vector<16x256xbf16>
    %c0_112 = arith.constant 0 : index
    %c0_113 = arith.constant 0 : index
    %402 = vector.load %arg4[%c0_112, %c0_113] : memref<256x1024xbf16, #tpu.memory_space<vmem>>, vector<256x1024xbf16>
    %cst_114 = arith.constant dense<0.000000e+00> : vector<16x1024xf32>
    %403 = tpu.matmul %401, %402, %cst_114 {dimension_numbers = #tpu.dot_dimension_numbers<[1], [0], [0], [1], [0, 0, 1, 1], [], []>} : vector<16x256xbf16>, vector<256x1024xbf16>, vector<16x1024xf32> -> vector<16x1024xf32>
    %404 = arith.addf %400, %403 : vector<16x1024xf32>
    %405 = arith.addf %404, %2 : vector<16x1024xf32>
    %406 = vector.extract_strided_slice %405 {offsets = [0, 0], sizes = [16, 256], strides = [1, 1]} : vector<16x1024xf32> to vector<16x256xf32>
    %407 = arith.negf %406 : vector<16x256xf32>
    %408 = math.exp %407 : vector<16x256xf32>
    %cst_115 = arith.constant 1.000000e+00 : f32
    %409 = vector.broadcast %cst_115 : f32 to vector<16x256xf32>
    %410 = arith.addf %409, %408 : vector<16x256xf32>
    %411 = arith.divf %409, %410 : vector<16x256xf32>
    %412 = vector.extract_strided_slice %405 {offsets = [0, 256], sizes = [16, 256], strides = [1, 1]} : vector<16x1024xf32> to vector<16x256xf32>
    %413 = arith.negf %412 : vector<16x256xf32>
    %414 = math.exp %413 : vector<16x256xf32>
    %cst_116 = arith.constant 1.000000e+00 : f32
    %415 = vector.broadcast %cst_116 : f32 to vector<16x256xf32>
    %416 = arith.addf %415, %414 : vector<16x256xf32>
    %417 = arith.divf %415, %416 : vector<16x256xf32>
    %418 = vector.extract_strided_slice %405 {offsets = [0, 512], sizes = [16, 256], strides = [1, 1]} : vector<16x1024xf32> to vector<16x256xf32>
    %419 = math.tanh %418 : vector<16x256xf32>
    %420 = vector.extract_strided_slice %405 {offsets = [0, 768], sizes = [16, 256], strides = [1, 1]} : vector<16x1024xf32> to vector<16x256xf32>
    %421 = arith.negf %420 : vector<16x256xf32>
    %422 = math.exp %421 : vector<16x256xf32>
    %cst_117 = arith.constant 1.000000e+00 : f32
    %423 = vector.broadcast %cst_117 : f32 to vector<16x256xf32>
    %424 = arith.addf %423, %422 : vector<16x256xf32>
    %425 = arith.divf %423, %424 : vector<16x256xf32>
    %426 = arith.mulf %417, %362 : vector<16x256xf32>
    %427 = arith.mulf %411, %419 : vector<16x256xf32>
    %428 = arith.addf %426, %427 : vector<16x256xf32>
    %429 = math.tanh %428 : vector<16x256xf32>
    %430 = arith.mulf %425, %429 : vector<16x256xf32>
    %c6_i32 = arith.constant 6 : i32
    %c1_i32_118 = arith.constant 1 : i32
    %431 = arith.addi %c6_i32, %c1_i32_118 : i32
    %432 = arith.index_cast %431 : i32 to index
    %c0_119 = arith.constant 0 : index
    %c0_120 = arith.constant 0 : index
    %433 = vector.load %arg1[%432, %c0_119, %c0_120] : memref<8x16x1024xf32, #tpu.memory_space<vmem>>, vector<1x16x1024xf32>
    %434 = vector.shape_cast %433 : vector<1x16x1024xf32> to vector<16x1024xf32>
    %435 = arith.truncf %397 : vector<16x256xf32> to vector<16x256xbf16>
    %c0_121 = arith.constant 0 : index
    %c0_122 = arith.constant 0 : index
    %436 = vector.load %arg2[%c0_121, %c0_122] : memref<256x1024xbf16, #tpu.memory_space<vmem>>, vector<256x1024xbf16>
    %cst_123 = arith.constant dense<0.000000e+00> : vector<16x1024xf32>
    %437 = tpu.matmul %435, %436, %cst_123 {dimension_numbers = #tpu.dot_dimension_numbers<[1], [0], [0], [1], [0, 0, 1, 1], [], []>} : vector<16x256xbf16>, vector<256x1024xbf16>, vector<16x1024xf32> -> vector<16x1024xf32>
    %438 = arith.addf %434, %437 : vector<16x1024xf32>
    %439 = vector.extract_strided_slice %438 {offsets = [0, 0], sizes = [16, 256], strides = [1, 1]} : vector<16x1024xf32> to vector<16x256xf32>
    %440 = arith.negf %439 : vector<16x256xf32>
    %441 = math.exp %440 : vector<16x256xf32>
    %cst_124 = arith.constant 1.000000e+00 : f32
    %442 = vector.broadcast %cst_124 : f32 to vector<16x256xf32>
    %443 = arith.addf %442, %441 : vector<16x256xf32>
    %444 = arith.divf %442, %443 : vector<16x256xf32>
    %445 = vector.extract_strided_slice %438 {offsets = [0, 256], sizes = [16, 256], strides = [1, 1]} : vector<16x1024xf32> to vector<16x256xf32>
    %446 = arith.negf %445 : vector<16x256xf32>
    %447 = math.exp %446 : vector<16x256xf32>
    %cst_125 = arith.constant 1.000000e+00 : f32
    %448 = vector.broadcast %cst_125 : f32 to vector<16x256xf32>
    %449 = arith.addf %448, %447 : vector<16x256xf32>
    %450 = arith.divf %448, %449 : vector<16x256xf32>
    %451 = vector.extract_strided_slice %438 {offsets = [0, 512], sizes = [16, 256], strides = [1, 1]} : vector<16x1024xf32> to vector<16x256xf32>
    %452 = math.tanh %451 : vector<16x256xf32>
    %453 = vector.extract_strided_slice %438 {offsets = [0, 768], sizes = [16, 256], strides = [1, 1]} : vector<16x1024xf32> to vector<16x256xf32>
    %454 = arith.negf %453 : vector<16x256xf32>
    %455 = math.exp %454 : vector<16x256xf32>
    %cst_126 = arith.constant 1.000000e+00 : f32
    %456 = vector.broadcast %cst_126 : f32 to vector<16x256xf32>
    %457 = arith.addf %456, %455 : vector<16x256xf32>
    %458 = arith.divf %456, %457 : vector<16x256xf32>
    %459 = arith.mulf %450, %395 : vector<16x256xf32>
    %460 = arith.mulf %444, %452 : vector<16x256xf32>
    %461 = arith.addf %459, %460 : vector<16x256xf32>
    %462 = math.tanh %461 : vector<16x256xf32>
    %463 = arith.mulf %458, %462 : vector<16x256xf32>
    %464 = arith.truncf %397 : vector<16x256xf32> to vector<16x256xbf16>
    %c0_127 = arith.constant 0 : index
    %c0_128 = arith.constant 0 : index
    %465 = vector.load %arg3[%c0_127, %c0_128] : memref<256x1024xbf16, #tpu.memory_space<vmem>>, vector<256x1024xbf16>
    %cst_129 = arith.constant dense<0.000000e+00> : vector<16x1024xf32>
    %466 = tpu.matmul %464, %465, %cst_129 {dimension_numbers = #tpu.dot_dimension_numbers<[1], [0], [0], [1], [0, 0, 1, 1], [], []>} : vector<16x256xbf16>, vector<256x1024xbf16>, vector<16x1024xf32> -> vector<16x1024xf32>
    %467 = arith.truncf %430 : vector<16x256xf32> to vector<16x256xbf16>
    %c0_130 = arith.constant 0 : index
    %c0_131 = arith.constant 0 : index
    %468 = vector.load %arg4[%c0_130, %c0_131] : memref<256x1024xbf16, #tpu.memory_space<vmem>>, vector<256x1024xbf16>
    %cst_132 = arith.constant dense<0.000000e+00> : vector<16x1024xf32>
    %469 = tpu.matmul %467, %468, %cst_132 {dimension_numbers = #tpu.dot_dimension_numbers<[1], [0], [0], [1], [0, 0, 1, 1], [], []>} : vector<16x256xbf16>, vector<256x1024xbf16>, vector<16x1024xf32> -> vector<16x1024xf32>
    %470 = arith.addf %466, %469 : vector<16x1024xf32>
    %471 = arith.addf %470, %2 : vector<16x1024xf32>
    %472 = vector.extract_strided_slice %471 {offsets = [0, 0], sizes = [16, 256], strides = [1, 1]} : vector<16x1024xf32> to vector<16x256xf32>
    %473 = arith.negf %472 : vector<16x256xf32>
    %474 = math.exp %473 : vector<16x256xf32>
    %cst_133 = arith.constant 1.000000e+00 : f32
    %475 = vector.broadcast %cst_133 : f32 to vector<16x256xf32>
    %476 = arith.addf %475, %474 : vector<16x256xf32>
    %477 = arith.divf %475, %476 : vector<16x256xf32>
    %478 = vector.extract_strided_slice %471 {offsets = [0, 256], sizes = [16, 256], strides = [1, 1]} : vector<16x1024xf32> to vector<16x256xf32>
    %479 = arith.negf %478 : vector<16x256xf32>
    %480 = math.exp %479 : vector<16x256xf32>
    %cst_134 = arith.constant 1.000000e+00 : f32
    %481 = vector.broadcast %cst_134 : f32 to vector<16x256xf32>
    %482 = arith.addf %481, %480 : vector<16x256xf32>
    %483 = arith.divf %481, %482 : vector<16x256xf32>
    %484 = vector.extract_strided_slice %471 {offsets = [0, 512], sizes = [16, 256], strides = [1, 1]} : vector<16x1024xf32> to vector<16x256xf32>
    %485 = math.tanh %484 : vector<16x256xf32>
    %486 = vector.extract_strided_slice %471 {offsets = [0, 768], sizes = [16, 256], strides = [1, 1]} : vector<16x1024xf32> to vector<16x256xf32>
    %487 = arith.negf %486 : vector<16x256xf32>
    %488 = math.exp %487 : vector<16x256xf32>
    %cst_135 = arith.constant 1.000000e+00 : f32
    %489 = vector.broadcast %cst_135 : f32 to vector<16x256xf32>
    %490 = arith.addf %489, %488 : vector<16x256xf32>
    %491 = arith.divf %489, %490 : vector<16x256xf32>
    %492 = arith.mulf %483, %428 : vector<16x256xf32>
    %493 = arith.mulf %477, %485 : vector<16x256xf32>
    %494 = arith.addf %492, %493 : vector<16x256xf32>
    %495 = math.tanh %494 : vector<16x256xf32>
    %496 = arith.mulf %491, %495 : vector<16x256xf32>
    %c7_i32 = arith.constant 7 : i32
    %497 = arith.truncf %463 : vector<16x256xf32> to vector<16x256xbf16>
    %c0_136 = arith.constant 0 : index
    %c0_137 = arith.constant 0 : index
    %498 = vector.load %arg3[%c0_136, %c0_137] : memref<256x1024xbf16, #tpu.memory_space<vmem>>, vector<256x1024xbf16>
    %cst_138 = arith.constant dense<0.000000e+00> : vector<16x1024xf32>
    %499 = tpu.matmul %497, %498, %cst_138 {dimension_numbers = #tpu.dot_dimension_numbers<[1], [0], [0], [1], [0, 0, 1, 1], [], []>} : vector<16x256xbf16>, vector<256x1024xbf16>, vector<16x1024xf32> -> vector<16x1024xf32>
    %500 = arith.truncf %496 : vector<16x256xf32> to vector<16x256xbf16>
    %c0_139 = arith.constant 0 : index
    %c0_140 = arith.constant 0 : index
    %501 = vector.load %arg4[%c0_139, %c0_140] : memref<256x1024xbf16, #tpu.memory_space<vmem>>, vector<256x1024xbf16>
    %cst_141 = arith.constant dense<0.000000e+00> : vector<16x1024xf32>
    %502 = tpu.matmul %500, %501, %cst_141 {dimension_numbers = #tpu.dot_dimension_numbers<[1], [0], [0], [1], [0, 0, 1, 1], [], []>} : vector<16x256xbf16>, vector<256x1024xbf16>, vector<16x1024xf32> -> vector<16x1024xf32>
    %503 = arith.addf %499, %502 : vector<16x1024xf32>
    %504 = arith.addf %503, %2 : vector<16x1024xf32>
    %505 = vector.extract_strided_slice %504 {offsets = [0, 0], sizes = [16, 256], strides = [1, 1]} : vector<16x1024xf32> to vector<16x256xf32>
    %506 = arith.negf %505 : vector<16x256xf32>
    %507 = math.exp %506 : vector<16x256xf32>
    %cst_142 = arith.constant 1.000000e+00 : f32
    %508 = vector.broadcast %cst_142 : f32 to vector<16x256xf32>
    %509 = arith.addf %508, %507 : vector<16x256xf32>
    %510 = arith.divf %508, %509 : vector<16x256xf32>
    %511 = vector.extract_strided_slice %504 {offsets = [0, 256], sizes = [16, 256], strides = [1, 1]} : vector<16x1024xf32> to vector<16x256xf32>
    %512 = arith.negf %511 : vector<16x256xf32>
    %513 = math.exp %512 : vector<16x256xf32>
    %cst_143 = arith.constant 1.000000e+00 : f32
    %514 = vector.broadcast %cst_143 : f32 to vector<16x256xf32>
    %515 = arith.addf %514, %513 : vector<16x256xf32>
    %516 = arith.divf %514, %515 : vector<16x256xf32>
    %517 = vector.extract_strided_slice %504 {offsets = [0, 512], sizes = [16, 256], strides = [1, 1]} : vector<16x1024xf32> to vector<16x256xf32>
    %518 = math.tanh %517 : vector<16x256xf32>
    %519 = vector.extract_strided_slice %504 {offsets = [0, 768], sizes = [16, 256], strides = [1, 1]} : vector<16x1024xf32> to vector<16x256xf32>
    %520 = arith.negf %519 : vector<16x256xf32>
    %521 = math.exp %520 : vector<16x256xf32>
    %cst_144 = arith.constant 1.000000e+00 : f32
    %522 = vector.broadcast %cst_144 : f32 to vector<16x256xf32>
    %523 = arith.addf %522, %521 : vector<16x256xf32>
    %524 = arith.divf %522, %523 : vector<16x256xf32>
    %525 = arith.mulf %516, %494 : vector<16x256xf32>
    %526 = arith.mulf %510, %518 : vector<16x256xf32>
    %527 = arith.addf %525, %526 : vector<16x256xf32>
    %528 = math.tanh %527 : vector<16x256xf32>
    %529 = arith.mulf %524, %528 : vector<16x256xf32>
    %530 = arith.truncf %529 : vector<16x256xf32> to vector<16x256xbf16>
    %c0_145 = arith.constant 0 : index
    %c0_146 = arith.constant 0 : index
    %531 = vector.load %arg6[%c0_145, %c0_146] : memref<256x128xbf16, #tpu.memory_space<vmem>>, vector<256x128xbf16>
    %cst_147 = arith.constant dense<0.000000e+00> : vector<16x128xf32>
    %532 = tpu.matmul %530, %531, %cst_147 {dimension_numbers = #tpu.dot_dimension_numbers<[1], [0], [0], [1], [0, 0, 1, 1], [], []>} : vector<16x256xbf16>, vector<256x128xbf16>, vector<16x128xf32> -> vector<16x128xf32>
    %c0_148 = arith.constant 0 : index
    %c0_149 = arith.constant 0 : index
    %533 = vector.load %arg7[%c0_148, %c0_149] : memref<1x128xf32, #tpu.memory_space<vmem>>, vector<1x128xf32>
    %534 = vector.broadcast %533 : vector<1x128xf32> to vector<16x128xf32>
    %535 = arith.addf %532, %534 : vector<16x128xf32>
    %c0_150 = arith.constant 0 : index
    %c0_151 = arith.constant 0 : index
    %536 = vector.load %arg8[%c0_150, %c0_151] : memref<16x128xf32, #tpu.memory_space<vmem>>, vector<16x128xf32>
    tpu.vector_store %arg8[%c0_150, %c0_151], %535 {strides = array<i32>} : memref<16x128xf32, #tpu.memory_space<vmem>>, vector<16x128xf32>,
    return
  }
  func.func @transform_0(%arg0: i32) -> (i32, i32, i32) {
    %c0_i32 = arith.constant 0 : i32
    %c0_i32_0 = arith.constant 0 : i32
    %c0_i32_1 = arith.constant 0 : i32
    return %c0_i32, %arg0, %c0_i32_0 : i32, i32, i32
  }
  func.func @transform_1(%arg0: i32) -> (i32, i32) {
    %c0_i32 = arith.constant 0 : i32
    %c0_i32_0 = arith.constant 0 : i32
    %c0_i32_1 = arith.constant 0 : i32
    return %c0_i32, %c0_i32_0 : i32, i32
  }
  func.func @transform_2(%arg0: i32) -> (i32, i32) {
    %c0_i32 = arith.constant 0 : i32
    %c0_i32_0 = arith.constant 0 : i32
    %c0_i32_1 = arith.constant 0 : i32
    return %c0_i32, %c0_i32_0 : i32, i32
  }
  func.func @transform_3(%arg0: i32) -> (i32, i32) {
    %c0_i32 = arith.constant 0 : i32
    %c0_i32_0 = arith.constant 0 : i32
    %c0_i32_1 = arith.constant 0 : i32
    return %c0_i32, %c0_i32_0 : i32, i32
  }
  func.func @transform_4(%arg0: i32) -> (i32, i32) {
    %c0_i32 = arith.constant 0 : i32
    %c0_i32_0 = arith.constant 0 : i32
    %c0_i32_1 = arith.constant 0 : i32
    return %c0_i32, %c0_i32_0 : i32, i32
  }
  func.func @transform_5(%arg0: i32) -> (i32, i32) {
    %c0_i32 = arith.constant 0 : i32
    %c0_i32_0 = arith.constant 0 : i32
    %c0_i32_1 = arith.constant 0 : i32
    return %c0_i32, %c0_i32_0 : i32, i32
  }
  func.func @transform_6(%arg0: i32) -> (i32, i32) {
    %c0_i32 = arith.constant 0 : i32
    %c0_i32_0 = arith.constant 0 : i32
    %c0_i32_1 = arith.constant 0 : i32
    return %c0_i32, %c0_i32_0 : i32, i32
  }
  func.func @transform_7(%arg0: i32) -> (i32, i32) {
    %c0_i32 = arith.constant 0 : i32
    %c0_i32_0 = arith.constant 0 : i32
    return %arg0, %c0_i32 : i32, i32
  }
}

</mosaic_0001>

<llo_original>
// kernel: tpu_custom_call.1
$region0: #{tpu_custom_call.1}
  #allocation0 [shape = 'u32[]', space=smem, size = 0x4, offset = 0x4, fixed_abs, tag = 'smem constant byte address 0x4 - core index']
  #allocation1 [shape = 'u32[144,128]{1,0:T(1,128)}', space=vmem, size = 0x12000, scoped, tag = 'internal scratch']
  %s0 = inlined_call_operand.hbm [shape: f32[8,16,1024], index: 0, kind: input, shape index: {}]
  %s1 = inlined_call_operand.hbm [shape: bf16[256,1024], index: 1, kind: input, shape index: {}]
  %s2 = inlined_call_operand.hbm [shape: bf16[256,1024], index: 2, kind: input, shape index: {}]
  %s3 = inlined_call_operand.hbm [shape: bf16[256,1024], index: 3, kind: input, shape index: {}]
  %s4 = inlined_call_operand.vmem [shape: f32[1,1024], index: 4, kind: input, shape index: {}]
  %s5 = inlined_call_operand.hbm [shape: bf16[256,128], index: 5, kind: input, shape index: {}]
  %s6 = inlined_call_operand.vmem [shape: f32[1,128], index: 6, kind: input, shape index: {}]
  %s7 = inlined_call_operand.hbm [shape: f32[16,128], index: 7, kind: output, shape index: {}]
  %s8 = sld [smem:[#allocation0]]
  $region58: #{tpu_custom_call.1} parent=0
    _
  %s10 = ssub.s32 1, %s8
  %s11 = scalar_select 0, %s10, %s8
  $region1: #{tpu_custom_call.1} parent=0
    #allocation2 [shape = 'u8[524288]{0}', space=vmem, size = 0x80000, scoped, tag = 'input window, operand 0, single buffered']
    #allocation3 [shape = 's32[1]{0}', space=sflag, size = 0x4, scoped, tag = 'scoped memory for tpu_custom_call.1']
    #allocation4 [shape = 's32[1]{0}', space=sflag, size = 0x4, scoped, tag = 'scoped memory for tpu_custom_call.1']
    #allocation5 [shape = 'u8[524288]{0}', space=vmem, size = 0x80000, scoped, tag = 'input window, operand 1, single buffered']
    #allocation6 [shape = 's32[1]{0}', space=sflag, size = 0x4, scoped, tag = 'scoped memory for tpu_custom_call.1']
    #allocation7 [shape = 'u8[524288]{0}', space=vmem, size = 0x80000, scoped, tag = 'input window, operand 2, single buffered']
    #allocation8 [shape = 'u8[524288]{0}', space=vmem, size = 0x80000, scoped, tag = 'input window, operand 3, single buffered']
    #allocation9 [shape = 's32[1]{0}', space=sflag, size = 0x4, scoped, tag = 'scoped memory for tpu_custom_call.1']
    #allocation10 [shape = 'u8[65536]{0}', space=vmem, size = 0x10000, scoped, tag = 'input window, operand 5, single buffered']
    #allocation11 [shape = 'u8[8192]{0}', space=vmem, size = 0x2000, scoped, tag = 'output window, operand 0, single buffered']
    %12 = vsyncpa [#allocation3], 0
    %13 = vsyncpa [#allocation6], 0
    %14 = vsyncpa [#allocation9], 0
    %15 = vsyncpa [#allocation4], 0
    // Predicated region
    $region2: #{tpu_custom_call.1} parent=1 // pred_check
      _
    $region3: #{tpu_custom_call.1} parent=1 // pred_check_branch
      %17 = sbr.rel (0) target = $region5
    $region4: #{tpu_custom_call.1} parent=1 // pred_region
      %s19 = ssub.s32 16384, 16384
      %20 = vsyncadd [#allocation3], %s19
      %s21 = sshll.u32 [#allocation2], 4
      %s22 = int_to_ptr.vmem [resolvable:$true] %s21
      %27 = dma.hbm_to_vmem [thread:$0]  %s0, 16384, %s22, [#allocation3], 1024, 1024, 64
    $region5: #{tpu_custom_call.1} parent=1 // pred_fallthru
      _
    // Predicated region
    $region6: #{tpu_custom_call.1} parent=1 // pred_check
      _
    $region7: #{tpu_custom_call.1} parent=1 // pred_check_branch
      %29 = sbr.rel (0) target = $region9
    $region8: #{tpu_custom_call.1} parent=1 // pred_region
      %s31 = ssub.s32 16384, 16384
      %32 = vsyncadd [#allocation6], %s31
      %s33 = sshll.u32 [#allocation5], 4
      %s34 = int_to_ptr.vmem [resolvable:$true] %s33
      %39 = dma.hbm_to_vmem [thread:$0]  %s1, 16384, %s34, [#allocation6], 512, 512, 32
    $region9: #{tpu_custom_call.1} parent=1 // pred_fallthru
      _
    // Predicated region
    $region10: #{tpu_custom_call.1} parent=1 // pred_check
      _
    $region11: #{tpu_custom_call.1} parent=1 // pred_check_branch
      %41 = sbr.rel (0) target = $region13
    $region12: #{tpu_custom_call.1} parent=1 // pred_region
      %s43 = ssub.s32 16384, 16384
      %44 = vsyncadd [#allocation6], %s43
      %s45 = sshll.u32 [#allocation7], 4
      %s46 = int_to_ptr.vmem [resolvable:$true] %s45
      %51 = dma.hbm_to_vmem [thread:$0]  %s2, 16384, %s46, [#allocation6], 512, 512, 32
    $region13: #{tpu_custom_call.1} parent=1 // pred_fallthru
      _
    // Predicated region
    $region14: #{tpu_custom_call.1} parent=1 // pred_check
      _
    $region15: #{tpu_custom_call.1} parent=1 // pred_check_branch
      %53 = sbr.rel (0) target = $region17
    $region16: #{tpu_custom_call.1} parent=1 // pred_region
      %s55 = ssub.s32 16384, 16384
      %56 = vsyncadd [#allocation9], %s55
      %s57 = sshll.u32 [#allocation8], 4
      %s58 = int_to_ptr.vmem [resolvable:$true] %s57
      %63 = dma.hbm_to_vmem [thread:$0]  %s3, 16384, %s58, [#allocation9], 512, 512, 32
    $region17: #{tpu_custom_call.1} parent=1 // pred_fallthru
      _
    // Predicated region
    $region18: #{tpu_custom_call.1} parent=1 // pred_check
      _
    $region19: #{tpu_custom_call.1} parent=1 // pred_check_branch
      %65 = sbr.rel (0) target = $region21
    $region20: #{tpu_custom_call.1} parent=1 // pred_region
      _
    $region21: #{tpu_custom_call.1} parent=1 // pred_fallthru
      _
    // Predicated region
    $region22: #{tpu_custom_call.1} parent=1 // pred_check
      _
    $region23: #{tpu_custom_call.1} parent=1 // pred_check_branch
      %67 = sbr.rel (0) target = $region25
    $region24: #{tpu_custom_call.1} parent=1 // pred_region
      %s69 = ssub.s32 2048, 2048
      %70 = vsyncadd [#allocation9], %s69
      %s71 = sshll.u32 [#allocation10], 4
      %s72 = int_to_ptr.vmem [resolvable:$true] %s71
      %77 = dma.hbm_to_vmem [thread:$0]  %s5, 2048, %s72, [#allocation9], 64, 64, 4
    $region25: #{tpu_custom_call.1} parent=1 // pred_fallthru
      _
    // Predicated region
    $region26: #{tpu_custom_call.1} parent=1 // pred_check
      _
    $region27: #{tpu_custom_call.1} parent=1 // pred_check_branch
      %79 = sbr.rel (0) target = $region29
    $region28: #{tpu_custom_call.1} parent=1 // pred_region
      _
    $region29: #{tpu_custom_call.1} parent=1 // pred_fallthru
      _
    // Predicated region
    $region30: #{tpu_custom_call.1} parent=1 // pred_check
      _
    $region31: #{tpu_custom_call.1} parent=1 // pred_check_branch
      %81 = sbr.rel (0) target = $region33
    $region32: #{tpu_custom_call.1} parent=1 // pred_region
      %82 = dma.done [#allocation3], 16384
    $region33: #{tpu_custom_call.1} parent=1 // pred_fallthru
      _
    // Predicated region
    $region34: #{tpu_custom_call.1} parent=1 // pred_check
      _
    $region35: #{tpu_custom_call.1} parent=1 // pred_check_branch
      %84 = sbr.rel (0) target = $region37
    $region36: #{tpu_custom_call.1} parent=1 // pred_region
      %85 = dma.done [#allocation6], 16384
    $region37: #{tpu_custom_call.1} parent=1 // pred_fallthru
      _
    // Predicated region
    $region38: #{tpu_custom_call.1} parent=1 // pred_check
      _
    $region39: #{tpu_custom_call.1} parent=1 // pred_check_branch
      %87 = sbr.rel (0) target = $region41
    $region40: #{tpu_custom_call.1} parent=1 // pred_region
      %88 = dma.done [#allocation6], 16384
    $region41: #{tpu_custom_call.1} parent=1 // pred_fallthru
      _
    // Predicated region
    $region42: #{tpu_custom_call.1} parent=1 // pred_check
      _
    $region43: #{tpu_custom_call.1} parent=1 // pred_check_branch
      %90 = sbr.rel (0) target = $region45
    $region44: #{tpu_custom_call.1} parent=1 // pred_region
      %91 = dma.done [#allocation9], 16384
    $region45: #{tpu_custom_call.1} parent=1 // pred_fallthru
      _
    // Predicated region
    $region46: #{tpu_custom_call.1} parent=1 // pred_check
      _
    $region47: #{tpu_custom_call.1} parent=1 // pred_check_branch
      %93 = sbr.rel (0) target = $region49
    $region48: #{tpu_custom_call.1} parent=1 // pred_region
      %94 = dma.done [#allocation9], 2048
    $region49: #{tpu_custom_call.1} parent=1 // pred_fallthru
      _
    %v96 = vld [vmem:[%s4] sm:$0xff]
    %v98 = vlaneseq
    %v99 = vshrl.u32 %v98, 7
    %v100 = vsub.s32 0, %v99
    %v101 = vrot.slane %v96, %v100
    %v102 = vlaneseq
    %v103 = vshrl.u32 %v102, 7
    %v104 = vsub.s32 1, %v103
    %v105 = vrot.slane %v96, %v104
    %v106 = vlaneseq
    %v107 = vshrl.u32 %v106, 7
    %v108 = vsub.s32 2, %v107
    %v109 = vrot.slane %v96, %v108
    %v110 = vlaneseq
    %v111 = vshrl.u32 %v110, 7
    %v112 = vsub.s32 3, %v111
    %v113 = vrot.slane %v96, %v112
    %v114 = vlaneseq
    %v115 = vshrl.u32 %v114, 7
    %v116 = vsub.s32 4, %v115
    %v117 = vrot.slane %v96, %v116
    %v118 = vlaneseq
    %v119 = vshrl.u32 %v118, 7
    %v120 = vsub.s32 5, %v119
    %v121 = vrot.slane %v96, %v120
    %v122 = vlaneseq
    %v123 = vshrl.u32 %v122, 7
    %v124 = vsub.s32 6, %v123
    %v125 = vrot.slane %v96, %v124
    %v126 = vlaneseq
    %v127 = vshrl.u32 %v126, 7
    %v128 = vsub.s32 7, %v127
    %v129 = vrot.slane %v96, %v128
    %v138 = vld [vmem:[#allocation2] sm:$0xff]
    %v139 = vld [vmem:[#allocation2 + $0x8] sm:$0xff]
    %v140 = vld [vmem:[#allocation2 + $0x10] sm:$0xff]
    %v141 = vld [vmem:[#allocation2 + $0x18] sm:$0xff]
    %v142 = vld [vmem:[#allocation2 + $0x20] sm:$0xff]
    %v143 = vld [vmem:[#allocation2 + $0x28] sm:$0xff]
    %v144 = vld [vmem:[#allocation2 + $0x30] sm:$0xff]
    %v145 = vld [vmem:[#allocation2 + $0x38] sm:$0xff]
    %v146 = vld [vmem:[#allocation2 + $0x40] sm:$0xff]
    %v147 = vld [vmem:[#allocation2 + $0x48] sm:$0xff]
    %v148 = vld [vmem:[#allocation2 + $0x50] sm:$0xff]
    %v149 = vld [vmem:[#allocation2 + $0x58] sm:$0xff]
    %v150 = vld [vmem:[#allocation2 + $0x60] sm:$0xff]
    %v151 = vld [vmem:[#allocation2 + $0x68] sm:$0xff]
    %v152 = vld [vmem:[#allocation2 + $0x70] sm:$0xff]
    %v153 = vld [vmem:[#allocation2 + $0x78] sm:$0xff]
    %v154 = vld [vmem:[#allocation5] sm:$0xff]
    %v155 = vld [vmem:[#allocation5 + $0x8] sm:$0xff]
    %v156 = vld [vmem:[#allocation5 + $0x10] sm:$0xff]
    %v157 = vld [vmem:[#allocation5 + $0x18] sm:$0xff]
    %v158 = vld [vmem:[#allocation5 + $0x20] sm:$0xff]
    %v159 = vld [vmem:[#allocation5 + $0x28] sm:$0xff]
    %v160 = vld [vmem:[#allocation5 + $0x30] sm:$0xff]
    %v161 = vld [vmem:[#allocation5 + $0x38] sm:$0xff]
    %v162 = vld [vmem:[#allocation5 + $0x40] sm:$0xff]
    %v163 = vld [vmem:[#allocation5 + $0x48] sm:$0xff]
    %v164 = vld [vmem:[#allocation5 + $0x50] sm:$0xff]
    %v165 = vld [vmem:[#allocation5 + $0x58] sm:$0xff]
    %v166 = vld [vmem:[#allocation5 + $0x60] sm:$0xff]
    %v167 = vld [vmem:[#allocation5 + $0x68] sm:$0xff]
    %v168 = vld [vmem:[#allocation5 + $0x70] sm:$0xff]
    %v169 = vld [vmem:[#allocation5 + $0x78] sm:$0xff]
    %v170 = vld [vmem:[#allocation5 + $0x80] sm:$0xff]
    %v171 = vld [vmem:[#allocation5 + $0x88] sm:$0xff]
    %v172 = vld [vmem:[#allocation5 + $0x90] sm:$0xff]
    %v173 = vld [vmem:[#allocation5 + $0x98] sm:$0xff]
    %v174 = vld [vmem:[#allocation5 + $0xa0] sm:$0xff]
    %v175 = vld [vmem:[#allocation5 + $0xa8] sm:$0xff]
    %v176 = vld [vmem:[#allocation5 + $0xb0] sm:$0xff]
    %v177 = vld [vmem:[#allocation5 + $0xb8] sm:$0xff]
    %v178 = vld [vmem:[#allocation5 + $0xc0] sm:$0xff]
    %v179 = vld [vmem:[#allocation5 + $0xc8] sm:$0xff]
    %v180 = vld [vmem:[#allocation5 + $0xd0] sm:$0xff]
    %v181 = vld [vmem:[#allocation5 + $0xd8] sm:$0xff]
    %v182 = vld [vmem:[#allocation5 + $0xe0] sm:$0xff]
    %v183 = vld [vmem:[#allocation5 + $0xe8] sm:$0xff]
    %v184 = vld [vmem:[#allocation5 + $0xf0] sm:$0xff]
    %v185 = vld [vmem:[#allocation5 + $0xf8] sm:$0xff]
    %v186 = vld [vmem:[#allocation5 + $0x100] sm:$0xff]
    %v187 = vld [vmem:[#allocation5 + $0x108] sm:$0xff]
    %v188 = vld [vmem:[#allocation5 + $0x110] sm:$0xff]
    %v189 = vld [vmem:[#allocation5 + $0x118] sm:$0xff]
    %v190 = vld [vmem:[#allocation5 + $0x120] sm:$0xff]
    %v191 = vld [vmem:[#allocation5 + $0x128] sm:$0xff]
    %v192 = vld [vmem:[#allocation5 + $0x130] sm:$0xff]
    %v193 = vld [vmem:[#allocation5 + $0x138] sm:$0xff]
    %v194 = vld [vmem:[#allocation5 + $0x140] sm:$0xff]
    %v195 = vld [vmem:[#allocation5 + $0x148] sm:$0xff]
    %v196 = vld [vmem:[#allocation5 + $0x150] sm:$0xff]
    %v197 = vld [vmem:[#allocation5 + $0x158] sm:$0xff]
    %v198 = vld [vmem:[#allocation5 + $0x160] sm:$0xff]
    %v199 = vld [vmem:[#allocation5 + $0x168] sm:$0xff]
    %v200 = vld [vmem:[#allocation5 + $0x170] sm:$0xff]
    %v201 = vld [vmem:[#allocation5 + $0x178] sm:$0xff]
    %v202 = vld [vmem:[#allocation5 + $0x180] sm:$0xff]
    %v203 = vld [vmem:[#allocation5 + $0x188] sm:$0xff]
    %v204 = vld [vmem:[#allocation5 + $0x190] sm:$0xff]
    %v205 = vld [vmem:[#allocation5 + $0x198] sm:$0xff]
    %v206 = vld [vmem:[#allocation5 + $0x1a0] sm:$0xff]
    %v207 = vld [vmem:[#allocation5 + $0x1a8] sm:$0xff]
    %v208 = vld [vmem:[#allocation5 + $0x1b0] sm:$0xff]
    %v209 = vld [vmem:[#allocation5 + $0x1b8] sm:$0xff]
    %v210 = vld [vmem:[#allocation5 + $0x1c0] sm:$0xff]
    %v211 = vld [vmem:[#allocation5 + $0x1c8] sm:$0xff]
    %v212 = vld [vmem:[#allocation5 + $0x1d0] sm:$0xff]
    %v213 = vld [vmem:[#allocation5 + $0x1d8] sm:$0xff]
    %v214 = vld [vmem:[#allocation5 + $0x1e0] sm:$0xff]
    %v215 = vld [vmem:[#allocation5 + $0x1e8] sm:$0xff]
    %v216 = vld [vmem:[#allocation5 + $0x1f0] sm:$0xff]
    %v217 = vld [vmem:[#allocation5 + $0x1f8] sm:$0xff]
    %v218 = vld [vmem:[#allocation5 + $0x200] sm:$0xff]
    %v219 = vld [vmem:[#allocation5 + $0x208] sm:$0xff]
    %v220 = vld [vmem:[#allocation5 + $0x210] sm:$0xff]
    %v221 = vld [vmem:[#allocation5 + $0x218] sm:$0xff]
    %v222 = vld [vmem:[#allocation5 + $0x220] sm:$0xff]
    %v223 = vld [vmem:[#allocation5 + $0x228] sm:$0xff]
    %v224 = vld [vmem:[#allocation5 + $0x230] sm:$0xff]
    %v225 = vld [vmem:[#allocation5 + $0x238] sm:$0xff]
    %v226 = vld [vmem:[#allocation5 + $0x240] sm:$0xff]
    %v227 = vld [vmem:[#allocation5 + $0x248] sm:$0xff]
    %v228 = vld [vmem:[#allocation5 + $0x250] sm:$0xff]
    %v229 = vld [vmem:[#allocation5 + $0x258] sm:$0xff]
    %v230 = vld [vmem:[#allocation5 + $0x260] sm:$0xff]
    %v231 = vld [vmem:[#allocation5 + $0x268] sm:$0xff]
    %v232 = vld [vmem:[#allocation5 + $0x270] sm:$0xff]
    %v233 = vld [vmem:[#allocation5 + $0x278] sm:$0xff]
    %v234 = vld [vmem:[#allocation5 + $0x280] sm:$0xff]
    %v235 = vld [vmem:[#allocation5 + $0x288] sm:$0xff]
    %v236 = vld [vmem:[#allocation5 + $0x290] sm:$0xff]
    %v237 = vld [vmem:[#allocation5 + $0x298] sm:$0xff]
    %v238 = vld [vmem:[#allocation5 + $0x2a0] sm:$0xff]
    %v239 = vld [vmem:[#allocation5 + $0x2a8] sm:$0xff]
    %v240 = vld [vmem:[#allocation5 + $0x2b0] sm:$0xff]
    %v241 = vld [vmem:[#allocation5 + $0x2b8] sm:$0xff]
    %v242 = vld [vmem:[#allocation5 + $0x2c0] sm:$0xff]
    %v243 = vld [vmem:[#allocation5 + $0x2c8] sm:$0xff]
    %v244 = vld [vmem:[#allocation5 + $0x2d0] sm:$0xff]
    %v245 = vld [vmem:[#allocation5 + $0x2d8] sm:$0xff]
    %v246 = vld [vmem:[#allocation5 + $0x2e0] sm:$0xff]
    %v247 = vld [vmem:[#allocation5 + $0x2e8] sm:$0xff]
    %v248 = vld [vmem:[#allocation5 + $0x2f0] sm:$0xff]
    %v249 = vld [vmem:[#allocation5 + $0x2f8] sm:$0xff]
    %v250 = vld [vmem:[#allocation5 + $0x300] sm:$0xff]
    %v251 = vld [vmem:[#allocation5 + $0x308] sm:$0xff]
    %v252 = vld [vmem:[#allocation5 + $0x310] sm:$0xff]
    %v253 = vld [vmem:[#allocation5 + $0x318] sm:$0xff]
    %v254 = vld [vmem:[#allocation5 + $0x320] sm:$0xff]
    %v255 = vld [vmem:[#allocation5 + $0x328] sm:$0xff]
    %v256 = vld [vmem:[#allocation5 + $0x330] sm:$0xff]
    %v257 = vld [vmem:[#allocation5 + $0x338] sm:$0xff]
    %v258 = vld [vmem:[#allocation5 + $0x340] sm:$0xff]
    %v259 = vld [vmem:[#allocation5 + $0x348] sm:$0xff]
    %v260 = vld [vmem:[#allocation5 + $0x350] sm:$0xff]
    %v261 = vld [vmem:[#allocation5 + $0x358] sm:$0xff]
    %v262 = vld [vmem:[#allocation5 + $0x360] sm:$0xff]
    %v263 = vld [vmem:[#allocation5 + $0x368] sm:$0xff]
    %v264 = vld [vmem:[#allocation5 + $0x370] sm:$0xff]
    %v265 = vld [vmem:[#allocation5 + $0x378] sm:$0xff]
    %v266 = vld [vmem:[#allocation5 + $0x380] sm:$0xff]
    %v267 = vld [vmem:[#allocation5 + $0x388] sm:$0xff]
    %v268 = vld [vmem:[#allocation5 + $0x390] sm:$0xff]
    %v269 = vld [vmem:[#allocation5 + $0x398] sm:$0xff]
    %v270 = vld [vmem:[#allocation5 + $0x3a0] sm:$0xff]
    %v271 = vld [vmem:[#allocation5 + $0x3a8] sm:$0xff]
    %v272 = vld [vmem:[#allocation5 + $0x3b0] sm:$0xff]
    %v273 = vld [vmem:[#allocation5 + $0x3b8] sm:$0xff]
    %v274 = vld [vmem:[#allocation5 + $0x3c0] sm:$0xff]
    %v275 = vld [vmem:[#allocation5 + $0x3c8] sm:$0xff]
    %v276 = vld [vmem:[#allocation5 + $0x3d0] sm:$0xff]
    %v277 = vld [vmem:[#allocation5 + $0x3d8] sm:$0xff]
    %v278 = vld [vmem:[#allocation5 + $0x3e0] sm:$0xff]
    %v279 = vld [vmem:[#allocation5 + $0x3e8] sm:$0xff]
    %v280 = vld [vmem:[#allocation5 + $0x3f0] sm:$0xff]
    %v281 = vld [vmem:[#allocation5 + $0x3f8] sm:$0xff]
    %v410 = vunpack.c.l.b16 %v154
    %v411 = vunpack.c.h.b16 %v154
    %v412 = vunpack.c.l.b16 %v155
    %v413 = vunpack.c.h.b16 %v155
    %v414 = vunpack.c.l.b16 %v156
    %v415 = vunpack.c.h.b16 %v156
    %v416 = vunpack.c.l.b16 %v157
    %v417 = vunpack.c.h.b16 %v157
    %v418 = vunpack.c.l.b16 %v158
    %v419 = vunpack.c.h.b16 %v158
    %v420 = vunpack.c.l.b16 %v159
    %v421 = vunpack.c.h.b16 %v159
    %v422 = vunpack.c.l.b16 %v160
    %v423 = vunpack.c.h.b16 %v160
    %v424 = vunpack.c.l.b16 %v161
    %v425 = vunpack.c.h.b16 %v161
    %v426 = vunpack.c.l.b16 %v162
    %v427 = vunpack.c.h.b16 %v162
    %v428 = vunpack.c.l.b16 %v163
    %v429 = vunpack.c.h.b16 %v163
    %v430 = vunpack.c.l.b16 %v164
    %v431 = vunpack.c.h.b16 %v164
    %v432 = vunpack.c.l.b16 %v165
    %v433 = vunpack.c.h.b16 %v165
    %v434 = vunpack.c.l.b16 %v166
    %v435 = vunpack.c.h.b16 %v166
    %v436 = vunpack.c.l.b16 %v167
    %v437 = vunpack.c.h.b16 %v167
    %v438 = vunpack.c.l.b16 %v168
    %v439 = vunpack.c.h.b16 %v168
    %v440 = vunpack.c.l.b16 %v169
    %v441 = vunpack.c.h.b16 %v169
    %v442 = vunpack.c.l.b16 %v170
    %v443 = vunpack.c.h.b16 %v170
    %v444 = vunpack.c.l.b16 %v171
    %v445 = vunpack.c.h.b16 %v171
    %v446 = vunpack.c.l.b16 %v172
    %v447 = vunpack.c.h.b16 %v172
    %v448 = vunpack.c.l.b16 %v173
    %v449 = vunpack.c.h.b16 %v173
    %v450 = vunpack.c.l.b16 %v174
    %v451 = vunpack.c.h.b16 %v174
    %v452 = vunpack.c.l.b16 %v175
    %v453 = vunpack.c.h.b16 %v175
    %v454 = vunpack.c.l.b16 %v176
    %v455 = vunpack.c.h.b16 %v176
    %v456 = vunpack.c.l.b16 %v177
    %v457 = vunpack.c.h.b16 %v177
    %v458 = vunpack.c.l.b16 %v178
    %v459 = vunpack.c.h.b16 %v178
    %v460 = vunpack.c.l.b16 %v179
    %v461 = vunpack.c.h.b16 %v179
    %v462 = vunpack.c.l.b16 %v180
    %v463 = vunpack.c.h.b16 %v180
    %v464 = vunpack.c.l.b16 %v181
    %v465 = vunpack.c.h.b16 %v181
    %v466 = vunpack.c.l.b16 %v182
    %v467 = vunpack.c.h.b16 %v182
    %v468 = vunpack.c.l.b16 %v183
    %v469 = vunpack.c.h.b16 %v183
    %v470 = vunpack.c.l.b16 %v184
    %v471 = vunpack.c.h.b16 %v184
    %v472 = vunpack.c.l.b16 %v185
    %v473 = vunpack.c.h.b16 %v185
    %v474 = vunpack.c.l.b16 %v186
    %v475 = vunpack.c.h.b16 %v186
    %v476 = vunpack.c.l.b16 %v187
    %v477 = vunpack.c.h.b16 %v187
    %v478 = vunpack.c.l.b16 %v188
    %v479 = vunpack.c.h.b16 %v188
    %v480 = vunpack.c.l.b16 %v189
    %v481 = vunpack.c.h.b16 %v189
    %v482 = vunpack.c.l.b16 %v190
    %v483 = vunpack.c.h.b16 %v190
    %v484 = vunpack.c.l.b16 %v191
    %v485 = vunpack.c.h.b16 %v191
    %v486 = vunpack.c.l.b16 %v192
    %v487 = vunpack.c.h.b16 %v192
    %v488 = vunpack.c.l.b16 %v193
    %v489 = vunpack.c.h.b16 %v193
    %v490 = vunpack.c.l.b16 %v194
    %v491 = vunpack.c.h.b16 %v194
    %v492 = vunpack.c.l.b16 %v195
    %v493 = vunpack.c.h.b16 %v195
    %v494 = vunpack.c.l.b16 %v196
    %v495 = vunpack.c.h.b16 %v196
    %v496 = vunpack.c.l.b16 %v197
    %v497 = vunpack.c.h.b16 %v197
    %v498 = vunpack.c.l.b16 %v198
    %v499 = vunpack.c.h.b16 %v198
    %v500 = vunpack.c.l.b16 %v199
    %v501 = vunpack.c.h.b16 %v199
    %v502 = vunpack.c.l.b16 %v200
    %v503 = vunpack.c.h.b16 %v200
    %v504 = vunpack.c.l.b16 %v201
    %v505 = vunpack.c.h.b16 %v201
    %v506 = vunpack.c.l.b16 %v202
    %v507 = vunpack.c.h.b16 %v202
    %v508 = vunpack.c.l.b16 %v203
    %v509 = vunpack.c.h.b16 %v203
    %v510 = vunpack.c.l.b16 %v204
    %v511 = vunpack.c.h.b16 %v204
    %v512 = vunpack.c.l.b16 %v205
    %v513 = vunpack.c.h.b16 %v205
    %v514 = vunpack.c.l.b16 %v206
    %v515 = vunpack.c.h.b16 %v206
    %v516 = vunpack.c.l.b16 %v207
    %v517 = vunpack.c.h.b16 %v207
    %v518 = vunpack.c.l.b16 %v208
    %v519 = vunpack.c.h.b16 %v208
    %v520 = vunpack.c.l.b16 %v209
    %v521 = vunpack.c.h.b16 %v209
    %v522 = vunpack.c.l.b16 %v210
    %v523 = vunpack.c.h.b16 %v210
    %v524 = vunpack.c.l.b16 %v211
    %v525 = vunpack.c.h.b16 %v211
    %v526 = vunpack.c.l.b16 %v212
    %v527 = vunpack.c.h.b16 %v212
    %v528 = vunpack.c.l.b16 %v213
    %v529 = vunpack.c.h.b16 %v213
    %v530 = vunpack.c.l.b16 %v214
    %v531 = vunpack.c.h.b16 %v214
    %v532 = vunpack.c.l.b16 %v215
    %v533 = vunpack.c.h.b16 %v215
    %v534 = vunpack.c.l.b16 %v216
    %v535 = vunpack.c.h.b16 %v216
    %v536 = vunpack.c.l.b16 %v217
    %v537 = vunpack.c.h.b16 %v217
    %v538 = vunpack.c.l.b16 %v218
    %v539 = vunpack.c.h.b16 %v218
    %v540 = vunpack.c.l.b16 %v219
    %v541 = vunpack.c.h.b16 %v219
    %v542 = vunpack.c.l.b16 %v220
    %v543 = vunpack.c.h.b16 %v220
    %v544 = vunpack.c.l.b16 %v221
    %v545 = vunpack.c.h.b16 %v221
    %v546 = vunpack.c.l.b16 %v222
    %v547 = vunpack.c.h.b16 %v222
    %v548 = vunpack.c.l.b16 %v223
    %v549 = vunpack.c.h.b16 %v223
    %v550 = vunpack.c.l.b16 %v224
    %v551 = vunpack.c.h.b16 %v224
    %v552 = vunpack.c.l.b16 %v225
    %v553 = vunpack.c.h.b16 %v225
    %v554 = vunpack.c.l.b16 %v226
    %v555 = vunpack.c.h.b16 %v226
    %v556 = vunpack.c.l.b16 %v227
    %v557 = vunpack.c.h.b16 %v227
    %v558 = vunpack.c.l.b16 %v228
    %v559 = vunpack.c.h.b16 %v228
    %v560 = vunpack.c.l.b16 %v229
    %v561 = vunpack.c.h.b16 %v229
    %v562 = vunpack.c.l.b16 %v230
    %v563 = vunpack.c.h.b16 %v230
    %v564 = vunpack.c.l.b16 %v231
    %v565 = vunpack.c.h.b16 %v231
    %v566 = vunpack.c.l.b16 %v232
    %v567 = vunpack.c.h.b16 %v232
    %v568 = vunpack.c.l.b16 %v233
    %v569 = vunpack.c.h.b16 %v233
    %v570 = vunpack.c.l.b16 %v234
    %v571 = vunpack.c.h.b16 %v234
    %v572 = vunpack.c.l.b16 %v235
    %v573 = vunpack.c.h.b16 %v235
    %v574 = vunpack.c.l.b16 %v236
    %v575 = vunpack.c.h.b16 %v236
    %v576 = vunpack.c.l.b16 %v237
    %v577 = vunpack.c.h.b16 %v237
    %v578 = vunpack.c.l.b16 %v238
    %v579 = vunpack.c.h.b16 %v238
    %v580 = vunpack.c.l.b16 %v239
    %v581 = vunpack.c.h.b16 %v239
    %v582 = vunpack.c.l.b16 %v240
    %v583 = vunpack.c.h.b16 %v240
    %v584 = vunpack.c.l.b16 %v241
    %v585 = vunpack.c.h.b16 %v241
    %v586 = vunpack.c.l.b16 %v242
    %v587 = vunpack.c.h.b16 %v242
    %v588 = vunpack.c.l.b16 %v243
    %v589 = vunpack.c.h.b16 %v243
    %v590 = vunpack.c.l.b16 %v244
    %v591 = vunpack.c.h.b16 %v244
    %v592 = vunpack.c.l.b16 %v245
    %v593 = vunpack.c.h.b16 %v245
    %v594 = vunpack.c.l.b16 %v246
    %v595 = vunpack.c.h.b16 %v246
    %v596 = vunpack.c.l.b16 %v247
    %v597 = vunpack.c.h.b16 %v247
    %v598 = vunpack.c.l.b16 %v248
    %v599 = vunpack.c.h.b16 %v248
    %v600 = vunpack.c.l.b16 %v249
    %v601 = vunpack.c.h.b16 %v249
    %v602 = vunpack.c.l.b16 %v250
    %v603 = vunpack.c.h.b16 %v250
    %v604 = vunpack.c.l.b16 %v251
    %v605 = vunpack.c.h.b16 %v251
    %v606 = vunpack.c.l.b16 %v252
    %v607 = vunpack.c.h.b16 %v252
    %v608 = vunpack.c.l.b16 %v253
    %v609 = vunpack.c.h.b16 %v253
    %v610 = vunpack.c.l.b16 %v254
    %v611 = vunpack.c.h.b16 %v254
    %v612 = vunpack.c.l.b16 %v255
    %v613 = vunpack.c.h.b16 %v255
    %v614 = vunpack.c.l.b16 %v256
    %v615 = vunpack.c.h.b16 %v256
    %v616 = vunpack.c.l.b16 %v257
    %v617 = vunpack.c.h.b16 %v257
    %v618 = vunpack.c.l.b16 %v258
    %v619 = vunpack.c.h.b16 %v258
    %v620 = vunpack.c.l.b16 %v259
    %v621 = vunpack.c.h.b16 %v259
    %v622 = vunpack.c.l.b16 %v260
    %v623 = vunpack.c.h.b16 %v260
    %v624 = vunpack.c.l.b16 %v261
    %v625 = vunpack.c.h.b16 %v261
    %v626 = vunpack.c.l.b16 %v262
    %v627 = vunpack.c.h.b16 %v262
    %v628 = vunpack.c.l.b16 %v263
    %v629 = vunpack.c.h.b16 %v263
    %v630 = vunpack.c.l.b16 %v264
    %v631 = vunpack.c.h.b16 %v264
    %v632 = vunpack.c.l.b16 %v265
    %v633 = vunpack.c.h.b16 %v265
    %v634 = vunpack.c.l.b16 %v266
    %v635 = vunpack.c.h.b16 %v266
    %v636 = vunpack.c.l.b16 %v267
    %v637 = vunpack.c.h.b16 %v267
    %v638 = vunpack.c.l.b16 %v268
    %v639 = vunpack.c.h.b16 %v268
    %v640 = vunpack.c.l.b16 %v269
    %v641 = vunpack.c.h.b16 %v269
    %v642 = vunpack.c.l.b16 %v270
    %v643 = vunpack.c.h.b16 %v270
    %v644 = vunpack.c.l.b16 %v271
    %v645 = vunpack.c.h.b16 %v271
    %v646 = vunpack.c.l.b16 %v272
    %v647 = vunpack.c.h.b16 %v272
    %v648 = vunpack.c.l.b16 %v273
    %v649 = vunpack.c.h.b16 %v273
    %v650 = vunpack.c.l.b16 %v274
    %v651 = vunpack.c.h.b16 %v274
    %v652 = vunpack.c.l.b16 %v275
    %v653 = vunpack.c.h.b16 %v275
    %v654 = vunpack.c.l.b16 %v276
    %v655 = vunpack.c.h.b16 %v276
    %v656 = vunpack.c.l.b16 %v277
    %v657 = vunpack.c.h.b16 %v277
    %v658 = vunpack.c.l.b16 %v278
    %v659 = vunpack.c.h.b16 %v278
    %v660 = vunpack.c.l.b16 %v279
    %v661 = vunpack.c.h.b16 %v279
    %v662 = vunpack.c.l.b16 %v280
    %v663 = vunpack.c.h.b16 %v280
    %v664 = vunpack.c.l.b16 %v281
    %v665 = vunpack.c.h.b16 %v281
    %v666 = vpack.c.b16 %v418, %v410
    %v667 = vpack.c.b16 %v419, %v411
    %v668 = vpack.c.b16 %v420, %v412
    %v669 = vpack.c.b16 %v421, %v413
    %v670 = vpack.c.b16 %v422, %v414
    %v671 = vpack.c.b16 %v423, %v415
    %v672 = vpack.c.b16 %v424, %v416
    %v673 = vpack.c.b16 %v425, %v417
    %v674 = vpack.c.b16 %v434, %v426
    %v675 = vpack.c.b16 %v435, %v427
    %v676 = vpack.c.b16 %v436, %v428
    %v677 = vpack.c.b16 %v437, %v429
    %v678 = vpack.c.b16 %v438, %v430
    %v679 = vpack.c.b16 %v439, %v431
    %v680 = vpack.c.b16 %v440, %v432
    %v681 = vpack.c.b16 %v441, %v433
    %v682 = vpack.c.b16 %v450, %v442
    %v683 = vpack.c.b16 %v451, %v443
    %v684 = vpack.c.b16 %v452, %v444
    %v685 = vpack.c.b16 %v453, %v445
    %v686 = vpack.c.b16 %v454, %v446
    %v687 = vpack.c.b16 %v455, %v447
    %v688 = vpack.c.b16 %v456, %v448
    %v689 = vpack.c.b16 %v457, %v449
    %v690 = vpack.c.b16 %v466, %v458
    %v691 = vpack.c.b16 %v467, %v459
    %v692 = vpack.c.b16 %v468, %v460
    %v693 = vpack.c.b16 %v469, %v461
    %v694 = vpack.c.b16 %v470, %v462
    %v695 = vpack.c.b16 %v471, %v463
    %v696 = vpack.c.b16 %v472, %v464
    %v697 = vpack.c.b16 %v473, %v465
    %v698 = vpack.c.b16 %v482, %v474
    %v699 = vpack.c.b16 %v483, %v475
    %v700 = vpack.c.b16 %v484, %v476
    %v701 = vpack.c.b16 %v485, %v477
    %v702 = vpack.c.b16 %v486, %v478
    %v703 = vpack.c.b16 %v487, %v479
    %v704 = vpack.c.b16 %v488, %v480
    %v705 = vpack.c.b16 %v489, %v481
    %v706 = vpack.c.b16 %v498, %v490
    %v707 = vpack.c.b16 %v499, %v491
    %v708 = vpack.c.b16 %v500, %v492
    %v709 = vpack.c.b16 %v501, %v493
    %v710 = vpack.c.b16 %v502, %v494
    %v711 = vpack.c.b16 %v503, %v495
    %v712 = vpack.c.b16 %v504, %v496
    %v713 = vpack.c.b16 %v505, %v497
    %v714 = vpack.c.b16 %v514, %v506
    %v715 = vpack.c.b16 %v515, %v507
    %v716 = vpack.c.b16 %v516, %v508
    %v717 = vpack.c.b16 %v517, %v509
    %v718 = vpack.c.b16 %v518, %v510
    %v719 = vpack.c.b16 %v519, %v511
    %v720 = vpack.c.b16 %v520, %v512
    %v721 = vpack.c.b16 %v521, %v513
    %v722 = vpack.c.b16 %v530, %v522
    %v723 = vpack.c.b16 %v531, %v523
    %v724 = vpack.c.b16 %v532, %v524
    %v725 = vpack.c.b16 %v533, %v525
    %v726 = vpack.c.b16 %v534, %v526
    %v727 = vpack.c.b16 %v535, %v527
    %v728 = vpack.c.b16 %v536, %v528
    %v729 = vpack.c.b16 %v537, %v529
    %v730 = vpack.c.b16 %v546, %v538
    %v731 = vpack.c.b16 %v547, %v539
    %v732 = vpack.c.b16 %v548, %v540
    %v733 = vpack.c.b16 %v549, %v541
    %v734 = vpack.c.b16 %v550, %v542
    %v735 = vpack.c.b16 %v551, %v543
    %v736 = vpack.c.b16 %v552, %v544
    %v737 = vpack.c.b16 %v553, %v545
    %v738 = vpack.c.b16 %v562, %v554
    %v739 = vpack.c.b16 %v563, %v555
    %v740 = vpack.c.b16 %v564, %v556
    %v741 = vpack.c.b16 %v565, %v557
    %v742 = vpack.c.b16 %v566, %v558
    %v743 = vpack.c.b16 %v567, %v559
    %v744 = vpack.c.b16 %v568, %v560
    %v745 = vpack.c.b16 %v569, %v561
    %v746 = vpack.c.b16 %v578, %v570
    %v747 = vpack.c.b16 %v579, %v571
    %v748 = vpack.c.b16 %v580, %v572
    %v749 = vpack.c.b16 %v581, %v573
    %v750 = vpack.c.b16 %v582, %v574
    %v751 = vpack.c.b16 %v583, %v575
    %v752 = vpack.c.b16 %v584, %v576
    %v753 = vpack.c.b16 %v585, %v577
    %v754 = vpack.c.b16 %v594, %v586
    %v755 = vpack.c.b16 %v595, %v587
    %v756 = vpack.c.b16 %v596, %v588
    %v757 = vpack.c.b16 %v597, %v589
    %v758 = vpack.c.b16 %v598, %v590
    %v759 = vpack.c.b16 %v599, %v591
    %v760 = vpack.c.b16 %v600, %v592
    %v761 = vpack.c.b16 %v601, %v593
    %v762 = vpack.c.b16 %v610, %v602
    %v763 = vpack.c.b16 %v611, %v603
    %v764 = vpack.c.b16 %v612, %v604
    %v765 = vpack.c.b16 %v613, %v605
    %v766 = vpack.c.b16 %v614, %v606
    %v767 = vpack.c.b16 %v615, %v607
    %v768 = vpack.c.b16 %v616, %v608
    %v769 = vpack.c.b16 %v617, %v609
    %v770 = vpack.c.b16 %v626, %v618
    %v771 = vpack.c.b16 %v627, %v619
    %v772 = vpack.c.b16 %v628, %v620
    %v773 = vpack.c.b16 %v629, %v621
    %v774 = vpack.c.b16 %v630, %v622
    %v775 = vpack.c.b16 %v631, %v623
    %v776 = vpack.c.b16 %v632, %v624
    %v777 = vpack.c.b16 %v633, %v625
    %v778 = vpack.c.b16 %v642, %v634
    %v779 = vpack.c.b16 %v643, %v635
    %v780 = vpack.c.b16 %v644, %v636
    %v781 = vpack.c.b16 %v645, %v637
    %v782 = vpack.c.b16 %v646, %v638
    %v783 = vpack.c.b16 %v647, %v639
    %v784 = vpack.c.b16 %v648, %v640
    %v785 = vpack.c.b16 %v649, %v641
    %v786 = vpack.c.b16 %v658, %v650
    %v787 = vpack.c.b16 %v659, %v651
    %v788 = vpack.c.b16 %v660, %v652
    %v789 = vpack.c.b16 %v661, %v653
    %v790 = vpack.c.b16 %v662, %v654
    %v791 = vpack.c.b16 %v663, %v655
    %v792 = vpack.c.b16 %v664, %v656
    %v793 = vpack.c.b16 %v665, %v657
    %922 = vmatprep.subr.bf16.mxu0 %v667
    %923 = vmatpush1.bf16.msra.mxu0 %v666
    %924 = vmatprep.subr.bf16.mxu0 %v675
    %925 = vmatpush1.bf16.msra.mxu0 %v674
    %926 = vmatprep.subr.bf16.mxu0 %v683
    %927 = vmatpush1.bf16.msra.mxu0 %v682
    %928 = vmatprep.subr.bf16.mxu0 %v691
    %929 = vmatpush1.bf16.msra.mxu0 %v690
    %930 = vmatprep.subr.bf16.mxu0 %v699
    %931 = vmatpush1.bf16.msra.mxu0 %v698
    %932 = vmatprep.subr.bf16.mxu0 %v707
    %933 = vmatpush1.bf16.msra.mxu0 %v706
    %934 = vmatprep.subr.bf16.mxu0 %v715
    %935 = vmatpush1.bf16.msra.mxu0 %v714
    %936 = vmatprep.subr.bf16.mxu0 %v723
    %937 = vmatpush1.bf16.msra.mxu0 %v722
    %938 = vmatprep.subr.bf16.mxu0 %v731
    %939 = vmatpush1.bf16.msra.mxu0 %v730
    %940 = vmatprep.subr.bf16.mxu0 %v739
    %941 = vmatpush1.bf16.msra.mxu0 %v738
    %942 = vmatprep.subr.bf16.mxu0 %v747
    %943 = vmatpush1.bf16.msra.mxu0 %v746
    %944 = vmatprep.subr.bf16.mxu0 %v755
    %945 = vmatpush1.bf16.msra.mxu0 %v754
    %946 = vmatprep.subr.bf16.mxu0 %v763
    %947 = vmatpush1.bf16.msra.mxu0 %v762
    %948 = vmatprep.subr.bf16.mxu0 %v771
    %949 = vmatpush1.bf16.msra.mxu0 %v770
    %950 = vmatprep.subr.bf16.mxu0 %v779
    %951 = vmatpush1.bf16.msra.mxu0 %v778
    %952 = vmatprep.subr.bf16.mxu0 %v787
    %953 = vmatpush1.bf16.msra.mxu0 %v786
    %954 = vmatprep.mubr.bf16.mxu0 0
    %955 = vmatmul.mubr.bf16.gmra.mrb[0].mxu0 0
    %v956 = vpop.f32.mrb[0].mxu0
    %v957 = vadd.f32 0.0, %v956
    %v958 = vpop.f32.mrb[0].mxu0
    %v959 = vadd.f32 0.0, %v958
    %v960 = vpop.f32.mrb[0].mxu0
    %v961 = vadd.f32 0.0, %v960
    %v962 = vpop.f32.mrb[0].mxu0
    %v963 = vadd.f32 0.0, %v962
    %964 = vdwg.mxu0
    %965 = vmatprep.subr.bf16.mxu0 %v669
    %966 = vmatpush1.bf16.msra.mxu0 %v668
    %967 = vmatprep.subr.bf16.mxu0 %v677
    %968 = vmatpush1.bf16.msra.mxu0 %v676
    %969 = vmatprep.subr.bf16.mxu0 %v685
    %970 = vmatpush1.bf16.msra.mxu0 %v684
    %971 = vmatprep.subr.bf16.mxu0 %v693
    %972 = vmatpush1.bf16.msra.mxu0 %v692
    %973 = vmatprep.subr.bf16.mxu0 %v701
    %974 = vmatpush1.bf16.msra.mxu0 %v700
    %975 = vmatprep.subr.bf16.mxu0 %v709
    %976 = vmatpush1.bf16.msra.mxu0 %v708
    %977 = vmatprep.subr.bf16.mxu0 %v717
    %978 = vmatpush1.bf16.msra.mxu0 %v716
    %979 = vmatprep.subr.bf16.mxu0 %v725
    %980 = vmatpush1.bf16.msra.mxu0 %v724
    %981 = vmatprep.subr.bf16.mxu0 %v733
    %982 = vmatpush1.bf16.msra.mxu0 %v732
    %983 = vmatprep.subr.bf16.mxu0 %v741
    %984 = vmatpush1.bf16.msra.mxu0 %v740
    %985 = vmatprep.subr.bf16.mxu0 %v749
    %986 = vmatpush1.bf16.msra.mxu0 %v748
    %987 = vmatprep.subr.bf16.mxu0 %v757
    %988 = vmatpush1.bf16.msra.mxu0 %v756
    %989 = vmatprep.subr.bf16.mxu0 %v765
    %990 = vmatpush1.bf16.msra.mxu0 %v764
    %991 = vmatprep.subr.bf16.mxu0 %v773
    %992 = vmatpush1.bf16.msra.mxu0 %v772
    %993 = vmatprep.subr.bf16.mxu0 %v781
    %994 = vmatpush1.bf16.msra.mxu0 %v780
    %995 = vmatprep.subr.bf16.mxu0 %v789
    %996 = vmatpush1.bf16.msra.mxu0 %v788
    %997 = vmatprep.mubr.bf16.mxu0 0
    %998 = vmatmul.mubr.bf16.gmra.mrb[0].mxu0 0
    %v999 = vpop.f32.mrb[0].mxu0
    %v1000 = vadd.f32 0.0, %v999
    %v1001 = vpop.f32.mrb[0].mxu0
    %v1002 = vadd.f32 0.0, %v1001
    %v1003 = vpop.f32.mrb[0].mxu0
    %v1004 = vadd.f32 0.0, %v1003
    %v1005 = vpop.f32.mrb[0].mxu0
    %v1006 = vadd.f32 0.0, %v1005
    %1007 = vdwg.mxu0
    %1008 = vmatprep.subr.bf16.mxu0 %v671
    %1009 = vmatpush1.bf16.msra.mxu0 %v670
    %1010 = vmatprep.subr.bf16.mxu0 %v679
    %1011 = vmatpush1.bf16.msra.mxu0 %v678
    %1012 = vmatprep.subr.bf16.mxu0 %v687
    %1013 = vmatpush1.bf16.msra.mxu0 %v686
    %1014 = vmatprep.subr.bf16.mxu0 %v695
    %1015 = vmatpush1.bf16.msra.mxu0 %v694
    %1016 = vmatprep.subr.bf16.mxu0 %v703
    %1017 = vmatpush1.bf16.msra.mxu0 %v702
    %1018 = vmatprep.subr.bf16.mxu0 %v711
    %1019 = vmatpush1.bf16.msra.mxu0 %v710
    %1020 = vmatprep.subr.bf16.mxu0 %v719
    %1021 = vmatpush1.bf16.msra.mxu0 %v718
    %1022 = vmatprep.subr.bf16.mxu0 %v727
    %1023 = vmatpush1.bf16.msra.mxu0 %v726
    %1024 = vmatprep.subr.bf16.mxu0 %v735
    %1025 = vmatpush1.bf16.msra.mxu0 %v734
    %1026 = vmatprep.subr.bf16.mxu0 %v743
    %1027 = vmatpush1.bf16.msra.mxu0 %v742
    %1028 = vmatprep.subr.bf16.mxu0 %v751
    %1029 = vmatpush1.bf16.msra.mxu0 %v750
    %1030 = vmatprep.subr.bf16.mxu0 %v759
    %1031 = vmatpush1.bf16.msra.mxu0 %v758
    %1032 = vmatprep.subr.bf16.mxu0 %v767
    %1033 = vmatpush1.bf16.msra.mxu0 %v766
    %1034 = vmatprep.subr.bf16.mxu0 %v775
    %1035 = vmatpush1.bf16.msra.mxu0 %v774
    %1036 = vmatprep.subr.bf16.mxu0 %v783
    %1037 = vmatpush1.bf16.msra.mxu0 %v782
    %1038 = vmatprep.subr.bf16.mxu0 %v791
    %1039 = vmatpush1.bf16.msra.mxu0 %v790
    %1040 = vmatprep.mubr.bf16.mxu0 0
    %1041 = vmatmul.mubr.bf16.gmra.mrb[0].mxu0 0
    %v1042 = vpop.f32.mrb[0].mxu0
    %v1043 = vadd.f32 0.0, %v1042
    %v1044 = vpop.f32.mrb[0].mxu0
    %v1045 = vadd.f32 0.0, %v1044
    %v1046 = vpop.f32.mrb[0].mxu0
    %v1047 = vadd.f32 0.0, %v1046
    %v1048 = vpop.f32.mrb[0].mxu0
    %v1049 = vadd.f32 0.0, %v1048
    %1050 = vdwg.mxu0
    %1051 = vmatprep.subr.bf16.mxu0 %v673
    %1052 = vmatpush1.bf16.msra.mxu0 %v672
    %1053 = vmatprep.subr.bf16.mxu0 %v681
    %1054 = vmatpush1.bf16.msra.mxu0 %v680
    %1055 = vmatprep.subr.bf16.mxu0 %v689
    %1056 = vmatpush1.bf16.msra.mxu0 %v688
    %1057 = vmatprep.subr.bf16.mxu0 %v697
    %1058 = vmatpush1.bf16.msra.mxu0 %v696
    %1059 = vmatprep.subr.bf16.mxu0 %v705
    %1060 = vmatpush1.bf16.msra.mxu0 %v704
    %1061 = vmatprep.subr.bf16.mxu0 %v713
    %1062 = vmatpush1.bf16.msra.mxu0 %v712
    %1063 = vmatprep.subr.bf16.mxu0 %v721
    %1064 = vmatpush1.bf16.msra.mxu0 %v720
    %1065 = vmatprep.subr.bf16.mxu0 %v729
    %1066 = vmatpush1.bf16.msra.mxu0 %v728
    %1067 = vmatprep.subr.bf16.mxu0 %v737
    %1068 = vmatpush1.bf16.msra.mxu0 %v736
    %1069 = vmatprep.subr.bf16.mxu0 %v745
    %1070 = vmatpush1.bf16.msra.mxu0 %v744
    %1071 = vmatprep.subr.bf16.mxu0 %v753
    %1072 = vmatpush1.bf16.msra.mxu0 %v752
    %1073 = vmatprep.subr.bf16.mxu0 %v761
    %1074 = vmatpush1.bf16.msra.mxu0 %v760
    %1075 = vmatprep.subr.bf16.mxu0 %v769
    %1076 = vmatpush1.bf16.msra.mxu0 %v768
    %1077 = vmatprep.subr.bf16.mxu0 %v777
    %1078 = vmatpush1.bf16.msra.mxu0 %v776
    %1079 = vmatprep.subr.bf16.mxu0 %v785
    %1080 = vmatpush1.bf16.msra.mxu0 %v784
    %1081 = vmatprep.subr.bf16.mxu0 %v793
    %1082 = vmatpush1.bf16.msra.mxu0 %v792
    %1083 = vmatprep.mubr.bf16.mxu0 0
    %1084 = vmatmul.mubr.bf16.gmra.mrb[0].mxu0 0
    %v1085 = vpop.f32.mrb[0].mxu0
    %v1086 = vadd.f32 0.0, %v1085
    %v1087 = vpop.f32.mrb[0].mxu0
    %v1088 = vadd.f32 0.0, %v1087
    %v1089 = vpop.f32.mrb[0].mxu0
    %v1090 = vadd.f32 0.0, %v1089
    %v1091 = vpop.f32.mrb[0].mxu0
    %v1092 = vadd.f32 0.0, %v1091
    %1093 = vdwg.mxu0
    %v1094 = vadd.f32 %v138, %v957
    %v1095 = vadd.f32 %v139, %v959
    %v1096 = vadd.f32 %v140, %v1000
    %v1097 = vadd.f32 %v141, %v1002
    %v1098 = vadd.f32 %v142, %v1043
    %v1099 = vadd.f32 %v143, %v1045
    %v1100 = vadd.f32 %v144, %v1086
    %v1101 = vadd.f32 %v145, %v1088
    %v1102 = vadd.f32 %v146, %v961
    %v1103 = vadd.f32 %v147, %v963
    %v1104 = vadd.f32 %v148, %v1004
    %v1105 = vadd.f32 %v149, %v1006
    %v1106 = vadd.f32 %v150, %v1047
    %v1107 = vadd.f32 %v151, %v1049
    %v1108 = vadd.f32 %v152, %v1090
    %v1109 = vadd.f32 %v153, %v1092
    %v1110 = vxor.u32 %v1094, 2147483648
    %v1111 = vxor.u32 %v1095, 2147483648
    %v1112 = vxor.u32 %v1102, 2147483648
    %v1113 = vxor.u32 %v1103, 2147483648
    %v1114 = vmul.f32 %v1110, 1.442695
    %v1115 = vpow.pop %v1114
    %v1116 = vmul.f32 %v1111, 1.442695
    %v1117 = vpow.pop %v1116
    %v1118 = vmul.f32 %v1112, 1.442695
    %v1119 = vpow.pop %v1118
    %v1120 = vmul.f32 %v1113, 1.442695
    %v1121 = vpow.pop %v1120
    %v1122 = vadd.f32 %v1115, 1.0
    %v1123 = vadd.f32 %v1117, 1.0
    %v1124 = vadd.f32 %v1119, 1.0
    %v1125 = vadd.f32 %v1121, 1.0
    %v1126 = vrcp.pop %v1122
    %v1127 = vmul.f32 1.0, %v1126
    %v1128 = vrcp.pop %v1123
    %v1129 = vmul.f32 1.0, %v1128
    %v1130 = vrcp.pop %v1124
    %v1131 = vmul.f32 1.0, %v1130
    %v1132 = vrcp.pop %v1125
    %v1133 = vmul.f32 1.0, %v1132
    %v1134 = vxor.u32 %v1096, 2147483648
    %v1135 = vxor.u32 %v1097, 2147483648
    %v1136 = vxor.u32 %v1104, 2147483648
    %v1137 = vxor.u32 %v1105, 2147483648
    %v1138 = vmul.f32 %v1134, 1.442695
    %v1139 = vpow.pop %v1138
    %v1140 = vmul.f32 %v1135, 1.442695
    %v1141 = vpow.pop %v1140
    %v1142 = vmul.f32 %v1136, 1.442695
    %v1143 = vpow.pop %v1142
    %v1144 = vmul.f32 %v1137, 1.442695
    %v1145 = vpow.pop %v1144
    %v1146 = vadd.f32 %v1139, 1.0
    %v1147 = vadd.f32 %v1141, 1.0
    %v1148 = vadd.f32 %v1143, 1.0
    %v1149 = vadd.f32 %v1145, 1.0
    %v1150 = vrcp.pop %v1146
    %v1151 = vmul.f32 1.0, %v1150
    %v1152 = vrcp.pop %v1147
    %v1153 = vmul.f32 1.0, %v1152
    %v1154 = vrcp.pop %v1148
    %v1155 = vmul.f32 1.0, %v1154
    %v1156 = vrcp.pop %v1149
    %v1157 = vmul.f32 1.0, %v1156
    %v1158 = vtanh.pop %v1098
    %v1159 = vtanh.pop %v1099
    %v1160 = vtanh.pop %v1106
    %v1161 = vtanh.pop %v1107
    %v1162 = vxor.u32 %v1100, 2147483648
    %v1163 = vxor.u32 %v1101, 2147483648
    %v1164 = vxor.u32 %v1108, 2147483648
    %v1165 = vxor.u32 %v1109, 2147483648
    %v1166 = vmul.f32 %v1162, 1.442695
    %v1167 = vpow.pop %v1166
    %v1168 = vmul.f32 %v1163, 1.442695
    %v1169 = vpow.pop %v1168
    %v1170 = vmul.f32 %v1164, 1.442695
    %v1171 = vpow.pop %v1170
    %v1172 = vmul.f32 %v1165, 1.442695
    %v1173 = vpow.pop %v1172
    %v1174 = vadd.f32 %v1167, 1.0
    %v1175 = vadd.f32 %v1169, 1.0
    %v1176 = vadd.f32 %v1171, 1.0
    %v1177 = vadd.f32 %v1173, 1.0
    %v1178 = vrcp.pop %v1174
    %v1179 = vmul.f32 1.0, %v1178
    %v1180 = vrcp.pop %v1175
    %v1181 = vmul.f32 1.0, %v1180
    %v1182 = vrcp.pop %v1176
    %v1183 = vmul.f32 1.0, %v1182
    %v1184 = vrcp.pop %v1177
    %v1185 = vmul.f32 1.0, %v1184
    %v1186 = vmul.f32 %v1151, 0.0
    %v1187 = vmul.f32 %v1153, 0.0
    %v1188 = vmul.f32 %v1155, 0.0
    %v1189 = vmul.f32 %v1157, 0.0
    %v1190 = vmul.f32 %v1127, %v1158
    %v1191 = vmul.f32 %v1129, %v1159
    %v1192 = vmul.f32 %v1131, %v1160
    %v1193 = vmul.f32 %v1133, %v1161
    %v1194 = vadd.f32 %v1186, %v1190
    %v1195 = vadd.f32 %v1187, %v1191
    %v1196 = vadd.f32 %v1188, %v1192
    %v1197 = vadd.f32 %v1189, %v1193
    %v1198 = vtanh.pop %v1194
    %v1199 = vtanh.pop %v1195
    %v1200 = vtanh.pop %v1196
    %v1201 = vtanh.pop %v1197
    %v1202 = vmul.f32 %v1179, %v1198
    %v1203 = vmul.f32 %v1181, %v1199
    %v1204 = vmul.f32 %v1183, %v1200
    %v1205 = vmul.f32 %v1185, %v1201
    %s1206 = scalar_lea.vmem [#allocation2], 128
    %v1207 = vld [vmem:[%s1206] sm:$0xff]
    %v1208 = vld [vmem:[%s1206 + $0x8] sm:$0xff]
    %v1209 = vld [vmem:[%s1206 + $0x10] sm:$0xff]
    %v1210 = vld [vmem:[%s1206 + $0x18] sm:$0xff]
    %v1211 = vld [vmem:[%s1206 + $0x20] sm:$0xff]
    %v1212 = vld [vmem:[%s1206 + $0x28] sm:$0xff]
    %v1213 = vld [vmem:[%s1206 + $0x30] sm:$0xff]
    %v1214 = vld [vmem:[%s1206 + $0x38] sm:$0xff]
    %v1215 = vld [vmem:[%s1206 + $0x40] sm:$0xff]
    %v1216 = vld [vmem:[%s1206 + $0x48] sm:$0xff]
    %v1217 = vld [vmem:[%s1206 + $0x50] sm:$0xff]
    %v1218 = vld [vmem:[%s1206 + $0x58] sm:$0xff]
    %v1219 = vld [vmem:[%s1206 + $0x60] sm:$0xff]
    %v1220 = vld [vmem:[%s1206 + $0x68] sm:$0xff]
    %v1221 = vld [vmem:[%s1206 + $0x70] sm:$0xff]
    %v1222 = vld [vmem:[%s1206 + $0x78] sm:$0xff]
    %v1223 = vpack.c.bf16 %v1204, %v1202
    %v1224 = vpack.c.bf16 %v1205, %v1203
    %1225 = vmatprep.subr.bf16.mxu0 %v667
    %1226 = vmatpush1.bf16.msra.mxu0 %v666
    %1227 = vmatprep.subr.bf16.mxu0 %v675
    %1228 = vmatpush1.bf16.msra.mxu0 %v674
    %1229 = vmatprep.subr.bf16.mxu0 %v683
    %1230 = vmatpush1.bf16.msra.mxu0 %v682
    %1231 = vmatprep.subr.bf16.mxu0 %v691
    %1232 = vmatpush1.bf16.msra.mxu0 %v690
    %1233 = vmatprep.subr.bf16.mxu0 %v699
    %1234 = vmatpush1.bf16.msra.mxu0 %v698
    %1235 = vmatprep.subr.bf16.mxu0 %v707
    %1236 = vmatpush1.bf16.msra.mxu0 %v706
    %1237 = vmatprep.subr.bf16.mxu0 %v715
    %1238 = vmatpush1.bf16.msra.mxu0 %v714
    %1239 = vmatprep.subr.bf16.mxu0 %v723
    %1240 = vmatpush1.bf16.msra.mxu0 %v722
    %1241 = vmatprep.subr.bf16.mxu0 %v731
    %1242 = vmatpush1.bf16.msra.mxu0 %v730
    %1243 = vmatprep.subr.bf16.mxu0 %v739
    %1244 = vmatpush1.bf16.msra.mxu0 %v738
    %1245 = vmatprep.subr.bf16.mxu0 %v747
    %1246 = vmatpush1.bf16.msra.mxu0 %v746
    %1247 = vmatprep.subr.bf16.mxu0 %v755
    %1248 = vmatpush1.bf16.msra.mxu0 %v754
    %1249 = vmatprep.subr.bf16.mxu0 %v763
    %1250 = vmatpush1.bf16.msra.mxu0 %v762
    %1251 = vmatprep.subr.bf16.mxu0 %v771
    %1252 = vmatpush1.bf16.msra.mxu0 %v770
    %1253 = vmatprep.subr.bf16.mxu0 %v779
    %1254 = vmatpush1.bf16.msra.mxu0 %v778
    %1255 = vmatprep.subr.bf16.mxu0 %v787
    %1256 = vmatpush1.bf16.msra.mxu0 %v786
    %1257 = vmatprep.mubr.bf16.mxu0 %v1224
    %1258 = vmatmul.mubr.bf16.gmra.mrb[0].mxu0 %v1223
    %v1259 = vpop.f32.mrb[0].mxu0
    %v1260 = vadd.f32 0.0, %v1259
    %v1261 = vpop.f32.mrb[0].mxu0
    %v1262 = vadd.f32 0.0, %v1261
    %v1263 = vpop.f32.mrb[0].mxu0
    %v1264 = vadd.f32 0.0, %v1263
    %v1265 = vpop.f32.mrb[0].mxu0
    %v1266 = vadd.f32 0.0, %v1265
    %1267 = vdwg.mxu0
    %1268 = vmatprep.subr.bf16.mxu0 %v669
    %1269 = vmatpush1.bf16.msra.mxu0 %v668
    %1270 = vmatprep.subr.bf16.mxu0 %v677
    %1271 = vmatpush1.bf16.msra.mxu0 %v676
    %1272 = vmatprep.subr.bf16.mxu0 %v685
    %1273 = vmatpush1.bf16.msra.mxu0 %v684
    %1274 = vmatprep.subr.bf16.mxu0 %v693
    %1275 = vmatpush1.bf16.msra.mxu0 %v692
    %1276 = vmatprep.subr.bf16.mxu0 %v701
    %1277 = vmatpush1.bf16.msra.mxu0 %v700
    %1278 = vmatprep.subr.bf16.mxu0 %v709
    %1279 = vmatpush1.bf16.msra.mxu0 %v708
    %1280 = vmatprep.subr.bf16.mxu0 %v717
    %1281 = vmatpush1.bf16.msra.mxu0 %v716
    %1282 = vmatprep.subr.bf16.mxu0 %v725
    %1283 = vmatpush1.bf16.msra.mxu0 %v724
    %1284 = vmatprep.subr.bf16.mxu0 %v733
    %1285 = vmatpush1.bf16.msra.mxu0 %v732
    %1286 = vmatprep.subr.bf16.mxu0 %v741
    %1287 = vmatpush1.bf16.msra.mxu0 %v740
    %1288 = vmatprep.subr.bf16.mxu0 %v749
    %1289 = vmatpush1.bf16.msra.mxu0 %v748
    %1290 = vmatprep.subr.bf16.mxu0 %v757
    %1291 = vmatpush1.bf16.msra.mxu0 %v756
    %1292 = vmatprep.subr.bf16.mxu0 %v765
    %1293 = vmatpush1.bf16.msra.mxu0 %v764
    %1294 = vmatprep.subr.bf16.mxu0 %v773
    %1295 = vmatpush1.bf16.msra.mxu0 %v772
    %1296 = vmatprep.subr.bf16.mxu0 %v781
    %1297 = vmatpush1.bf16.msra.mxu0 %v780
    %1298 = vmatprep.subr.bf16.mxu0 %v789
    %1299 = vmatpush1.bf16.msra.mxu0 %v788
    %1300 = vmatprep.mubr.bf16.mxu0 %v1224
    %1301 = vmatmul.mubr.bf16.gmra.mrb[0].mxu0 %v1223
    %v1302 = vpop.f32.mrb[0].mxu0
    %v1303 = vadd.f32 0.0, %v1302
    %v1304 = vpop.f32.mrb[0].mxu0
    %v1305 = vadd.f32 0.0, %v1304
    %v1306 = vpop.f32.mrb[0].mxu0
    %v1307 = vadd.f32 0.0, %v1306
    %v1308 = vpop.f32.mrb[0].mxu0
    %v1309 = vadd.f32 0.0, %v1308
    %1310 = vdwg.mxu0
    %1311 = vmatprep.subr.bf16.mxu0 %v671
    %1312 = vmatpush1.bf16.msra.mxu0 %v670
    %1313 = vmatprep.subr.bf16.mxu0 %v679
    %1314 = vmatpush1.bf16.msra.mxu0 %v678
    %1315 = vmatprep.subr.bf16.mxu0 %v687
    %1316 = vmatpush1.bf16.msra.mxu0 %v686
    %1317 = vmatprep.subr.bf16.mxu0 %v695
    %1318 = vmatpush1.bf16.msra.mxu0 %v694
    %1319 = vmatprep.subr.bf16.mxu0 %v703
    %1320 = vmatpush1.bf16.msra.mxu0 %v702
    %1321 = vmatprep.subr.bf16.mxu0 %v711
    %1322 = vmatpush1.bf16.msra.mxu0 %v710
    %1323 = vmatprep.subr.bf16.mxu0 %v719
    %1324 = vmatpush1.bf16.msra.mxu0 %v718
    %1325 = vmatprep.subr.bf16.mxu0 %v727
    %1326 = vmatpush1.bf16.msra.mxu0 %v726
    %1327 = vmatprep.subr.bf16.mxu0 %v735
    %1328 = vmatpush1.bf16.msra.mxu0 %v734
    %1329 = vmatprep.subr.bf16.mxu0 %v743
    %1330 = vmatpush1.bf16.msra.mxu0 %v742
    %1331 = vmatprep.subr.bf16.mxu0 %v751
    %1332 = vmatpush1.bf16.msra.mxu0 %v750
    %1333 = vmatprep.subr.bf16.mxu0 %v759
    %1334 = vmatpush1.bf16.msra.mxu0 %v758
    %1335 = vmatprep.subr.bf16.mxu0 %v767
    %1336 = vmatpush1.bf16.msra.mxu0 %v766
    %1337 = vmatprep.subr.bf16.mxu0 %v775
    %1338 = vmatpush1.bf16.msra.mxu0 %v774
    %1339 = vmatprep.subr.bf16.mxu0 %v783
    %1340 = vmatpush1.bf16.msra.mxu0 %v782
    %1341 = vmatprep.subr.bf16.mxu0 %v791
    %1342 = vmatpush1.bf16.msra.mxu0 %v790
    %1343 = vmatprep.mubr.bf16.mxu0 %v1224
    %1344 = vmatmul.mubr.bf16.gmra.mrb[0].mxu0 %v1223
    %v1345 = vpop.f32.mrb[0].mxu0
    %v1346 = vadd.f32 0.0, %v1345
    %v1347 = vpop.f32.mrb[0].mxu0
    %v1348 = vadd.f32 0.0, %v1347
    %v1349 = vpop.f32.mrb[0].mxu0
    %v1350 = vadd.f32 0.0, %v1349
    %v1351 = vpop.f32.mrb[0].mxu0
    %v1352 = vadd.f32 0.0, %v1351
    %1353 = vdwg.mxu0
    %1354 = vmatprep.subr.bf16.mxu0 %v673
    %1355 = vmatpush1.bf16.msra.mxu0 %v672
    %1356 = vmatprep.subr.bf16.mxu0 %v681
    %1357 = vmatpush1.bf16.msra.mxu0 %v680
    %1358 = vmatprep.subr.bf16.mxu0 %v689
    %1359 = vmatpush1.bf16.msra.mxu0 %v688
    %1360 = vmatprep.subr.bf16.mxu0 %v697
    %1361 = vmatpush1.bf16.msra.mxu0 %v696
    %1362 = vmatprep.subr.bf16.mxu0 %v705
    %1363 = vmatpush1.bf16.msra.mxu0 %v704
    %1364 = vmatprep.subr.bf16.mxu0 %v713
    %1365 = vmatpush1.bf16.msra.mxu0 %v712
    %1366 = vmatprep.subr.bf16.mxu0 %v721
    %1367 = vmatpush1.bf16.msra.mxu0 %v720
    %1368 = vmatprep.subr.bf16.mxu0 %v729
    %1369 = vmatpush1.bf16.msra.mxu0 %v728
    %1370 = vmatprep.subr.bf16.mxu0 %v737
    %1371 = vmatpush1.bf16.msra.mxu0 %v736
    %1372 = vmatprep.subr.bf16.mxu0 %v745
    %1373 = vmatpush1.bf16.msra.mxu0 %v744
    %1374 = vmatprep.subr.bf16.mxu0 %v753
    %1375 = vmatpush1.bf16.msra.mxu0 %v752
    %1376 = vmatprep.subr.bf16.mxu0 %v761
    %1377 = vmatpush1.bf16.msra.mxu0 %v760
    %1378 = vmatprep.subr.bf16.mxu0 %v769
    %1379 = vmatpush1.bf16.msra.mxu0 %v768
    %1380 = vmatprep.subr.bf16.mxu0 %v777
    %1381 = vmatpush1.bf16.msra.mxu0 %v776
    %1382 = vmatprep.subr.bf16.mxu0 %v785
    %1383 = vmatpush1.bf16.msra.mxu0 %v784
    %1384 = vmatprep.subr.bf16.mxu0 %v793
    %1385 = vmatpush1.bf16.msra.mxu0 %v792
    %1386 = vmatprep.mubr.bf16.mxu0 %v1224
    %1387 = vmatmul.mubr.bf16.gmra.mrb[0].mxu0 %v1223
    %v1388 = vpop.f32.mrb[0].mxu0
    %v1389 = vadd.f32 0.0, %v1388
    %v1390 = vpop.f32.mrb[0].mxu0
    %v1391 = vadd.f32 0.0, %v1390
    %v1392 = vpop.f32.mrb[0].mxu0
    %v1393 = vadd.f32 0.0, %v1392
    %v1394 = vpop.f32.mrb[0].mxu0
    %v1395 = vadd.f32 0.0, %v1394
    %1396 = vdwg.mxu0
    %v1397 = vadd.f32 %v1207, %v1260
    %v1398 = vadd.f32 %v1208, %v1262
    %v1399 = vadd.f32 %v1209, %v1303
    %v1400 = vadd.f32 %v1210, %v1305
    %v1401 = vadd.f32 %v1211, %v1346
    %v1402 = vadd.f32 %v1212, %v1348
    %v1403 = vadd.f32 %v1213, %v1389
    %v1404 = vadd.f32 %v1214, %v1391
    %v1405 = vadd.f32 %v1215, %v1264
    %v1406 = vadd.f32 %v1216, %v1266
    %v1407 = vadd.f32 %v1217, %v1307
    %v1408 = vadd.f32 %v1218, %v1309
    %v1409 = vadd.f32 %v1219, %v1350
    %v1410 = vadd.f32 %v1220, %v1352
    %v1411 = vadd.f32 %v1221, %v1393
    %v1412 = vadd.f32 %v1222, %v1395
    %v1413 = vxor.u32 %v1397, 2147483648
    %v1414 = vxor.u32 %v1398, 2147483648
    %v1415 = vxor.u32 %v1405, 2147483648
    %v1416 = vxor.u32 %v1406, 2147483648
    %v1417 = vmul.f32 %v1413, 1.442695
    %v1418 = vpow.pop %v1417
    %v1419 = vmul.f32 %v1414, 1.442695
    %v1420 = vpow.pop %v1419
    %v1421 = vmul.f32 %v1415, 1.442695
    %v1422 = vpow.pop %v1421
    %v1423 = vmul.f32 %v1416, 1.442695
    %v1424 = vpow.pop %v1423
    %v1425 = vadd.f32 %v1418, 1.0
    %v1426 = vadd.f32 %v1420, 1.0
    %v1427 = vadd.f32 %v1422, 1.0
    %v1428 = vadd.f32 %v1424, 1.0
    %v1429 = vrcp.pop %v1425
    %v1430 = vmul.f32 1.0, %v1429
    %v1431 = vrcp.pop %v1426
    %v1432 = vmul.f32 1.0, %v1431
    %v1433 = vrcp.pop %v1427
    %v1434 = vmul.f32 1.0, %v1433
    %v1435 = vrcp.pop %v1428
    %v1436 = vmul.f32 1.0, %v1435
    %v1437 = vxor.u32 %v1399, 2147483648
    %v1438 = vxor.u32 %v1400, 2147483648
    %v1439 = vxor.u32 %v1407, 2147483648
    %v1440 = vxor.u32 %v1408, 2147483648
    %v1441 = vmul.f32 %v1437, 1.442695
    %v1442 = vpow.pop %v1441
    %v1443 = vmul.f32 %v1438, 1.442695
    %v1444 = vpow.pop %v1443
    %v1445 = vmul.f32 %v1439, 1.442695
    %v1446 = vpow.pop %v1445
    %v1447 = vmul.f32 %v1440, 1.442695
    %v1448 = vpow.pop %v1447
    %v1449 = vadd.f32 %v1442, 1.0
    %v1450 = vadd.f32 %v1444, 1.0
    %v1451 = vadd.f32 %v1446, 1.0
    %v1452 = vadd.f32 %v1448, 1.0
    %v1453 = vrcp.pop %v1449
    %v1454 = vmul.f32 1.0, %v1453
    %v1455 = vrcp.pop %v1450
    %v1456 = vmul.f32 1.0, %v1455
    %v1457 = vrcp.pop %v1451
    %v1458 = vmul.f32 1.0, %v1457
    %v1459 = vrcp.pop %v1452
    %v1460 = vmul.f32 1.0, %v1459
    %v1461 = vtanh.pop %v1401
    %v1462 = vtanh.pop %v1402
    %v1463 = vtanh.pop %v1409
    %v1464 = vtanh.pop %v1410
    %v1465 = vxor.u32 %v1403, 2147483648
    %v1466 = vxor.u32 %v1404, 2147483648
    %v1467 = vxor.u32 %v1411, 2147483648
    %v1468 = vxor.u32 %v1412, 2147483648
    %v1469 = vmul.f32 %v1465, 1.442695
    %v1470 = vpow.pop %v1469
    %v1471 = vmul.f32 %v1466, 1.442695
    %v1472 = vpow.pop %v1471
    %v1473 = vmul.f32 %v1467, 1.442695
    %v1474 = vpow.pop %v1473
    %v1475 = vmul.f32 %v1468, 1.442695
    %v1476 = vpow.pop %v1475
    %v1477 = vadd.f32 %v1470, 1.0
    %v1478 = vadd.f32 %v1472, 1.0
    %v1479 = vadd.f32 %v1474, 1.0
    %v1480 = vadd.f32 %v1476, 1.0
    %v1481 = vrcp.pop %v1477
    %v1482 = vmul.f32 1.0, %v1481
    %v1483 = vrcp.pop %v1478
    %v1484 = vmul.f32 1.0, %v1483
    %v1485 = vrcp.pop %v1479
    %v1486 = vmul.f32 1.0, %v1485
    %v1487 = vrcp.pop %v1480
    %v1488 = vmul.f32 1.0, %v1487
    %v1489 = vmul.f32 %v1454, %v1194
    %v1490 = vmul.f32 %v1456, %v1195
    %v1491 = vmul.f32 %v1458, %v1196
    %v1492 = vmul.f32 %v1460, %v1197
    %v1493 = vmul.f32 %v1430, %v1461
    %v1494 = vmul.f32 %v1432, %v1462
    %v1495 = vmul.f32 %v1434, %v1463
    %v1496 = vmul.f32 %v1436, %v1464
    %v1497 = vadd.f32 %v1489, %v1493
    %v1498 = vadd.f32 %v1490, %v1494
    %v1499 = vadd.f32 %v1491, %v1495
    %v1500 = vadd.f32 %v1492, %v1496
    %v1501 = vtanh.pop %v1497
    %v1502 = vtanh.pop %v1498
    %v1503 = vtanh.pop %v1499
    %v1504 = vtanh.pop %v1500
    %v1505 = vmul.f32 %v1482, %v1501
    %v1506 = vmul.f32 %v1484, %v1502
    %v1507 = vmul.f32 %v1486, %v1503
    %v1508 = vmul.f32 %v1488, %v1504
    %v1509 = vld [vmem:[#allocation7] sm:$0xff]
    %v1510 = vld [vmem:[#allocation7 + $0x8] sm:$0xff]
    %v1511 = vld [vmem:[#allocation7 + $0x10] sm:$0xff]
    %v1512 = vld [vmem:[#allocation7 + $0x18] sm:$0xff]
    %v1513 = vld [vmem:[#allocation7 + $0x20] sm:$0xff]
    %v1514 = vld [vmem:[#allocation7 + $0x28] sm:$0xff]
    %v1515 = vld [vmem:[#allocation7 + $0x30] sm:$0xff]
    %v1516 = vld [vmem:[#allocation7 + $0x38] sm:$0xff]
    %v1517 = vld [vmem:[#allocation7 + $0x40] sm:$0xff]
    %v1518 = vld [vmem:[#allocation7 + $0x48] sm:$0xff]
    %v1519 = vld [vmem:[#allocation7 + $0x50] sm:$0xff]
    %v1520 = vld [vmem:[#allocation7 + $0x58] sm:$0xff]
    %v1521 = vld [vmem:[#allocation7 + $0x60] sm:$0xff]
    %v1522 = vld [vmem:[#allocation7 + $0x68] sm:$0xff]
    %v1523 = vld [vmem:[#allocation7 + $0x70] sm:$0xff]
    %v1524 = vld [vmem:[#allocation7 + $0x78] sm:$0xff]
    %v1525 = vld [vmem:[#allocation7 + $0x80] sm:$0xff]
    %v1526 = vld [vmem:[#allocation7 + $0x88] sm:$0xff]
    %v1527 = vld [vmem:[#allocation7 + $0x90] sm:$0xff]
    %v1528 = vld [vmem:[#allocation7 + $0x98] sm:$0xff]
    %v1529 = vld [vmem:[#allocation7 + $0xa0] sm:$0xff]
    %v1530 = vld [vmem:[#allocation7 + $0xa8] sm:$0xff]
    %v1531 = vld [vmem:[#allocation7 + $0xb0] sm:$0xff]
    %v1532 = vld [vmem:[#allocation7 + $0xb8] sm:$0xff]
    %v1533 = vld [vmem:[#allocation7 + $0xc0] sm:$0xff]
    %v1534 = vld [vmem:[#allocation7 + $0xc8] sm:$0xff]
    %v1535 = vld [vmem:[#allocation7 + $0xd0] sm:$0xff]
    %v1536 = vld [vmem:[#allocation7 + $0xd8] sm:$0xff]
    %v1537 = vld [vmem:[#allocation7 + $0xe0] sm:$0xff]
    %v1538 = vld [vmem:[#allocation7 + $0xe8] sm:$0xff]
    %v1539 = vld [vmem:[#allocation7 + $0xf0] sm:$0xff]
    %v1540 = vld [vmem:[#allocation7 + $0xf8] sm:$0xff]
    %v1541 = vld [vmem:[#allocation7 + $0x100] sm:$0xff]
    %v1542 = vld [vmem:[#allocation7 + $0x108] sm:$0xff]
    %v1543 = vld [vmem:[#allocation7 + $0x110] sm:$0xff]
    %v1544 = vld [vmem:[#allocation7 + $0x118] sm:$0xff]
    %v1545 = vld [vmem:[#allocation7 + $0x120] sm:$0xff]
    %v1546 = vld [vmem:[#allocation7 + $0x128] sm:$0xff]
    %v1547 = vld [vmem:[#allocation7 + $0x130] sm:$0xff]
    %v1548 = vld [vmem:[#allocation7 + $0x138] sm:$0xff]
    %v1549 = vld [vmem:[#allocation7 + $0x140] sm:$0xff]
    %v1550 = vld [vmem:[#allocation7 + $0x148] sm:$0xff]
    %v1551 = vld [vmem:[#allocation7 + $0x150] sm:$0xff]
    %v1552 = vld [vmem:[#allocation7 + $0x158] sm:$0xff]
    %v1553 = vld [vmem:[#allocation7 + $0x160] sm:$0xff]
    %v1554 = vld [vmem:[#allocation7 + $0x168] sm:$0xff]
    %v1555 = vld [vmem:[#allocation7 + $0x170] sm:$0xff]
    %v1556 = vld [vmem:[#allocation7 + $0x178] sm:$0xff]
    %v1557 = vld [vmem:[#allocation7 + $0x180] sm:$0xff]
    %v1558 = vld [vmem:[#allocation7 + $0x188] sm:$0xff]
    %v1559 = vld [vmem:[#allocation7 + $0x190] sm:$0xff]
    %v1560 = vld [vmem:[#allocation7 + $0x198] sm:$0xff]
    %v1561 = vld [vmem:[#allocation7 + $0x1a0] sm:$0xff]
    %v1562 = vld [vmem:[#allocation7 + $0x1a8] sm:$0xff]
    %v1563 = vld [vmem:[#allocation7 + $0x1b0] sm:$0xff]
    %v1564 = vld [vmem:[#allocation7 + $0x1b8] sm:$0xff]
    %v1565 = vld [vmem:[#allocation7 + $0x1c0] sm:$0xff]
    %v1566 = vld [vmem:[#allocation7 + $0x1c8] sm:$0xff]
    %v1567 = vld [vmem:[#allocation7 + $0x1d0] sm:$0xff]
    %v1568 = vld [vmem:[#allocation7 + $0x1d8] sm:$0xff]
    %v1569 = vld [vmem:[#allocation7 + $0x1e0] sm:$0xff]
    %v1570 = vld [vmem:[#allocation7 + $0x1e8] sm:$0xff]
    %v1571 = vld [vmem:[#allocation7 + $0x1f0] sm:$0xff]
    %v1572 = vld [vmem:[#allocation7 + $0x1f8] sm:$0xff]
    %v1573 = vld [vmem:[#allocation7 + $0x200] sm:$0xff]
    %v1574 = vld [vmem:[#allocation7 + $0x208] sm:$0xff]
    %v1575 = vld [vmem:[#allocation7 + $0x210] sm:$0xff]
    %v1576 = vld [vmem:[#allocation7 + $0x218] sm:$0xff]
    %v1577 = vld [vmem:[#allocation7 + $0x220] sm:$0xff]
    %v1578 = vld [vmem:[#allocation7 + $0x228] sm:$0xff]
    %v1579 = vld [vmem:[#allocation7 + $0x230] sm:$0xff]
    %v1580 = vld [vmem:[#allocation7 + $0x238] sm:$0xff]
    %v1581 = vld [vmem:[#allocation7 + $0x240] sm:$0xff]
    %v1582 = vld [vmem:[#allocation7 + $0x248] sm:$0xff]
    %v1583 = vld [vmem:[#allocation7 + $0x250] sm:$0xff]
    %v1584 = vld [vmem:[#allocation7 + $0x258] sm:$0xff]
    %v1585 = vld [vmem:[#allocation7 + $0x260] sm:$0xff]
    %v1586 = vld [vmem:[#allocation7 + $0x268] sm:$0xff]
    %v1587 = vld [vmem:[#allocation7 + $0x270] sm:$0xff]
    %v1588 = vld [vmem:[#allocation7 + $0x278] sm:$0xff]
    %v1589 = vld [vmem:[#allocation7 + $0x280] sm:$0xff]
    %v1590 = vld [vmem:[#allocation7 + $0x288] sm:$0xff]
    %v1591 = vld [vmem:[#allocation7 + $0x290] sm:$0xff]
    %v1592 = vld [vmem:[#allocation7 + $0x298] sm:$0xff]
    %v1593 = vld [vmem:[#allocation7 + $0x2a0] sm:$0xff]
    %v1594 = vld [vmem:[#allocation7 + $0x2a8] sm:$0xff]
    %v1595 = vld [vmem:[#allocation7 + $0x2b0] sm:$0xff]
    %v1596 = vld [vmem:[#allocation7 + $0x2b8] sm:$0xff]
    %v1597 = vld [vmem:[#allocation7 + $0x2c0] sm:$0xff]
    %v1598 = vld [vmem:[#allocation7 + $0x2c8] sm:$0xff]
    %v1599 = vld [vmem:[#allocation7 + $0x2d0] sm:$0xff]
    %v1600 = vld [vmem:[#allocation7 + $0x2d8] sm:$0xff]
    %v1601 = vld [vmem:[#allocation7 + $0x2e0] sm:$0xff]
    %v1602 = vld [vmem:[#allocation7 + $0x2e8] sm:$0xff]
    %v1603 = vld [vmem:[#allocation7 + $0x2f0] sm:$0xff]
    %v1604 = vld [vmem:[#allocation7 + $0x2f8] sm:$0xff]
    %v1605 = vld [vmem:[#allocation7 + $0x300] sm:$0xff]
    %v1606 = vld [vmem:[#allocation7 + $0x308] sm:$0xff]
    %v1607 = vld [vmem:[#allocation7 + $0x310] sm:$0xff]
    %v1608 = vld [vmem:[#allocation7 + $0x318] sm:$0xff]
    %v1609 = vld [vmem:[#allocation7 + $0x320] sm:$0xff]
    %v1610 = vld [vmem:[#allocation7 + $0x328] sm:$0xff]
    %v1611 = vld [vmem:[#allocation7 + $0x330] sm:$0xff]
    %v1612 = vld [vmem:[#allocation7 + $0x338] sm:$0xff]
    %v1613 = vld [vmem:[#allocation7 + $0x340] sm:$0xff]
    %v1614 = vld [vmem:[#allocation7 + $0x348] sm:$0xff]
    %v1615 = vld [vmem:[#allocation7 + $0x350] sm:$0xff]
    %v1616 = vld [vmem:[#allocation7 + $0x358] sm:$0xff]
    %v1617 = vld [vmem:[#allocation7 + $0x360] sm:$0xff]
    %v1618 = vld [vmem:[#allocation7 + $0x368] sm:$0xff]
    %v1619 = vld [vmem:[#allocation7 + $0x370] sm:$0xff]
    %v1620 = vld [vmem:[#allocation7 + $0x378] sm:$0xff]
    %v1621 = vld [vmem:[#allocation7 + $0x380] sm:$0xff]
    %v1622 = vld [vmem:[#allocation7 + $0x388] sm:$0xff]
    %v1623 = vld [vmem:[#allocation7 + $0x390] sm:$0xff]
    %v1624 = vld [vmem:[#allocation7 + $0x398] sm:$0xff]
    %v1625 = vld [vmem:[#allocation7 + $0x3a0] sm:$0xff]
    %v1626 = vld [vmem:[#allocation7 + $0x3a8] sm:$0xff]
    %v1627 = vld [vmem:[#allocation7 + $0x3b0] sm:$0xff]
    %v1628 = vld [vmem:[#allocation7 + $0x3b8] sm:$0xff]
    %v1629 = vld [vmem:[#allocation7 + $0x3c0] sm:$0xff]
    %v1630 = vld [vmem:[#allocation7 + $0x3c8] sm:$0xff]
    %v1631 = vld [vmem:[#allocation7 + $0x3d0] sm:$0xff]
    %v1632 = vld [vmem:[#allocation7 + $0x3d8] sm:$0xff]
    %v1633 = vld [vmem:[#allocation7 + $0x3e0] sm:$0xff]
    %v1634 = vld [vmem:[#allocation7 + $0x3e8] sm:$0xff]
    %v1635 = vld [vmem:[#allocation7 + $0x3f0] sm:$0xff]
    %v1636 = vld [vmem:[#allocation7 + $0x3f8] sm:$0xff]
    %v1637 = vld [vmem:[#allocation8] sm:$0xff]
    %v1638 = vld [vmem:[#allocation8 + $0x8] sm:$0xff]
    %v1639 = vld [vmem:[#allocation8 + $0x10] sm:$0xff]
    %v1640 = vld [vmem:[#allocation8 + $0x18] sm:$0xff]
    %v1641 = vld [vmem:[#allocation8 + $0x20] sm:$0xff]
    %v1642 = vld [vmem:[#allocation8 + $0x28] sm:$0xff]
    %v1643 = vld [vmem:[#allocation8 + $0x30] sm:$0xff]
    %v1644 = vld [vmem:[#allocation8 + $0x38] sm:$0xff]
    %v1645 = vld [vmem:[#allocation8 + $0x40] sm:$0xff]
    %v1646 = vld [vmem:[#allocation8 + $0x48] sm:$0xff]
    %v1647 = vld [vmem:[#allocation8 + $0x50] sm:$0xff]
    %v1648 = vld [vmem:[#allocation8 + $0x58] sm:$0xff]
    %v1649 = vld [vmem:[#allocation8 + $0x60] sm:$0xff]
    %v1650 = vld [vmem:[#allocation8 + $0x68] sm:$0xff]
    %v1651 = vld [vmem:[#allocation8 + $0x70] sm:$0xff]
    %v1652 = vld [vmem:[#allocation8 + $0x78] sm:$0xff]
    %v1653 = vld [vmem:[#allocation8 + $0x80] sm:$0xff]
    %v1654 = vld [vmem:[#allocation8 + $0x88] sm:$0xff]
    %v1655 = vld [vmem:[#allocation8 + $0x90] sm:$0xff]
    %v1656 = vld [vmem:[#allocation8 + $0x98] sm:$0xff]
    %v1657 = vld [vmem:[#allocation8 + $0xa0] sm:$0xff]
    %v1658 = vld [vmem:[#allocation8 + $0xa8] sm:$0xff]
    %v1659 = vld [vmem:[#allocation8 + $0xb0] sm:$0xff]
    %v1660 = vld [vmem:[#allocation8 + $0xb8] sm:$0xff]
    %v1661 = vld [vmem:[#allocation8 + $0xc0] sm:$0xff]
    %v1662 = vld [vmem:[#allocation8 + $0xc8] sm:$0xff]
    %v1663 = vld [vmem:[#allocation8 + $0xd0] sm:$0xff]
    %v1664 = vld [vmem:[#allocation8 + $0xd8] sm:$0xff]
    %v1665 = vld [vmem:[#allocation8 + $0xe0] sm:$0xff]
    %v1666 = vld [vmem:[#allocation8 + $0xe8] sm:$0xff]
    %v1667 = vld [vmem:[#allocation8 + $0xf0] sm:$0xff]
    %v1668 = vld [vmem:[#allocation8 + $0xf8] sm:$0xff]
    %v1669 = vld [vmem:[#allocation8 + $0x100] sm:$0xff]
    %v1670 = vld [vmem:[#allocation8 + $0x108] sm:$0xff]
    %v1671 = vld [vmem:[#allocation8 + $0x110] sm:$0xff]
    %v1672 = vld [vmem:[#allocation8 + $0x118] sm:$0xff]
    %v1673 = vld [vmem:[#allocation8 + $0x120] sm:$0xff]
    %v1674 = vld [vmem:[#allocation8 + $0x128] sm:$0xff]
    %v1675 = vld [vmem:[#allocation8 + $0x130] sm:$0xff]
    %v1676 = vld [vmem:[#allocation8 + $0x138] sm:$0xff]
    %v1677 = vld [vmem:[#allocation8 + $0x140] sm:$0xff]
    %v1678 = vld [vmem:[#allocation8 + $0x148] sm:$0xff]
    %v1679 = vld [vmem:[#allocation8 + $0x150] sm:$0xff]
    %v1680 = vld [vmem:[#allocation8 + $0x158] sm:$0xff]
    %v1681 = vld [vmem:[#allocation8 + $0x160] sm:$0xff]
    %v1682 = vld [vmem:[#allocation8 + $0x168] sm:$0xff]
    %v1683 = vld [vmem:[#allocation8 + $0x170] sm:$0xff]
    %v1684 = vld [vmem:[#allocation8 + $0x178] sm:$0xff]
    %v1685 = vld [vmem:[#allocation8 + $0x180] sm:$0xff]
    %v1686 = vld [vmem:[#allocation8 + $0x188] sm:$0xff]
    %v1687 = vld [vmem:[#allocation8 + $0x190] sm:$0xff]
    %v1688 = vld [vmem:[#allocation8 + $0x198] sm:$0xff]
    %v1689 = vld [vmem:[#allocation8 + $0x1a0] sm:$0xff]
    %v1690 = vld [vmem:[#allocation8 + $0x1a8] sm:$0xff]
    %v1691 = vld [vmem:[#allocation8 + $0x1b0] sm:$0xff]
    %v1692 = vld [vmem:[#allocation8 + $0x1b8] sm:$0xff]
    %v1693 = vld [vmem:[#allocation8 + $0x1c0] sm:$0xff]
    %v1694 = vld [vmem:[#allocation8 + $0x1c8] sm:$0xff]
    %v1695 = vld [vmem:[#allocation8 + $0x1d0] sm:$0xff]
    %v1696 = vld [vmem:[#allocation8 + $0x1d8] sm:$0xff]
    %v1697 = vld [vmem:[#allocation8 + $0x1e0] sm:$0xff]
    %v1698 = vld [vmem:[#allocation8 + $0x1e8] sm:$0xff]
    %v1699 = vld [vmem:[#allocation8 + $0x1f0] sm:$0xff]
    %v1700 = vld [vmem:[#allocation8 + $0x1f8] sm:$0xff]
    %v1701 = vld [vmem:[#allocation8 + $0x200] sm:$0xff]
    %v1702 = vld [vmem:[#allocation8 + $0x208] sm:$0xff]
    %v1703 = vld [vmem:[#allocation8 + $0x210] sm:$0xff]
    %v1704 = vld [vmem:[#allocation8 + $0x218] sm:$0xff]
    %v1705 = vld [vmem:[#allocation8 + $0x220] sm:$0xff]
    %v1706 = vld [vmem:[#allocation8 + $0x228] sm:$0xff]
    %v1707 = vld [vmem:[#allocation8 + $0x230] sm:$0xff]
    %v1708 = vld [vmem:[#allocation8 + $0x238] sm:$0xff]
    %v1709 = vld [vmem:[#allocation8 + $0x240] sm:$0xff]
    %v1710 = vld [vmem:[#allocation8 + $0x248] sm:$0xff]
    %v1711 = vld [vmem:[#allocation8 + $0x250] sm:$0xff]
    %v1712 = vld [vmem:[#allocation8 + $0x258] sm:$0xff]
    %v1713 = vld [vmem:[#allocation8 + $0x260] sm:$0xff]
    %v1714 = vld [vmem:[#allocation8 + $0x268] sm:$0xff]
    %v1715 = vld [vmem:[#allocation8 + $0x270] sm:$0xff]
    %v1716 = vld [vmem:[#allocation8 + $0x278] sm:$0xff]
    %v1717 = vld [vmem:[#allocation8 + $0x280] sm:$0xff]
    %v1718 = vld [vmem:[#allocation8 + $0x288] sm:$0xff]
    %v1719 = vld [vmem:[#allocation8 + $0x290] sm:$0xff]
    %v1720 = vld [vmem:[#allocation8 + $0x298] sm:$0xff]
    %v1721 = vld [vmem:[#allocation8 + $0x2a0] sm:$0xff]
    %v1722 = vld [vmem:[#allocation8 + $0x2a8] sm:$0xff]
    %v1723 = vld [vmem:[#allocation8 + $0x2b0] sm:$0xff]
    %v1724 = vld [vmem:[#allocation8 + $0x2b8] sm:$0xff]
    %v1725 = vld [vmem:[#allocation8 + $0x2c0] sm:$0xff]
    %v1726 = vld [vmem:[#allocation8 + $0x2c8] sm:$0xff]
    %v1727 = vld [vmem:[#allocation8 + $0x2d0] sm:$0xff]
    %v1728 = vld [vmem:[#allocation8 + $0x2d8] sm:$0xff]
    %v1729 = vld [vmem:[#allocation8 + $0x2e0] sm:$0xff]
    %v1730 = vld [vmem:[#allocation8 + $0x2e8] sm:$0xff]
    %v1731 = vld [vmem:[#allocation8 + $0x2f0] sm:$0xff]
    %v1732 = vld [vmem:[#allocation8 + $0x2f8] sm:$0xff]
    %v1733 = vld [vmem:[#allocation8 + $0x300] sm:$0xff]
    %v1734 = vld [vmem:[#allocation8 + $0x308] sm:$0xff]
    %v1735 = vld [vmem:[#allocation8 + $0x310] sm:$0xff]
    %v1736 = vld [vmem:[#allocation8 + $0x318] sm:$0xff]
    %v1737 = vld [vmem:[#allocation8 + $0x320] sm:$0xff]
    %v1738 = vld [vmem:[#allocation8 + $0x328] sm:$0xff]
    %v1739 = vld [vmem:[#allocation8 + $0x330] sm:$0xff]
    %v1740 = vld [vmem:[#allocation8 + $0x338] sm:$0xff]
    %v1741 = vld [vmem:[#allocation8 + $0x340] sm:$0xff]
    %v1742 = vld [vmem:[#allocation8 + $0x348] sm:$0xff]
    %v1743 = vld [vmem:[#allocation8 + $0x350] sm:$0xff]
    %v1744 = vld [vmem:[#allocation8 + $0x358] sm:$0xff]
    %v1745 = vld [vmem:[#allocation8 + $0x360] sm:$0xff]
    %v1746 = vld [vmem:[#allocation8 + $0x368] sm:$0xff]
    %v1747 = vld [vmem:[#allocation8 + $0x370] sm:$0xff]
    %v1748 = vld [vmem:[#allocation8 + $0x378] sm:$0xff]
    %v1749 = vld [vmem:[#allocation8 + $0x380] sm:$0xff]
    %v1750 = vld [vmem:[#allocation8 + $0x388] sm:$0xff]
    %v1751 = vld [vmem:[#allocation8 + $0x390] sm:$0xff]
    %v1752 = vld [vmem:[#allocation8 + $0x398] sm:$0xff]
    %v1753 = vld [vmem:[#allocation8 + $0x3a0] sm:$0xff]
    %v1754 = vld [vmem:[#allocation8 + $0x3a8] sm:$0xff]
    %v1755 = vld [vmem:[#allocation8 + $0x3b0] sm:$0xff]
    %v1756 = vld [vmem:[#allocation8 + $0x3b8] sm:$0xff]
    %v1757 = vld [vmem:[#allocation8 + $0x3c0] sm:$0xff]
    %v1758 = vld [vmem:[#allocation8 + $0x3c8] sm:$0xff]
    %v1759 = vld [vmem:[#allocation8 + $0x3d0] sm:$0xff]
    %v1760 = vld [vmem:[#allocation8 + $0x3d8] sm:$0xff]
    %v1761 = vld [vmem:[#allocation8 + $0x3e0] sm:$0xff]
    %v1762 = vld [vmem:[#allocation8 + $0x3e8] sm:$0xff]
    %v1763 = vld [vmem:[#allocation8 + $0x3f0] sm:$0xff]
    %v1764 = vld [vmem:[#allocation8 + $0x3f8] sm:$0xff]
    %v1893 = vunpack.c.l.b16 %v1637
    %v1894 = vunpack.c.h.b16 %v1637
    %v1895 = vunpack.c.l.b16 %v1638
    %v1896 = vunpack.c.h.b16 %v1638
    %v1897 = vunpack.c.l.b16 %v1639
    %v1898 = vunpack.c.h.b16 %v1639
    %v1899 = vunpack.c.l.b16 %v1640
    %v1900 = vunpack.c.h.b16 %v1640
    %v1901 = vunpack.c.l.b16 %v1641
    %v1902 = vunpack.c.h.b16 %v1641
    %v1903 = vunpack.c.l.b16 %v1642
    %v1904 = vunpack.c.h.b16 %v1642
    %v1905 = vunpack.c.l.b16 %v1643
    %v1906 = vunpack.c.h.b16 %v1643
    %v1907 = vunpack.c.l.b16 %v1644
    %v1908 = vunpack.c.h.b16 %v1644
    %v1909 = vunpack.c.l.b16 %v1645
    %v1910 = vunpack.c.h.b16 %v1645
    %v1911 = vunpack.c.l.b16 %v1646
    %v1912 = vunpack.c.h.b16 %v1646
    %v1913 = vunpack.c.l.b16 %v1647
    %v1914 = vunpack.c.h.b16 %v1647
    %v1915 = vunpack.c.l.b16 %v1648
    %v1916 = vunpack.c.h.b16 %v1648
    %v1917 = vunpack.c.l.b16 %v1649
    %v1918 = vunpack.c.h.b16 %v1649
    %v1919 = vunpack.c.l.b16 %v1650
    %v1920 = vunpack.c.h.b16 %v1650
    %v1921 = vunpack.c.l.b16 %v1651
    %v1922 = vunpack.c.h.b16 %v1651
    %v1923 = vunpack.c.l.b16 %v1652
    %v1924 = vunpack.c.h.b16 %v1652
    %v1925 = vunpack.c.l.b16 %v1653
    %v1926 = vunpack.c.h.b16 %v1653
    %v1927 = vunpack.c.l.b16 %v1654
    %v1928 = vunpack.c.h.b16 %v1654
    %v1929 = vunpack.c.l.b16 %v1655
    %v1930 = vunpack.c.h.b16 %v1655
    %v1931 = vunpack.c.l.b16 %v1656
    %v1932 = vunpack.c.h.b16 %v1656
    %v1933 = vunpack.c.l.b16 %v1657
    %v1934 = vunpack.c.h.b16 %v1657
    %v1935 = vunpack.c.l.b16 %v1658
    %v1936 = vunpack.c.h.b16 %v1658
    %v1937 = vunpack.c.l.b16 %v1659
    %v1938 = vunpack.c.h.b16 %v1659
    %v1939 = vunpack.c.l.b16 %v1660
    %v1940 = vunpack.c.h.b16 %v1660
    %v1941 = vunpack.c.l.b16 %v1661
    %v1942 = vunpack.c.h.b16 %v1661
    %v1943 = vunpack.c.l.b16 %v1662
    %v1944 = vunpack.c.h.b16 %v1662
    %v1945 = vunpack.c.l.b16 %v1663
    %v1946 = vunpack.c.h.b16 %v1663
    %v1947 = vunpack.c.l.b16 %v1664
    %v1948 = vunpack.c.h.b16 %v1664
    %v1949 = vunpack.c.l.b16 %v1665
    %v1950 = vunpack.c.h.b16 %v1665
    %v1951 = vunpack.c.l.b16 %v1666
    %v1952 = vunpack.c.h.b16 %v1666
    %v1953 = vunpack.c.l.b16 %v1667
    %v1954 = vunpack.c.h.b16 %v1667
    %v1955 = vunpack.c.l.b16 %v1668
    %v1956 = vunpack.c.h.b16 %v1668
    %v1957 = vunpack.c.l.b16 %v1669
    %v1958 = vunpack.c.h.b16 %v1669
    %v1959 = vunpack.c.l.b16 %v1670
    %v1960 = vunpack.c.h.b16 %v1670
    %v1961 = vunpack.c.l.b16 %v1671
    %v1962 = vunpack.c.h.b16 %v1671
    %v1963 = vunpack.c.l.b16 %v1672
    %v1964 = vunpack.c.h.b16 %v1672
    %v1965 = vunpack.c.l.b16 %v1673
    %v1966 = vunpack.c.h.b16 %v1673
    %v1967 = vunpack.c.l.b16 %v1674
    %v1968 = vunpack.c.h.b16 %v1674
    %v1969 = vunpack.c.l.b16 %v1675
    %v1970 = vunpack.c.h.b16 %v1675
    %v1971 = vunpack.c.l.b16 %v1676
    %v1972 = vunpack.c.h.b16 %v1676
    %v1973 = vunpack.c.l.b16 %v1677
    %v1974 = vunpack.c.h.b16 %v1677
    %v1975 = vunpack.c.l.b16 %v1678
    %v1976 = vunpack.c.h.b16 %v1678
    %v1977 = vunpack.c.l.b16 %v1679
    %v1978 = vunpack.c.h.b16 %v1679
    %v1979 = vunpack.c.l.b16 %v1680
    %v1980 = vunpack.c.h.b16 %v1680
    %v1981 = vunpack.c.l.b16 %v1681
    %v1982 = vunpack.c.h.b16 %v1681
    %v1983 = vunpack.c.l.b16 %v1682
    %v1984 = vunpack.c.h.b16 %v1682
    %v1985 = vunpack.c.l.b16 %v1683
    %v1986 = vunpack.c.h.b16 %v1683
    %v1987 = vunpack.c.l.b16 %v1684
    %v1988 = vunpack.c.h.b16 %v1684
    %v1989 = vunpack.c.l.b16 %v1685
    %v1990 = vunpack.c.h.b16 %v1685
    %v1991 = vunpack.c.l.b16 %v1686
    %v1992 = vunpack.c.h.b16 %v1686
    %v1993 = vunpack.c.l.b16 %v1687
    %v1994 = vunpack.c.h.b16 %v1687
    %v1995 = vunpack.c.l.b16 %v1688
    %v1996 = vunpack.c.h.b16 %v1688
    %v1997 = vunpack.c.l.b16 %v1689
    %v1998 = vunpack.c.h.b16 %v1689
    %v1999 = vunpack.c.l.b16 %v1690
    %v2000 = vunpack.c.h.b16 %v1690
    %v2001 = vunpack.c.l.b16 %v1691
    %v2002 = vunpack.c.h.b16 %v1691
    %v2003 = vunpack.c.l.b16 %v1692
    %v2004 = vunpack.c.h.b16 %v1692
    %v2005 = vunpack.c.l.b16 %v1693
    %v2006 = vunpack.c.h.b16 %v1693
    %v2007 = vunpack.c.l.b16 %v1694
    %v2008 = vunpack.c.h.b16 %v1694
    %v2009 = vunpack.c.l.b16 %v1695
    %v2010 = vunpack.c.h.b16 %v1695
    %v2011 = vunpack.c.l.b16 %v1696
    %v2012 = vunpack.c.h.b16 %v1696
    %v2013 = vunpack.c.l.b16 %v1697
    %v2014 = vunpack.c.h.b16 %v1697
    %v2015 = vunpack.c.l.b16 %v1698
    %v2016 = vunpack.c.h.b16 %v1698
    %v2017 = vunpack.c.l.b16 %v1699
    %v2018 = vunpack.c.h.b16 %v1699
    %v2019 = vunpack.c.l.b16 %v1700
    %v2020 = vunpack.c.h.b16 %v1700
    %v2021 = vunpack.c.l.b16 %v1701
    %v2022 = vunpack.c.h.b16 %v1701
    %v2023 = vunpack.c.l.b16 %v1702
    %v2024 = vunpack.c.h.b16 %v1702
    %v2025 = vunpack.c.l.b16 %v1703
    %v2026 = vunpack.c.h.b16 %v1703
    %v2027 = vunpack.c.l.b16 %v1704
    %v2028 = vunpack.c.h.b16 %v1704
    %v2029 = vunpack.c.l.b16 %v1705
    %v2030 = vunpack.c.h.b16 %v1705
    %v2031 = vunpack.c.l.b16 %v1706
    %v2032 = vunpack.c.h.b16 %v1706
    %v2033 = vunpack.c.l.b16 %v1707
    %v2034 = vunpack.c.h.b16 %v1707
    %v2035 = vunpack.c.l.b16 %v1708
    %v2036 = vunpack.c.h.b16 %v1708
    %v2037 = vunpack.c.l.b16 %v1709
    %v2038 = vunpack.c.h.b16 %v1709
    %v2039 = vunpack.c.l.b16 %v1710
    %v2040 = vunpack.c.h.b16 %v1710
    %v2041 = vunpack.c.l.b16 %v1711
    %v2042 = vunpack.c.h.b16 %v1711
    %v2043 = vunpack.c.l.b16 %v1712
    %v2044 = vunpack.c.h.b16 %v1712
    %v2045 = vunpack.c.l.b16 %v1713
    %v2046 = vunpack.c.h.b16 %v1713
    %v2047 = vunpack.c.l.b16 %v1714
    %v2048 = vunpack.c.h.b16 %v1714
    %v2049 = vunpack.c.l.b16 %v1715
    %v2050 = vunpack.c.h.b16 %v1715
    %v2051 = vunpack.c.l.b16 %v1716
    %v2052 = vunpack.c.h.b16 %v1716
    %v2053 = vunpack.c.l.b16 %v1717
    %v2054 = vunpack.c.h.b16 %v1717
    %v2055 = vunpack.c.l.b16 %v1718
    %v2056 = vunpack.c.h.b16 %v1718
    %v2057 = vunpack.c.l.b16 %v1719
    %v2058 = vunpack.c.h.b16 %v1719
    %v2059 = vunpack.c.l.b16 %v1720
    %v2060 = vunpack.c.h.b16 %v1720
    %v2061 = vunpack.c.l.b16 %v1721
    %v2062 = vunpack.c.h.b16 %v1721
    %v2063 = vunpack.c.l.b16 %v1722
    %v2064 = vunpack.c.h.b16 %v1722
    %v2065 = vunpack.c.l.b16 %v1723
    %v2066 = vunpack.c.h.b16 %v1723
    %v2067 = vunpack.c.l.b16 %v1724
    %v2068 = vunpack.c.h.b16 %v1724
    %v2069 = vunpack.c.l.b16 %v1725
    %v2070 = vunpack.c.h.b16 %v1725
    %v2071 = vunpack.c.l.b16 %v1726
    %v2072 = vunpack.c.h.b16 %v1726
    %v2073 = vunpack.c.l.b16 %v1727
    %v2074 = vunpack.c.h.b16 %v1727
    %v2075 = vunpack.c.l.b16 %v1728
    %v2076 = vunpack.c.h.b16 %v1728
    %v2077 = vunpack.c.l.b16 %v1729
    %v2078 = vunpack.c.h.b16 %v1729
    %v2079 = vunpack.c.l.b16 %v1730
    %v2080 = vunpack.c.h.b16 %v1730
    %v2081 = vunpack.c.l.b16 %v1731
    %v2082 = vunpack.c.h.b16 %v1731
    %v2083 = vunpack.c.l.b16 %v1732
    %v2084 = vunpack.c.h.b16 %v1732
    %v2085 = vunpack.c.l.b16 %v1733
    %v2086 = vunpack.c.h.b16 %v1733
    %v2087 = vunpack.c.l.b16 %v1734
    %v2088 = vunpack.c.h.b16 %v1734
    %v2089 = vunpack.c.l.b16 %v1735
    %v2090 = vunpack.c.h.b16 %v1735
    %v2091 = vunpack.c.l.b16 %v1736
    %v2092 = vunpack.c.h.b16 %v1736
    %v2093 = vunpack.c.l.b16 %v1737
    %v2094 = vunpack.c.h.b16 %v1737
    %v2095 = vunpack.c.l.b16 %v1738
    %v2096 = vunpack.c.h.b16 %v1738
    %v2097 = vunpack.c.l.b16 %v1739
    %v2098 = vunpack.c.h.b16 %v1739
    %v2099 = vunpack.c.l.b16 %v1740
    %v2100 = vunpack.c.h.b16 %v1740
    %v2101 = vunpack.c.l.b16 %v1741
    %v2102 = vunpack.c.h.b16 %v1741
    %v2103 = vunpack.c.l.b16 %v1742
    %v2104 = vunpack.c.h.b16 %v1742
    %v2105 = vunpack.c.l.b16 %v1743
    %v2106 = vunpack.c.h.b16 %v1743
    %v2107 = vunpack.c.l.b16 %v1744
    %v2108 = vunpack.c.h.b16 %v1744
    %v2109 = vunpack.c.l.b16 %v1745
    %v2110 = vunpack.c.h.b16 %v1745
    %v2111 = vunpack.c.l.b16 %v1746
    %v2112 = vunpack.c.h.b16 %v1746
    %v2113 = vunpack.c.l.b16 %v1747
    %v2114 = vunpack.c.h.b16 %v1747
    %v2115 = vunpack.c.l.b16 %v1748
    %v2116 = vunpack.c.h.b16 %v1748
    %v2117 = vunpack.c.l.b16 %v1749
    %v2118 = vunpack.c.h.b16 %v1749
    %v2119 = vunpack.c.l.b16 %v1750
    %v2120 = vunpack.c.h.b16 %v1750
    %v2121 = vunpack.c.l.b16 %v1751
    %v2122 = vunpack.c.h.b16 %v1751
    %v2123 = vunpack.c.l.b16 %v1752
    %v2124 = vunpack.c.h.b16 %v1752
    %v2125 = vunpack.c.l.b16 %v1753
    %v2126 = vunpack.c.h.b16 %v1753
    %v2127 = vunpack.c.l.b16 %v1754
    %v2128 = vunpack.c.h.b16 %v1754
    %v2129 = vunpack.c.l.b16 %v1755
    %v2130 = vunpack.c.h.b16 %v1755
    %v2131 = vunpack.c.l.b16 %v1756
    %v2132 = vunpack.c.h.b16 %v1756
    %v2133 = vunpack.c.l.b16 %v1757
    %v2134 = vunpack.c.h.b16 %v1757
    %v2135 = vunpack.c.l.b16 %v1758
    %v2136 = vunpack.c.h.b16 %v1758
    %v2137 = vunpack.c.l.b16 %v1759
    %v2138 = vunpack.c.h.b16 %v1759
    %v2139 = vunpack.c.l.b16 %v1760
    %v2140 = vunpack.c.h.b16 %v1760
    %v2141 = vunpack.c.l.b16 %v1761
    %v2142 = vunpack.c.h.b16 %v1761
    %v2143 = vunpack.c.l.b16 %v1762
    %v2144 = vunpack.c.h.b16 %v1762
    %v2145 = vunpack.c.l.b16 %v1763
    %v2146 = vunpack.c.h.b16 %v1763
    %v2147 = vunpack.c.l.b16 %v1764
    %v2148 = vunpack.c.h.b16 %v1764
    %v2149 = vpack.c.b16 %v1901, %v1893
    %v2150 = vpack.c.b16 %v1902, %v1894
    %v2151 = vpack.c.b16 %v1903, %v1895
    %v2152 = vpack.c.b16 %v1904, %v1896
    %v2153 = vpack.c.b16 %v1905, %v1897
    %v2154 = vpack.c.b16 %v1906, %v1898
    %v2155 = vpack.c.b16 %v1907, %v1899
    %v2156 = vpack.c.b16 %v1908, %v1900
    %v2157 = vpack.c.b16 %v1917, %v1909
    %v2158 = vpack.c.b16 %v1918, %v1910
    %v2159 = vpack.c.b16 %v1919, %v1911
    %v2160 = vpack.c.b16 %v1920, %v1912
    %v2161 = vpack.c.b16 %v1921, %v1913
    %v2162 = vpack.c.b16 %v1922, %v1914
    %v2163 = vpack.c.b16 %v1923, %v1915
    %v2164 = vpack.c.b16 %v1924, %v1916
    %v2165 = vpack.c.b16 %v1933, %v1925
    %v2166 = vpack.c.b16 %v1934, %v1926
    %v2167 = vpack.c.b16 %v1935, %v1927
    %v2168 = vpack.c.b16 %v1936, %v1928
    %v2169 = vpack.c.b16 %v1937, %v1929
    %v2170 = vpack.c.b16 %v1938, %v1930
    %v2171 = vpack.c.b16 %v1939, %v1931
    %v2172 = vpack.c.b16 %v1940, %v1932
    %v2173 = vpack.c.b16 %v1949, %v1941
    %v2174 = vpack.c.b16 %v1950, %v1942
    %v2175 = vpack.c.b16 %v1951, %v1943
    %v2176 = vpack.c.b16 %v1952, %v1944
    %v2177 = vpack.c.b16 %v1953, %v1945
    %v2178 = vpack.c.b16 %v1954, %v1946
    %v2179 = vpack.c.b16 %v1955, %v1947
    %v2180 = vpack.c.b16 %v1956, %v1948
    %v2181 = vpack.c.b16 %v1965, %v1957
    %v2182 = vpack.c.b16 %v1966, %v1958
    %v2183 = vpack.c.b16 %v1967, %v1959
    %v2184 = vpack.c.b16 %v1968, %v1960
    %v2185 = vpack.c.b16 %v1969, %v1961
    %v2186 = vpack.c.b16 %v1970, %v1962
    %v2187 = vpack.c.b16 %v1971, %v1963
    %v2188 = vpack.c.b16 %v1972, %v1964
    %v2189 = vpack.c.b16 %v1981, %v1973
    %v2190 = vpack.c.b16 %v1982, %v1974
    %v2191 = vpack.c.b16 %v1983, %v1975
    %v2192 = vpack.c.b16 %v1984, %v1976
    %v2193 = vpack.c.b16 %v1985, %v1977
    %v2194 = vpack.c.b16 %v1986, %v1978
    %v2195 = vpack.c.b16 %v1987, %v1979
    %v2196 = vpack.c.b16 %v1988, %v1980
    %v2197 = vpack.c.b16 %v1997, %v1989
    %v2198 = vpack.c.b16 %v1998, %v1990
    %v2199 = vpack.c.b16 %v1999, %v1991
    %v2200 = vpack.c.b16 %v2000, %v1992
    %v2201 = vpack.c.b16 %v2001, %v1993
    %v2202 = vpack.c.b16 %v2002, %v1994
    %v2203 = vpack.c.b16 %v2003, %v1995
    %v2204 = vpack.c.b16 %v2004, %v1996
    %v2205 = vpack.c.b16 %v2013, %v2005
    %v2206 = vpack.c.b16 %v2014, %v2006
    %v2207 = vpack.c.b16 %v2015, %v2007
    %v2208 = vpack.c.b16 %v2016, %v2008
    %v2209 = vpack.c.b16 %v2017, %v2009
    %v2210 = vpack.c.b16 %v2018, %v2010
    %v2211 = vpack.c.b16 %v2019, %v2011
    %v2212 = vpack.c.b16 %v2020, %v2012
    %v2213 = vpack.c.b16 %v2029, %v2021
    %v2214 = vpack.c.b16 %v2030, %v2022
    %v2215 = vpack.c.b16 %v2031, %v2023
    %v2216 = vpack.c.b16 %v2032, %v2024
    %v2217 = vpack.c.b16 %v2033, %v2025
    %v2218 = vpack.c.b16 %v2034, %v2026
    %v2219 = vpack.c.b16 %v2035, %v2027
    %v2220 = vpack.c.b16 %v2036, %v2028
    %v2221 = vpack.c.b16 %v2045, %v2037
    %v2222 = vpack.c.b16 %v2046, %v2038
    %v2223 = vpack.c.b16 %v2047, %v2039
    %v2224 = vpack.c.b16 %v2048, %v2040
    %v2225 = vpack.c.b16 %v2049, %v2041
    %v2226 = vpack.c.b16 %v2050, %v2042
    %v2227 = vpack.c.b16 %v2051, %v2043
    %v2228 = vpack.c.b16 %v2052, %v2044
    %v2229 = vpack.c.b16 %v2061, %v2053
    %v2230 = vpack.c.b16 %v2062, %v2054
    %v2231 = vpack.c.b16 %v2063, %v2055
    %v2232 = vpack.c.b16 %v2064, %v2056
    %v2233 = vpack.c.b16 %v2065, %v2057
    %v2234 = vpack.c.b16 %v2066, %v2058
    %v2235 = vpack.c.b16 %v2067, %v2059
    %v2236 = vpack.c.b16 %v2068, %v2060
    %v2237 = vpack.c.b16 %v2077, %v2069
    %v2238 = vpack.c.b16 %v2078, %v2070
    %v2239 = vpack.c.b16 %v2079, %v2071
    %v2240 = vpack.c.b16 %v2080, %v2072
    %v2241 = vpack.c.b16 %v2081, %v2073
    %v2242 = vpack.c.b16 %v2082, %v2074
    %v2243 = vpack.c.b16 %v2083, %v2075
    %v2244 = vpack.c.b16 %v2084, %v2076
    %v2245 = vpack.c.b16 %v2093, %v2085
    %v2246 = vpack.c.b16 %v2094, %v2086
    %v2247 = vpack.c.b16 %v2095, %v2087
    %v2248 = vpack.c.b16 %v2096, %v2088
    %v2249 = vpack.c.b16 %v2097, %v2089
    %v2250 = vpack.c.b16 %v2098, %v2090
    %v2251 = vpack.c.b16 %v2099, %v2091
    %v2252 = vpack.c.b16 %v2100, %v2092
    %v2253 = vpack.c.b16 %v2109, %v2101
    %v2254 = vpack.c.b16 %v2110, %v2102
    %v2255 = vpack.c.b16 %v2111, %v2103
    %v2256 = vpack.c.b16 %v2112, %v2104
    %v2257 = vpack.c.b16 %v2113, %v2105
    %v2258 = vpack.c.b16 %v2114, %v2106
    %v2259 = vpack.c.b16 %v2115, %v2107
    %v2260 = vpack.c.b16 %v2116, %v2108
    %v2261 = vpack.c.b16 %v2125, %v2117
    %v2262 = vpack.c.b16 %v2126, %v2118
    %v2263 = vpack.c.b16 %v2127, %v2119
    %v2264 = vpack.c.b16 %v2128, %v2120
    %v2265 = vpack.c.b16 %v2129, %v2121
    %v2266 = vpack.c.b16 %v2130, %v2122
    %v2267 = vpack.c.b16 %v2131, %v2123
    %v2268 = vpack.c.b16 %v2132, %v2124
    %v2269 = vpack.c.b16 %v2141, %v2133
    %v2270 = vpack.c.b16 %v2142, %v2134
    %v2271 = vpack.c.b16 %v2143, %v2135
    %v2272 = vpack.c.b16 %v2144, %v2136
    %v2273 = vpack.c.b16 %v2145, %v2137
    %v2274 = vpack.c.b16 %v2146, %v2138
    %v2275 = vpack.c.b16 %v2147, %v2139
    %v2276 = vpack.c.b16 %v2148, %v2140
    %2405 = vmatprep.subr.bf16.mxu0 %v2150
    %2406 = vmatpush1.bf16.msra.mxu0 %v2149
    %2407 = vmatprep.subr.bf16.mxu0 %v2158
    %2408 = vmatpush1.bf16.msra.mxu0 %v2157
    %2409 = vmatprep.subr.bf16.mxu0 %v2166
    %2410 = vmatpush1.bf16.msra.mxu0 %v2165
    %2411 = vmatprep.subr.bf16.mxu0 %v2174
    %2412 = vmatpush1.bf16.msra.mxu0 %v2173
    %2413 = vmatprep.subr.bf16.mxu0 %v2182
    %2414 = vmatpush1.bf16.msra.mxu0 %v2181
    %2415 = vmatprep.subr.bf16.mxu0 %v2190
    %2416 = vmatpush1.bf16.msra.mxu0 %v2189
    %2417 = vmatprep.subr.bf16.mxu0 %v2198
    %2418 = vmatpush1.bf16.msra.mxu0 %v2197
    %2419 = vmatprep.subr.bf16.mxu0 %v2206
    %2420 = vmatpush1.bf16.msra.mxu0 %v2205
    %2421 = vmatprep.subr.bf16.mxu0 %v2214
    %2422 = vmatpush1.bf16.msra.mxu0 %v2213
    %2423 = vmatprep.subr.bf16.mxu0 %v2222
    %2424 = vmatpush1.bf16.msra.mxu0 %v2221
    %2425 = vmatprep.subr.bf16.mxu0 %v2230
    %2426 = vmatpush1.bf16.msra.mxu0 %v2229
    %2427 = vmatprep.subr.bf16.mxu0 %v2238
    %2428 = vmatpush1.bf16.msra.mxu0 %v2237
    %2429 = vmatprep.subr.bf16.mxu0 %v2246
    %2430 = vmatpush1.bf16.msra.mxu0 %v2245
    %2431 = vmatprep.subr.bf16.mxu0 %v2254
    %2432 = vmatpush1.bf16.msra.mxu0 %v2253
    %2433 = vmatprep.subr.bf16.mxu0 %v2262
    %2434 = vmatpush1.bf16.msra.mxu0 %v2261
    %2435 = vmatprep.subr.bf16.mxu0 %v2270
    %2436 = vmatpush1.bf16.msra.mxu0 %v2269
    %2437 = vmatprep.mubr.bf16.mxu0 0
    %2438 = vmatmul.mubr.bf16.gmra.mrb[0].mxu0 0
    %v2439 = vpop.f32.mrb[0].mxu0
    %v2440 = vadd.f32 0.0, %v2439
    %v2441 = vpop.f32.mrb[0].mxu0
    %v2442 = vadd.f32 0.0, %v2441
    %v2443 = vpop.f32.mrb[0].mxu0
    %v2444 = vadd.f32 0.0, %v2443
    %v2445 = vpop.f32.mrb[0].mxu0
    %v2446 = vadd.f32 0.0, %v2445
    %2447 = vdwg.mxu0
    %2448 = vmatprep.subr.bf16.mxu0 %v2152
    %2449 = vmatpush1.bf16.msra.mxu0 %v2151
    %2450 = vmatprep.subr.bf16.mxu0 %v2160
    %2451 = vmatpush1.bf16.msra.mxu0 %v2159
    %2452 = vmatprep.subr.bf16.mxu0 %v2168
    %2453 = vmatpush1.bf16.msra.mxu0 %v2167
    %2454 = vmatprep.subr.bf16.mxu0 %v2176
    %2455 = vmatpush1.bf16.msra.mxu0 %v2175
    %2456 = vmatprep.subr.bf16.mxu0 %v2184
    %2457 = vmatpush1.bf16.msra.mxu0 %v2183
    %2458 = vmatprep.subr.bf16.mxu0 %v2192
    %2459 = vmatpush1.bf16.msra.mxu0 %v2191
    %2460 = vmatprep.subr.bf16.mxu0 %v2200
    %2461 = vmatpush1.bf16.msra.mxu0 %v2199
    %2462 = vmatprep.subr.bf16.mxu0 %v2208
    %2463 = vmatpush1.bf16.msra.mxu0 %v2207
    %2464 = vmatprep.subr.bf16.mxu0 %v2216
    %2465 = vmatpush1.bf16.msra.mxu0 %v2215
    %2466 = vmatprep.subr.bf16.mxu0 %v2224
    %2467 = vmatpush1.bf16.msra.mxu0 %v2223
    %2468 = vmatprep.subr.bf16.mxu0 %v2232
    %2469 = vmatpush1.bf16.msra.mxu0 %v2231
    %2470 = vmatprep.subr.bf16.mxu0 %v2240
    %2471 = vmatpush1.bf16.msra.mxu0 %v2239
    %2472 = vmatprep.subr.bf16.mxu0 %v2248
    %2473 = vmatpush1.bf16.msra.mxu0 %v2247
    %2474 = vmatprep.subr.bf16.mxu0 %v2256
    %2475 = vmatpush1.bf16.msra.mxu0 %v2255
    %2476 = vmatprep.subr.bf16.mxu0 %v2264
    %2477 = vmatpush1.bf16.msra.mxu0 %v2263
    %2478 = vmatprep.subr.bf16.mxu0 %v2272
    %2479 = vmatpush1.bf16.msra.mxu0 %v2271
    %2480 = vmatprep.mubr.bf16.mxu0 0
    %2481 = vmatmul.mubr.bf16.gmra.mrb[0].mxu0 0
    %v2482 = vpop.f32.mrb[0].mxu0
    %v2483 = vadd.f32 0.0, %v2482
    %v2484 = vpop.f32.mrb[0].mxu0
    %v2485 = vadd.f32 0.0, %v2484
    %v2486 = vpop.f32.mrb[0].mxu0
    %v2487 = vadd.f32 0.0, %v2486
    %v2488 = vpop.f32.mrb[0].mxu0
    %v2489 = vadd.f32 0.0, %v2488
    %2490 = vdwg.mxu0
    %2491 = vmatprep.subr.bf16.mxu0 %v2154
    %2492 = vmatpush1.bf16.msra.mxu0 %v2153
    %2493 = vmatprep.subr.bf16.mxu0 %v2162
    %2494 = vmatpush1.bf16.msra.mxu0 %v2161
    %2495 = vmatprep.subr.bf16.mxu0 %v2170
    %2496 = vmatpush1.bf16.msra.mxu0 %v2169
    %2497 = vmatprep.subr.bf16.mxu0 %v2178
    %2498 = vmatpush1.bf16.msra.mxu0 %v2177
    %2499 = vmatprep.subr.bf16.mxu0 %v2186
    %2500 = vmatpush1.bf16.msra.mxu0 %v2185
    %2501 = vmatprep.subr.bf16.mxu0 %v2194
    %2502 = vmatpush1.bf16.msra.mxu0 %v2193
    %2503 = vmatprep.subr.bf16.mxu0 %v2202
    %2504 = vmatpush1.bf16.msra.mxu0 %v2201
    %2505 = vmatprep.subr.bf16.mxu0 %v2210
    %2506 = vmatpush1.bf16.msra.mxu0 %v2209
    %2507 = vmatprep.subr.bf16.mxu0 %v2218
    %2508 = vmatpush1.bf16.msra.mxu0 %v2217
    %2509 = vmatprep.subr.bf16.mxu0 %v2226
    %2510 = vmatpush1.bf16.msra.mxu0 %v2225
    %2511 = vmatprep.subr.bf16.mxu0 %v2234
    %2512 = vmatpush1.bf16.msra.mxu0 %v2233
    %2513 = vmatprep.subr.bf16.mxu0 %v2242
    %2514 = vmatpush1.bf16.msra.mxu0 %v2241
    %2515 = vmatprep.subr.bf16.mxu0 %v2250
    %2516 = vmatpush1.bf16.msra.mxu0 %v2249
    %2517 = vmatprep.subr.bf16.mxu0 %v2258
    %2518 = vmatpush1.bf16.msra.mxu0 %v2257
    %2519 = vmatprep.subr.bf16.mxu0 %v2266
    %2520 = vmatpush1.bf16.msra.mxu0 %v2265
    %2521 = vmatprep.subr.bf16.mxu0 %v2274
    %2522 = vmatpush1.bf16.msra.mxu0 %v2273
    %2523 = vmatprep.mubr.bf16.mxu0 0
    %2524 = vmatmul.mubr.bf16.gmra.mrb[0].mxu0 0
    %v2525 = vpop.f32.mrb[0].mxu0
    %v2526 = vadd.f32 0.0, %v2525
    %v2527 = vpop.f32.mrb[0].mxu0
    %v2528 = vadd.f32 0.0, %v2527
    %v2529 = vpop.f32.mrb[0].mxu0
    %v2530 = vadd.f32 0.0, %v2529
    %v2531 = vpop.f32.mrb[0].mxu0
    %v2532 = vadd.f32 0.0, %v2531
    %2533 = vdwg.mxu0
    %2534 = vmatprep.subr.bf16.mxu0 %v2156
    %2535 = vmatpush1.bf16.msra.mxu0 %v2155
    %2536 = vmatprep.subr.bf16.mxu0 %v2164
    %2537 = vmatpush1.bf16.msra.mxu0 %v2163
    %2538 = vmatprep.subr.bf16.mxu0 %v2172
    %2539 = vmatpush1.bf16.msra.mxu0 %v2171
    %2540 = vmatprep.subr.bf16.mxu0 %v2180
    %2541 = vmatpush1.bf16.msra.mxu0 %v2179
    %2542 = vmatprep.subr.bf16.mxu0 %v2188
    %2543 = vmatpush1.bf16.msra.mxu0 %v2187
    %2544 = vmatprep.subr.bf16.mxu0 %v2196
    %2545 = vmatpush1.bf16.msra.mxu0 %v2195
    %2546 = vmatprep.subr.bf16.mxu0 %v2204
    %2547 = vmatpush1.bf16.msra.mxu0 %v2203
    %2548 = vmatprep.subr.bf16.mxu0 %v2212
    %2549 = vmatpush1.bf16.msra.mxu0 %v2211
    %2550 = vmatprep.subr.bf16.mxu0 %v2220
    %2551 = vmatpush1.bf16.msra.mxu0 %v2219
    %2552 = vmatprep.subr.bf16.mxu0 %v2228
    %2553 = vmatpush1.bf16.msra.mxu0 %v2227
    %2554 = vmatprep.subr.bf16.mxu0 %v2236
    %2555 = vmatpush1.bf16.msra.mxu0 %v2235
    %2556 = vmatprep.subr.bf16.mxu0 %v2244
    %2557 = vmatpush1.bf16.msra.mxu0 %v2243
    %2558 = vmatprep.subr.bf16.mxu0 %v2252
    %2559 = vmatpush1.bf16.msra.mxu0 %v2251
    %2560 = vmatprep.subr.bf16.mxu0 %v2260
    %2561 = vmatpush1.bf16.msra.mxu0 %v2259
    %2562 = vmatprep.subr.bf16.mxu0 %v2268
    %2563 = vmatpush1.bf16.msra.mxu0 %v2267
    %2564 = vmatprep.subr.bf16.mxu0 %v2276
    %2565 = vmatpush1.bf16.msra.mxu0 %v2275
    %2566 = vmatprep.mubr.bf16.mxu0 0
    %2567 = vmatmul.mubr.bf16.gmra.mrb[0].mxu0 0
    %v2568 = vpop.f32.mrb[0].mxu0
    %v2569 = vadd.f32 0.0, %v2568
    %v2570 = vpop.f32.mrb[0].mxu0
    %v2571 = vadd.f32 0.0, %v2570
    %v2572 = vpop.f32.mrb[0].mxu0
    %v2573 = vadd.f32 0.0, %v2572
    %v2574 = vpop.f32.mrb[0].mxu0
    %v2575 = vadd.f32 0.0, %v2574
    %2576 = vdwg.mxu0
    %v2705 = vunpack.c.l.b16 %v1509
    %v2706 = vunpack.c.h.b16 %v1509
    %v2707 = vunpack.c.l.b16 %v1510
    %v2708 = vunpack.c.h.b16 %v1510
    %v2709 = vunpack.c.l.b16 %v1511
    %v2710 = vunpack.c.h.b16 %v1511
    %v2711 = vunpack.c.l.b16 %v1512
    %v2712 = vunpack.c.h.b16 %v1512
    %v2713 = vunpack.c.l.b16 %v1513
    %v2714 = vunpack.c.h.b16 %v1513
    %v2715 = vunpack.c.l.b16 %v1514
    %v2716 = vunpack.c.h.b16 %v1514
    %v2717 = vunpack.c.l.b16 %v1515
    %v2718 = vunpack.c.h.b16 %v1515
    %v2719 = vunpack.c.l.b16 %v1516
    %v2720 = vunpack.c.h.b16 %v1516
    %v2721 = vunpack.c.l.b16 %v1517
    %v2722 = vunpack.c.h.b16 %v1517
    %v2723 = vunpack.c.l.b16 %v1518
    %v2724 = vunpack.c.h.b16 %v1518
    %v2725 = vunpack.c.l.b16 %v1519
    %v2726 = vunpack.c.h.b16 %v1519
    %v2727 = vunpack.c.l.b16 %v1520
    %v2728 = vunpack.c.h.b16 %v1520
    %v2729 = vunpack.c.l.b16 %v1521
    %v2730 = vunpack.c.h.b16 %v1521
    %v2731 = vunpack.c.l.b16 %v1522
    %v2732 = vunpack.c.h.b16 %v1522
    %v2733 = vunpack.c.l.b16 %v1523
    %v2734 = vunpack.c.h.b16 %v1523
    %v2735 = vunpack.c.l.b16 %v1524
    %v2736 = vunpack.c.h.b16 %v1524
    %v2737 = vunpack.c.l.b16 %v1525
    %v2738 = vunpack.c.h.b16 %v1525
    %v2739 = vunpack.c.l.b16 %v1526
    %v2740 = vunpack.c.h.b16 %v1526
    %v2741 = vunpack.c.l.b16 %v1527
    %v2742 = vunpack.c.h.b16 %v1527
    %v2743 = vunpack.c.l.b16 %v1528
    %v2744 = vunpack.c.h.b16 %v1528
    %v2745 = vunpack.c.l.b16 %v1529
    %v2746 = vunpack.c.h.b16 %v1529
    %v2747 = vunpack.c.l.b16 %v1530
    %v2748 = vunpack.c.h.b16 %v1530
    %v2749 = vunpack.c.l.b16 %v1531
    %v2750 = vunpack.c.h.b16 %v1531
    %v2751 = vunpack.c.l.b16 %v1532
    %v2752 = vunpack.c.h.b16 %v1532
    %v2753 = vunpack.c.l.b16 %v1533
    %v2754 = vunpack.c.h.b16 %v1533
    %v2755 = vunpack.c.l.b16 %v1534
    %v2756 = vunpack.c.h.b16 %v1534
    %v2757 = vunpack.c.l.b16 %v1535
    %v2758 = vunpack.c.h.b16 %v1535
    %v2759 = vunpack.c.l.b16 %v1536
    %v2760 = vunpack.c.h.b16 %v1536
    %v2761 = vunpack.c.l.b16 %v1537
    %v2762 = vunpack.c.h.b16 %v1537
    %v2763 = vunpack.c.l.b16 %v1538
    %v2764 = vunpack.c.h.b16 %v1538
    %v2765 = vunpack.c.l.b16 %v1539
    %v2766 = vunpack.c.h.b16 %v1539
    %v2767 = vunpack.c.l.b16 %v1540
    %v2768 = vunpack.c.h.b16 %v1540
    %v2769 = vunpack.c.l.b16 %v1541
    %v2770 = vunpack.c.h.b16 %v1541
    %v2771 = vunpack.c.l.b16 %v1542
    %v2772 = vunpack.c.h.b16 %v1542
    %v2773 = vunpack.c.l.b16 %v1543
    %v2774 = vunpack.c.h.b16 %v1543
    %v2775 = vunpack.c.l.b16 %v1544
    %v2776 = vunpack.c.h.b16 %v1544
    %v2777 = vunpack.c.l.b16 %v1545
    %v2778 = vunpack.c.h.b16 %v1545
    %v2779 = vunpack.c.l.b16 %v1546
    %v2780 = vunpack.c.h.b16 %v1546
    %v2781 = vunpack.c.l.b16 %v1547
    %v2782 = vunpack.c.h.b16 %v1547
    %v2783 = vunpack.c.l.b16 %v1548
    %v2784 = vunpack.c.h.b16 %v1548
    %v2785 = vunpack.c.l.b16 %v1549
    %v2786 = vunpack.c.h.b16 %v1549
    %v2787 = vunpack.c.l.b16 %v1550
    %v2788 = vunpack.c.h.b16 %v1550
    %v2789 = vunpack.c.l.b16 %v1551
    %v2790 = vunpack.c.h.b16 %v1551
    %v2791 = vunpack.c.l.b16 %v1552
    %v2792 = vunpack.c.h.b16 %v1552
    %v2793 = vunpack.c.l.b16 %v1553
    %v2794 = vunpack.c.h.b16 %v1553
    %v2795 = vunpack.c.l.b16 %v1554
    %v2796 = vunpack.c.h.b16 %v1554
    %v2797 = vunpack.c.l.b16 %v1555
    %v2798 = vunpack.c.h.b16 %v1555
    %v2799 = vunpack.c.l.b16 %v1556
    %v2800 = vunpack.c.h.b16 %v1556
    %v2801 = vunpack.c.l.b16 %v1557
    %v2802 = vunpack.c.h.b16 %v1557
    %v2803 = vunpack.c.l.b16 %v1558
    %v2804 = vunpack.c.h.b16 %v1558
    %v2805 = vunpack.c.l.b16 %v1559
    %v2806 = vunpack.c.h.b16 %v1559
    %v2807 = vunpack.c.l.b16 %v1560
    %v2808 = vunpack.c.h.b16 %v1560
    %v2809 = vunpack.c.l.b16 %v1561
    %v2810 = vunpack.c.h.b16 %v1561
    %v2811 = vunpack.c.l.b16 %v1562
    %v2812 = vunpack.c.h.b16 %v1562
    %v2813 = vunpack.c.l.b16 %v1563
    %v2814 = vunpack.c.h.b16 %v1563
    %v2815 = vunpack.c.l.b16 %v1564
    %v2816 = vunpack.c.h.b16 %v1564
    %v2817 = vunpack.c.l.b16 %v1565
    %v2818 = vunpack.c.h.b16 %v1565
    %v2819 = vunpack.c.l.b16 %v1566
    %v2820 = vunpack.c.h.b16 %v1566
    %v2821 = vunpack.c.l.b16 %v1567
    %v2822 = vunpack.c.h.b16 %v1567
    %v2823 = vunpack.c.l.b16 %v1568
    %v2824 = vunpack.c.h.b16 %v1568
    %v2825 = vunpack.c.l.b16 %v1569
    %v2826 = vunpack.c.h.b16 %v1569
    %v2827 = vunpack.c.l.b16 %v1570
    %v2828 = vunpack.c.h.b16 %v1570
    %v2829 = vunpack.c.l.b16 %v1571
    %v2830 = vunpack.c.h.b16 %v1571
    %v2831 = vunpack.c.l.b16 %v1572
    %v2832 = vunpack.c.h.b16 %v1572
    %v2833 = vunpack.c.l.b16 %v1573
    %v2834 = vunpack.c.h.b16 %v1573
    %v2835 = vunpack.c.l.b16 %v1574
    %v2836 = vunpack.c.h.b16 %v1574
    %v2837 = vunpack.c.l.b16 %v1575
    %v2838 = vunpack.c.h.b16 %v1575
    %v2839 = vunpack.c.l.b16 %v1576
    %v2840 = vunpack.c.h.b16 %v1576
    %v2841 = vunpack.c.l.b16 %v1577
    %v2842 = vunpack.c.h.b16 %v1577
    %v2843 = vunpack.c.l.b16 %v1578
    %v2844 = vunpack.c.h.b16 %v1578
    %v2845 = vunpack.c.l.b16 %v1579
    %v2846 = vunpack.c.h.b16 %v1579
    %v2847 = vunpack.c.l.b16 %v1580
    %v2848 = vunpack.c.h.b16 %v1580
    %v2849 = vunpack.c.l.b16 %v1581
    %v2850 = vunpack.c.h.b16 %v1581
    %v2851 = vunpack.c.l.b16 %v1582
    %v2852 = vunpack.c.h.b16 %v1582
    %v2853 = vunpack.c.l.b16 %v1583
    %v2854 = vunpack.c.h.b16 %v1583
    %v2855 = vunpack.c.l.b16 %v1584
    %v2856 = vunpack.c.h.b16 %v1584
    %v2857 = vunpack.c.l.b16 %v1585
    %v2858 = vunpack.c.h.b16 %v1585
    %v2859 = vunpack.c.l.b16 %v1586
    %v2860 = vunpack.c.h.b16 %v1586
    %v2861 = vunpack.c.l.b16 %v1587
    %v2862 = vunpack.c.h.b16 %v1587
    %v2863 = vunpack.c.l.b16 %v1588
    %v2864 = vunpack.c.h.b16 %v1588
    %v2865 = vunpack.c.l.b16 %v1589
    %v2866 = vunpack.c.h.b16 %v1589
    %v2867 = vunpack.c.l.b16 %v1590
    %v2868 = vunpack.c.h.b16 %v1590
    %v2869 = vunpack.c.l.b16 %v1591
    %v2870 = vunpack.c.h.b16 %v1591
    %v2871 = vunpack.c.l.b16 %v1592
    %v2872 = vunpack.c.h.b16 %v1592
    %v2873 = vunpack.c.l.b16 %v1593
    %v2874 = vunpack.c.h.b16 %v1593
    %v2875 = vunpack.c.l.b16 %v1594
    %v2876 = vunpack.c.h.b16 %v1594
    %v2877 = vunpack.c.l.b16 %v1595
    %v2878 = vunpack.c.h.b16 %v1595
    %v2879 = vunpack.c.l.b16 %v1596
    %v2880 = vunpack.c.h.b16 %v1596
    %v2881 = vunpack.c.l.b16 %v1597
    %v2882 = vunpack.c.h.b16 %v1597
    %v2883 = vunpack.c.l.b16 %v1598
    %v2884 = vunpack.c.h.b16 %v1598
    %v2885 = vunpack.c.l.b16 %v1599
    %v2886 = vunpack.c.h.b16 %v1599
    %v2887 = vunpack.c.l.b16 %v1600
    %v2888 = vunpack.c.h.b16 %v1600
    %v2889 = vunpack.c.l.b16 %v1601
    %v2890 = vunpack.c.h.b16 %v1601
    %v2891 = vunpack.c.l.b16 %v1602
    %v2892 = vunpack.c.h.b16 %v1602
    %v2893 = vunpack.c.l.b16 %v1603
    %v2894 = vunpack.c.h.b16 %v1603
    %v2895 = vunpack.c.l.b16 %v1604
    %v2896 = vunpack.c.h.b16 %v1604
    %v2897 = vunpack.c.l.b16 %v1605
    %v2898 = vunpack.c.h.b16 %v1605
    %v2899 = vunpack.c.l.b16 %v1606
    %v2900 = vunpack.c.h.b16 %v1606
    %v2901 = vunpack.c.l.b16 %v1607
    %v2902 = vunpack.c.h.b16 %v1607
    %v2903 = vunpack.c.l.b16 %v1608
    %v2904 = vunpack.c.h.b16 %v1608
    %v2905 = vunpack.c.l.b16 %v1609
    %v2906 = vunpack.c.h.b16 %v1609
    %v2907 = vunpack.c.l.b16 %v1610
    %v2908 = vunpack.c.h.b16 %v1610
    %v2909 = vunpack.c.l.b16 %v1611
    %v2910 = vunpack.c.h.b16 %v1611
    %v2911 = vunpack.c.l.b16 %v1612
    %v2912 = vunpack.c.h.b16 %v1612
    %v2913 = vunpack.c.l.b16 %v1613
    %v2914 = vunpack.c.h.b16 %v1613
    %v2915 = vunpack.c.l.b16 %v1614
    %v2916 = vunpack.c.h.b16 %v1614
    %v2917 = vunpack.c.l.b16 %v1615
    %v2918 = vunpack.c.h.b16 %v1615
    %v2919 = vunpack.c.l.b16 %v1616
    %v2920 = vunpack.c.h.b16 %v1616
    %v2921 = vunpack.c.l.b16 %v1617
    %v2922 = vunpack.c.h.b16 %v1617
    %v2923 = vunpack.c.l.b16 %v1618
    %v2924 = vunpack.c.h.b16 %v1618
    %v2925 = vunpack.c.l.b16 %v1619
    %v2926 = vunpack.c.h.b16 %v1619
    %v2927 = vunpack.c.l.b16 %v1620
    %v2928 = vunpack.c.h.b16 %v1620
    %v2929 = vunpack.c.l.b16 %v1621
    %v2930 = vunpack.c.h.b16 %v1621
    %v2931 = vunpack.c.l.b16 %v1622
    %v2932 = vunpack.c.h.b16 %v1622
    %v2933 = vunpack.c.l.b16 %v1623
    %v2934 = vunpack.c.h.b16 %v1623
    %v2935 = vunpack.c.l.b16 %v1624
    %v2936 = vunpack.c.h.b16 %v1624
    %v2937 = vunpack.c.l.b16 %v1625
    %v2938 = vunpack.c.h.b16 %v1625
    %v2939 = vunpack.c.l.b16 %v1626
    %v2940 = vunpack.c.h.b16 %v1626
    %v2941 = vunpack.c.l.b16 %v1627
    %v2942 = vunpack.c.h.b16 %v1627
    %v2943 = vunpack.c.l.b16 %v1628
    %v2944 = vunpack.c.h.b16 %v1628
    %v2945 = vunpack.c.l.b16 %v1629
    %v2946 = vunpack.c.h.b16 %v1629
    %v2947 = vunpack.c.l.b16 %v1630
    %v2948 = vunpack.c.h.b16 %v1630
    %v2949 = vunpack.c.l.b16 %v1631
    %v2950 = vunpack.c.h.b16 %v1631
    %v2951 = vunpack.c.l.b16 %v1632
    %v2952 = vunpack.c.h.b16 %v1632
    %v2953 = vunpack.c.l.b16 %v1633
    %v2954 = vunpack.c.h.b16 %v1633
    %v2955 = vunpack.c.l.b16 %v1634
    %v2956 = vunpack.c.h.b16 %v1634
    %v2957 = vunpack.c.l.b16 %v1635
    %v2958 = vunpack.c.h.b16 %v1635
    %v2959 = vunpack.c.l.b16 %v1636
    %v2960 = vunpack.c.h.b16 %v1636
    %v2961 = vpack.c.b16 %v2713, %v2705
    %v2962 = vpack.c.b16 %v2714, %v2706
    %v2963 = vpack.c.b16 %v2715, %v2707
    %v2964 = vpack.c.b16 %v2716, %v2708
    %v2965 = vpack.c.b16 %v2717, %v2709
    %v2966 = vpack.c.b16 %v2718, %v2710
    %v2967 = vpack.c.b16 %v2719, %v2711
    %v2968 = vpack.c.b16 %v2720, %v2712
    %v2969 = vpack.c.b16 %v2729, %v2721
    %v2970 = vpack.c.b16 %v2730, %v2722
    %v2971 = vpack.c.b16 %v2731, %v2723
    %v2972 = vpack.c.b16 %v2732, %v2724
    %v2973 = vpack.c.b16 %v2733, %v2725
    %v2974 = vpack.c.b16 %v2734, %v2726
    %v2975 = vpack.c.b16 %v2735, %v2727
    %v2976 = vpack.c.b16 %v2736, %v2728
    %v2977 = vpack.c.b16 %v2745, %v2737
    %v2978 = vpack.c.b16 %v2746, %v2738
    %v2979 = vpack.c.b16 %v2747, %v2739
    %v2980 = vpack.c.b16 %v2748, %v2740
    %v2981 = vpack.c.b16 %v2749, %v2741
    %v2982 = vpack.c.b16 %v2750, %v2742
    %v2983 = vpack.c.b16 %v2751, %v2743
    %v2984 = vpack.c.b16 %v2752, %v2744
    %v2985 = vpack.c.b16 %v2761, %v2753
    %v2986 = vpack.c.b16 %v2762, %v2754
    %v2987 = vpack.c.b16 %v2763, %v2755
    %v2988 = vpack.c.b16 %v2764, %v2756
    %v2989 = vpack.c.b16 %v2765, %v2757
    %v2990 = vpack.c.b16 %v2766, %v2758
    %v2991 = vpack.c.b16 %v2767, %v2759
    %v2992 = vpack.c.b16 %v2768, %v2760
    %v2993 = vpack.c.b16 %v2777, %v2769
    %v2994 = vpack.c.b16 %v2778, %v2770
    %v2995 = vpack.c.b16 %v2779, %v2771
    %v2996 = vpack.c.b16 %v2780, %v2772
    %v2997 = vpack.c.b16 %v2781, %v2773
    %v2998 = vpack.c.b16 %v2782, %v2774
    %v2999 = vpack.c.b16 %v2783, %v2775
    %v3000 = vpack.c.b16 %v2784, %v2776
    %v3001 = vpack.c.b16 %v2793, %v2785
    %v3002 = vpack.c.b16 %v2794, %v2786
    %v3003 = vpack.c.b16 %v2795, %v2787
    %v3004 = vpack.c.b16 %v2796, %v2788
    %v3005 = vpack.c.b16 %v2797, %v2789
    %v3006 = vpack.c.b16 %v2798, %v2790
    %v3007 = vpack.c.b16 %v2799, %v2791
    %v3008 = vpack.c.b16 %v2800, %v2792
    %v3009 = vpack.c.b16 %v2809, %v2801
    %v3010 = vpack.c.b16 %v2810, %v2802
    %v3011 = vpack.c.b16 %v2811, %v2803
    %v3012 = vpack.c.b16 %v2812, %v2804
    %v3013 = vpack.c.b16 %v2813, %v2805
    %v3014 = vpack.c.b16 %v2814, %v2806
    %v3015 = vpack.c.b16 %v2815, %v2807
    %v3016 = vpack.c.b16 %v2816, %v2808
    %v3017 = vpack.c.b16 %v2825, %v2817
    %v3018 = vpack.c.b16 %v2826, %v2818
    %v3019 = vpack.c.b16 %v2827, %v2819
    %v3020 = vpack.c.b16 %v2828, %v2820
    %v3021 = vpack.c.b16 %v2829, %v2821
    %v3022 = vpack.c.b16 %v2830, %v2822
    %v3023 = vpack.c.b16 %v2831, %v2823
    %v3024 = vpack.c.b16 %v2832, %v2824
    %v3025 = vpack.c.b16 %v2841, %v2833
    %v3026 = vpack.c.b16 %v2842, %v2834
    %v3027 = vpack.c.b16 %v2843, %v2835
    %v3028 = vpack.c.b16 %v2844, %v2836
    %v3029 = vpack.c.b16 %v2845, %v2837
    %v3030 = vpack.c.b16 %v2846, %v2838
    %v3031 = vpack.c.b16 %v2847, %v2839
    %v3032 = vpack.c.b16 %v2848, %v2840
    %v3033 = vpack.c.b16 %v2857, %v2849
    %v3034 = vpack.c.b16 %v2858, %v2850
    %v3035 = vpack.c.b16 %v2859, %v2851
    %v3036 = vpack.c.b16 %v2860, %v2852
    %v3037 = vpack.c.b16 %v2861, %v2853
    %v3038 = vpack.c.b16 %v2862, %v2854
    %v3039 = vpack.c.b16 %v2863, %v2855
    %v3040 = vpack.c.b16 %v2864, %v2856
    %v3041 = vpack.c.b16 %v2873, %v2865
    %v3042 = vpack.c.b16 %v2874, %v2866
    %v3043 = vpack.c.b16 %v2875, %v2867
    %v3044 = vpack.c.b16 %v2876, %v2868
    %v3045 = vpack.c.b16 %v2877, %v2869
    %v3046 = vpack.c.b16 %v2878, %v2870
    %v3047 = vpack.c.b16 %v2879, %v2871
    %v3048 = vpack.c.b16 %v2880, %v2872
    %v3049 = vpack.c.b16 %v2889, %v2881
    %v3050 = vpack.c.b16 %v2890, %v2882
    %v3051 = vpack.c.b16 %v2891, %v2883
    %v3052 = vpack.c.b16 %v2892, %v2884
    %v3053 = vpack.c.b16 %v2893, %v2885
    %v3054 = vpack.c.b16 %v2894, %v2886
    %v3055 = vpack.c.b16 %v2895, %v2887
    %v3056 = vpack.c.b16 %v2896, %v2888
    %v3057 = vpack.c.b16 %v2905, %v2897
    %v3058 = vpack.c.b16 %v2906, %v2898
    %v3059 = vpack.c.b16 %v2907, %v2899
    %v3060 = vpack.c.b16 %v2908, %v2900
    %v3061 = vpack.c.b16 %v2909, %v2901
    %v3062 = vpack.c.b16 %v2910, %v2902
    %v3063 = vpack.c.b16 %v2911, %v2903
    %v3064 = vpack.c.b16 %v2912, %v2904
    %v3065 = vpack.c.b16 %v2921, %v2913
    %v3066 = vpack.c.b16 %v2922, %v2914
    %v3067 = vpack.c.b16 %v2923, %v2915
    %v3068 = vpack.c.b16 %v2924, %v2916
    %v3069 = vpack.c.b16 %v2925, %v2917
    %v3070 = vpack.c.b16 %v2926, %v2918
    %v3071 = vpack.c.b16 %v2927, %v2919
    %v3072 = vpack.c.b16 %v2928, %v2920
    %v3073 = vpack.c.b16 %v2937, %v2929
    %v3074 = vpack.c.b16 %v2938, %v2930
    %v3075 = vpack.c.b16 %v2939, %v2931
    %v3076 = vpack.c.b16 %v2940, %v2932
    %v3077 = vpack.c.b16 %v2941, %v2933
    %v3078 = vpack.c.b16 %v2942, %v2934
    %v3079 = vpack.c.b16 %v2943, %v2935
    %v3080 = vpack.c.b16 %v2944, %v2936
    %v3081 = vpack.c.b16 %v2953, %v2945
    %v3082 = vpack.c.b16 %v2954, %v2946
    %v3083 = vpack.c.b16 %v2955, %v2947
    %v3084 = vpack.c.b16 %v2956, %v2948
    %v3085 = vpack.c.b16 %v2957, %v2949
    %v3086 = vpack.c.b16 %v2958, %v2950
    %v3087 = vpack.c.b16 %v2959, %v2951
    %v3088 = vpack.c.b16 %v2960, %v2952
    %3217 = vmatprep.subr.bf16.mxu0 %v2962
    %3218 = vmatpush1.bf16.msra.mxu0 %v2961
    %3219 = vmatprep.subr.bf16.mxu0 %v2970
    %3220 = vmatpush1.bf16.msra.mxu0 %v2969
    %3221 = vmatprep.subr.bf16.mxu0 %v2978
    %3222 = vmatpush1.bf16.msra.mxu0 %v2977
    %3223 = vmatprep.subr.bf16.mxu0 %v2986
    %3224 = vmatpush1.bf16.msra.mxu0 %v2985
    %3225 = vmatprep.subr.bf16.mxu0 %v2994
    %3226 = vmatpush1.bf16.msra.mxu0 %v2993
    %3227 = vmatprep.subr.bf16.mxu0 %v3002
    %3228 = vmatpush1.bf16.msra.mxu0 %v3001
    %3229 = vmatprep.subr.bf16.mxu0 %v3010
    %3230 = vmatpush1.bf16.msra.mxu0 %v3009
    %3231 = vmatprep.subr.bf16.mxu0 %v3018
    %3232 = vmatpush1.bf16.msra.mxu0 %v3017
    %3233 = vmatprep.subr.bf16.mxu0 %v3026
    %3234 = vmatpush1.bf16.msra.mxu0 %v3025
    %3235 = vmatprep.subr.bf16.mxu0 %v3034
    %3236 = vmatpush1.bf16.msra.mxu0 %v3033
    %3237 = vmatprep.subr.bf16.mxu0 %v3042
    %3238 = vmatpush1.bf16.msra.mxu0 %v3041
    %3239 = vmatprep.subr.bf16.mxu0 %v3050
    %3240 = vmatpush1.bf16.msra.mxu0 %v3049
    %3241 = vmatprep.subr.bf16.mxu0 %v3058
    %3242 = vmatpush1.bf16.msra.mxu0 %v3057
    %3243 = vmatprep.subr.bf16.mxu0 %v3066
    %3244 = vmatpush1.bf16.msra.mxu0 %v3065
    %3245 = vmatprep.subr.bf16.mxu0 %v3074
    %3246 = vmatpush1.bf16.msra.mxu0 %v3073
    %3247 = vmatprep.subr.bf16.mxu0 %v3082
    %3248 = vmatpush1.bf16.msra.mxu0 %v3081
    %3249 = vmatprep.mubr.bf16.mxu0 %v1224
    %3250 = vmatmul.mubr.bf16.gmra.mrb[0].mxu0 %v1223
    %v3251 = vpop.f32.mrb[0].mxu0
    %v3252 = vadd.f32 %v2440, %v3251
    %v3253 = vpop.f32.mrb[0].mxu0
    %v3254 = vadd.f32 %v2442, %v3253
    %v3255 = vpop.f32.mrb[0].mxu0
    %v3256 = vadd.f32 %v2444, %v3255
    %v3257 = vpop.f32.mrb[0].mxu0
    %v3258 = vadd.f32 %v2446, %v3257
    %3259 = vdwg.mxu0
    %3260 = vmatprep.subr.bf16.mxu0 %v2964
    %3261 = vmatpush1.bf16.msra.mxu0 %v2963
    %3262 = vmatprep.subr.bf16.mxu0 %v2972
    %3263 = vmatpush1.bf16.msra.mxu0 %v2971
    %3264 = vmatprep.subr.bf16.mxu0 %v2980
    %3265 = vmatpush1.bf16.msra.mxu0 %v2979
    %3266 = vmatprep.subr.bf16.mxu0 %v2988
    %3267 = vmatpush1.bf16.msra.mxu0 %v2987
    %3268 = vmatprep.subr.bf16.mxu0 %v2996
    %3269 = vmatpush1.bf16.msra.mxu0 %v2995
    %3270 = vmatprep.subr.bf16.mxu0 %v3004
    %3271 = vmatpush1.bf16.msra.mxu0 %v3003
    %3272 = vmatprep.subr.bf16.mxu0 %v3012
    %3273 = vmatpush1.bf16.msra.mxu0 %v3011
    %3274 = vmatprep.subr.bf16.mxu0 %v3020
    %3275 = vmatpush1.bf16.msra.mxu0 %v3019
    %3276 = vmatprep.subr.bf16.mxu0 %v3028
    %3277 = vmatpush1.bf16.msra.mxu0 %v3027
    %3278 = vmatprep.subr.bf16.mxu0 %v3036
    %3279 = vmatpush1.bf16.msra.mxu0 %v3035
    %3280 = vmatprep.subr.bf16.mxu0 %v3044
    %3281 = vmatpush1.bf16.msra.mxu0 %v3043
    %3282 = vmatprep.subr.bf16.mxu0 %v3052
    %3283 = vmatpush1.bf16.msra.mxu0 %v3051
    %3284 = vmatprep.subr.bf16.mxu0 %v3060
    %3285 = vmatpush1.bf16.msra.mxu0 %v3059
    %3286 = vmatprep.subr.bf16.mxu0 %v3068
    %3287 = vmatpush1.bf16.msra.mxu0 %v3067
    %3288 = vmatprep.subr.bf16.mxu0 %v3076
    %3289 = vmatpush1.bf16.msra.mxu0 %v3075
    %3290 = vmatprep.subr.bf16.mxu0 %v3084
    %3291 = vmatpush1.bf16.msra.mxu0 %v3083
    %3292 = vmatprep.mubr.bf16.mxu0 %v1224
    %3293 = vmatmul.mubr.bf16.gmra.mrb[0].mxu0 %v1223
    %v3294 = vpop.f32.mrb[0].mxu0
    %v3295 = vadd.f32 %v2483, %v3294
    %v3296 = vpop.f32.mrb[0].mxu0
    %v3297 = vadd.f32 %v2485, %v3296
    %v3298 = vpop.f32.mrb[0].mxu0
    %v3299 = vadd.f32 %v2487, %v3298
    %v3300 = vpop.f32.mrb[0].mxu0
    %v3301 = vadd.f32 %v2489, %v3300
    %3302 = vdwg.mxu0
    %3303 = vmatprep.subr.bf16.mxu0 %v2966
    %3304 = vmatpush1.bf16.msra.mxu0 %v2965
    %3305 = vmatprep.subr.bf16.mxu0 %v2974
    %3306 = vmatpush1.bf16.msra.mxu0 %v2973
    %3307 = vmatprep.subr.bf16.mxu0 %v2982
    %3308 = vmatpush1.bf16.msra.mxu0 %v2981
    %3309 = vmatprep.subr.bf16.mxu0 %v2990
    %3310 = vmatpush1.bf16.msra.mxu0 %v2989
    %3311 = vmatprep.subr.bf16.mxu0 %v2998
    %3312 = vmatpush1.bf16.msra.mxu0 %v2997
    %3313 = vmatprep.subr.bf16.mxu0 %v3006
    %3314 = vmatpush1.bf16.msra.mxu0 %v3005
    %3315 = vmatprep.subr.bf16.mxu0 %v3014
    %3316 = vmatpush1.bf16.msra.mxu0 %v3013
    %3317 = vmatprep.subr.bf16.mxu0 %v3022
    %3318 = vmatpush1.bf16.msra.mxu0 %v3021
    %3319 = vmatprep.subr.bf16.mxu0 %v3030
    %3320 = vmatpush1.bf16.msra.mxu0 %v3029
    %3321 = vmatprep.subr.bf16.mxu0 %v3038
    %3322 = vmatpush1.bf16.msra.mxu0 %v3037
    %3323 = vmatprep.subr.bf16.mxu0 %v3046
    %3324 = vmatpush1.bf16.msra.mxu0 %v3045
    %3325 = vmatprep.subr.bf16.mxu0 %v3054
    %3326 = vmatpush1.bf16.msra.mxu0 %v3053
    %3327 = vmatprep.subr.bf16.mxu0 %v3062
    %3328 = vmatpush1.bf16.msra.mxu0 %v3061
    %3329 = vmatprep.subr.bf16.mxu0 %v3070
    %3330 = vmatpush1.bf16.msra.mxu0 %v3069
    %3331 = vmatprep.subr.bf16.mxu0 %v3078
    %3332 = vmatpush1.bf16.msra.mxu0 %v3077
    %3333 = vmatprep.subr.bf16.mxu0 %v3086
    %3334 = vmatpush1.bf16.msra.mxu0 %v3085
    %3335 = vmatprep.mubr.bf16.mxu0 %v1224
    %3336 = vmatmul.mubr.bf16.gmra.mrb[0].mxu0 %v1223
    %v3337 = vpop.f32.mrb[0].mxu0
    %v3338 = vadd.f32 %v2526, %v3337
    %v3339 = vpop.f32.mrb[0].mxu0
    %v3340 = vadd.f32 %v2528, %v3339
    %v3341 = vpop.f32.mrb[0].mxu0
    %v3342 = vadd.f32 %v2530, %v3341
    %v3343 = vpop.f32.mrb[0].mxu0
    %v3344 = vadd.f32 %v2532, %v3343
    %3345 = vdwg.mxu0
    %3346 = vmatprep.subr.bf16.mxu0 %v2968
    %3347 = vmatpush1.bf16.msra.mxu0 %v2967
    %3348 = vmatprep.subr.bf16.mxu0 %v2976
    %3349 = vmatpush1.bf16.msra.mxu0 %v2975
    %3350 = vmatprep.subr.bf16.mxu0 %v2984
    %3351 = vmatpush1.bf16.msra.mxu0 %v2983
    %3352 = vmatprep.subr.bf16.mxu0 %v2992
    %3353 = vmatpush1.bf16.msra.mxu0 %v2991
    %3354 = vmatprep.subr.bf16.mxu0 %v3000
    %3355 = vmatpush1.bf16.msra.mxu0 %v2999
    %3356 = vmatprep.subr.bf16.mxu0 %v3008
    %3357 = vmatpush1.bf16.msra.mxu0 %v3007
    %3358 = vmatprep.subr.bf16.mxu0 %v3016
    %3359 = vmatpush1.bf16.msra.mxu0 %v3015
    %3360 = vmatprep.subr.bf16.mxu0 %v3024
    %3361 = vmatpush1.bf16.msra.mxu0 %v3023
    %3362 = vmatprep.subr.bf16.mxu0 %v3032
    %3363 = vmatpush1.bf16.msra.mxu0 %v3031
    %3364 = vmatprep.subr.bf16.mxu0 %v3040
    %3365 = vmatpush1.bf16.msra.mxu0 %v3039
    %3366 = vmatprep.subr.bf16.mxu0 %v3048
    %3367 = vmatpush1.bf16.msra.mxu0 %v3047
    %3368 = vmatprep.subr.bf16.mxu0 %v3056
    %3369 = vmatpush1.bf16.msra.mxu0 %v3055
    %3370 = vmatprep.subr.bf16.mxu0 %v3064
    %3371 = vmatpush1.bf16.msra.mxu0 %v3063
    %3372 = vmatprep.subr.bf16.mxu0 %v3072
    %3373 = vmatpush1.bf16.msra.mxu0 %v3071
    %3374 = vmatprep.subr.bf16.mxu0 %v3080
    %3375 = vmatpush1.bf16.msra.mxu0 %v3079
    %3376 = vmatprep.subr.bf16.mxu0 %v3088
    %3377 = vmatpush1.bf16.msra.mxu0 %v3087
    %3378 = vmatprep.mubr.bf16.mxu0 %v1224
    %3379 = vmatmul.mubr.bf16.gmra.mrb[0].mxu0 %v1223
    %v3380 = vpop.f32.mrb[0].mxu0
    %v3381 = vadd.f32 %v2569, %v3380
    %v3382 = vpop.f32.mrb[0].mxu0
    %v3383 = vadd.f32 %v2571, %v3382
    %v3384 = vpop.f32.mrb[0].mxu0
    %v3385 = vadd.f32 %v2573, %v3384
    %v3386 = vpop.f32.mrb[0].mxu0
    %v3387 = vadd.f32 %v2575, %v3386
    %3388 = vdwg.mxu0
    %v3389 = vadd.f32 %v3252, %v101
    %v3390 = vadd.f32 %v3254, %v105
    %v3391 = vadd.f32 %v3295, %v109
    %v3392 = vadd.f32 %v3297, %v113
    %v3393 = vadd.f32 %v3338, %v117
    %v3394 = vadd.f32 %v3340, %v121
    %v3395 = vadd.f32 %v3381, %v125
    %v3396 = vadd.f32 %v3383, %v129
    %v3397 = vadd.f32 %v3256, %v101
    %v3398 = vadd.f32 %v3258, %v105
    %v3399 = vadd.f32 %v3299, %v109
    %v3400 = vadd.f32 %v3301, %v113
    %v3401 = vadd.f32 %v3342, %v117
    %v3402 = vadd.f32 %v3344, %v121
    %v3403 = vadd.f32 %v3385, %v125
    %v3404 = vadd.f32 %v3387, %v129
    %v3405 = vxor.u32 %v3389, 2147483648
    %v3406 = vxor.u32 %v3390, 2147483648
    %v3407 = vxor.u32 %v3397, 2147483648
    %v3408 = vxor.u32 %v3398, 2147483648
    %v3409 = vmul.f32 %v3405, 1.442695
    %v3410 = vpow.pop %v3409
    %v3411 = vmul.f32 %v3406, 1.442695
    %v3412 = vpow.pop %v3411
    %v3413 = vmul.f32 %v3407, 1.442695
    %v3414 = vpow.pop %v3413
    %v3415 = vmul.f32 %v3408, 1.442695
    %v3416 = vpow.pop %v3415
    %v3417 = vadd.f32 %v3410, 1.0
    %v3418 = vadd.f32 %v3412, 1.0
    %v3419 = vadd.f32 %v3414, 1.0
    %v3420 = vadd.f32 %v3416, 1.0
    %v3421 = vrcp.pop %v3417
    %v3422 = vmul.f32 1.0, %v3421
    %v3423 = vrcp.pop %v3418
    %v3424 = vmul.f32 1.0, %v3423
    %v3425 = vrcp.pop %v3419
    %v3426 = vmul.f32 1.0, %v3425
    %v3427 = vrcp.pop %v3420
    %v3428 = vmul.f32 1.0, %v3427
    %v3429 = vxor.u32 %v3391, 2147483648
    %v3430 = vxor.u32 %v3392, 2147483648
    %v3431 = vxor.u32 %v3399, 2147483648
    %v3432 = vxor.u32 %v3400, 2147483648
    %v3433 = vmul.f32 %v3429, 1.442695
    %v3434 = vpow.pop %v3433
    %v3435 = vmul.f32 %v3430, 1.442695
    %v3436 = vpow.pop %v3435
    %v3437 = vmul.f32 %v3431, 1.442695
    %v3438 = vpow.pop %v3437
    %v3439 = vmul.f32 %v3432, 1.442695
    %v3440 = vpow.pop %v3439
    %v3441 = vadd.f32 %v3434, 1.0
    %v3442 = vadd.f32 %v3436, 1.0
    %v3443 = vadd.f32 %v3438, 1.0
    %v3444 = vadd.f32 %v3440, 1.0
    %v3445 = vrcp.pop %v3441
    %v3446 = vmul.f32 1.0, %v3445
    %v3447 = vrcp.pop %v3442
    %v3448 = vmul.f32 1.0, %v3447
    %v3449 = vrcp.pop %v3443
    %v3450 = vmul.f32 1.0, %v3449
    %v3451 = vrcp.pop %v3444
    %v3452 = vmul.f32 1.0, %v3451
    %v3453 = vtanh.pop %v3393
    %v3454 = vtanh.pop %v3394
    %v3455 = vtanh.pop %v3401
    %v3456 = vtanh.pop %v3402
    %v3457 = vxor.u32 %v3395, 2147483648
    %v3458 = vxor.u32 %v3396, 2147483648
    %v3459 = vxor.u32 %v3403, 2147483648
    %v3460 = vxor.u32 %v3404, 2147483648
    %v3461 = vmul.f32 %v3457, 1.442695
    %v3462 = vpow.pop %v3461
    %v3463 = vmul.f32 %v3458, 1.442695
    %v3464 = vpow.pop %v3463
    %v3465 = vmul.f32 %v3459, 1.442695
    %v3466 = vpow.pop %v3465
    %v3467 = vmul.f32 %v3460, 1.442695
    %v3468 = vpow.pop %v3467
    %v3469 = vadd.f32 %v3462, 1.0
    %v3470 = vadd.f32 %v3464, 1.0
    %v3471 = vadd.f32 %v3466, 1.0
    %v3472 = vadd.f32 %v3468, 1.0
    %v3473 = vrcp.pop %v3469
    %v3474 = vmul.f32 1.0, %v3473
    %v3475 = vrcp.pop %v3470
    %v3476 = vmul.f32 1.0, %v3475
    %v3477 = vrcp.pop %v3471
    %v3478 = vmul.f32 1.0, %v3477
    %v3479 = vrcp.pop %v3472
    %v3480 = vmul.f32 1.0, %v3479
    %v3481 = vmul.f32 %v3446, 0.0
    %v3482 = vmul.f32 %v3448, 0.0
    %v3483 = vmul.f32 %v3450, 0.0
    %v3484 = vmul.f32 %v3452, 0.0
    %v3485 = vmul.f32 %v3422, %v3453
    %v3486 = vmul.f32 %v3424, %v3454
    %v3487 = vmul.f32 %v3426, %v3455
    %v3488 = vmul.f32 %v3428, %v3456
    %v3489 = vadd.f32 %v3481, %v3485
    %v3490 = vadd.f32 %v3482, %v3486
    %v3491 = vadd.f32 %v3483, %v3487
    %v3492 = vadd.f32 %v3484, %v3488
    %v3493 = vtanh.pop %v3489
    %v3494 = vtanh.pop %v3490
    %v3495 = vtanh.pop %v3491
    %v3496 = vtanh.pop %v3492
    %v3497 = vmul.f32 %v3474, %v3493
    %v3498 = vmul.f32 %v3476, %v3494
    %v3499 = vmul.f32 %v3478, %v3495
    %v3500 = vmul.f32 %v3480, %v3496
    %s3501 = scalar_lea.vmem [#allocation2], 256
    %v3502 = vld [vmem:[%s3501] sm:$0xff]
    %v3503 = vld [vmem:[%s3501 + $0x8] sm:$0xff]
    %v3504 = vld [vmem:[%s3501 + $0x10] sm:$0xff]
    %v3505 = vld [vmem:[%s3501 + $0x18] sm:$0xff]
    %v3506 = vld [vmem:[%s3501 + $0x20] sm:$0xff]
    %v3507 = vld [vmem:[%s3501 + $0x28] sm:$0xff]
    %v3508 = vld [vmem:[%s3501 + $0x30] sm:$0xff]
    %v3509 = vld [vmem:[%s3501 + $0x38] sm:$0xff]
    %v3510 = vld [vmem:[%s3501 + $0x40] sm:$0xff]
    %v3511 = vld [vmem:[%s3501 + $0x48] sm:$0xff]
    %v3512 = vld [vmem:[%s3501 + $0x50] sm:$0xff]
    %v3513 = vld [vmem:[%s3501 + $0x58] sm:$0xff]
    %v3514 = vld [vmem:[%s3501 + $0x60] sm:$0xff]
    %v3515 = vld [vmem:[%s3501 + $0x68] sm:$0xff]
    %v3516 = vld [vmem:[%s3501 + $0x70] sm:$0xff]
    %v3517 = vld [vmem:[%s3501 + $0x78] sm:$0xff]
    %v3518 = vpack.c.bf16 %v1507, %v1505
    %v3519 = vpack.c.bf16 %v1508, %v1506
    %3520 = vmatprep.subr.bf16.mxu0 %v667
    %3521 = vmatpush1.bf16.msra.mxu0 %v666
    %3522 = vmatprep.subr.bf16.mxu0 %v675
    %3523 = vmatpush1.bf16.msra.mxu0 %v674
    %3524 = vmatprep.subr.bf16.mxu0 %v683
    %3525 = vmatpush1.bf16.msra.mxu0 %v682
    %3526 = vmatprep.subr.bf16.mxu0 %v691
    %3527 = vmatpush1.bf16.msra.mxu0 %v690
    %3528 = vmatprep.subr.bf16.mxu0 %v699
    %3529 = vmatpush1.bf16.msra.mxu0 %v698
    %3530 = vmatprep.subr.bf16.mxu0 %v707
    %3531 = vmatpush1.bf16.msra.mxu0 %v706
    %3532 = vmatprep.subr.bf16.mxu0 %v715
    %3533 = vmatpush1.bf16.msra.mxu0 %v714
    %3534 = vmatprep.subr.bf16.mxu0 %v723
    %3535 = vmatpush1.bf16.msra.mxu0 %v722
    %3536 = vmatprep.subr.bf16.mxu0 %v731
    %3537 = vmatpush1.bf16.msra.mxu0 %v730
    %3538 = vmatprep.subr.bf16.mxu0 %v739
    %3539 = vmatpush1.bf16.msra.mxu0 %v738
    %3540 = vmatprep.subr.bf16.mxu0 %v747
    %3541 = vmatpush1.bf16.msra.mxu0 %v746
    %3542 = vmatprep.subr.bf16.mxu0 %v755
    %3543 = vmatpush1.bf16.msra.mxu0 %v754
    %3544 = vmatprep.subr.bf16.mxu0 %v763
    %3545 = vmatpush1.bf16.msra.mxu0 %v762
    %3546 = vmatprep.subr.bf16.mxu0 %v771
    %3547 = vmatpush1.bf16.msra.mxu0 %v770
    %3548 = vmatprep.subr.bf16.mxu0 %v779
    %3549 = vmatpush1.bf16.msra.mxu0 %v778
    %3550 = vmatprep.subr.bf16.mxu0 %v787
    %3551 = vmatpush1.bf16.msra.mxu0 %v786
    %3552 = vmatprep.mubr.bf16.mxu0 %v3519
    %3553 = vmatmul.mubr.bf16.gmra.mrb[0].mxu0 %v3518
    %v3554 = vpop.f32.mrb[0].mxu0
    %v3555 = vadd.f32 0.0, %v3554
    %v3556 = vpop.f32.mrb[0].mxu0
    %v3557 = vadd.f32 0.0, %v3556
    %v3558 = vpop.f32.mrb[0].mxu0
    %v3559 = vadd.f32 0.0, %v3558
    %v3560 = vpop.f32.mrb[0].mxu0
    %v3561 = vadd.f32 0.0, %v3560
    %3562 = vdwg.mxu0
    %3563 = vmatprep.subr.bf16.mxu0 %v669
    %3564 = vmatpush1.bf16.msra.mxu0 %v668
    %3565 = vmatprep.subr.bf16.mxu0 %v677
    %3566 = vmatpush1.bf16.msra.mxu0 %v676
    %3567 = vmatprep.subr.bf16.mxu0 %v685
    %3568 = vmatpush1.bf16.msra.mxu0 %v684
    %3569 = vmatprep.subr.bf16.mxu0 %v693
    %3570 = vmatpush1.bf16.msra.mxu0 %v692
    %3571 = vmatprep.subr.bf16.mxu0 %v701
    %3572 = vmatpush1.bf16.msra.mxu0 %v700
    %3573 = vmatprep.subr.bf16.mxu0 %v709
    %3574 = vmatpush1.bf16.msra.mxu0 %v708
    %3575 = vmatprep.subr.bf16.mxu0 %v717
    %3576 = vmatpush1.bf16.msra.mxu0 %v716
    %3577 = vmatprep.subr.bf16.mxu0 %v725
    %3578 = vmatpush1.bf16.msra.mxu0 %v724
    %3579 = vmatprep.subr.bf16.mxu0 %v733
    %3580 = vmatpush1.bf16.msra.mxu0 %v732
    %3581 = vmatprep.subr.bf16.mxu0 %v741
    %3582 = vmatpush1.bf16.msra.mxu0 %v740
    %3583 = vmatprep.subr.bf16.mxu0 %v749
    %3584 = vmatpush1.bf16.msra.mxu0 %v748
    %3585 = vmatprep.subr.bf16.mxu0 %v757
    %3586 = vmatpush1.bf16.msra.mxu0 %v756
    %3587 = vmatprep.subr.bf16.mxu0 %v765
    %3588 = vmatpush1.bf16.msra.mxu0 %v764
    %3589 = vmatprep.subr.bf16.mxu0 %v773
    %3590 = vmatpush1.bf16.msra.mxu0 %v772
    %3591 = vmatprep.subr.bf16.mxu0 %v781
    %3592 = vmatpush1.bf16.msra.mxu0 %v780
    %3593 = vmatprep.subr.bf16.mxu0 %v789
    %3594 = vmatpush1.bf16.msra.mxu0 %v788
    %3595 = vmatprep.mubr.bf16.mxu0 %v3519
    %3596 = vmatmul.mubr.bf16.gmra.mrb[0].mxu0 %v3518
    %v3597 = vpop.f32.mrb[0].mxu0
    %v3598 = vadd.f32 0.0, %v3597
    %v3599 = vpop.f32.mrb[0].mxu0
    %v3600 = vadd.f32 0.0, %v3599
    %v3601 = vpop.f32.mrb[0].mxu0
    %v3602 = vadd.f32 0.0, %v3601
    %v3603 = vpop.f32.mrb[0].mxu0
    %v3604 = vadd.f32 0.0, %v3603
    %3605 = vdwg.mxu0
    %3606 = vmatprep.subr.bf16.mxu0 %v671
    %3607 = vmatpush1.bf16.msra.mxu0 %v670
    %3608 = vmatprep.subr.bf16.mxu0 %v679
    %3609 = vmatpush1.bf16.msra.mxu0 %v678
    %3610 = vmatprep.subr.bf16.mxu0 %v687
    %3611 = vmatpush1.bf16.msra.mxu0 %v686
    %3612 = vmatprep.subr.bf16.mxu0 %v695
    %3613 = vmatpush1.bf16.msra.mxu0 %v694
    %3614 = vmatprep.subr.bf16.mxu0 %v703
    %3615 = vmatpush1.bf16.msra.mxu0 %v702
    %3616 = vmatprep.subr.bf16.mxu0 %v711
    %3617 = vmatpush1.bf16.msra.mxu0 %v710
    %3618 = vmatprep.subr.bf16.mxu0 %v719
    %3619 = vmatpush1.bf16.msra.mxu0 %v718
    %3620 = vmatprep.subr.bf16.mxu0 %v727
    %3621 = vmatpush1.bf16.msra.mxu0 %v726
    %3622 = vmatprep.subr.bf16.mxu0 %v735
    %3623 = vmatpush1.bf16.msra.mxu0 %v734
    %3624 = vmatprep.subr.bf16.mxu0 %v743
    %3625 = vmatpush1.bf16.msra.mxu0 %v742
    %3626 = vmatprep.subr.bf16.mxu0 %v751
    %3627 = vmatpush1.bf16.msra.mxu0 %v750
    %3628 = vmatprep.subr.bf16.mxu0 %v759
    %3629 = vmatpush1.bf16.msra.mxu0 %v758
    %3630 = vmatprep.subr.bf16.mxu0 %v767
    %3631 = vmatpush1.bf16.msra.mxu0 %v766
    %3632 = vmatprep.subr.bf16.mxu0 %v775
    %3633 = vmatpush1.bf16.msra.mxu0 %v774
    %3634 = vmatprep.subr.bf16.mxu0 %v783
    %3635 = vmatpush1.bf16.msra.mxu0 %v782
    %3636 = vmatprep.subr.bf16.mxu0 %v791
    %3637 = vmatpush1.bf16.msra.mxu0 %v790
    %3638 = vmatprep.mubr.bf16.mxu0 %v3519
    %3639 = vmatmul.mubr.bf16.gmra.mrb[0].mxu0 %v3518
    %v3640 = vpop.f32.mrb[0].mxu0
    %v3641 = vadd.f32 0.0, %v3640
    %v3642 = vpop.f32.mrb[0].mxu0
    %v3643 = vadd.f32 0.0, %v3642
    %v3644 = vpop.f32.mrb[0].mxu0
    %v3645 = vadd.f32 0.0, %v3644
    %v3646 = vpop.f32.mrb[0].mxu0
    %v3647 = vadd.f32 0.0, %v3646
    %3648 = vdwg.mxu0
    %3649 = vmatprep.subr.bf16.mxu0 %v673
    %3650 = vmatpush1.bf16.msra.mxu0 %v672
    %3651 = vmatprep.subr.bf16.mxu0 %v681
    %3652 = vmatpush1.bf16.msra.mxu0 %v680
    %3653 = vmatprep.subr.bf16.mxu0 %v689
    %3654 = vmatpush1.bf16.msra.mxu0 %v688
    %3655 = vmatprep.subr.bf16.mxu0 %v697
    %3656 = vmatpush1.bf16.msra.mxu0 %v696
    %3657 = vmatprep.subr.bf16.mxu0 %v705
    %3658 = vmatpush1.bf16.msra.mxu0 %v704
    %3659 = vmatprep.subr.bf16.mxu0 %v713
    %3660 = vmatpush1.bf16.msra.mxu0 %v712
    %3661 = vmatprep.subr.bf16.mxu0 %v721
    %3662 = vmatpush1.bf16.msra.mxu0 %v720
    %3663 = vmatprep.subr.bf16.mxu0 %v729
    %3664 = vmatpush1.bf16.msra.mxu0 %v728
    %3665 = vmatprep.subr.bf16.mxu0 %v737
    %3666 = vmatpush1.bf16.msra.mxu0 %v736
    %3667 = vmatprep.subr.bf16.mxu0 %v745
    %3668 = vmatpush1.bf16.msra.mxu0 %v744
    %3669 = vmatprep.subr.bf16.mxu0 %v753
    %3670 = vmatpush1.bf16.msra.mxu0 %v752
    %3671 = vmatprep.subr.bf16.mxu0 %v761
    %3672 = vmatpush1.bf16.msra.mxu0 %v760
    %3673 = vmatprep.subr.bf16.mxu0 %v769
    %3674 = vmatpush1.bf16.msra.mxu0 %v768
    %3675 = vmatprep.subr.bf16.mxu0 %v777
    %3676 = vmatpush1.bf16.msra.mxu0 %v776
    %3677 = vmatprep.subr.bf16.mxu0 %v785
    %3678 = vmatpush1.bf16.msra.mxu0 %v784
    %3679 = vmatprep.subr.bf16.mxu0 %v793
    %3680 = vmatpush1.bf16.msra.mxu0 %v792
    %3681 = vmatprep.mubr.bf16.mxu0 %v3519
    %3682 = vmatmul.mubr.bf16.gmra.mrb[0].mxu0 %v3518
    %v3683 = vpop.f32.mrb[0].mxu0
    %v3684 = vadd.f32 0.0, %v3683
    %v3685 = vpop.f32.mrb[0].mxu0
    %v3686 = vadd.f32 0.0, %v3685
    %v3687 = vpop.f32.mrb[0].mxu0
    %v3688 = vadd.f32 0.0, %v3687
    %v3689 = vpop.f32.mrb[0].mxu0
    %v3690 = vadd.f32 0.0, %v3689
    %3691 = vdwg.mxu0
    %v3692 = vadd.f32 %v3502, %v3555
    %v3693 = vadd.f32 %v3503, %v3557
    %v3694 = vadd.f32 %v3504, %v3598
    %v3695 = vadd.f32 %v3505, %v3600
    %v3696 = vadd.f32 %v3506, %v3641
    %v3697 = vadd.f32 %v3507, %v3643
    %v3698 = vadd.f32 %v3508, %v3684
    %v3699 = vadd.f32 %v3509, %v3686
    %v3700 = vadd.f32 %v3510, %v3559
    %v3701 = vadd.f32 %v3511, %v3561
    %v3702 = vadd.f32 %v3512, %v3602
    %v3703 = vadd.f32 %v3513, %v3604
    %v3704 = vadd.f32 %v3514, %v3645
    %v3705 = vadd.f32 %v3515, %v3647
    %v3706 = vadd.f32 %v3516, %v3688
    %v3707 = vadd.f32 %v3517, %v3690
    %v3708 = vxor.u32 %v3692, 2147483648
    %v3709 = vxor.u32 %v3693, 2147483648
    %v3710 = vxor.u32 %v3700, 2147483648
    %v3711 = vxor.u32 %v3701, 2147483648
    %v3712 = vmul.f32 %v3708, 1.442695
    %v3713 = vpow.pop %v3712
    %v3714 = vmul.f32 %v3709, 1.442695
    %v3715 = vpow.pop %v3714
    %v3716 = vmul.f32 %v3710, 1.442695
    %v3717 = vpow.pop %v3716
    %v3718 = vmul.f32 %v3711, 1.442695
    %v3719 = vpow.pop %v3718
    %v3720 = vadd.f32 %v3713, 1.0
    %v3721 = vadd.f32 %v3715, 1.0
    %v3722 = vadd.f32 %v3717, 1.0
    %v3723 = vadd.f32 %v3719, 1.0
    %v3724 = vrcp.pop %v3720
    %v3725 = vmul.f32 1.0, %v3724
    %v3726 = vrcp.pop %v3721
    %v3727 = vmul.f32 1.0, %v3726
    %v3728 = vrcp.pop %v3722
    %v3729 = vmul.f32 1.0, %v3728
    %v3730 = vrcp.pop %v3723
    %v3731 = vmul.f32 1.0, %v3730
    %v3732 = vxor.u32 %v3694, 2147483648
    %v3733 = vxor.u32 %v3695, 2147483648
    %v3734 = vxor.u32 %v3702, 2147483648
    %v3735 = vxor.u32 %v3703, 2147483648
    %v3736 = vmul.f32 %v3732, 1.442695
    %v3737 = vpow.pop %v3736
    %v3738 = vmul.f32 %v3733, 1.442695
    %v3739 = vpow.pop %v3738
    %v3740 = vmul.f32 %v3734, 1.442695
    %v3741 = vpow.pop %v3740
    %v3742 = vmul.f32 %v3735, 1.442695
    %v3743 = vpow.pop %v3742
    %v3744 = vadd.f32 %v3737, 1.0
    %v3745 = vadd.f32 %v3739, 1.0
    %v3746 = vadd.f32 %v3741, 1.0
    %v3747 = vadd.f32 %v3743, 1.0
    %v3748 = vrcp.pop %v3744
    %v3749 = vmul.f32 1.0, %v3748
    %v3750 = vrcp.pop %v3745
    %v3751 = vmul.f32 1.0, %v3750
    %v3752 = vrcp.pop %v3746
    %v3753 = vmul.f32 1.0, %v3752
    %v3754 = vrcp.pop %v3747
    %v3755 = vmul.f32 1.0, %v3754
    %v3756 = vtanh.pop %v3696
    %v3757 = vtanh.pop %v3697
    %v3758 = vtanh.pop %v3704
    %v3759 = vtanh.pop %v3705
    %v3760 = vxor.u32 %v3698, 2147483648
    %v3761 = vxor.u32 %v3699, 2147483648
    %v3762 = vxor.u32 %v3706, 2147483648
    %v3763 = vxor.u32 %v3707, 2147483648
    %v3764 = vmul.f32 %v3760, 1.442695
    %v3765 = vpow.pop %v3764
    %v3766 = vmul.f32 %v3761, 1.442695
    %v3767 = vpow.pop %v3766
    %v3768 = vmul.f32 %v3762, 1.442695
    %v3769 = vpow.pop %v3768
    %v3770 = vmul.f32 %v3763, 1.442695
    %v3771 = vpow.pop %v3770
    %v3772 = vadd.f32 %v3765, 1.0
    %v3773 = vadd.f32 %v3767, 1.0
    %v3774 = vadd.f32 %v3769, 1.0
    %v3775 = vadd.f32 %v3771, 1.0
    %v3776 = vrcp.pop %v3772
    %v3777 = vmul.f32 1.0, %v3776
    %v3778 = vrcp.pop %v3773
    %v3779 = vmul.f32 1.0, %v3778
    %v3780 = vrcp.pop %v3774
    %v3781 = vmul.f32 1.0, %v3780
    %v3782 = vrcp.pop %v3775
    %v3783 = vmul.f32 1.0, %v3782
    %v3784 = vmul.f32 %v3749, %v1497
    %v3785 = vmul.f32 %v3751, %v1498
    %v3786 = vmul.f32 %v3753, %v1499
    %v3787 = vmul.f32 %v3755, %v1500
    %v3788 = vmul.f32 %v3725, %v3756
    %v3789 = vmul.f32 %v3727, %v3757
    %v3790 = vmul.f32 %v3729, %v3758
    %v3791 = vmul.f32 %v3731, %v3759
    %v3792 = vadd.f32 %v3784, %v3788
    %v3793 = vadd.f32 %v3785, %v3789
    %v3794 = vadd.f32 %v3786, %v3790
    %v3795 = vadd.f32 %v3787, %v3791
    %v3796 = vtanh.pop %v3792
    %v3797 = vtanh.pop %v3793
    %v3798 = vtanh.pop %v3794
    %v3799 = vtanh.pop %v3795
    %v3800 = vmul.f32 %v3777, %v3796
    %v3801 = vmul.f32 %v3779, %v3797
    %v3802 = vmul.f32 %v3781, %v3798
    %v3803 = vmul.f32 %v3783, %v3799
    %v3804 = vpack.c.bf16 %v3499, %v3497
    %v3805 = vpack.c.bf16 %v3500, %v3498
    %3806 = vmatprep.subr.bf16.mxu0 %v2150
    %3807 = vmatpush1.bf16.msra.mxu0 %v2149
    %3808 = vmatprep.subr.bf16.mxu0 %v2158
    %3809 = vmatpush1.bf16.msra.mxu0 %v2157
    %3810 = vmatprep.subr.bf16.mxu0 %v2166
    %3811 = vmatpush1.bf16.msra.mxu0 %v2165
    %3812 = vmatprep.subr.bf16.mxu0 %v2174
    %3813 = vmatpush1.bf16.msra.mxu0 %v2173
    %3814 = vmatprep.subr.bf16.mxu0 %v2182
    %3815 = vmatpush1.bf16.msra.mxu0 %v2181
    %3816 = vmatprep.subr.bf16.mxu0 %v2190
    %3817 = vmatpush1.bf16.msra.mxu0 %v2189
    %3818 = vmatprep.subr.bf16.mxu0 %v2198
    %3819 = vmatpush1.bf16.msra.mxu0 %v2197
    %3820 = vmatprep.subr.bf16.mxu0 %v2206
    %3821 = vmatpush1.bf16.msra.mxu0 %v2205
    %3822 = vmatprep.subr.bf16.mxu0 %v2214
    %3823 = vmatpush1.bf16.msra.mxu0 %v2213
    %3824 = vmatprep.subr.bf16.mxu0 %v2222
    %3825 = vmatpush1.bf16.msra.mxu0 %v2221
    %3826 = vmatprep.subr.bf16.mxu0 %v2230
    %3827 = vmatpush1.bf16.msra.mxu0 %v2229
    %3828 = vmatprep.subr.bf16.mxu0 %v2238
    %3829 = vmatpush1.bf16.msra.mxu0 %v2237
    %3830 = vmatprep.subr.bf16.mxu0 %v2246
    %3831 = vmatpush1.bf16.msra.mxu0 %v2245
    %3832 = vmatprep.subr.bf16.mxu0 %v2254
    %3833 = vmatpush1.bf16.msra.mxu0 %v2253
    %3834 = vmatprep.subr.bf16.mxu0 %v2262
    %3835 = vmatpush1.bf16.msra.mxu0 %v2261
    %3836 = vmatprep.subr.bf16.mxu0 %v2270
    %3837 = vmatpush1.bf16.msra.mxu0 %v2269
    %3838 = vmatprep.mubr.bf16.mxu0 %v3805
    %3839 = vmatmul.mubr.bf16.gmra.mrb[0].mxu0 %v3804
    %v3840 = vpop.f32.mrb[0].mxu0
    %v3841 = vadd.f32 0.0, %v3840
    %v3842 = vpop.f32.mrb[0].mxu0
    %v3843 = vadd.f32 0.0, %v3842
    %v3844 = vpop.f32.mrb[0].mxu0
    %v3845 = vadd.f32 0.0, %v3844
    %v3846 = vpop.f32.mrb[0].mxu0
    %v3847 = vadd.f32 0.0, %v3846
    %3848 = vdwg.mxu0
    %3849 = vmatprep.subr.bf16.mxu0 %v2152
    %3850 = vmatpush1.bf16.msra.mxu0 %v2151
    %3851 = vmatprep.subr.bf16.mxu0 %v2160
    %3852 = vmatpush1.bf16.msra.mxu0 %v2159
    %3853 = vmatprep.subr.bf16.mxu0 %v2168
    %3854 = vmatpush1.bf16.msra.mxu0 %v2167
    %3855 = vmatprep.subr.bf16.mxu0 %v2176
    %3856 = vmatpush1.bf16.msra.mxu0 %v2175
    %3857 = vmatprep.subr.bf16.mxu0 %v2184
    %3858 = vmatpush1.bf16.msra.mxu0 %v2183
    %3859 = vmatprep.subr.bf16.mxu0 %v2192
    %3860 = vmatpush1.bf16.msra.mxu0 %v2191
    %3861 = vmatprep.subr.bf16.mxu0 %v2200
    %3862 = vmatpush1.bf16.msra.mxu0 %v2199
    %3863 = vmatprep.subr.bf16.mxu0 %v2208
    %3864 = vmatpush1.bf16.msra.mxu0 %v2207
    %3865 = vmatprep.subr.bf16.mxu0 %v2216
    %3866 = vmatpush1.bf16.msra.mxu0 %v2215
    %3867 = vmatprep.subr.bf16.mxu0 %v2224
    %3868 = vmatpush1.bf16.msra.mxu0 %v2223
    %3869 = vmatprep.subr.bf16.mxu0 %v2232
    %3870 = vmatpush1.bf16.msra.mxu0 %v2231
    %3871 = vmatprep.subr.bf16.mxu0 %v2240
    %3872 = vmatpush1.bf16.msra.mxu0 %v2239
    %3873 = vmatprep.subr.bf16.mxu0 %v2248
    %3874 = vmatpush1.bf16.msra.mxu0 %v2247
    %3875 = vmatprep.subr.bf16.mxu0 %v2256
    %3876 = vmatpush1.bf16.msra.mxu0 %v2255
    %3877 = vmatprep.subr.bf16.mxu0 %v2264
    %3878 = vmatpush1.bf16.msra.mxu0 %v2263
    %3879 = vmatprep.subr.bf16.mxu0 %v2272
    %3880 = vmatpush1.bf16.msra.mxu0 %v2271
    %3881 = vmatprep.mubr.bf16.mxu0 %v3805
    %3882 = vmatmul.mubr.bf16.gmra.mrb[0].mxu0 %v3804
    %v3883 = vpop.f32.mrb[0].mxu0
    %v3884 = vadd.f32 0.0, %v3883
    %v3885 = vpop.f32.mrb[0].mxu0
    %v3886 = vadd.f32 0.0, %v3885
    %v3887 = vpop.f32.mrb[0].mxu0
    %v3888 = vadd.f32 0.0, %v3887
    %v3889 = vpop.f32.mrb[0].mxu0
    %v3890 = vadd.f32 0.0, %v3889
    %3891 = vdwg.mxu0
    %3892 = vmatprep.subr.bf16.mxu0 %v2154
    %3893 = vmatpush1.bf16.msra.mxu0 %v2153
    %3894 = vmatprep.subr.bf16.mxu0 %v2162
    %3895 = vmatpush1.bf16.msra.mxu0 %v2161
    %3896 = vmatprep.subr.bf16.mxu0 %v2170
    %3897 = vmatpush1.bf16.msra.mxu0 %v2169
    %3898 = vmatprep.subr.bf16.mxu0 %v2178
    %3899 = vmatpush1.bf16.msra.mxu0 %v2177
    %3900 = vmatprep.subr.bf16.mxu0 %v2186
    %3901 = vmatpush1.bf16.msra.mxu0 %v2185
    %3902 = vmatprep.subr.bf16.mxu0 %v2194
    %3903 = vmatpush1.bf16.msra.mxu0 %v2193
    %3904 = vmatprep.subr.bf16.mxu0 %v2202
    %3905 = vmatpush1.bf16.msra.mxu0 %v2201
    %3906 = vmatprep.subr.bf16.mxu0 %v2210
    %3907 = vmatpush1.bf16.msra.mxu0 %v2209
    %3908 = vmatprep.subr.bf16.mxu0 %v2218
    %3909 = vmatpush1.bf16.msra.mxu0 %v2217
    %3910 = vmatprep.subr.bf16.mxu0 %v2226
    %3911 = vmatpush1.bf16.msra.mxu0 %v2225
    %3912 = vmatprep.subr.bf16.mxu0 %v2234
    %3913 = vmatpush1.bf16.msra.mxu0 %v2233
    %3914 = vmatprep.subr.bf16.mxu0 %v2242
    %3915 = vmatpush1.bf16.msra.mxu0 %v2241
    %3916 = vmatprep.subr.bf16.mxu0 %v2250
    %3917 = vmatpush1.bf16.msra.mxu0 %v2249
    %3918 = vmatprep.subr.bf16.mxu0 %v2258
    %3919 = vmatpush1.bf16.msra.mxu0 %v2257
    %3920 = vmatprep.subr.bf16.mxu0 %v2266
    %3921 = vmatpush1.bf16.msra.mxu0 %v2265
    %3922 = vmatprep.subr.bf16.mxu0 %v2274
    %3923 = vmatpush1.bf16.msra.mxu0 %v2273
    %3924 = vmatprep.mubr.bf16.mxu0 %v3805
    %3925 = vmatmul.mubr.bf16.gmra.mrb[0].mxu0 %v3804
    %v3926 = vpop.f32.mrb[0].mxu0
    %v3927 = vadd.f32 0.0, %v3926
    %v3928 = vpop.f32.mrb[0].mxu0
    %v3929 = vadd.f32 0.0, %v3928
    %v3930 = vpop.f32.mrb[0].mxu0
    %v3931 = vadd.f32 0.0, %v3930
    %v3932 = vpop.f32.mrb[0].mxu0
    %v3933 = vadd.f32 0.0, %v3932
    %3934 = vdwg.mxu0
    %3935 = vmatprep.subr.bf16.mxu0 %v2156
    %3936 = vmatpush1.bf16.msra.mxu0 %v2155
    %3937 = vmatprep.subr.bf16.mxu0 %v2164
    %3938 = vmatpush1.bf16.msra.mxu0 %v2163
    %3939 = vmatprep.subr.bf16.mxu0 %v2172
    %3940 = vmatpush1.bf16.msra.mxu0 %v2171
    %3941 = vmatprep.subr.bf16.mxu0 %v2180
    %3942 = vmatpush1.bf16.msra.mxu0 %v2179
    %3943 = vmatprep.subr.bf16.mxu0 %v2188
    %3944 = vmatpush1.bf16.msra.mxu0 %v2187
    %3945 = vmatprep.subr.bf16.mxu0 %v2196
    %3946 = vmatpush1.bf16.msra.mxu0 %v2195
    %3947 = vmatprep.subr.bf16.mxu0 %v2204
    %3948 = vmatpush1.bf16.msra.mxu0 %v2203
    %3949 = vmatprep.subr.bf16.mxu0 %v2212
    %3950 = vmatpush1.bf16.msra.mxu0 %v2211
    %3951 = vmatprep.subr.bf16.mxu0 %v2220
    %3952 = vmatpush1.bf16.msra.mxu0 %v2219
    %3953 = vmatprep.subr.bf16.mxu0 %v2228
    %3954 = vmatpush1.bf16.msra.mxu0 %v2227
    %3955 = vmatprep.subr.bf16.mxu0 %v2236
    %3956 = vmatpush1.bf16.msra.mxu0 %v2235
    %3957 = vmatprep.subr.bf16.mxu0 %v2244
    %3958 = vmatpush1.bf16.msra.mxu0 %v2243
    %3959 = vmatprep.subr.bf16.mxu0 %v2252
    %3960 = vmatpush1.bf16.msra.mxu0 %v2251
    %3961 = vmatprep.subr.bf16.mxu0 %v2260
    %3962 = vmatpush1.bf16.msra.mxu0 %v2259
    %3963 = vmatprep.subr.bf16.mxu0 %v2268
    %3964 = vmatpush1.bf16.msra.mxu0 %v2267
    %3965 = vmatprep.subr.bf16.mxu0 %v2276
    %3966 = vmatpush1.bf16.msra.mxu0 %v2275
    %3967 = vmatprep.mubr.bf16.mxu0 %v3805
    %3968 = vmatmul.mubr.bf16.gmra.mrb[0].mxu0 %v3804
    %v3969 = vpop.f32.mrb[0].mxu0
    %v3970 = vadd.f32 0.0, %v3969
    %v3971 = vpop.f32.mrb[0].mxu0
    %v3972 = vadd.f32 0.0, %v3971
    %v3973 = vpop.f32.mrb[0].mxu0
    %v3974 = vadd.f32 0.0, %v3973
    %v3975 = vpop.f32.mrb[0].mxu0
    %v3976 = vadd.f32 0.0, %v3975
    %3977 = vdwg.mxu0
    %3978 = vmatprep.subr.bf16.mxu0 %v2962
    %3979 = vmatpush1.bf16.msra.mxu0 %v2961
    %3980 = vmatprep.subr.bf16.mxu0 %v2970
    %3981 = vmatpush1.bf16.msra.mxu0 %v2969
    %3982 = vmatprep.subr.bf16.mxu0 %v2978
    %3983 = vmatpush1.bf16.msra.mxu0 %v2977
    %3984 = vmatprep.subr.bf16.mxu0 %v2986
    %3985 = vmatpush1.bf16.msra.mxu0 %v2985
    %3986 = vmatprep.subr.bf16.mxu0 %v2994
    %3987 = vmatpush1.bf16.msra.mxu0 %v2993
    %3988 = vmatprep.subr.bf16.mxu0 %v3002
    %3989 = vmatpush1.bf16.msra.mxu0 %v3001
    %3990 = vmatprep.subr.bf16.mxu0 %v3010
    %3991 = vmatpush1.bf16.msra.mxu0 %v3009
    %3992 = vmatprep.subr.bf16.mxu0 %v3018
    %3993 = vmatpush1.bf16.msra.mxu0 %v3017
    %3994 = vmatprep.subr.bf16.mxu0 %v3026
    %3995 = vmatpush1.bf16.msra.mxu0 %v3025
    %3996 = vmatprep.subr.bf16.mxu0 %v3034
    %3997 = vmatpush1.bf16.msra.mxu0 %v3033
    %3998 = vmatprep.subr.bf16.mxu0 %v3042
    %3999 = vmatpush1.bf16.msra.mxu0 %v3041
    %4000 = vmatprep.subr.bf16.mxu0 %v3050
    %4001 = vmatpush1.bf16.msra.mxu0 %v3049
    %4002 = vmatprep.subr.bf16.mxu0 %v3058
    %4003 = vmatpush1.bf16.msra.mxu0 %v3057
    %4004 = vmatprep.subr.bf16.mxu0 %v3066
    %4005 = vmatpush1.bf16.msra.mxu0 %v3065
    %4006 = vmatprep.subr.bf16.mxu0 %v3074
    %4007 = vmatpush1.bf16.msra.mxu0 %v3073
    %4008 = vmatprep.subr.bf16.mxu0 %v3082
    %4009 = vmatpush1.bf16.msra.mxu0 %v3081
    %4010 = vmatprep.mubr.bf16.mxu0 %v3519
    %4011 = vmatmul.mubr.bf16.gmra.mrb[0].mxu0 %v3518
    %v4012 = vpop.f32.mrb[0].mxu0
    %v4013 = vadd.f32 %v3841, %v4012
    %v4014 = vpop.f32.mrb[0].mxu0
    %v4015 = vadd.f32 %v3843, %v4014
    %v4016 = vpop.f32.mrb[0].mxu0
    %v4017 = vadd.f32 %v3845, %v4016
    %v4018 = vpop.f32.mrb[0].mxu0
    %v4019 = vadd.f32 %v3847, %v4018
    %4020 = vdwg.mxu0
    %4021 = vmatprep.subr.bf16.mxu0 %v2964
    %4022 = vmatpush1.bf16.msra.mxu0 %v2963
    %4023 = vmatprep.subr.bf16.mxu0 %v2972
    %4024 = vmatpush1.bf16.msra.mxu0 %v2971
    %4025 = vmatprep.subr.bf16.mxu0 %v2980
    %4026 = vmatpush1.bf16.msra.mxu0 %v2979
    %4027 = vmatprep.subr.bf16.mxu0 %v2988
    %4028 = vmatpush1.bf16.msra.mxu0 %v2987
    %4029 = vmatprep.subr.bf16.mxu0 %v2996
    %4030 = vmatpush1.bf16.msra.mxu0 %v2995
    %4031 = vmatprep.subr.bf16.mxu0 %v3004
    %4032 = vmatpush1.bf16.msra.mxu0 %v3003
    %4033 = vmatprep.subr.bf16.mxu0 %v3012
    %4034 = vmatpush1.bf16.msra.mxu0 %v3011
    %4035 = vmatprep.subr.bf16.mxu0 %v3020
    %4036 = vmatpush1.bf16.msra.mxu0 %v3019
    %4037 = vmatprep.subr.bf16.mxu0 %v3028
    %4038 = vmatpush1.bf16.msra.mxu0 %v3027
    %4039 = vmatprep.subr.bf16.mxu0 %v3036
    %4040 = vmatpush1.bf16.msra.mxu0 %v3035
    %4041 = vmatprep.subr.bf16.mxu0 %v3044
    %4042 = vmatpush1.bf16.msra.mxu0 %v3043
    %4043 = vmatprep.subr.bf16.mxu0 %v3052
    %4044 = vmatpush1.bf16.msra.mxu0 %v3051
    %4045 = vmatprep.subr.bf16.mxu0 %v3060
    %4046 = vmatpush1.bf16.msra.mxu0 %v3059
    %4047 = vmatprep.subr.bf16.mxu0 %v3068
    %4048 = vmatpush1.bf16.msra.mxu0 %v3067
    %4049 = vmatprep.subr.bf16.mxu0 %v3076
    %4050 = vmatpush1.bf16.msra.mxu0 %v3075
    %4051 = vmatprep.subr.bf16.mxu0 %v3084
    %4052 = vmatpush1.bf16.msra.mxu0 %v3083
    %4053 = vmatprep.mubr.bf16.mxu0 %v3519
    %4054 = vmatmul.mubr.bf16.gmra.mrb[0].mxu0 %v3518
    %v4055 = vpop.f32.mrb[0].mxu0
    %v4056 = vadd.f32 %v3884, %v4055
    %v4057 = vpop.f32.mrb[0].mxu0
    %v4058 = vadd.f32 %v3886, %v4057
    %v4059 = vpop.f32.mrb[0].mxu0
    %v4060 = vadd.f32 %v3888, %v4059
    %v4061 = vpop.f32.mrb[0].mxu0
    %v4062 = vadd.f32 %v3890, %v4061
    %4063 = vdwg.mxu0
    %4064 = vmatprep.subr.bf16.mxu0 %v2966
    %4065 = vmatpush1.bf16.msra.mxu0 %v2965
    %4066 = vmatprep.subr.bf16.mxu0 %v2974
    %4067 = vmatpush1.bf16.msra.mxu0 %v2973
    %4068 = vmatprep.subr.bf16.mxu0 %v2982
    %4069 = vmatpush1.bf16.msra.mxu0 %v2981
    %4070 = vmatprep.subr.bf16.mxu0 %v2990
    %4071 = vmatpush1.bf16.msra.mxu0 %v2989
    %4072 = vmatprep.subr.bf16.mxu0 %v2998
    %4073 = vmatpush1.bf16.msra.mxu0 %v2997
    %4074 = vmatprep.subr.bf16.mxu0 %v3006
    %4075 = vmatpush1.bf16.msra.mxu0 %v3005
    %4076 = vmatprep.subr.bf16.mxu0 %v3014
    %4077 = vmatpush1.bf16.msra.mxu0 %v3013
    %4078 = vmatprep.subr.bf16.mxu0 %v3022
    %4079 = vmatpush1.bf16.msra.mxu0 %v3021
    %4080 = vmatprep.subr.bf16.mxu0 %v3030
    %4081 = vmatpush1.bf16.msra.mxu0 %v3029
    %4082 = vmatprep.subr.bf16.mxu0 %v3038
    %4083 = vmatpush1.bf16.msra.mxu0 %v3037
    %4084 = vmatprep.subr.bf16.mxu0 %v3046
    %4085 = vmatpush1.bf16.msra.mxu0 %v3045
    %4086 = vmatprep.subr.bf16.mxu0 %v3054
    %4087 = vmatpush1.bf16.msra.mxu0 %v3053
    %4088 = vmatprep.subr.bf16.mxu0 %v3062
    %4089 = vmatpush1.bf16.msra.mxu0 %v3061
    %4090 = vmatprep.subr.bf16.mxu0 %v3070
    %4091 = vmatpush1.bf16.msra.mxu0 %v3069
    %4092 = vmatprep.subr.bf16.mxu0 %v3078
    %4093 = vmatpush1.bf16.msra.mxu0 %v3077
    %4094 = vmatprep.subr.bf16.mxu0 %v3086
    %4095 = vmatpush1.bf16.msra.mxu0 %v3085
    %4096 = vmatprep.mubr.bf16.mxu0 %v3519
    %4097 = vmatmul.mubr.bf16.gmra.mrb[0].mxu0 %v3518
    %v4098 = vpop.f32.mrb[0].mxu0
    %v4099 = vadd.f32 %v3927, %v4098
    %v4100 = vpop.f32.mrb[0].mxu0
    %v4101 = vadd.f32 %v3929, %v4100
    %v4102 = vpop.f32.mrb[0].mxu0
    %v4103 = vadd.f32 %v3931, %v4102
    %v4104 = vpop.f32.mrb[0].mxu0
    %v4105 = vadd.f32 %v3933, %v4104
    %4106 = vdwg.mxu0
    %4107 = vmatprep.subr.bf16.mxu0 %v2968
    %4108 = vmatpush1.bf16.msra.mxu0 %v2967
    %4109 = vmatprep.subr.bf16.mxu0 %v2976
    %4110 = vmatpush1.bf16.msra.mxu0 %v2975
    %4111 = vmatprep.subr.bf16.mxu0 %v2984
    %4112 = vmatpush1.bf16.msra.mxu0 %v2983
    %4113 = vmatprep.subr.bf16.mxu0 %v2992
    %4114 = vmatpush1.bf16.msra.mxu0 %v2991
    %4115 = vmatprep.subr.bf16.mxu0 %v3000
    %4116 = vmatpush1.bf16.msra.mxu0 %v2999
    %4117 = vmatprep.subr.bf16.mxu0 %v3008
    %4118 = vmatpush1.bf16.msra.mxu0 %v3007
    %4119 = vmatprep.subr.bf16.mxu0 %v3016
    %4120 = vmatpush1.bf16.msra.mxu0 %v3015
    %4121 = vmatprep.subr.bf16.mxu0 %v3024
    %4122 = vmatpush1.bf16.msra.mxu0 %v3023
    %4123 = vmatprep.subr.bf16.mxu0 %v3032
    %4124 = vmatpush1.bf16.msra.mxu0 %v3031
    %4125 = vmatprep.subr.bf16.mxu0 %v3040
    %4126 = vmatpush1.bf16.msra.mxu0 %v3039
    %4127 = vmatprep.subr.bf16.mxu0 %v3048
    %4128 = vmatpush1.bf16.msra.mxu0 %v3047
    %4129 = vmatprep.subr.bf16.mxu0 %v3056
    %4130 = vmatpush1.bf16.msra.mxu0 %v3055
    %4131 = vmatprep.subr.bf16.mxu0 %v3064
    %4132 = vmatpush1.bf16.msra.mxu0 %v3063
    %4133 = vmatprep.subr.bf16.mxu0 %v3072
    %4134 = vmatpush1.bf16.msra.mxu0 %v3071
    %4135 = vmatprep.subr.bf16.mxu0 %v3080
    %4136 = vmatpush1.bf16.msra.mxu0 %v3079
    %4137 = vmatprep.subr.bf16.mxu0 %v3088
    %4138 = vmatpush1.bf16.msra.mxu0 %v3087
    %4139 = vmatprep.mubr.bf16.mxu0 %v3519
    %4140 = vmatmul.mubr.bf16.gmra.mrb[0].mxu0 %v3518
    %v4141 = vpop.f32.mrb[0].mxu0
    %v4142 = vadd.f32 %v3970, %v4141
    %v4143 = vpop.f32.mrb[0].mxu0
    %v4144 = vadd.f32 %v3972, %v4143
    %v4145 = vpop.f32.mrb[0].mxu0
    %v4146 = vadd.f32 %v3974, %v4145
    %v4147 = vpop.f32.mrb[0].mxu0
    %v4148 = vadd.f32 %v3976, %v4147
    %4149 = vdwg.mxu0
    %v4150 = vadd.f32 %v4013, %v101
    %v4151 = vadd.f32 %v4015, %v105
    %v4152 = vadd.f32 %v4056, %v109
    %v4153 = vadd.f32 %v4058, %v113
    %v4154 = vadd.f32 %v4099, %v117
    %v4155 = vadd.f32 %v4101, %v121
    %v4156 = vadd.f32 %v4142, %v125
    %v4157 = vadd.f32 %v4144, %v129
    %v4158 = vadd.f32 %v4017, %v101
    %v4159 = vadd.f32 %v4019, %v105
    %v4160 = vadd.f32 %v4060, %v109
    %v4161 = vadd.f32 %v4062, %v113
    %v4162 = vadd.f32 %v4103, %v117
    %v4163 = vadd.f32 %v4105, %v121
    %v4164 = vadd.f32 %v4146, %v125
    %v4165 = vadd.f32 %v4148, %v129
    %v4166 = vxor.u32 %v4150, 2147483648
    %v4167 = vxor.u32 %v4151, 2147483648
    %v4168 = vxor.u32 %v4158, 2147483648
    %v4169 = vxor.u32 %v4159, 2147483648
    %v4170 = vmul.f32 %v4166, 1.442695
    %v4171 = vpow.pop %v4170
    %v4172 = vmul.f32 %v4167, 1.442695
    %v4173 = vpow.pop %v4172
    %v4174 = vmul.f32 %v4168, 1.442695
    %v4175 = vpow.pop %v4174
    %v4176 = vmul.f32 %v4169, 1.442695
    %v4177 = vpow.pop %v4176
    %v4178 = vadd.f32 %v4171, 1.0
    %v4179 = vadd.f32 %v4173, 1.0
    %v4180 = vadd.f32 %v4175, 1.0
    %v4181 = vadd.f32 %v4177, 1.0
    %v4182 = vrcp.pop %v4178
    %v4183 = vmul.f32 1.0, %v4182
    %v4184 = vrcp.pop %v4179
    %v4185 = vmul.f32 1.0, %v4184
    %v4186 = vrcp.pop %v4180
    %v4187 = vmul.f32 1.0, %v4186
    %v4188 = vrcp.pop %v4181
    %v4189 = vmul.f32 1.0, %v4188
    %v4190 = vxor.u32 %v4152, 2147483648
    %v4191 = vxor.u32 %v4153, 2147483648
    %v4192 = vxor.u32 %v4160, 2147483648
    %v4193 = vxor.u32 %v4161, 2147483648
    %v4194 = vmul.f32 %v4190, 1.442695
    %v4195 = vpow.pop %v4194
    %v4196 = vmul.f32 %v4191, 1.442695
    %v4197 = vpow.pop %v4196
    %v4198 = vmul.f32 %v4192, 1.442695
    %v4199 = vpow.pop %v4198
    %v4200 = vmul.f32 %v4193, 1.442695
    %v4201 = vpow.pop %v4200
    %v4202 = vadd.f32 %v4195, 1.0
    %v4203 = vadd.f32 %v4197, 1.0
    %v4204 = vadd.f32 %v4199, 1.0
    %v4205 = vadd.f32 %v4201, 1.0
    %v4206 = vrcp.pop %v4202
    %v4207 = vmul.f32 1.0, %v4206
    %v4208 = vrcp.pop %v4203
    %v4209 = vmul.f32 1.0, %v4208
    %v4210 = vrcp.pop %v4204
    %v4211 = vmul.f32 1.0, %v4210
    %v4212 = vrcp.pop %v4205
    %v4213 = vmul.f32 1.0, %v4212
    %v4214 = vtanh.pop %v4154
    %v4215 = vtanh.pop %v4155
    %v4216 = vtanh.pop %v4162
    %v4217 = vtanh.pop %v4163
    %v4218 = vxor.u32 %v4156, 2147483648
    %v4219 = vxor.u32 %v4157, 2147483648
    %v4220 = vxor.u32 %v4164, 2147483648
    %v4221 = vxor.u32 %v4165, 2147483648
    %v4222 = vmul.f32 %v4218, 1.442695
    %v4223 = vpow.pop %v4222
    %v4224 = vmul.f32 %v4219, 1.442695
    %v4225 = vpow.pop %v4224
    %v4226 = vmul.f32 %v4220, 1.442695
    %v4227 = vpow.pop %v4226
    %v4228 = vmul.f32 %v4221, 1.442695
    %v4229 = vpow.pop %v4228
    %v4230 = vadd.f32 %v4223, 1.0
    %v4231 = vadd.f32 %v4225, 1.0
    %v4232 = vadd.f32 %v4227, 1.0
    %v4233 = vadd.f32 %v4229, 1.0
    %v4234 = vrcp.pop %v4230
    %v4235 = vmul.f32 1.0, %v4234
    %v4236 = vrcp.pop %v4231
    %v4237 = vmul.f32 1.0, %v4236
    %v4238 = vrcp.pop %v4232
    %v4239 = vmul.f32 1.0, %v4238
    %v4240 = vrcp.pop %v4233
    %v4241 = vmul.f32 1.0, %v4240
    %v4242 = vmul.f32 %v4207, %v3489
    %v4243 = vmul.f32 %v4209, %v3490
    %v4244 = vmul.f32 %v4211, %v3491
    %v4245 = vmul.f32 %v4213, %v3492
    %v4246 = vmul.f32 %v4183, %v4214
    %v4247 = vmul.f32 %v4185, %v4215
    %v4248 = vmul.f32 %v4187, %v4216
    %v4249 = vmul.f32 %v4189, %v4217
    %v4250 = vadd.f32 %v4242, %v4246
    %v4251 = vadd.f32 %v4243, %v4247
    %v4252 = vadd.f32 %v4244, %v4248
    %v4253 = vadd.f32 %v4245, %v4249
    %v4254 = vtanh.pop %v4250
    %v4255 = vtanh.pop %v4251
    %v4256 = vtanh.pop %v4252
    %v4257 = vtanh.pop %v4253
    %v4258 = vmul.f32 %v4235, %v4254
    %v4259 = vmul.f32 %v4237, %v4255
    %v4260 = vmul.f32 %v4239, %v4256
    %v4261 = vmul.f32 %v4241, %v4257
    %s4262 = scalar_lea.vmem [#allocation2], 384
    %v4263 = vld [vmem:[%s4262] sm:$0xff]
    %v4264 = vld [vmem:[%s4262 + $0x8] sm:$0xff]
    %v4265 = vld [vmem:[%s4262 + $0x10] sm:$0xff]
    %v4266 = vld [vmem:[%s4262 + $0x18] sm:$0xff]
    %v4267 = vld [vmem:[%s4262 + $0x20] sm:$0xff]
    %v4268 = vld [vmem:[%s4262 + $0x28] sm:$0xff]
    %v4269 = vld [vmem:[%s4262 + $0x30] sm:$0xff]
    %v4270 = vld [vmem:[%s4262 + $0x38] sm:$0xff]
    %v4271 = vld [vmem:[%s4262 + $0x40] sm:$0xff]
    %v4272 = vld [vmem:[%s4262 + $0x48] sm:$0xff]
    %v4273 = vld [vmem:[%s4262 + $0x50] sm:$0xff]
    %v4274 = vld [vmem:[%s4262 + $0x58] sm:$0xff]
    %v4275 = vld [vmem:[%s4262 + $0x60] sm:$0xff]
    %v4276 = vld [vmem:[%s4262 + $0x68] sm:$0xff]
    %v4277 = vld [vmem:[%s4262 + $0x70] sm:$0xff]
    %v4278 = vld [vmem:[%s4262 + $0x78] sm:$0xff]
    %v4279 = vpack.c.bf16 %v3802, %v3800
    %v4280 = vpack.c.bf16 %v3803, %v3801
    %4281 = vmatprep.subr.bf16.mxu0 %v667
    %4282 = vmatpush1.bf16.msra.mxu0 %v666
    %4283 = vmatprep.subr.bf16.mxu0 %v675
    %4284 = vmatpush1.bf16.msra.mxu0 %v674
    %4285 = vmatprep.subr.bf16.mxu0 %v683
    %4286 = vmatpush1.bf16.msra.mxu0 %v682
    %4287 = vmatprep.subr.bf16.mxu0 %v691
    %4288 = vmatpush1.bf16.msra.mxu0 %v690
    %4289 = vmatprep.subr.bf16.mxu0 %v699
    %4290 = vmatpush1.bf16.msra.mxu0 %v698
    %4291 = vmatprep.subr.bf16.mxu0 %v707
    %4292 = vmatpush1.bf16.msra.mxu0 %v706
    %4293 = vmatprep.subr.bf16.mxu0 %v715
    %4294 = vmatpush1.bf16.msra.mxu0 %v714
    %4295 = vmatprep.subr.bf16.mxu0 %v723
    %4296 = vmatpush1.bf16.msra.mxu0 %v722
    %4297 = vmatprep.subr.bf16.mxu0 %v731
    %4298 = vmatpush1.bf16.msra.mxu0 %v730
    %4299 = vmatprep.subr.bf16.mxu0 %v739
    %4300 = vmatpush1.bf16.msra.mxu0 %v738
    %4301 = vmatprep.subr.bf16.mxu0 %v747
    %4302 = vmatpush1.bf16.msra.mxu0 %v746
    %4303 = vmatprep.subr.bf16.mxu0 %v755
    %4304 = vmatpush1.bf16.msra.mxu0 %v754
    %4305 = vmatprep.subr.bf16.mxu0 %v763
    %4306 = vmatpush1.bf16.msra.mxu0 %v762
    %4307 = vmatprep.subr.bf16.mxu0 %v771
    %4308 = vmatpush1.bf16.msra.mxu0 %v770
    %4309 = vmatprep.subr.bf16.mxu0 %v779
    %4310 = vmatpush1.bf16.msra.mxu0 %v778
    %4311 = vmatprep.subr.bf16.mxu0 %v787
    %4312 = vmatpush1.bf16.msra.mxu0 %v786
    %4313 = vmatprep.mubr.bf16.mxu0 %v4280
    %4314 = vmatmul.mubr.bf16.gmra.mrb[0].mxu0 %v4279
    %v4315 = vpop.f32.mrb[0].mxu0
    %v4316 = vadd.f32 0.0, %v4315
    %v4317 = vpop.f32.mrb[0].mxu0
    %v4318 = vadd.f32 0.0, %v4317
    %v4319 = vpop.f32.mrb[0].mxu0
    %v4320 = vadd.f32 0.0, %v4319
    %v4321 = vpop.f32.mrb[0].mxu0
    %v4322 = vadd.f32 0.0, %v4321
    %4323 = vdwg.mxu0
    %4324 = vmatprep.subr.bf16.mxu0 %v669
    %4325 = vmatpush1.bf16.msra.mxu0 %v668
    %4326 = vmatprep.subr.bf16.mxu0 %v677
    %4327 = vmatpush1.bf16.msra.mxu0 %v676
    %4328 = vmatprep.subr.bf16.mxu0 %v685
    %4329 = vmatpush1.bf16.msra.mxu0 %v684
    %4330 = vmatprep.subr.bf16.mxu0 %v693
    %4331 = vmatpush1.bf16.msra.mxu0 %v692
    %4332 = vmatprep.subr.bf16.mxu0 %v701
    %4333 = vmatpush1.bf16.msra.mxu0 %v700
    %4334 = vmatprep.subr.bf16.mxu0 %v709
    %4335 = vmatpush1.bf16.msra.mxu0 %v708
    %4336 = vmatprep.subr.bf16.mxu0 %v717
    %4337 = vmatpush1.bf16.msra.mxu0 %v716
    %4338 = vmatprep.subr.bf16.mxu0 %v725
    %4339 = vmatpush1.bf16.msra.mxu0 %v724
    %4340 = vmatprep.subr.bf16.mxu0 %v733
    %4341 = vmatpush1.bf16.msra.mxu0 %v732
    %4342 = vmatprep.subr.bf16.mxu0 %v741
    %4343 = vmatpush1.bf16.msra.mxu0 %v740
    %4344 = vmatprep.subr.bf16.mxu0 %v749
    %4345 = vmatpush1.bf16.msra.mxu0 %v748
    %4346 = vmatprep.subr.bf16.mxu0 %v757
    %4347 = vmatpush1.bf16.msra.mxu0 %v756
    %4348 = vmatprep.subr.bf16.mxu0 %v765
    %4349 = vmatpush1.bf16.msra.mxu0 %v764
    %4350 = vmatprep.subr.bf16.mxu0 %v773
    %4351 = vmatpush1.bf16.msra.mxu0 %v772
    %4352 = vmatprep.subr.bf16.mxu0 %v781
    %4353 = vmatpush1.bf16.msra.mxu0 %v780
    %4354 = vmatprep.subr.bf16.mxu0 %v789
    %4355 = vmatpush1.bf16.msra.mxu0 %v788
    %4356 = vmatprep.mubr.bf16.mxu0 %v4280
    %4357 = vmatmul.mubr.bf16.gmra.mrb[0].mxu0 %v4279
    %v4358 = vpop.f32.mrb[0].mxu0
    %v4359 = vadd.f32 0.0, %v4358
    %v4360 = vpop.f32.mrb[0].mxu0
    %v4361 = vadd.f32 0.0, %v4360
    %v4362 = vpop.f32.mrb[0].mxu0
    %v4363 = vadd.f32 0.0, %v4362
    %v4364 = vpop.f32.mrb[0].mxu0
    %v4365 = vadd.f32 0.0, %v4364
    %4366 = vdwg.mxu0
    %4367 = vmatprep.subr.bf16.mxu0 %v671
    %4368 = vmatpush1.bf16.msra.mxu0 %v670
    %4369 = vmatprep.subr.bf16.mxu0 %v679
    %4370 = vmatpush1.bf16.msra.mxu0 %v678
    %4371 = vmatprep.subr.bf16.mxu0 %v687
    %4372 = vmatpush1.bf16.msra.mxu0 %v686
    %4373 = vmatprep.subr.bf16.mxu0 %v695
    %4374 = vmatpush1.bf16.msra.mxu0 %v694
    %4375 = vmatprep.subr.bf16.mxu0 %v703
    %4376 = vmatpush1.bf16.msra.mxu0 %v702
    %4377 = vmatprep.subr.bf16.mxu0 %v711
    %4378 = vmatpush1.bf16.msra.mxu0 %v710
    %4379 = vmatprep.subr.bf16.mxu0 %v719
    %4380 = vmatpush1.bf16.msra.mxu0 %v718
    %4381 = vmatprep.subr.bf16.mxu0 %v727
    %4382 = vmatpush1.bf16.msra.mxu0 %v726
    %4383 = vmatprep.subr.bf16.mxu0 %v735
    %4384 = vmatpush1.bf16.msra.mxu0 %v734
    %4385 = vmatprep.subr.bf16.mxu0 %v743
    %4386 = vmatpush1.bf16.msra.mxu0 %v742
    %4387 = vmatprep.subr.bf16.mxu0 %v751
    %4388 = vmatpush1.bf16.msra.mxu0 %v750
    %4389 = vmatprep.subr.bf16.mxu0 %v759
    %4390 = vmatpush1.bf16.msra.mxu0 %v758
    %4391 = vmatprep.subr.bf16.mxu0 %v767
    %4392 = vmatpush1.bf16.msra.mxu0 %v766
    %4393 = vmatprep.subr.bf16.mxu0 %v775
    %4394 = vmatpush1.bf16.msra.mxu0 %v774
    %4395 = vmatprep.subr.bf16.mxu0 %v783
    %4396 = vmatpush1.bf16.msra.mxu0 %v782
    %4397 = vmatprep.subr.bf16.mxu0 %v791
    %4398 = vmatpush1.bf16.msra.mxu0 %v790
    %4399 = vmatprep.mubr.bf16.mxu0 %v4280
    %4400 = vmatmul.mubr.bf16.gmra.mrb[0].mxu0 %v4279
    %v4401 = vpop.f32.mrb[0].mxu0
    %v4402 = vadd.f32 0.0, %v4401
    %v4403 = vpop.f32.mrb[0].mxu0
    %v4404 = vadd.f32 0.0, %v4403
    %v4405 = vpop.f32.mrb[0].mxu0
    %v4406 = vadd.f32 0.0, %v4405
    %v4407 = vpop.f32.mrb[0].mxu0
    %v4408 = vadd.f32 0.0, %v4407
    %4409 = vdwg.mxu0
    %4410 = vmatprep.subr.bf16.mxu0 %v673
    %4411 = vmatpush1.bf16.msra.mxu0 %v672
    %4412 = vmatprep.subr.bf16.mxu0 %v681
    %4413 = vmatpush1.bf16.msra.mxu0 %v680
    %4414 = vmatprep.subr.bf16.mxu0 %v689
    %4415 = vmatpush1.bf16.msra.mxu0 %v688
    %4416 = vmatprep.subr.bf16.mxu0 %v697
    %4417 = vmatpush1.bf16.msra.mxu0 %v696
    %4418 = vmatprep.subr.bf16.mxu0 %v705
    %4419 = vmatpush1.bf16.msra.mxu0 %v704
    %4420 = vmatprep.subr.bf16.mxu0 %v713
    %4421 = vmatpush1.bf16.msra.mxu0 %v712
    %4422 = vmatprep.subr.bf16.mxu0 %v721
    %4423 = vmatpush1.bf16.msra.mxu0 %v720
    %4424 = vmatprep.subr.bf16.mxu0 %v729
    %4425 = vmatpush1.bf16.msra.mxu0 %v728
    %4426 = vmatprep.subr.bf16.mxu0 %v737
    %4427 = vmatpush1.bf16.msra.mxu0 %v736
    %4428 = vmatprep.subr.bf16.mxu0 %v745
    %4429 = vmatpush1.bf16.msra.mxu0 %v744
    %4430 = vmatprep.subr.bf16.mxu0 %v753
    %4431 = vmatpush1.bf16.msra.mxu0 %v752
    %4432 = vmatprep.subr.bf16.mxu0 %v761
    %4433 = vmatpush1.bf16.msra.mxu0 %v760
    %4434 = vmatprep.subr.bf16.mxu0 %v769
    %4435 = vmatpush1.bf16.msra.mxu0 %v768
    %4436 = vmatprep.subr.bf16.mxu0 %v777
    %4437 = vmatpush1.bf16.msra.mxu0 %v776
    %4438 = vmatprep.subr.bf16.mxu0 %v785
    %4439 = vmatpush1.bf16.msra.mxu0 %v784
    %4440 = vmatprep.subr.bf16.mxu0 %v793
    %4441 = vmatpush1.bf16.msra.mxu0 %v792
    %4442 = vmatprep.mubr.bf16.mxu0 %v4280
    %4443 = vmatmul.mubr.bf16.gmra.mrb[0].mxu0 %v4279
    %v4444 = vpop.f32.mrb[0].mxu0
    %v4445 = vadd.f32 0.0, %v4444
    %v4446 = vpop.f32.mrb[0].mxu0
    %v4447 = vadd.f32 0.0, %v4446
    %v4448 = vpop.f32.mrb[0].mxu0
    %v4449 = vadd.f32 0.0, %v4448
    %v4450 = vpop.f32.mrb[0].mxu0
    %v4451 = vadd.f32 0.0, %v4450
    %4452 = vdwg.mxu0
    %v4453 = vadd.f32 %v4263, %v4316
    %v4454 = vadd.f32 %v4264, %v4318
    %v4455 = vadd.f32 %v4265, %v4359
    %v4456 = vadd.f32 %v4266, %v4361
    %v4457 = vadd.f32 %v4267, %v4402
    %v4458 = vadd.f32 %v4268, %v4404
    %v4459 = vadd.f32 %v4269, %v4445
    %v4460 = vadd.f32 %v4270, %v4447
    %v4461 = vadd.f32 %v4271, %v4320
    %v4462 = vadd.f32 %v4272, %v4322
    %v4463 = vadd.f32 %v4273, %v4363
    %v4464 = vadd.f32 %v4274, %v4365
    %v4465 = vadd.f32 %v4275, %v4406
    %v4466 = vadd.f32 %v4276, %v4408
    %v4467 = vadd.f32 %v4277, %v4449
    %v4468 = vadd.f32 %v4278, %v4451
    %v4469 = vxor.u32 %v4453, 2147483648
    %v4470 = vxor.u32 %v4454, 2147483648
    %v4471 = vxor.u32 %v4461, 2147483648
    %v4472 = vxor.u32 %v4462, 2147483648
    %v4473 = vmul.f32 %v4469, 1.442695
    %v4474 = vpow.pop %v4473
    %v4475 = vmul.f32 %v4470, 1.442695
    %v4476 = vpow.pop %v4475
    %v4477 = vmul.f32 %v4471, 1.442695
    %v4478 = vpow.pop %v4477
    %v4479 = vmul.f32 %v4472, 1.442695
    %v4480 = vpow.pop %v4479
    %v4481 = vadd.f32 %v4474, 1.0
    %v4482 = vadd.f32 %v4476, 1.0
    %v4483 = vadd.f32 %v4478, 1.0
    %v4484 = vadd.f32 %v4480, 1.0
    %v4485 = vrcp.pop %v4481
    %v4486 = vmul.f32 1.0, %v4485
    %v4487 = vrcp.pop %v4482
    %v4488 = vmul.f32 1.0, %v4487
    %v4489 = vrcp.pop %v4483
    %v4490 = vmul.f32 1.0, %v4489
    %v4491 = vrcp.pop %v4484
    %v4492 = vmul.f32 1.0, %v4491
    %v4493 = vxor.u32 %v4455, 2147483648
    %v4494 = vxor.u32 %v4456, 2147483648
    %v4495 = vxor.u32 %v4463, 2147483648
    %v4496 = vxor.u32 %v4464, 2147483648
    %v4497 = vmul.f32 %v4493, 1.442695
    %v4498 = vpow.pop %v4497
    %v4499 = vmul.f32 %v4494, 1.442695
    %v4500 = vpow.pop %v4499
    %v4501 = vmul.f32 %v4495, 1.442695
    %v4502 = vpow.pop %v4501
    %v4503 = vmul.f32 %v4496, 1.442695
    %v4504 = vpow.pop %v4503
    %v4505 = vadd.f32 %v4498, 1.0
    %v4506 = vadd.f32 %v4500, 1.0
    %v4507 = vadd.f32 %v4502, 1.0
    %v4508 = vadd.f32 %v4504, 1.0
    %v4509 = vrcp.pop %v4505
    %v4510 = vmul.f32 1.0, %v4509
    %v4511 = vrcp.pop %v4506
    %v4512 = vmul.f32 1.0, %v4511
    %v4513 = vrcp.pop %v4507
    %v4514 = vmul.f32 1.0, %v4513
    %v4515 = vrcp.pop %v4508
    %v4516 = vmul.f32 1.0, %v4515
    %v4517 = vtanh.pop %v4457
    %v4518 = vtanh.pop %v4458
    %v4519 = vtanh.pop %v4465
    %v4520 = vtanh.pop %v4466
    %v4521 = vxor.u32 %v4459, 2147483648
    %v4522 = vxor.u32 %v4460, 2147483648
    %v4523 = vxor.u32 %v4467, 2147483648
    %v4524 = vxor.u32 %v4468, 2147483648
    %v4525 = vmul.f32 %v4521, 1.442695
    %v4526 = vpow.pop %v4525
    %v4527 = vmul.f32 %v4522, 1.442695
    %v4528 = vpow.pop %v4527
    %v4529 = vmul.f32 %v4523, 1.442695
    %v4530 = vpow.pop %v4529
    %v4531 = vmul.f32 %v4524, 1.442695
    %v4532 = vpow.pop %v4531
    %v4533 = vadd.f32 %v4526, 1.0
    %v4534 = vadd.f32 %v4528, 1.0
    %v4535 = vadd.f32 %v4530, 1.0
    %v4536 = vadd.f32 %v4532, 1.0
    %v4537 = vrcp.pop %v4533
    %v4538 = vmul.f32 1.0, %v4537
    %v4539 = vrcp.pop %v4534
    %v4540 = vmul.f32 1.0, %v4539
    %v4541 = vrcp.pop %v4535
    %v4542 = vmul.f32 1.0, %v4541
    %v4543 = vrcp.pop %v4536
    %v4544 = vmul.f32 1.0, %v4543
    %v4545 = vmul.f32 %v4510, %v3792
    %v4546 = vmul.f32 %v4512, %v3793
    %v4547 = vmul.f32 %v4514, %v3794
    %v4548 = vmul.f32 %v4516, %v3795
    %v4549 = vmul.f32 %v4486, %v4517
    %v4550 = vmul.f32 %v4488, %v4518
    %v4551 = vmul.f32 %v4490, %v4519
    %v4552 = vmul.f32 %v4492, %v4520
    %v4553 = vadd.f32 %v4545, %v4549
    %v4554 = vadd.f32 %v4546, %v4550
    %v4555 = vadd.f32 %v4547, %v4551
    %v4556 = vadd.f32 %v4548, %v4552
    %v4557 = vtanh.pop %v4553
    %v4558 = vtanh.pop %v4554
    %v4559 = vtanh.pop %v4555
    %v4560 = vtanh.pop %v4556
    %v4561 = vmul.f32 %v4538, %v4557
    %v4562 = vmul.f32 %v4540, %v4558
    %v4563 = vmul.f32 %v4542, %v4559
    %v4564 = vmul.f32 %v4544, %v4560
    %v4565 = vpack.c.bf16 %v4260, %v4258
    %v4566 = vpack.c.bf16 %v4261, %v4259
    %4567 = vmatprep.subr.bf16.mxu0 %v2150
    %4568 = vmatpush1.bf16.msra.mxu0 %v2149
    %4569 = vmatprep.subr.bf16.mxu0 %v2158
    %4570 = vmatpush1.bf16.msra.mxu0 %v2157
    %4571 = vmatprep.subr.bf16.mxu0 %v2166
    %4572 = vmatpush1.bf16.msra.mxu0 %v2165
    %4573 = vmatprep.subr.bf16.mxu0 %v2174
    %4574 = vmatpush1.bf16.msra.mxu0 %v2173
    %4575 = vmatprep.subr.bf16.mxu0 %v2182
    %4576 = vmatpush1.bf16.msra.mxu0 %v2181
    %4577 = vmatprep.subr.bf16.mxu0 %v2190
    %4578 = vmatpush1.bf16.msra.mxu0 %v2189
    %4579 = vmatprep.subr.bf16.mxu0 %v2198
    %4580 = vmatpush1.bf16.msra.mxu0 %v2197
    %4581 = vmatprep.subr.bf16.mxu0 %v2206
    %4582 = vmatpush1.bf16.msra.mxu0 %v2205
    %4583 = vmatprep.subr.bf16.mxu0 %v2214
    %4584 = vmatpush1.bf16.msra.mxu0 %v2213
    %4585 = vmatprep.subr.bf16.mxu0 %v2222
    %4586 = vmatpush1.bf16.msra.mxu0 %v2221
    %4587 = vmatprep.subr.bf16.mxu0 %v2230
    %4588 = vmatpush1.bf16.msra.mxu0 %v2229
    %4589 = vmatprep.subr.bf16.mxu0 %v2238
    %4590 = vmatpush1.bf16.msra.mxu0 %v2237
    %4591 = vmatprep.subr.bf16.mxu0 %v2246
    %4592 = vmatpush1.bf16.msra.mxu0 %v2245
    %4593 = vmatprep.subr.bf16.mxu0 %v2254
    %4594 = vmatpush1.bf16.msra.mxu0 %v2253
    %4595 = vmatprep.subr.bf16.mxu0 %v2262
    %4596 = vmatpush1.bf16.msra.mxu0 %v2261
    %4597 = vmatprep.subr.bf16.mxu0 %v2270
    %4598 = vmatpush1.bf16.msra.mxu0 %v2269
    %4599 = vmatprep.mubr.bf16.mxu0 %v4566
    %4600 = vmatmul.mubr.bf16.gmra.mrb[0].mxu0 %v4565
    %v4601 = vpop.f32.mrb[0].mxu0
    %v4602 = vadd.f32 0.0, %v4601
    %v4603 = vpop.f32.mrb[0].mxu0
    %v4604 = vadd.f32 0.0, %v4603
    %v4605 = vpop.f32.mrb[0].mxu0
    %v4606 = vadd.f32 0.0, %v4605
    %v4607 = vpop.f32.mrb[0].mxu0
    %v4608 = vadd.f32 0.0, %v4607
    %4609 = vdwg.mxu0
    %4610 = vmatprep.subr.bf16.mxu0 %v2152
    %4611 = vmatpush1.bf16.msra.mxu0 %v2151
    %4612 = vmatprep.subr.bf16.mxu0 %v2160
    %4613 = vmatpush1.bf16.msra.mxu0 %v2159
    %4614 = vmatprep.subr.bf16.mxu0 %v2168
    %4615 = vmatpush1.bf16.msra.mxu0 %v2167
    %4616 = vmatprep.subr.bf16.mxu0 %v2176
    %4617 = vmatpush1.bf16.msra.mxu0 %v2175
    %4618 = vmatprep.subr.bf16.mxu0 %v2184
    %4619 = vmatpush1.bf16.msra.mxu0 %v2183
    %4620 = vmatprep.subr.bf16.mxu0 %v2192
    %4621 = vmatpush1.bf16.msra.mxu0 %v2191
    %4622 = vmatprep.subr.bf16.mxu0 %v2200
    %4623 = vmatpush1.bf16.msra.mxu0 %v2199
    %4624 = vmatprep.subr.bf16.mxu0 %v2208
    %4625 = vmatpush1.bf16.msra.mxu0 %v2207
    %4626 = vmatprep.subr.bf16.mxu0 %v2216
    %4627 = vmatpush1.bf16.msra.mxu0 %v2215
    %4628 = vmatprep.subr.bf16.mxu0 %v2224
    %4629 = vmatpush1.bf16.msra.mxu0 %v2223
    %4630 = vmatprep.subr.bf16.mxu0 %v2232
    %4631 = vmatpush1.bf16.msra.mxu0 %v2231
    %4632 = vmatprep.subr.bf16.mxu0 %v2240
    %4633 = vmatpush1.bf16.msra.mxu0 %v2239
    %4634 = vmatprep.subr.bf16.mxu0 %v2248
    %4635 = vmatpush1.bf16.msra.mxu0 %v2247
    %4636 = vmatprep.subr.bf16.mxu0 %v2256
    %4637 = vmatpush1.bf16.msra.mxu0 %v2255
    %4638 = vmatprep.subr.bf16.mxu0 %v2264
    %4639 = vmatpush1.bf16.msra.mxu0 %v2263
    %4640 = vmatprep.subr.bf16.mxu0 %v2272
    %4641 = vmatpush1.bf16.msra.mxu0 %v2271
    %4642 = vmatprep.mubr.bf16.mxu0 %v4566
    %4643 = vmatmul.mubr.bf16.gmra.mrb[0].mxu0 %v4565
    %v4644 = vpop.f32.mrb[0].mxu0
    %v4645 = vadd.f32 0.0, %v4644
    %v4646 = vpop.f32.mrb[0].mxu0
    %v4647 = vadd.f32 0.0, %v4646
    %v4648 = vpop.f32.mrb[0].mxu0
    %v4649 = vadd.f32 0.0, %v4648
    %v4650 = vpop.f32.mrb[0].mxu0
    %v4651 = vadd.f32 0.0, %v4650
    %4652 = vdwg.mxu0
    %4653 = vmatprep.subr.bf16.mxu0 %v2154
    %4654 = vmatpush1.bf16.msra.mxu0 %v2153
    %4655 = vmatprep.subr.bf16.mxu0 %v2162
    %4656 = vmatpush1.bf16.msra.mxu0 %v2161
    %4657 = vmatprep.subr.bf16.mxu0 %v2170
    %4658 = vmatpush1.bf16.msra.mxu0 %v2169
    %4659 = vmatprep.subr.bf16.mxu0 %v2178
    %4660 = vmatpush1.bf16.msra.mxu0 %v2177
    %4661 = vmatprep.subr.bf16.mxu0 %v2186
    %4662 = vmatpush1.bf16.msra.mxu0 %v2185
    %4663 = vmatprep.subr.bf16.mxu0 %v2194
    %4664 = vmatpush1.bf16.msra.mxu0 %v2193
    %4665 = vmatprep.subr.bf16.mxu0 %v2202
    %4666 = vmatpush1.bf16.msra.mxu0 %v2201
    %4667 = vmatprep.subr.bf16.mxu0 %v2210
    %4668 = vmatpush1.bf16.msra.mxu0 %v2209
    %4669 = vmatprep.subr.bf16.mxu0 %v2218
    %4670 = vmatpush1.bf16.msra.mxu0 %v2217
    %4671 = vmatprep.subr.bf16.mxu0 %v2226
    %4672 = vmatpush1.bf16.msra.mxu0 %v2225
    %4673 = vmatprep.subr.bf16.mxu0 %v2234
    %4674 = vmatpush1.bf16.msra.mxu0 %v2233
    %4675 = vmatprep.subr.bf16.mxu0 %v2242
    %4676 = vmatpush1.bf16.msra.mxu0 %v2241
    %4677 = vmatprep.subr.bf16.mxu0 %v2250
    %4678 = vmatpush1.bf16.msra.mxu0 %v2249
    %4679 = vmatprep.subr.bf16.mxu0 %v2258
    %4680 = vmatpush1.bf16.msra.mxu0 %v2257
    %4681 = vmatprep.subr.bf16.mxu0 %v2266
    %4682 = vmatpush1.bf16.msra.mxu0 %v2265
    %4683 = vmatprep.subr.bf16.mxu0 %v2274
    %4684 = vmatpush1.bf16.msra.mxu0 %v2273
    %4685 = vmatprep.mubr.bf16.mxu0 %v4566
    %4686 = vmatmul.mubr.bf16.gmra.mrb[0].mxu0 %v4565
    %v4687 = vpop.f32.mrb[0].mxu0
    %v4688 = vadd.f32 0.0, %v4687
    %v4689 = vpop.f32.mrb[0].mxu0
    %v4690 = vadd.f32 0.0, %v4689
    %v4691 = vpop.f32.mrb[0].mxu0
    %v4692 = vadd.f32 0.0, %v4691
    %v4693 = vpop.f32.mrb[0].mxu0
    %v4694 = vadd.f32 0.0, %v4693
    %4695 = vdwg.mxu0
    %4696 = vmatprep.subr.bf16.mxu0 %v2156
    %4697 = vmatpush1.bf16.msra.mxu0 %v2155
    %4698 = vmatprep.subr.bf16.mxu0 %v2164
    %4699 = vmatpush1.bf16.msra.mxu0 %v2163
    %4700 = vmatprep.subr.bf16.mxu0 %v2172
    %4701 = vmatpush1.bf16.msra.mxu0 %v2171
    %4702 = vmatprep.subr.bf16.mxu0 %v2180
    %4703 = vmatpush1.bf16.msra.mxu0 %v2179
    %4704 = vmatprep.subr.bf16.mxu0 %v2188
    %4705 = vmatpush1.bf16.msra.mxu0 %v2187
    %4706 = vmatprep.subr.bf16.mxu0 %v2196
    %4707 = vmatpush1.bf16.msra.mxu0 %v2195
    %4708 = vmatprep.subr.bf16.mxu0 %v2204
    %4709 = vmatpush1.bf16.msra.mxu0 %v2203
    %4710 = vmatprep.subr.bf16.mxu0 %v2212
    %4711 = vmatpush1.bf16.msra.mxu0 %v2211
    %4712 = vmatprep.subr.bf16.mxu0 %v2220
    %4713 = vmatpush1.bf16.msra.mxu0 %v2219
    %4714 = vmatprep.subr.bf16.mxu0 %v2228
    %4715 = vmatpush1.bf16.msra.mxu0 %v2227
    %4716 = vmatprep.subr.bf16.mxu0 %v2236
    %4717 = vmatpush1.bf16.msra.mxu0 %v2235
    %4718 = vmatprep.subr.bf16.mxu0 %v2244
    %4719 = vmatpush1.bf16.msra.mxu0 %v2243
    %4720 = vmatprep.subr.bf16.mxu0 %v2252
    %4721 = vmatpush1.bf16.msra.mxu0 %v2251
    %4722 = vmatprep.subr.bf16.mxu0 %v2260
    %4723 = vmatpush1.bf16.msra.mxu0 %v2259
    %4724 = vmatprep.subr.bf16.mxu0 %v2268
    %4725 = vmatpush1.bf16.msra.mxu0 %v2267
    %4726 = vmatprep.subr.bf16.mxu0 %v2276
    %4727 = vmatpush1.bf16.msra.mxu0 %v2275
    %4728 = vmatprep.mubr.bf16.mxu0 %v4566
    %4729 = vmatmul.mubr.bf16.gmra.mrb[0].mxu0 %v4565
    %v4730 = vpop.f32.mrb[0].mxu0
    %v4731 = vadd.f32 0.0, %v4730
    %v4732 = vpop.f32.mrb[0].mxu0
    %v4733 = vadd.f32 0.0, %v4732
    %v4734 = vpop.f32.mrb[0].mxu0
    %v4735 = vadd.f32 0.0, %v4734
    %v4736 = vpop.f32.mrb[0].mxu0
    %v4737 = vadd.f32 0.0, %v4736
    %4738 = vdwg.mxu0
    %4739 = vmatprep.subr.bf16.mxu0 %v2962
    %4740 = vmatpush1.bf16.msra.mxu0 %v2961
    %4741 = vmatprep.subr.bf16.mxu0 %v2970
    %4742 = vmatpush1.bf16.msra.mxu0 %v2969
    %4743 = vmatprep.subr.bf16.mxu0 %v2978
    %4744 = vmatpush1.bf16.msra.mxu0 %v2977
    %4745 = vmatprep.subr.bf16.mxu0 %v2986
    %4746 = vmatpush1.bf16.msra.mxu0 %v2985
    %4747 = vmatprep.subr.bf16.mxu0 %v2994
    %4748 = vmatpush1.bf16.msra.mxu0 %v2993
    %4749 = vmatprep.subr.bf16.mxu0 %v3002
    %4750 = vmatpush1.bf16.msra.mxu0 %v3001
    %4751 = vmatprep.subr.bf16.mxu0 %v3010
    %4752 = vmatpush1.bf16.msra.mxu0 %v3009
    %4753 = vmatprep.subr.bf16.mxu0 %v3018
    %4754 = vmatpush1.bf16.msra.mxu0 %v3017
    %4755 = vmatprep.subr.bf16.mxu0 %v3026
    %4756 = vmatpush1.bf16.msra.mxu0 %v3025
    %4757 = vmatprep.subr.bf16.mxu0 %v3034
    %4758 = vmatpush1.bf16.msra.mxu0 %v3033
    %4759 = vmatprep.subr.bf16.mxu0 %v3042
    %4760 = vmatpush1.bf16.msra.mxu0 %v3041
    %4761 = vmatprep.subr.bf16.mxu0 %v3050
    %4762 = vmatpush1.bf16.msra.mxu0 %v3049
    %4763 = vmatprep.subr.bf16.mxu0 %v3058
    %4764 = vmatpush1.bf16.msra.mxu0 %v3057
    %4765 = vmatprep.subr.bf16.mxu0 %v3066
    %4766 = vmatpush1.bf16.msra.mxu0 %v3065
    %4767 = vmatprep.subr.bf16.mxu0 %v3074
    %4768 = vmatpush1.bf16.msra.mxu0 %v3073
    %4769 = vmatprep.subr.bf16.mxu0 %v3082
    %4770 = vmatpush1.bf16.msra.mxu0 %v3081
    %4771 = vmatprep.mubr.bf16.mxu0 %v4280
    %4772 = vmatmul.mubr.bf16.gmra.mrb[0].mxu0 %v4279
    %v4773 = vpop.f32.mrb[0].mxu0
    %v4774 = vadd.f32 %v4602, %v4773
    %v4775 = vpop.f32.mrb[0].mxu0
    %v4776 = vadd.f32 %v4604, %v4775
    %v4777 = vpop.f32.mrb[0].mxu0
    %v4778 = vadd.f32 %v4606, %v4777
    %v4779 = vpop.f32.mrb[0].mxu0
    %v4780 = vadd.f32 %v4608, %v4779
    %4781 = vdwg.mxu0
    %4782 = vmatprep.subr.bf16.mxu0 %v2964
    %4783 = vmatpush1.bf16.msra.mxu0 %v2963
    %4784 = vmatprep.subr.bf16.mxu0 %v2972
    %4785 = vmatpush1.bf16.msra.mxu0 %v2971
    %4786 = vmatprep.subr.bf16.mxu0 %v2980
    %4787 = vmatpush1.bf16.msra.mxu0 %v2979
    %4788 = vmatprep.subr.bf16.mxu0 %v2988
    %4789 = vmatpush1.bf16.msra.mxu0 %v2987
    %4790 = vmatprep.subr.bf16.mxu0 %v2996
    %4791 = vmatpush1.bf16.msra.mxu0 %v2995
    %4792 = vmatprep.subr.bf16.mxu0 %v3004
    %4793 = vmatpush1.bf16.msra.mxu0 %v3003
    %4794 = vmatprep.subr.bf16.mxu0 %v3012
    %4795 = vmatpush1.bf16.msra.mxu0 %v3011
    %4796 = vmatprep.subr.bf16.mxu0 %v3020
    %4797 = vmatpush1.bf16.msra.mxu0 %v3019
    %4798 = vmatprep.subr.bf16.mxu0 %v3028
    %4799 = vmatpush1.bf16.msra.mxu0 %v3027
    %4800 = vmatprep.subr.bf16.mxu0 %v3036
    %4801 = vmatpush1.bf16.msra.mxu0 %v3035
    %4802 = vmatprep.subr.bf16.mxu0 %v3044
    %4803 = vmatpush1.bf16.msra.mxu0 %v3043
    %4804 = vmatprep.subr.bf16.mxu0 %v3052
    %4805 = vmatpush1.bf16.msra.mxu0 %v3051
    %4806 = vmatprep.subr.bf16.mxu0 %v3060
    %4807 = vmatpush1.bf16.msra.mxu0 %v3059
    %4808 = vmatprep.subr.bf16.mxu0 %v3068
    %4809 = vmatpush1.bf16.msra.mxu0 %v3067
    %4810 = vmatprep.subr.bf16.mxu0 %v3076
    %4811 = vmatpush1.bf16.msra.mxu0 %v3075
    %4812 = vmatprep.subr.bf16.mxu0 %v3084
    %4813 = vmatpush1.bf16.msra.mxu0 %v3083
    %4814 = vmatprep.mubr.bf16.mxu0 %v4280
    %4815 = vmatmul.mubr.bf16.gmra.mrb[0].mxu0 %v4279
    %v4816 = vpop.f32.mrb[0].mxu0
    %v4817 = vadd.f32 %v4645, %v4816
    %v4818 = vpop.f32.mrb[0].mxu0
    %v4819 = vadd.f32 %v4647, %v4818
    %v4820 = vpop.f32.mrb[0].mxu0
    %v4821 = vadd.f32 %v4649, %v4820
    %v4822 = vpop.f32.mrb[0].mxu0
    %v4823 = vadd.f32 %v4651, %v4822
    %4824 = vdwg.mxu0
    %4825 = vmatprep.subr.bf16.mxu0 %v2966
    %4826 = vmatpush1.bf16.msra.mxu0 %v2965
    %4827 = vmatprep.subr.bf16.mxu0 %v2974
    %4828 = vmatpush1.bf16.msra.mxu0 %v2973
    %4829 = vmatprep.subr.bf16.mxu0 %v2982
    %4830 = vmatpush1.bf16.msra.mxu0 %v2981
    %4831 = vmatprep.subr.bf16.mxu0 %v2990
    %4832 = vmatpush1.bf16.msra.mxu0 %v2989
    %4833 = vmatprep.subr.bf16.mxu0 %v2998
    %4834 = vmatpush1.bf16.msra.mxu0 %v2997
    %4835 = vmatprep.subr.bf16.mxu0 %v3006
    %4836 = vmatpush1.bf16.msra.mxu0 %v3005
    %4837 = vmatprep.subr.bf16.mxu0 %v3014
    %4838 = vmatpush1.bf16.msra.mxu0 %v3013
    %4839 = vmatprep.subr.bf16.mxu0 %v3022
    %4840 = vmatpush1.bf16.msra.mxu0 %v3021
    %4841 = vmatprep.subr.bf16.mxu0 %v3030
    %4842 = vmatpush1.bf16.msra.mxu0 %v3029
    %4843 = vmatprep.subr.bf16.mxu0 %v3038
    %4844 = vmatpush1.bf16.msra.mxu0 %v3037
    %4845 = vmatprep.subr.bf16.mxu0 %v3046
    %4846 = vmatpush1.bf16.msra.mxu0 %v3045
    %4847 = vmatprep.subr.bf16.mxu0 %v3054
    %4848 = vmatpush1.bf16.msra.mxu0 %v3053
    %4849 = vmatprep.subr.bf16.mxu0 %v3062
    %4850 = vmatpush1.bf16.msra.mxu0 %v3061
    %4851 = vmatprep.subr.bf16.mxu0 %v3070
    %4852 = vmatpush1.bf16.msra.mxu0 %v3069
    %4853 = vmatprep.subr.bf16.mxu0 %v3078
    %4854 = vmatpush1.bf16.msra.mxu0 %v3077
    %4855 = vmatprep.subr.bf16.mxu0 %v3086
    %4856 = vmatpush1.bf16.msra.mxu0 %v3085
    %4857 = vmatprep.mubr.bf16.mxu0 %v4280
    %4858 = vmatmul.mubr.bf16.gmra.mrb[0].mxu0 %v4279
    %v4859 = vpop.f32.mrb[0].mxu0
    %v4860 = vadd.f32 %v4688, %v4859
    %v4861 = vpop.f32.mrb[0].mxu0
    %v4862 = vadd.f32 %v4690, %v4861
    %v4863 = vpop.f32.mrb[0].mxu0
    %v4864 = vadd.f32 %v4692, %v4863
    %v4865 = vpop.f32.mrb[0].mxu0
    %v4866 = vadd.f32 %v4694, %v4865
    %4867 = vdwg.mxu0
    %4868 = vmatprep.subr.bf16.mxu0 %v2968
    %4869 = vmatpush1.bf16.msra.mxu0 %v2967
    %4870 = vmatprep.subr.bf16.mxu0 %v2976
    %4871 = vmatpush1.bf16.msra.mxu0 %v2975
    %4872 = vmatprep.subr.bf16.mxu0 %v2984
    %4873 = vmatpush1.bf16.msra.mxu0 %v2983
    %4874 = vmatprep.subr.bf16.mxu0 %v2992
    %4875 = vmatpush1.bf16.msra.mxu0 %v2991
    %4876 = vmatprep.subr.bf16.mxu0 %v3000
    %4877 = vmatpush1.bf16.msra.mxu0 %v2999
    %4878 = vmatprep.subr.bf16.mxu0 %v3008
    %4879 = vmatpush1.bf16.msra.mxu0 %v3007
    %4880 = vmatprep.subr.bf16.mxu0 %v3016
    %4881 = vmatpush1.bf16.msra.mxu0 %v3015
    %4882 = vmatprep.subr.bf16.mxu0 %v3024
    %4883 = vmatpush1.bf16.msra.mxu0 %v3023
    %4884 = vmatprep.subr.bf16.mxu0 %v3032
    %4885 = vmatpush1.bf16.msra.mxu0 %v3031
    %4886 = vmatprep.subr.bf16.mxu0 %v3040
    %4887 = vmatpush1.bf16.msra.mxu0 %v3039
    %4888 = vmatprep.subr.bf16.mxu0 %v3048
    %4889 = vmatpush1.bf16.msra.mxu0 %v3047
    %4890 = vmatprep.subr.bf16.mxu0 %v3056
    %4891 = vmatpush1.bf16.msra.mxu0 %v3055
    %4892 = vmatprep.subr.bf16.mxu0 %v3064
    %4893 = vmatpush1.bf16.msra.mxu0 %v3063
    %4894 = vmatprep.subr.bf16.mxu0 %v3072
    %4895 = vmatpush1.bf16.msra.mxu0 %v3071
    %4896 = vmatprep.subr.bf16.mxu0 %v3080
    %4897 = vmatpush1.bf16.msra.mxu0 %v3079
    %4898 = vmatprep.subr.bf16.mxu0 %v3088
    %4899 = vmatpush1.bf16.msra.mxu0 %v3087
    %4900 = vmatprep.mubr.bf16.mxu0 %v4280
    %4901 = vmatmul.mubr.bf16.gmra.mrb[0].mxu0 %v4279
    %v4902 = vpop.f32.mrb[0].mxu0
    %v4903 = vadd.f32 %v4731, %v4902
    %v4904 = vpop.f32.mrb[0].mxu0
    %v4905 = vadd.f32 %v4733, %v4904
    %v4906 = vpop.f32.mrb[0].mxu0
    %v4907 = vadd.f32 %v4735, %v4906
    %v4908 = vpop.f32.mrb[0].mxu0
    %v4909 = vadd.f32 %v4737, %v4908
    %4910 = vdwg.mxu0
    %v4911 = vadd.f32 %v4774, %v101
    %v4912 = vadd.f32 %v4776, %v105
    %v4913 = vadd.f32 %v4817, %v109
    %v4914 = vadd.f32 %v4819, %v113
    %v4915 = vadd.f32 %v4860, %v117
    %v4916 = vadd.f32 %v4862, %v121
    %v4917 = vadd.f32 %v4903, %v125
    %v4918 = vadd.f32 %v4905, %v129
    %v4919 = vadd.f32 %v4778, %v101
    %v4920 = vadd.f32 %v4780, %v105
    %v4921 = vadd.f32 %v4821, %v109
    %v4922 = vadd.f32 %v4823, %v113
    %v4923 = vadd.f32 %v4864, %v117
    %v4924 = vadd.f32 %v4866, %v121
    %v4925 = vadd.f32 %v4907, %v125
    %v4926 = vadd.f32 %v4909, %v129
    %v4927 = vxor.u32 %v4911, 2147483648
    %v4928 = vxor.u32 %v4912, 2147483648
    %v4929 = vxor.u32 %v4919, 2147483648
    %v4930 = vxor.u32 %v4920, 2147483648
    %v4931 = vmul.f32 %v4927, 1.442695
    %v4932 = vpow.pop %v4931
    %v4933 = vmul.f32 %v4928, 1.442695
    %v4934 = vpow.pop %v4933
    %v4935 = vmul.f32 %v4929, 1.442695
    %v4936 = vpow.pop %v4935
    %v4937 = vmul.f32 %v4930, 1.442695
    %v4938 = vpow.pop %v4937
    %v4939 = vadd.f32 %v4932, 1.0
    %v4940 = vadd.f32 %v4934, 1.0
    %v4941 = vadd.f32 %v4936, 1.0
    %v4942 = vadd.f32 %v4938, 1.0
    %v4943 = vrcp.pop %v4939
    %v4944 = vmul.f32 1.0, %v4943
    %v4945 = vrcp.pop %v4940
    %v4946 = vmul.f32 1.0, %v4945
    %v4947 = vrcp.pop %v4941
    %v4948 = vmul.f32 1.0, %v4947
    %v4949 = vrcp.pop %v4942
    %v4950 = vmul.f32 1.0, %v4949
    %v4951 = vxor.u32 %v4913, 2147483648
    %v4952 = vxor.u32 %v4914, 2147483648
    %v4953 = vxor.u32 %v4921, 2147483648
    %v4954 = vxor.u32 %v4922, 2147483648
    %v4955 = vmul.f32 %v4951, 1.442695
    %v4956 = vpow.pop %v4955
    %v4957 = vmul.f32 %v4952, 1.442695
    %v4958 = vpow.pop %v4957
    %v4959 = vmul.f32 %v4953, 1.442695
    %v4960 = vpow.pop %v4959
    %v4961 = vmul.f32 %v4954, 1.442695
    %v4962 = vpow.pop %v4961
    %v4963 = vadd.f32 %v4956, 1.0
    %v4964 = vadd.f32 %v4958, 1.0
    %v4965 = vadd.f32 %v4960, 1.0
    %v4966 = vadd.f32 %v4962, 1.0
    %v4967 = vrcp.pop %v4963
    %v4968 = vmul.f32 1.0, %v4967
    %v4969 = vrcp.pop %v4964
    %v4970 = vmul.f32 1.0, %v4969
    %v4971 = vrcp.pop %v4965
    %v4972 = vmul.f32 1.0, %v4971
    %v4973 = vrcp.pop %v4966
    %v4974 = vmul.f32 1.0, %v4973
    %v4975 = vtanh.pop %v4915
    %v4976 = vtanh.pop %v4916
    %v4977 = vtanh.pop %v4923
    %v4978 = vtanh.pop %v4924
    %v4979 = vxor.u32 %v4917, 2147483648
    %v4980 = vxor.u32 %v4918, 2147483648
    %v4981 = vxor.u32 %v4925, 2147483648
    %v4982 = vxor.u32 %v4926, 2147483648
    %v4983 = vmul.f32 %v4979, 1.442695
    %v4984 = vpow.pop %v4983
    %v4985 = vmul.f32 %v4980, 1.442695
    %v4986 = vpow.pop %v4985
    %v4987 = vmul.f32 %v4981, 1.442695
    %v4988 = vpow.pop %v4987
    %v4989 = vmul.f32 %v4982, 1.442695
    %v4990 = vpow.pop %v4989
    %v4991 = vadd.f32 %v4984, 1.0
    %v4992 = vadd.f32 %v4986, 1.0
    %v4993 = vadd.f32 %v4988, 1.0
    %v4994 = vadd.f32 %v4990, 1.0
    %v4995 = vrcp.pop %v4991
    %v4996 = vmul.f32 1.0, %v4995
    %v4997 = vrcp.pop %v4992
    %v4998 = vmul.f32 1.0, %v4997
    %v4999 = vrcp.pop %v4993
    %v5000 = vmul.f32 1.0, %v4999
    %v5001 = vrcp.pop %v4994
    %v5002 = vmul.f32 1.0, %v5001
    %v5003 = vmul.f32 %v4968, %v4250
    %v5004 = vmul.f32 %v4970, %v4251
    %v5005 = vmul.f32 %v4972, %v4252
    %v5006 = vmul.f32 %v4974, %v4253
    %v5007 = vmul.f32 %v4944, %v4975
    %v5008 = vmul.f32 %v4946, %v4976
    %v5009 = vmul.f32 %v4948, %v4977
    %v5010 = vmul.f32 %v4950, %v4978
    %v5011 = vadd.f32 %v5003, %v5007
    %v5012 = vadd.f32 %v5004, %v5008
    %v5013 = vadd.f32 %v5005, %v5009
    %v5014 = vadd.f32 %v5006, %v5010
    %v5015 = vtanh.pop %v5011
    %v5016 = vtanh.pop %v5012
    %v5017 = vtanh.pop %v5013
    %v5018 = vtanh.pop %v5014
    %v5019 = vmul.f32 %v4996, %v5015
    %v5020 = vmul.f32 %v4998, %v5016
    %v5021 = vmul.f32 %v5000, %v5017
    %v5022 = vmul.f32 %v5002, %v5018
    %s5023 = scalar_lea.vmem [#allocation2], 512
    %v5024 = vld [vmem:[%s5023] sm:$0xff]
    %v5025 = vld [vmem:[%s5023 + $0x8] sm:$0xff]
    %v5026 = vld [vmem:[%s5023 + $0x10] sm:$0xff]
    %v5027 = vld [vmem:[%s5023 + $0x18] sm:$0xff]
    %v5028 = vld [vmem:[%s5023 + $0x20] sm:$0xff]
    %v5029 = vld [vmem:[%s5023 + $0x28] sm:$0xff]
    %v5030 = vld [vmem:[%s5023 + $0x30] sm:$0xff]
    %v5031 = vld [vmem:[%s5023 + $0x38] sm:$0xff]
    %v5032 = vld [vmem:[%s5023 + $0x40] sm:$0xff]
    %v5033 = vld [vmem:[%s5023 + $0x48] sm:$0xff]
    %v5034 = vld [vmem:[%s5023 + $0x50] sm:$0xff]
    %v5035 = vld [vmem:[%s5023 + $0x58] sm:$0xff]
    %v5036 = vld [vmem:[%s5023 + $0x60] sm:$0xff]
    %v5037 = vld [vmem:[%s5023 + $0x68] sm:$0xff]
    %v5038 = vld [vmem:[%s5023 + $0x70] sm:$0xff]
    %v5039 = vld [vmem:[%s5023 + $0x78] sm:$0xff]
    %v5040 = vpack.c.bf16 %v4563, %v4561
    %v5041 = vpack.c.bf16 %v4564, %v4562
    %5042 = vmatprep.subr.bf16.mxu0 %v667
    %5043 = vmatpush1.bf16.msra.mxu0 %v666
    %5044 = vmatprep.subr.bf16.mxu0 %v675
    %5045 = vmatpush1.bf16.msra.mxu0 %v674
    %5046 = vmatprep.subr.bf16.mxu0 %v683
    %5047 = vmatpush1.bf16.msra.mxu0 %v682
    %5048 = vmatprep.subr.bf16.mxu0 %v691
    %5049 = vmatpush1.bf16.msra.mxu0 %v690
    %5050 = vmatprep.subr.bf16.mxu0 %v699
    %5051 = vmatpush1.bf16.msra.mxu0 %v698
    %5052 = vmatprep.subr.bf16.mxu0 %v707
    %5053 = vmatpush1.bf16.msra.mxu0 %v706
    %5054 = vmatprep.subr.bf16.mxu0 %v715
    %5055 = vmatpush1.bf16.msra.mxu0 %v714
    %5056 = vmatprep.subr.bf16.mxu0 %v723
    %5057 = vmatpush1.bf16.msra.mxu0 %v722
    %5058 = vmatprep.subr.bf16.mxu0 %v731
    %5059 = vmatpush1.bf16.msra.mxu0 %v730
    %5060 = vmatprep.subr.bf16.mxu0 %v739
    %5061 = vmatpush1.bf16.msra.mxu0 %v738
    %5062 = vmatprep.subr.bf16.mxu0 %v747
    %5063 = vmatpush1.bf16.msra.mxu0 %v746
    %5064 = vmatprep.subr.bf16.mxu0 %v755
    %5065 = vmatpush1.bf16.msra.mxu0 %v754
    %5066 = vmatprep.subr.bf16.mxu0 %v763
    %5067 = vmatpush1.bf16.msra.mxu0 %v762
    %5068 = vmatprep.subr.bf16.mxu0 %v771
    %5069 = vmatpush1.bf16.msra.mxu0 %v770
    %5070 = vmatprep.subr.bf16.mxu0 %v779
    %5071 = vmatpush1.bf16.msra.mxu0 %v778
    %5072 = vmatprep.subr.bf16.mxu0 %v787
    %5073 = vmatpush1.bf16.msra.mxu0 %v786
    %5074 = vmatprep.mubr.bf16.mxu0 %v5041
    %5075 = vmatmul.mubr.bf16.gmra.mrb[0].mxu0 %v5040
    %v5076 = vpop.f32.mrb[0].mxu0
    %v5077 = vadd.f32 0.0, %v5076
    %v5078 = vpop.f32.mrb[0].mxu0
    %v5079 = vadd.f32 0.0, %v5078
    %v5080 = vpop.f32.mrb[0].mxu0
    %v5081 = vadd.f32 0.0, %v5080
    %v5082 = vpop.f32.mrb[0].mxu0
    %v5083 = vadd.f32 0.0, %v5082
    %5084 = vdwg.mxu0
    %5085 = vmatprep.subr.bf16.mxu0 %v669
    %5086 = vmatpush1.bf16.msra.mxu0 %v668
    %5087 = vmatprep.subr.bf16.mxu0 %v677
    %5088 = vmatpush1.bf16.msra.mxu0 %v676
    %5089 = vmatprep.subr.bf16.mxu0 %v685
    %5090 = vmatpush1.bf16.msra.mxu0 %v684
    %5091 = vmatprep.subr.bf16.mxu0 %v693
    %5092 = vmatpush1.bf16.msra.mxu0 %v692
    %5093 = vmatprep.subr.bf16.mxu0 %v701
    %5094 = vmatpush1.bf16.msra.mxu0 %v700
    %5095 = vmatprep.subr.bf16.mxu0 %v709
    %5096 = vmatpush1.bf16.msra.mxu0 %v708
    %5097 = vmatprep.subr.bf16.mxu0 %v717
    %5098 = vmatpush1.bf16.msra.mxu0 %v716
    %5099 = vmatprep.subr.bf16.mxu0 %v725
    %5100 = vmatpush1.bf16.msra.mxu0 %v724
    %5101 = vmatprep.subr.bf16.mxu0 %v733
    %5102 = vmatpush1.bf16.msra.mxu0 %v732
    %5103 = vmatprep.subr.bf16.mxu0 %v741
    %5104 = vmatpush1.bf16.msra.mxu0 %v740
    %5105 = vmatprep.subr.bf16.mxu0 %v749
    %5106 = vmatpush1.bf16.msra.mxu0 %v748
    %5107 = vmatprep.subr.bf16.mxu0 %v757
    %5108 = vmatpush1.bf16.msra.mxu0 %v756
    %5109 = vmatprep.subr.bf16.mxu0 %v765
    %5110 = vmatpush1.bf16.msra.mxu0 %v764
    %5111 = vmatprep.subr.bf16.mxu0 %v773
    %5112 = vmatpush1.bf16.msra.mxu0 %v772
    %5113 = vmatprep.subr.bf16.mxu0 %v781
    %5114 = vmatpush1.bf16.msra.mxu0 %v780
    %5115 = vmatprep.subr.bf16.mxu0 %v789
    %5116 = vmatpush1.bf16.msra.mxu0 %v788
    %5117 = vmatprep.mubr.bf16.mxu0 %v5041
    %5118 = vmatmul.mubr.bf16.gmra.mrb[0].mxu0 %v5040
    %v5119 = vpop.f32.mrb[0].mxu0
    %v5120 = vadd.f32 0.0, %v5119
    %v5121 = vpop.f32.mrb[0].mxu0
    %v5122 = vadd.f32 0.0, %v5121
    %v5123 = vpop.f32.mrb[0].mxu0
    %v5124 = vadd.f32 0.0, %v5123
    %v5125 = vpop.f32.mrb[0].mxu0
    %v5126 = vadd.f32 0.0, %v5125
    %5127 = vdwg.mxu0
    %5128 = vmatprep.subr.bf16.mxu0 %v671
    %5129 = vmatpush1.bf16.msra.mxu0 %v670
    %5130 = vmatprep.subr.bf16.mxu0 %v679
    %5131 = vmatpush1.bf16.msra.mxu0 %v678
    %5132 = vmatprep.subr.bf16.mxu0 %v687
    %5133 = vmatpush1.bf16.msra.mxu0 %v686
    %5134 = vmatprep.subr.bf16.mxu0 %v695
    %5135 = vmatpush1.bf16.msra.mxu0 %v694
    %5136 = vmatprep.subr.bf16.mxu0 %v703
    %5137 = vmatpush1.bf16.msra.mxu0 %v702
    %5138 = vmatprep.subr.bf16.mxu0 %v711
    %5139 = vmatpush1.bf16.msra.mxu0 %v710
    %5140 = vmatprep.subr.bf16.mxu0 %v719
    %5141 = vmatpush1.bf16.msra.mxu0 %v718
    %5142 = vmatprep.subr.bf16.mxu0 %v727
    %5143 = vmatpush1.bf16.msra.mxu0 %v726
    %5144 = vmatprep.subr.bf16.mxu0 %v735
    %5145 = vmatpush1.bf16.msra.mxu0 %v734
    %5146 = vmatprep.subr.bf16.mxu0 %v743
    %5147 = vmatpush1.bf16.msra.mxu0 %v742
    %5148 = vmatprep.subr.bf16.mxu0 %v751
    %5149 = vmatpush1.bf16.msra.mxu0 %v750
    %5150 = vmatprep.subr.bf16.mxu0 %v759
    %5151 = vmatpush1.bf16.msra.mxu0 %v758
    %5152 = vmatprep.subr.bf16.mxu0 %v767
    %5153 = vmatpush1.bf16.msra.mxu0 %v766
    %5154 = vmatprep.subr.bf16.mxu0 %v775
    %5155 = vmatpush1.bf16.msra.mxu0 %v774
    %5156 = vmatprep.subr.bf16.mxu0 %v783
    %5157 = vmatpush1.bf16.msra.mxu0 %v782
    %5158 = vmatprep.subr.bf16.mxu0 %v791
    %5159 = vmatpush1.bf16.msra.mxu0 %v790
    %5160 = vmatprep.mubr.bf16.mxu0 %v5041
    %5161 = vmatmul.mubr.bf16.gmra.mrb[0].mxu0 %v5040
    %v5162 = vpop.f32.mrb[0].mxu0
    %v5163 = vadd.f32 0.0, %v5162
    %v5164 = vpop.f32.mrb[0].mxu0
    %v5165 = vadd.f32 0.0, %v5164
    %v5166 = vpop.f32.mrb[0].mxu0
    %v5167 = vadd.f32 0.0, %v5166
    %v5168 = vpop.f32.mrb[0].mxu0
    %v5169 = vadd.f32 0.0, %v5168
    %5170 = vdwg.mxu0
    %5171 = vmatprep.subr.bf16.mxu0 %v673
    %5172 = vmatpush1.bf16.msra.mxu0 %v672
    %5173 = vmatprep.subr.bf16.mxu0 %v681
    %5174 = vmatpush1.bf16.msra.mxu0 %v680
    %5175 = vmatprep.subr.bf16.mxu0 %v689
    %5176 = vmatpush1.bf16.msra.mxu0 %v688
    %5177 = vmatprep.subr.bf16.mxu0 %v697
    %5178 = vmatpush1.bf16.msra.mxu0 %v696
    %5179 = vmatprep.subr.bf16.mxu0 %v705
    %5180 = vmatpush1.bf16.msra.mxu0 %v704
    %5181 = vmatprep.subr.bf16.mxu0 %v713
    %5182 = vmatpush1.bf16.msra.mxu0 %v712
    %5183 = vmatprep.subr.bf16.mxu0 %v721
    %5184 = vmatpush1.bf16.msra.mxu0 %v720
    %5185 = vmatprep.subr.bf16.mxu0 %v729
    %5186 = vmatpush1.bf16.msra.mxu0 %v728
    %5187 = vmatprep.subr.bf16.mxu0 %v737
    %5188 = vmatpush1.bf16.msra.mxu0 %v736
    %5189 = vmatprep.subr.bf16.mxu0 %v745
    %5190 = vmatpush1.bf16.msra.mxu0 %v744
    %5191 = vmatprep.subr.bf16.mxu0 %v753
    %5192 = vmatpush1.bf16.msra.mxu0 %v752
    %5193 = vmatprep.subr.bf16.mxu0 %v761
    %5194 = vmatpush1.bf16.msra.mxu0 %v760
    %5195 = vmatprep.subr.bf16.mxu0 %v769
    %5196 = vmatpush1.bf16.msra.mxu0 %v768
    %5197 = vmatprep.subr.bf16.mxu0 %v777
    %5198 = vmatpush1.bf16.msra.mxu0 %v776
    %5199 = vmatprep.subr.bf16.mxu0 %v785
    %5200 = vmatpush1.bf16.msra.mxu0 %v784
    %5201 = vmatprep.subr.bf16.mxu0 %v793
    %5202 = vmatpush1.bf16.msra.mxu0 %v792
    %5203 = vmatprep.mubr.bf16.mxu0 %v5041
    %5204 = vmatmul.mubr.bf16.gmra.mrb[0].mxu0 %v5040
    %v5205 = vpop.f32.mrb[0].mxu0
    %v5206 = vadd.f32 0.0, %v5205
    %v5207 = vpop.f32.mrb[0].mxu0
    %v5208 = vadd.f32 0.0, %v5207
    %v5209 = vpop.f32.mrb[0].mxu0
    %v5210 = vadd.f32 0.0, %v5209
    %v5211 = vpop.f32.mrb[0].mxu0
    %v5212 = vadd.f32 0.0, %v5211
    %5213 = vdwg.mxu0
    %v5214 = vadd.f32 %v5024, %v5077
    %v5215 = vadd.f32 %v5025, %v5079
    %v5216 = vadd.f32 %v5026, %v5120
    %v5217 = vadd.f32 %v5027, %v5122
    %v5218 = vadd.f32 %v5028, %v5163
    %v5219 = vadd.f32 %v5029, %v5165
    %v5220 = vadd.f32 %v5030, %v5206
    %v5221 = vadd.f32 %v5031, %v5208
    %v5222 = vadd.f32 %v5032, %v5081
    %v5223 = vadd.f32 %v5033, %v5083
    %v5224 = vadd.f32 %v5034, %v5124
    %v5225 = vadd.f32 %v5035, %v5126
    %v5226 = vadd.f32 %v5036, %v5167
    %v5227 = vadd.f32 %v5037, %v5169
    %v5228 = vadd.f32 %v5038, %v5210
    %v5229 = vadd.f32 %v5039, %v5212
    %v5230 = vxor.u32 %v5214, 2147483648
    %v5231 = vxor.u32 %v5215, 2147483648
    %v5232 = vxor.u32 %v5222, 2147483648
    %v5233 = vxor.u32 %v5223, 2147483648
    %v5234 = vmul.f32 %v5230, 1.442695
    %v5235 = vpow.pop %v5234
    %v5236 = vmul.f32 %v5231, 1.442695
    %v5237 = vpow.pop %v5236
    %v5238 = vmul.f32 %v5232, 1.442695
    %v5239 = vpow.pop %v5238
    %v5240 = vmul.f32 %v5233, 1.442695
    %v5241 = vpow.pop %v5240
    %v5242 = vadd.f32 %v5235, 1.0
    %v5243 = vadd.f32 %v5237, 1.0
    %v5244 = vadd.f32 %v5239, 1.0
    %v5245 = vadd.f32 %v5241, 1.0
    %v5246 = vrcp.pop %v5242
    %v5247 = vmul.f32 1.0, %v5246
    %v5248 = vrcp.pop %v5243
    %v5249 = vmul.f32 1.0, %v5248
    %v5250 = vrcp.pop %v5244
    %v5251 = vmul.f32 1.0, %v5250
    %v5252 = vrcp.pop %v5245
    %v5253 = vmul.f32 1.0, %v5252
    %v5254 = vxor.u32 %v5216, 2147483648
    %v5255 = vxor.u32 %v5217, 2147483648
    %v5256 = vxor.u32 %v5224, 2147483648
    %v5257 = vxor.u32 %v5225, 2147483648
    %v5258 = vmul.f32 %v5254, 1.442695
    %v5259 = vpow.pop %v5258
    %v5260 = vmul.f32 %v5255, 1.442695
    %v5261 = vpow.pop %v5260
    %v5262 = vmul.f32 %v5256, 1.442695
    %v5263 = vpow.pop %v5262
    %v5264 = vmul.f32 %v5257, 1.442695
    %v5265 = vpow.pop %v5264
    %v5266 = vadd.f32 %v5259, 1.0
    %v5267 = vadd.f32 %v5261, 1.0
    %v5268 = vadd.f32 %v5263, 1.0
    %v5269 = vadd.f32 %v5265, 1.0
    %v5270 = vrcp.pop %v5266
    %v5271 = vmul.f32 1.0, %v5270
    %v5272 = vrcp.pop %v5267
    %v5273 = vmul.f32 1.0, %v5272
    %v5274 = vrcp.pop %v5268
    %v5275 = vmul.f32 1.0, %v5274
    %v5276 = vrcp.pop %v5269
    %v5277 = vmul.f32 1.0, %v5276
    %v5278 = vtanh.pop %v5218
    %v5279 = vtanh.pop %v5219
    %v5280 = vtanh.pop %v5226
    %v5281 = vtanh.pop %v5227
    %v5282 = vxor.u32 %v5220, 2147483648
    %v5283 = vxor.u32 %v5221, 2147483648
    %v5284 = vxor.u32 %v5228, 2147483648
    %v5285 = vxor.u32 %v5229, 2147483648
    %v5286 = vmul.f32 %v5282, 1.442695
    %v5287 = vpow.pop %v5286
    %v5288 = vmul.f32 %v5283, 1.442695
    %v5289 = vpow.pop %v5288
    %v5290 = vmul.f32 %v5284, 1.442695
    %v5291 = vpow.pop %v5290
    %v5292 = vmul.f32 %v5285, 1.442695
    %v5293 = vpow.pop %v5292
    %v5294 = vadd.f32 %v5287, 1.0
    %v5295 = vadd.f32 %v5289, 1.0
    %v5296 = vadd.f32 %v5291, 1.0
    %v5297 = vadd.f32 %v5293, 1.0
    %v5298 = vrcp.pop %v5294
    %v5299 = vmul.f32 1.0, %v5298
    %v5300 = vrcp.pop %v5295
    %v5301 = vmul.f32 1.0, %v5300
    %v5302 = vrcp.pop %v5296
    %v5303 = vmul.f32 1.0, %v5302
    %v5304 = vrcp.pop %v5297
    %v5305 = vmul.f32 1.0, %v5304
    %v5306 = vmul.f32 %v5271, %v4553
    %v5307 = vmul.f32 %v5273, %v4554
    %v5308 = vmul.f32 %v5275, %v4555
    %v5309 = vmul.f32 %v5277, %v4556
    %v5310 = vmul.f32 %v5247, %v5278
    %v5311 = vmul.f32 %v5249, %v5279
    %v5312 = vmul.f32 %v5251, %v5280
    %v5313 = vmul.f32 %v5253, %v5281
    %v5314 = vadd.f32 %v5306, %v5310
    %v5315 = vadd.f32 %v5307, %v5311
    %v5316 = vadd.f32 %v5308, %v5312
    %v5317 = vadd.f32 %v5309, %v5313
    %v5318 = vtanh.pop %v5314
    %v5319 = vtanh.pop %v5315
    %v5320 = vtanh.pop %v5316
    %v5321 = vtanh.pop %v5317
    %v5322 = vmul.f32 %v5299, %v5318
    %v5323 = vmul.f32 %v5301, %v5319
    %v5324 = vmul.f32 %v5303, %v5320
    %v5325 = vmul.f32 %v5305, %v5321
    %v5326 = vpack.c.bf16 %v5021, %v5019
    %v5327 = vpack.c.bf16 %v5022, %v5020
    %5328 = vmatprep.subr.bf16.mxu0 %v2150
    %5329 = vmatpush1.bf16.msra.mxu0 %v2149
    %5330 = vmatprep.subr.bf16.mxu0 %v2158
    %5331 = vmatpush1.bf16.msra.mxu0 %v2157
    %5332 = vmatprep.subr.bf16.mxu0 %v2166
    %5333 = vmatpush1.bf16.msra.mxu0 %v2165
    %5334 = vmatprep.subr.bf16.mxu0 %v2174
    %5335 = vmatpush1.bf16.msra.mxu0 %v2173
    %5336 = vmatprep.subr.bf16.mxu0 %v2182
    %5337 = vmatpush1.bf16.msra.mxu0 %v2181
    %5338 = vmatprep.subr.bf16.mxu0 %v2190
    %5339 = vmatpush1.bf16.msra.mxu0 %v2189
    %5340 = vmatprep.subr.bf16.mxu0 %v2198
    %5341 = vmatpush1.bf16.msra.mxu0 %v2197
    %5342 = vmatprep.subr.bf16.mxu0 %v2206
    %5343 = vmatpush1.bf16.msra.mxu0 %v2205
    %5344 = vmatprep.subr.bf16.mxu0 %v2214
    %5345 = vmatpush1.bf16.msra.mxu0 %v2213
    %5346 = vmatprep.subr.bf16.mxu0 %v2222
    %5347 = vmatpush1.bf16.msra.mxu0 %v2221
    %5348 = vmatprep.subr.bf16.mxu0 %v2230
    %5349 = vmatpush1.bf16.msra.mxu0 %v2229
    %5350 = vmatprep.subr.bf16.mxu0 %v2238
    %5351 = vmatpush1.bf16.msra.mxu0 %v2237
    %5352 = vmatprep.subr.bf16.mxu0 %v2246
    %5353 = vmatpush1.bf16.msra.mxu0 %v2245
    %5354 = vmatprep.subr.bf16.mxu0 %v2254
    %5355 = vmatpush1.bf16.msra.mxu0 %v2253
    %5356 = vmatprep.subr.bf16.mxu0 %v2262
    %5357 = vmatpush1.bf16.msra.mxu0 %v2261
    %5358 = vmatprep.subr.bf16.mxu0 %v2270
    %5359 = vmatpush1.bf16.msra.mxu0 %v2269
    %5360 = vmatprep.mubr.bf16.mxu0 %v5327
    %5361 = vmatmul.mubr.bf16.gmra.mrb[0].mxu0 %v5326
    %v5362 = vpop.f32.mrb[0].mxu0
    %v5363 = vadd.f32 0.0, %v5362
    %v5364 = vpop.f32.mrb[0].mxu0
    %v5365 = vadd.f32 0.0, %v5364
    %v5366 = vpop.f32.mrb[0].mxu0
    %v5367 = vadd.f32 0.0, %v5366
    %v5368 = vpop.f32.mrb[0].mxu0
    %v5369 = vadd.f32 0.0, %v5368
    %5370 = vdwg.mxu0
    %5371 = vmatprep.subr.bf16.mxu0 %v2152
    %5372 = vmatpush1.bf16.msra.mxu0 %v2151
    %5373 = vmatprep.subr.bf16.mxu0 %v2160
    %5374 = vmatpush1.bf16.msra.mxu0 %v2159
    %5375 = vmatprep.subr.bf16.mxu0 %v2168
    %5376 = vmatpush1.bf16.msra.mxu0 %v2167
    %5377 = vmatprep.subr.bf16.mxu0 %v2176
    %5378 = vmatpush1.bf16.msra.mxu0 %v2175
    %5379 = vmatprep.subr.bf16.mxu0 %v2184
    %5380 = vmatpush1.bf16.msra.mxu0 %v2183
    %5381 = vmatprep.subr.bf16.mxu0 %v2192
    %5382 = vmatpush1.bf16.msra.mxu0 %v2191
    %5383 = vmatprep.subr.bf16.mxu0 %v2200
    %5384 = vmatpush1.bf16.msra.mxu0 %v2199
    %5385 = vmatprep.subr.bf16.mxu0 %v2208
    %5386 = vmatpush1.bf16.msra.mxu0 %v2207
    %5387 = vmatprep.subr.bf16.mxu0 %v2216
    %5388 = vmatpush1.bf16.msra.mxu0 %v2215
    %5389 = vmatprep.subr.bf16.mxu0 %v2224
    %5390 = vmatpush1.bf16.msra.mxu0 %v2223
    %5391 = vmatprep.subr.bf16.mxu0 %v2232
    %5392 = vmatpush1.bf16.msra.mxu0 %v2231
    %5393 = vmatprep.subr.bf16.mxu0 %v2240
    %5394 = vmatpush1.bf16.msra.mxu0 %v2239
    %5395 = vmatprep.subr.bf16.mxu0 %v2248
    %5396 = vmatpush1.bf16.msra.mxu0 %v2247
    %5397 = vmatprep.subr.bf16.mxu0 %v2256
    %5398 = vmatpush1.bf16.msra.mxu0 %v2255
    %5399 = vmatprep.subr.bf16.mxu0 %v2264
    %5400 = vmatpush1.bf16.msra.mxu0 %v2263
    %5401 = vmatprep.subr.bf16.mxu0 %v2272
    %5402 = vmatpush1.bf16.msra.mxu0 %v2271
    %5403 = vmatprep.mubr.bf16.mxu0 %v5327
    %5404 = vmatmul.mubr.bf16.gmra.mrb[0].mxu0 %v5326
    %v5405 = vpop.f32.mrb[0].mxu0
    %v5406 = vadd.f32 0.0, %v5405
    %v5407 = vpop.f32.mrb[0].mxu0
    %v5408 = vadd.f32 0.0, %v5407
    %v5409 = vpop.f32.mrb[0].mxu0
    %v5410 = vadd.f32 0.0, %v5409
    %v5411 = vpop.f32.mrb[0].mxu0
    %v5412 = vadd.f32 0.0, %v5411
    %5413 = vdwg.mxu0
    %5414 = vmatprep.subr.bf16.mxu0 %v2154
    %5415 = vmatpush1.bf16.msra.mxu0 %v2153
    %5416 = vmatprep.subr.bf16.mxu0 %v2162
    %5417 = vmatpush1.bf16.msra.mxu0 %v2161
    %5418 = vmatprep.subr.bf16.mxu0 %v2170
    %5419 = vmatpush1.bf16.msra.mxu0 %v2169
    %5420 = vmatprep.subr.bf16.mxu0 %v2178
    %5421 = vmatpush1.bf16.msra.mxu0 %v2177
    %5422 = vmatprep.subr.bf16.mxu0 %v2186
    %5423 = vmatpush1.bf16.msra.mxu0 %v2185
    %5424 = vmatprep.subr.bf16.mxu0 %v2194
    %5425 = vmatpush1.bf16.msra.mxu0 %v2193
    %5426 = vmatprep.subr.bf16.mxu0 %v2202
    %5427 = vmatpush1.bf16.msra.mxu0 %v2201
    %5428 = vmatprep.subr.bf16.mxu0 %v2210
    %5429 = vmatpush1.bf16.msra.mxu0 %v2209
    %5430 = vmatprep.subr.bf16.mxu0 %v2218
    %5431 = vmatpush1.bf16.msra.mxu0 %v2217
    %5432 = vmatprep.subr.bf16.mxu0 %v2226
    %5433 = vmatpush1.bf16.msra.mxu0 %v2225
    %5434 = vmatprep.subr.bf16.mxu0 %v2234
    %5435 = vmatpush1.bf16.msra.mxu0 %v2233
    %5436 = vmatprep.subr.bf16.mxu0 %v2242
    %5437 = vmatpush1.bf16.msra.mxu0 %v2241
    %5438 = vmatprep.subr.bf16.mxu0 %v2250
    %5439 = vmatpush1.bf16.msra.mxu0 %v2249
    %5440 = vmatprep.subr.bf16.mxu0 %v2258
    %5441 = vmatpush1.bf16.msra.mxu0 %v2257
    %5442 = vmatprep.subr.bf16.mxu0 %v2266
    %5443 = vmatpush1.bf16.msra.mxu0 %v2265
    %5444 = vmatprep.subr.bf16.mxu0 %v2274
    %5445 = vmatpush1.bf16.msra.mxu0 %v2273
    %5446 = vmatprep.mubr.bf16.mxu0 %v5327
    %5447 = vmatmul.mubr.bf16.gmra.mrb[0].mxu0 %v5326
    %v5448 = vpop.f32.mrb[0].mxu0
    %v5449 = vadd.f32 0.0, %v5448
    %v5450 = vpop.f32.mrb[0].mxu0
    %v5451 = vadd.f32 0.0, %v5450
    %v5452 = vpop.f32.mrb[0].mxu0
    %v5453 = vadd.f32 0.0, %v5452
    %v5454 = vpop.f32.mrb[0].mxu0
    %v5455 = vadd.f32 0.0, %v5454
    %5456 = vdwg.mxu0
    %5457 = vmatprep.subr.bf16.mxu0 %v2156
    %5458 = vmatpush1.bf16.msra.mxu0 %v2155
    %5459 = vmatprep.subr.bf16.mxu0 %v2164
    %5460 = vmatpush1.bf16.msra.mxu0 %v2163
    %5461 = vmatprep.subr.bf16.mxu0 %v2172
    %5462 = vmatpush1.bf16.msra.mxu0 %v2171
    %5463 = vmatprep.subr.bf16.mxu0 %v2180
    %5464 = vmatpush1.bf16.msra.mxu0 %v2179
    %5465 = vmatprep.subr.bf16.mxu0 %v2188
    %5466 = vmatpush1.bf16.msra.mxu0 %v2187
    %5467 = vmatprep.subr.bf16.mxu0 %v2196
    %5468 = vmatpush1.bf16.msra.mxu0 %v2195
    %5469 = vmatprep.subr.bf16.mxu0 %v2204
    %5470 = vmatpush1.bf16.msra.mxu0 %v2203
    %5471 = vmatprep.subr.bf16.mxu0 %v2212
    %5472 = vmatpush1.bf16.msra.mxu0 %v2211
    %5473 = vmatprep.subr.bf16.mxu0 %v2220
    %5474 = vmatpush1.bf16.msra.mxu0 %v2219
    %5475 = vmatprep.subr.bf16.mxu0 %v2228
    %5476 = vmatpush1.bf16.msra.mxu0 %v2227
    %5477 = vmatprep.subr.bf16.mxu0 %v2236
    %5478 = vmatpush1.bf16.msra.mxu0 %v2235
    %5479 = vmatprep.subr.bf16.mxu0 %v2244
    %5480 = vmatpush1.bf16.msra.mxu0 %v2243
    %5481 = vmatprep.subr.bf16.mxu0 %v2252
    %5482 = vmatpush1.bf16.msra.mxu0 %v2251
    %5483 = vmatprep.subr.bf16.mxu0 %v2260
    %5484 = vmatpush1.bf16.msra.mxu0 %v2259
    %5485 = vmatprep.subr.bf16.mxu0 %v2268
    %5486 = vmatpush1.bf16.msra.mxu0 %v2267
    %5487 = vmatprep.subr.bf16.mxu0 %v2276
    %5488 = vmatpush1.bf16.msra.mxu0 %v2275
    %5489 = vmatprep.mubr.bf16.mxu0 %v5327
    %5490 = vmatmul.mubr.bf16.gmra.mrb[0].mxu0 %v5326
    %v5491 = vpop.f32.mrb[0].mxu0
    %v5492 = vadd.f32 0.0, %v5491
    %v5493 = vpop.f32.mrb[0].mxu0
    %v5494 = vadd.f32 0.0, %v5493
    %v5495 = vpop.f32.mrb[0].mxu0
    %v5496 = vadd.f32 0.0, %v5495
    %v5497 = vpop.f32.mrb[0].mxu0
    %v5498 = vadd.f32 0.0, %v5497
    %5499 = vdwg.mxu0
    %5500 = vmatprep.subr.bf16.mxu0 %v2962
    %5501 = vmatpush1.bf16.msra.mxu0 %v2961
    %5502 = vmatprep.subr.bf16.mxu0 %v2970
    %5503 = vmatpush1.bf16.msra.mxu0 %v2969
    %5504 = vmatprep.subr.bf16.mxu0 %v2978
    %5505 = vmatpush1.bf16.msra.mxu0 %v2977
    %5506 = vmatprep.subr.bf16.mxu0 %v2986
    %5507 = vmatpush1.bf16.msra.mxu0 %v2985
    %5508 = vmatprep.subr.bf16.mxu0 %v2994
    %5509 = vmatpush1.bf16.msra.mxu0 %v2993
    %5510 = vmatprep.subr.bf16.mxu0 %v3002
    %5511 = vmatpush1.bf16.msra.mxu0 %v3001
    %5512 = vmatprep.subr.bf16.mxu0 %v3010
    %5513 = vmatpush1.bf16.msra.mxu0 %v3009
    %5514 = vmatprep.subr.bf16.mxu0 %v3018
    %5515 = vmatpush1.bf16.msra.mxu0 %v3017
    %5516 = vmatprep.subr.bf16.mxu0 %v3026
    %5517 = vmatpush1.bf16.msra.mxu0 %v3025
    %5518 = vmatprep.subr.bf16.mxu0 %v3034
    %5519 = vmatpush1.bf16.msra.mxu0 %v3033
    %5520 = vmatprep.subr.bf16.mxu0 %v3042
    %5521 = vmatpush1.bf16.msra.mxu0 %v3041
    %5522 = vmatprep.subr.bf16.mxu0 %v3050
    %5523 = vmatpush1.bf16.msra.mxu0 %v3049
    %5524 = vmatprep.subr.bf16.mxu0 %v3058
    %5525 = vmatpush1.bf16.msra.mxu0 %v3057
    %5526 = vmatprep.subr.bf16.mxu0 %v3066
    %5527 = vmatpush1.bf16.msra.mxu0 %v3065
    %5528 = vmatprep.subr.bf16.mxu0 %v3074
    %5529 = vmatpush1.bf16.msra.mxu0 %v3073
    %5530 = vmatprep.subr.bf16.mxu0 %v3082
    %5531 = vmatpush1.bf16.msra.mxu0 %v3081
    %5532 = vmatprep.mubr.bf16.mxu0 %v5041
    %5533 = vmatmul.mubr.bf16.gmra.mrb[0].mxu0 %v5040
    %v5534 = vpop.f32.mrb[0].mxu0
    %v5535 = vadd.f32 %v5363, %v5534
    %v5536 = vpop.f32.mrb[0].mxu0
    %v5537 = vadd.f32 %v5365, %v5536
    %v5538 = vpop.f32.mrb[0].mxu0
    %v5539 = vadd.f32 %v5367, %v5538
    %v5540 = vpop.f32.mrb[0].mxu0
    %v5541 = vadd.f32 %v5369, %v5540
    %5542 = vdwg.mxu0
    %5543 = vmatprep.subr.bf16.mxu0 %v2964
    %5544 = vmatpush1.bf16.msra.mxu0 %v2963
    %5545 = vmatprep.subr.bf16.mxu0 %v2972
    %5546 = vmatpush1.bf16.msra.mxu0 %v2971
    %5547 = vmatprep.subr.bf16.mxu0 %v2980
    %5548 = vmatpush1.bf16.msra.mxu0 %v2979
    %5549 = vmatprep.subr.bf16.mxu0 %v2988
    %5550 = vmatpush1.bf16.msra.mxu0 %v2987
    %5551 = vmatprep.subr.bf16.mxu0 %v2996
    %5552 = vmatpush1.bf16.msra.mxu0 %v2995
    %5553 = vmatprep.subr.bf16.mxu0 %v3004
    %5554 = vmatpush1.bf16.msra.mxu0 %v3003
    %5555 = vmatprep.subr.bf16.mxu0 %v3012
    %5556 = vmatpush1.bf16.msra.mxu0 %v3011
    %5557 = vmatprep.subr.bf16.mxu0 %v3020
    %5558 = vmatpush1.bf16.msra.mxu0 %v3019
    %5559 = vmatprep.subr.bf16.mxu0 %v3028
    %5560 = vmatpush1.bf16.msra.mxu0 %v3027
    %5561 = vmatprep.subr.bf16.mxu0 %v3036
    %5562 = vmatpush1.bf16.msra.mxu0 %v3035
    %5563 = vmatprep.subr.bf16.mxu0 %v3044
    %5564 = vmatpush1.bf16.msra.mxu0 %v3043
    %5565 = vmatprep.subr.bf16.mxu0 %v3052
    %5566 = vmatpush1.bf16.msra.mxu0 %v3051
    %5567 = vmatprep.subr.bf16.mxu0 %v3060
    %5568 = vmatpush1.bf16.msra.mxu0 %v3059
    %5569 = vmatprep.subr.bf16.mxu0 %v3068
    %5570 = vmatpush1.bf16.msra.mxu0 %v3067
    %5571 = vmatprep.subr.bf16.mxu0 %v3076
    %5572 = vmatpush1.bf16.msra.mxu0 %v3075
    %5573 = vmatprep.subr.bf16.mxu0 %v3084
    %5574 = vmatpush1.bf16.msra.mxu0 %v3083
    %5575 = vmatprep.mubr.bf16.mxu0 %v5041
    %5576 = vmatmul.mubr.bf16.gmra.mrb[0].mxu0 %v5040
    %v5577 = vpop.f32.mrb[0].mxu0
    %v5578 = vadd.f32 %v5406, %v5577
    %v5579 = vpop.f32.mrb[0].mxu0
    %v5580 = vadd.f32 %v5408, %v5579
    %v5581 = vpop.f32.mrb[0].mxu0
    %v5582 = vadd.f32 %v5410, %v5581
    %v5583 = vpop.f32.mrb[0].mxu0
    %v5584 = vadd.f32 %v5412, %v5583
    %5585 = vdwg.mxu0
    %5586 = vmatprep.subr.bf16.mxu0 %v2966
    %5587 = vmatpush1.bf16.msra.mxu0 %v2965
    %5588 = vmatprep.subr.bf16.mxu0 %v2974
    %5589 = vmatpush1.bf16.msra.mxu0 %v2973
    %5590 = vmatprep.subr.bf16.mxu0 %v2982
    %5591 = vmatpush1.bf16.msra.mxu0 %v2981
    %5592 = vmatprep.subr.bf16.mxu0 %v2990
    %5593 = vmatpush1.bf16.msra.mxu0 %v2989
    %5594 = vmatprep.subr.bf16.mxu0 %v2998
    %5595 = vmatpush1.bf16.msra.mxu0 %v2997
    %5596 = vmatprep.subr.bf16.mxu0 %v3006
    %5597 = vmatpush1.bf16.msra.mxu0 %v3005
    %5598 = vmatprep.subr.bf16.mxu0 %v3014
    %5599 = vmatpush1.bf16.msra.mxu0 %v3013
    %5600 = vmatprep.subr.bf16.mxu0 %v3022
    %5601 = vmatpush1.bf16.msra.mxu0 %v3021
    %5602 = vmatprep.subr.bf16.mxu0 %v3030
    %5603 = vmatpush1.bf16.msra.mxu0 %v3029
    %5604 = vmatprep.subr.bf16.mxu0 %v3038
    %5605 = vmatpush1.bf16.msra.mxu0 %v3037
    %5606 = vmatprep.subr.bf16.mxu0 %v3046
    %5607 = vmatpush1.bf16.msra.mxu0 %v3045
    %5608 = vmatprep.subr.bf16.mxu0 %v3054
    %5609 = vmatpush1.bf16.msra.mxu0 %v3053
    %5610 = vmatprep.subr.bf16.mxu0 %v3062
    %5611 = vmatpush1.bf16.msra.mxu0 %v3061
    %5612 = vmatprep.subr.bf16.mxu0 %v3070
    %5613 = vmatpush1.bf16.msra.mxu0 %v3069
    %5614 = vmatprep.subr.bf16.mxu0 %v3078
    %5615 = vmatpush1.bf16.msra.mxu0 %v3077
    %5616 = vmatprep.subr.bf16.mxu0 %v3086
    %5617 = vmatpush1.bf16.msra.mxu0 %v3085
    %5618 = vmatprep.mubr.bf16.mxu0 %v5041
    %5619 = vmatmul.mubr.bf16.gmra.mrb[0].mxu0 %v5040
    %v5620 = vpop.f32.mrb[0].mxu0
    %v5621 = vadd.f32 %v5449, %v5620
    %v5622 = vpop.f32.mrb[0].mxu0
    %v5623 = vadd.f32 %v5451, %v5622
    %v5624 = vpop.f32.mrb[0].mxu0
    %v5625 = vadd.f32 %v5453, %v5624
    %v5626 = vpop.f32.mrb[0].mxu0
    %v5627 = vadd.f32 %v5455, %v5626
    %5628 = vdwg.mxu0
    %5629 = vmatprep.subr.bf16.mxu0 %v2968
    %5630 = vmatpush1.bf16.msra.mxu0 %v2967
    %5631 = vmatprep.subr.bf16.mxu0 %v2976
    %5632 = vmatpush1.bf16.msra.mxu0 %v2975
    %5633 = vmatprep.subr.bf16.mxu0 %v2984
    %5634 = vmatpush1.bf16.msra.mxu0 %v2983
    %5635 = vmatprep.subr.bf16.mxu0 %v2992
    %5636 = vmatpush1.bf16.msra.mxu0 %v2991
    %5637 = vmatprep.subr.bf16.mxu0 %v3000
    %5638 = vmatpush1.bf16.msra.mxu0 %v2999
    %5639 = vmatprep.subr.bf16.mxu0 %v3008
    %5640 = vmatpush1.bf16.msra.mxu0 %v3007
    %5641 = vmatprep.subr.bf16.mxu0 %v3016
    %5642 = vmatpush1.bf16.msra.mxu0 %v3015
    %5643 = vmatprep.subr.bf16.mxu0 %v3024
    %5644 = vmatpush1.bf16.msra.mxu0 %v3023
    %5645 = vmatprep.subr.bf16.mxu0 %v3032
    %5646 = vmatpush1.bf16.msra.mxu0 %v3031
    %5647 = vmatprep.subr.bf16.mxu0 %v3040
    %5648 = vmatpush1.bf16.msra.mxu0 %v3039
    %5649 = vmatprep.subr.bf16.mxu0 %v3048
    %5650 = vmatpush1.bf16.msra.mxu0 %v3047
    %5651 = vmatprep.subr.bf16.mxu0 %v3056
    %5652 = vmatpush1.bf16.msra.mxu0 %v3055
    %5653 = vmatprep.subr.bf16.mxu0 %v3064
    %5654 = vmatpush1.bf16.msra.mxu0 %v3063
    %5655 = vmatprep.subr.bf16.mxu0 %v3072
    %5656 = vmatpush1.bf16.msra.mxu0 %v3071
    %5657 = vmatprep.subr.bf16.mxu0 %v3080
    %5658 = vmatpush1.bf16.msra.mxu0 %v3079
    %5659 = vmatprep.subr.bf16.mxu0 %v3088
    %5660 = vmatpush1.bf16.msra.mxu0 %v3087
    %5661 = vmatprep.mubr.bf16.mxu0 %v5041
    %5662 = vmatmul.mubr.bf16.gmra.mrb[0].mxu0 %v5040
    %v5663 = vpop.f32.mrb[0].mxu0
    %v5664 = vadd.f32 %v5492, %v5663
    %v5665 = vpop.f32.mrb[0].mxu0
    %v5666 = vadd.f32 %v5494, %v5665
    %v5667 = vpop.f32.mrb[0].mxu0
    %v5668 = vadd.f32 %v5496, %v5667
    %v5669 = vpop.f32.mrb[0].mxu0
    %v5670 = vadd.f32 %v5498, %v5669
    %5671 = vdwg.mxu0
    %v5672 = vadd.f32 %v5535, %v101
    %v5673 = vadd.f32 %v5537, %v105
    %v5674 = vadd.f32 %v5578, %v109
    %v5675 = vadd.f32 %v5580, %v113
    %v5676 = vadd.f32 %v5621, %v117
    %v5677 = vadd.f32 %v5623, %v121
    %v5678 = vadd.f32 %v5664, %v125
    %v5679 = vadd.f32 %v5666, %v129
    %v5680 = vadd.f32 %v5539, %v101
    %v5681 = vadd.f32 %v5541, %v105
    %v5682 = vadd.f32 %v5582, %v109
    %v5683 = vadd.f32 %v5584, %v113
    %v5684 = vadd.f32 %v5625, %v117
    %v5685 = vadd.f32 %v5627, %v121
    %v5686 = vadd.f32 %v5668, %v125
    %v5687 = vadd.f32 %v5670, %v129
    %v5688 = vxor.u32 %v5672, 2147483648
    %v5689 = vxor.u32 %v5673, 2147483648
    %v5690 = vxor.u32 %v5680, 2147483648
    %v5691 = vxor.u32 %v5681, 2147483648
    %v5692 = vmul.f32 %v5688, 1.442695
    %v5693 = vpow.pop %v5692
    %v5694 = vmul.f32 %v5689, 1.442695
    %v5695 = vpow.pop %v5694
    %v5696 = vmul.f32 %v5690, 1.442695
    %v5697 = vpow.pop %v5696
    %v5698 = vmul.f32 %v5691, 1.442695
    %v5699 = vpow.pop %v5698
    %v5700 = vadd.f32 %v5693, 1.0
    %v5701 = vadd.f32 %v5695, 1.0
    %v5702 = vadd.f32 %v5697, 1.0
    %v5703 = vadd.f32 %v5699, 1.0
    %v5704 = vrcp.pop %v5700
    %v5705 = vmul.f32 1.0, %v5704
    %v5706 = vrcp.pop %v5701
    %v5707 = vmul.f32 1.0, %v5706
    %v5708 = vrcp.pop %v5702
    %v5709 = vmul.f32 1.0, %v5708
    %v5710 = vrcp.pop %v5703
    %v5711 = vmul.f32 1.0, %v5710
    %v5712 = vxor.u32 %v5674, 2147483648
    %v5713 = vxor.u32 %v5675, 2147483648
    %v5714 = vxor.u32 %v5682, 2147483648
    %v5715 = vxor.u32 %v5683, 2147483648
    %v5716 = vmul.f32 %v5712, 1.442695
    %v5717 = vpow.pop %v5716
    %v5718 = vmul.f32 %v5713, 1.442695
    %v5719 = vpow.pop %v5718
    %v5720 = vmul.f32 %v5714, 1.442695
    %v5721 = vpow.pop %v5720
    %v5722 = vmul.f32 %v5715, 1.442695
    %v5723 = vpow.pop %v5722
    %v5724 = vadd.f32 %v5717, 1.0
    %v5725 = vadd.f32 %v5719, 1.0
    %v5726 = vadd.f32 %v5721, 1.0
    %v5727 = vadd.f32 %v5723, 1.0
    %v5728 = vrcp.pop %v5724
    %v5729 = vmul.f32 1.0, %v5728
    %v5730 = vrcp.pop %v5725
    %v5731 = vmul.f32 1.0, %v5730
    %v5732 = vrcp.pop %v5726
    %v5733 = vmul.f32 1.0, %v5732
    %v5734 = vrcp.pop %v5727
    %v5735 = vmul.f32 1.0, %v5734
    %v5736 = vtanh.pop %v5676
    %v5737 = vtanh.pop %v5677
    %v5738 = vtanh.pop %v5684
    %v5739 = vtanh.pop %v5685
    %v5740 = vxor.u32 %v5678, 2147483648
    %v5741 = vxor.u32 %v5679, 2147483648
    %v5742 = vxor.u32 %v5686, 2147483648
    %v5743 = vxor.u32 %v5687, 2147483648
    %v5744 = vmul.f32 %v5740, 1.442695
    %v5745 = vpow.pop %v5744
    %v5746 = vmul.f32 %v5741, 1.442695
    %v5747 = vpow.pop %v5746
    %v5748 = vmul.f32 %v5742, 1.442695
    %v5749 = vpow.pop %v5748
    %v5750 = vmul.f32 %v5743, 1.442695
    %v5751 = vpow.pop %v5750
    %v5752 = vadd.f32 %v5745, 1.0
    %v5753 = vadd.f32 %v5747, 1.0
    %v5754 = vadd.f32 %v5749, 1.0
    %v5755 = vadd.f32 %v5751, 1.0
    %v5756 = vrcp.pop %v5752
    %v5757 = vmul.f32 1.0, %v5756
    %v5758 = vrcp.pop %v5753
    %v5759 = vmul.f32 1.0, %v5758
    %v5760 = vrcp.pop %v5754
    %v5761 = vmul.f32 1.0, %v5760
    %v5762 = vrcp.pop %v5755
    %v5763 = vmul.f32 1.0, %v5762
    %v5764 = vmul.f32 %v5729, %v5011
    %v5765 = vmul.f32 %v5731, %v5012
    %v5766 = vmul.f32 %v5733, %v5013
    %v5767 = vmul.f32 %v5735, %v5014
    %v5768 = vmul.f32 %v5705, %v5736
    %v5769 = vmul.f32 %v5707, %v5737
    %v5770 = vmul.f32 %v5709, %v5738
    %v5771 = vmul.f32 %v5711, %v5739
    %v5772 = vadd.f32 %v5764, %v5768
    %v5773 = vadd.f32 %v5765, %v5769
    %v5774 = vadd.f32 %v5766, %v5770
    %v5775 = vadd.f32 %v5767, %v5771
    %v5776 = vtanh.pop %v5772
    %v5777 = vtanh.pop %v5773
    %v5778 = vtanh.pop %v5774
    %v5779 = vtanh.pop %v5775
    %v5780 = vmul.f32 %v5757, %v5776
    %v5781 = vmul.f32 %v5759, %v5777
    %v5782 = vmul.f32 %v5761, %v5778
    %v5783 = vmul.f32 %v5763, %v5779
    %s5784 = scalar_lea.vmem [#allocation2], 640
    %v5785 = vld [vmem:[%s5784] sm:$0xff]
    %v5786 = vld [vmem:[%s5784 + $0x8] sm:$0xff]
    %v5787 = vld [vmem:[%s5784 + $0x10] sm:$0xff]
    %v5788 = vld [vmem:[%s5784 + $0x18] sm:$0xff]
    %v5789 = vld [vmem:[%s5784 + $0x20] sm:$0xff]
    %v5790 = vld [vmem:[%s5784 + $0x28] sm:$0xff]
    %v5791 = vld [vmem:[%s5784 + $0x30] sm:$0xff]
    %v5792 = vld [vmem:[%s5784 + $0x38] sm:$0xff]
    %v5793 = vld [vmem:[%s5784 + $0x40] sm:$0xff]
    %v5794 = vld [vmem:[%s5784 + $0x48] sm:$0xff]
    %v5795 = vld [vmem:[%s5784 + $0x50] sm:$0xff]
    %v5796 = vld [vmem:[%s5784 + $0x58] sm:$0xff]
    %v5797 = vld [vmem:[%s5784 + $0x60] sm:$0xff]
    %v5798 = vld [vmem:[%s5784 + $0x68] sm:$0xff]
    %v5799 = vld [vmem:[%s5784 + $0x70] sm:$0xff]
    %v5800 = vld [vmem:[%s5784 + $0x78] sm:$0xff]
    %v5801 = vpack.c.bf16 %v5324, %v5322
    %v5802 = vpack.c.bf16 %v5325, %v5323
    %5803 = vmatprep.subr.bf16.mxu0 %v667
    %5804 = vmatpush1.bf16.msra.mxu0 %v666
    %5805 = vmatprep.subr.bf16.mxu0 %v675
    %5806 = vmatpush1.bf16.msra.mxu0 %v674
    %5807 = vmatprep.subr.bf16.mxu0 %v683
    %5808 = vmatpush1.bf16.msra.mxu0 %v682
    %5809 = vmatprep.subr.bf16.mxu0 %v691
    %5810 = vmatpush1.bf16.msra.mxu0 %v690
    %5811 = vmatprep.subr.bf16.mxu0 %v699
    %5812 = vmatpush1.bf16.msra.mxu0 %v698
    %5813 = vmatprep.subr.bf16.mxu0 %v707
    %5814 = vmatpush1.bf16.msra.mxu0 %v706
    %5815 = vmatprep.subr.bf16.mxu0 %v715
    %5816 = vmatpush1.bf16.msra.mxu0 %v714
    %5817 = vmatprep.subr.bf16.mxu0 %v723
    %5818 = vmatpush1.bf16.msra.mxu0 %v722
    %5819 = vmatprep.subr.bf16.mxu0 %v731
    %5820 = vmatpush1.bf16.msra.mxu0 %v730
    %5821 = vmatprep.subr.bf16.mxu0 %v739
    %5822 = vmatpush1.bf16.msra.mxu0 %v738
    %5823 = vmatprep.subr.bf16.mxu0 %v747
    %5824 = vmatpush1.bf16.msra.mxu0 %v746
    %5825 = vmatprep.subr.bf16.mxu0 %v755
    %5826 = vmatpush1.bf16.msra.mxu0 %v754
    %5827 = vmatprep.subr.bf16.mxu0 %v763
    %5828 = vmatpush1.bf16.msra.mxu0 %v762
    %5829 = vmatprep.subr.bf16.mxu0 %v771
    %5830 = vmatpush1.bf16.msra.mxu0 %v770
    %5831 = vmatprep.subr.bf16.mxu0 %v779
    %5832 = vmatpush1.bf16.msra.mxu0 %v778
    %5833 = vmatprep.subr.bf16.mxu0 %v787
    %5834 = vmatpush1.bf16.msra.mxu0 %v786
    %5835 = vmatprep.mubr.bf16.mxu0 %v5802
    %5836 = vmatmul.mubr.bf16.gmra.mrb[0].mxu0 %v5801
    %v5837 = vpop.f32.mrb[0].mxu0
    %v5838 = vadd.f32 0.0, %v5837
    %v5839 = vpop.f32.mrb[0].mxu0
    %v5840 = vadd.f32 0.0, %v5839
    %v5841 = vpop.f32.mrb[0].mxu0
    %v5842 = vadd.f32 0.0, %v5841
    %v5843 = vpop.f32.mrb[0].mxu0
    %v5844 = vadd.f32 0.0, %v5843
    %5845 = vdwg.mxu0
    %5846 = vmatprep.subr.bf16.mxu0 %v669
    %5847 = vmatpush1.bf16.msra.mxu0 %v668
    %5848 = vmatprep.subr.bf16.mxu0 %v677
    %5849 = vmatpush1.bf16.msra.mxu0 %v676
    %5850 = vmatprep.subr.bf16.mxu0 %v685
    %5851 = vmatpush1.bf16.msra.mxu0 %v684
    %5852 = vmatprep.subr.bf16.mxu0 %v693
    %5853 = vmatpush1.bf16.msra.mxu0 %v692
    %5854 = vmatprep.subr.bf16.mxu0 %v701
    %5855 = vmatpush1.bf16.msra.mxu0 %v700
    %5856 = vmatprep.subr.bf16.mxu0 %v709
    %5857 = vmatpush1.bf16.msra.mxu0 %v708
    %5858 = vmatprep.subr.bf16.mxu0 %v717
    %5859 = vmatpush1.bf16.msra.mxu0 %v716
    %5860 = vmatprep.subr.bf16.mxu0 %v725
    %5861 = vmatpush1.bf16.msra.mxu0 %v724
    %5862 = vmatprep.subr.bf16.mxu0 %v733
    %5863 = vmatpush1.bf16.msra.mxu0 %v732
    %5864 = vmatprep.subr.bf16.mxu0 %v741
    %5865 = vmatpush1.bf16.msra.mxu0 %v740
    %5866 = vmatprep.subr.bf16.mxu0 %v749
    %5867 = vmatpush1.bf16.msra.mxu0 %v748
    %5868 = vmatprep.subr.bf16.mxu0 %v757
    %5869 = vmatpush1.bf16.msra.mxu0 %v756
    %5870 = vmatprep.subr.bf16.mxu0 %v765
    %5871 = vmatpush1.bf16.msra.mxu0 %v764
    %5872 = vmatprep.subr.bf16.mxu0 %v773
    %5873 = vmatpush1.bf16.msra.mxu0 %v772
    %5874 = vmatprep.subr.bf16.mxu0 %v781
    %5875 = vmatpush1.bf16.msra.mxu0 %v780
    %5876 = vmatprep.subr.bf16.mxu0 %v789
    %5877 = vmatpush1.bf16.msra.mxu0 %v788
    %5878 = vmatprep.mubr.bf16.mxu0 %v5802
    %5879 = vmatmul.mubr.bf16.gmra.mrb[0].mxu0 %v5801
    %v5880 = vpop.f32.mrb[0].mxu0
    %v5881 = vadd.f32 0.0, %v5880
    %v5882 = vpop.f32.mrb[0].mxu0
    %v5883 = vadd.f32 0.0, %v5882
    %v5884 = vpop.f32.mrb[0].mxu0
    %v5885 = vadd.f32 0.0, %v5884
    %v5886 = vpop.f32.mrb[0].mxu0
    %v5887 = vadd.f32 0.0, %v5886
    %5888 = vdwg.mxu0
    %5889 = vmatprep.subr.bf16.mxu0 %v671
    %5890 = vmatpush1.bf16.msra.mxu0 %v670
    %5891 = vmatprep.subr.bf16.mxu0 %v679
    %5892 = vmatpush1.bf16.msra.mxu0 %v678
    %5893 = vmatprep.subr.bf16.mxu0 %v687
    %5894 = vmatpush1.bf16.msra.mxu0 %v686
    %5895 = vmatprep.subr.bf16.mxu0 %v695
    %5896 = vmatpush1.bf16.msra.mxu0 %v694
    %5897 = vmatprep.subr.bf16.mxu0 %v703
    %5898 = vmatpush1.bf16.msra.mxu0 %v702
    %5899 = vmatprep.subr.bf16.mxu0 %v711
    %5900 = vmatpush1.bf16.msra.mxu0 %v710
    %5901 = vmatprep.subr.bf16.mxu0 %v719
    %5902 = vmatpush1.bf16.msra.mxu0 %v718
    %5903 = vmatprep.subr.bf16.mxu0 %v727
    %5904 = vmatpush1.bf16.msra.mxu0 %v726
    %5905 = vmatprep.subr.bf16.mxu0 %v735
    %5906 = vmatpush1.bf16.msra.mxu0 %v734
    %5907 = vmatprep.subr.bf16.mxu0 %v743
    %5908 = vmatpush1.bf16.msra.mxu0 %v742
    %5909 = vmatprep.subr.bf16.mxu0 %v751
    %5910 = vmatpush1.bf16.msra.mxu0 %v750
    %5911 = vmatprep.subr.bf16.mxu0 %v759
    %5912 = vmatpush1.bf16.msra.mxu0 %v758
    %5913 = vmatprep.subr.bf16.mxu0 %v767
    %5914 = vmatpush1.bf16.msra.mxu0 %v766
    %5915 = vmatprep.subr.bf16.mxu0 %v775
    %5916 = vmatpush1.bf16.msra.mxu0 %v774
    %5917 = vmatprep.subr.bf16.mxu0 %v783
    %5918 = vmatpush1.bf16.msra.mxu0 %v782
    %5919 = vmatprep.subr.bf16.mxu0 %v791
    %5920 = vmatpush1.bf16.msra.mxu0 %v790
    %5921 = vmatprep.mubr.bf16.mxu0 %v5802
    %5922 = vmatmul.mubr.bf16.gmra.mrb[0].mxu0 %v5801
    %v5923 = vpop.f32.mrb[0].mxu0
    %v5924 = vadd.f32 0.0, %v5923
    %v5925 = vpop.f32.mrb[0].mxu0
    %v5926 = vadd.f32 0.0, %v5925
    %v5927 = vpop.f32.mrb[0].mxu0
    %v5928 = vadd.f32 0.0, %v5927
    %v5929 = vpop.f32.mrb[0].mxu0
    %v5930 = vadd.f32 0.0, %v5929
    %5931 = vdwg.mxu0
    %5932 = vmatprep.subr.bf16.mxu0 %v673
    %5933 = vmatpush1.bf16.msra.mxu0 %v672
    %5934 = vmatprep.subr.bf16.mxu0 %v681
    %5935 = vmatpush1.bf16.msra.mxu0 %v680
    %5936 = vmatprep.subr.bf16.mxu0 %v689
    %5937 = vmatpush1.bf16.msra.mxu0 %v688
    %5938 = vmatprep.subr.bf16.mxu0 %v697
    %5939 = vmatpush1.bf16.msra.mxu0 %v696
    %5940 = vmatprep.subr.bf16.mxu0 %v705
    %5941 = vmatpush1.bf16.msra.mxu0 %v704
    %5942 = vmatprep.subr.bf16.mxu0 %v713
    %5943 = vmatpush1.bf16.msra.mxu0 %v712
    %5944 = vmatprep.subr.bf16.mxu0 %v721
    %5945 = vmatpush1.bf16.msra.mxu0 %v720
    %5946 = vmatprep.subr.bf16.mxu0 %v729
    %5947 = vmatpush1.bf16.msra.mxu0 %v728
    %5948 = vmatprep.subr.bf16.mxu0 %v737
    %5949 = vmatpush1.bf16.msra.mxu0 %v736
    %5950 = vmatprep.subr.bf16.mxu0 %v745
    %5951 = vmatpush1.bf16.msra.mxu0 %v744
    %5952 = vmatprep.subr.bf16.mxu0 %v753
    %5953 = vmatpush1.bf16.msra.mxu0 %v752
    %5954 = vmatprep.subr.bf16.mxu0 %v761
    %5955 = vmatpush1.bf16.msra.mxu0 %v760
    %5956 = vmatprep.subr.bf16.mxu0 %v769
    %5957 = vmatpush1.bf16.msra.mxu0 %v768
    %5958 = vmatprep.subr.bf16.mxu0 %v777
    %5959 = vmatpush1.bf16.msra.mxu0 %v776
    %5960 = vmatprep.subr.bf16.mxu0 %v785
    %5961 = vmatpush1.bf16.msra.mxu0 %v784
    %5962 = vmatprep.subr.bf16.mxu0 %v793
    %5963 = vmatpush1.bf16.msra.mxu0 %v792
    %5964 = vmatprep.mubr.bf16.mxu0 %v5802
    %5965 = vmatmul.mubr.bf16.gmra.mrb[0].mxu0 %v5801
    %v5966 = vpop.f32.mrb[0].mxu0
    %v5967 = vadd.f32 0.0, %v5966
    %v5968 = vpop.f32.mrb[0].mxu0
    %v5969 = vadd.f32 0.0, %v5968
    %v5970 = vpop.f32.mrb[0].mxu0
    %v5971 = vadd.f32 0.0, %v5970
    %v5972 = vpop.f32.mrb[0].mxu0
    %v5973 = vadd.f32 0.0, %v5972
    %5974 = vdwg.mxu0
    %v5975 = vadd.f32 %v5785, %v5838
    %v5976 = vadd.f32 %v5786, %v5840
    %v5977 = vadd.f32 %v5787, %v5881
    %v5978 = vadd.f32 %v5788, %v5883
    %v5979 = vadd.f32 %v5789, %v5924
    %v5980 = vadd.f32 %v5790, %v5926
    %v5981 = vadd.f32 %v5791, %v5967
    %v5982 = vadd.f32 %v5792, %v5969
    %v5983 = vadd.f32 %v5793, %v5842
    %v5984 = vadd.f32 %v5794, %v5844
    %v5985 = vadd.f32 %v5795, %v5885
    %v5986 = vadd.f32 %v5796, %v5887
    %v5987 = vadd.f32 %v5797, %v5928
    %v5988 = vadd.f32 %v5798, %v5930
    %v5989 = vadd.f32 %v5799, %v5971
    %v5990 = vadd.f32 %v5800, %v5973
    %v5991 = vxor.u32 %v5975, 2147483648
    %v5992 = vxor.u32 %v5976, 2147483648
    %v5993 = vxor.u32 %v5983, 2147483648
    %v5994 = vxor.u32 %v5984, 2147483648
    %v5995 = vmul.f32 %v5991, 1.442695
    %v5996 = vpow.pop %v5995
    %v5997 = vmul.f32 %v5992, 1.442695
    %v5998 = vpow.pop %v5997
    %v5999 = vmul.f32 %v5993, 1.442695
    %v6000 = vpow.pop %v5999
    %v6001 = vmul.f32 %v5994, 1.442695
    %v6002 = vpow.pop %v6001
    %v6003 = vadd.f32 %v5996, 1.0
    %v6004 = vadd.f32 %v5998, 1.0
    %v6005 = vadd.f32 %v6000, 1.0
    %v6006 = vadd.f32 %v6002, 1.0
    %v6007 = vrcp.pop %v6003
    %v6008 = vmul.f32 1.0, %v6007
    %v6009 = vrcp.pop %v6004
    %v6010 = vmul.f32 1.0, %v6009
    %v6011 = vrcp.pop %v6005
    %v6012 = vmul.f32 1.0, %v6011
    %v6013 = vrcp.pop %v6006
    %v6014 = vmul.f32 1.0, %v6013
    %v6015 = vxor.u32 %v5977, 2147483648
    %v6016 = vxor.u32 %v5978, 2147483648
    %v6017 = vxor.u32 %v5985, 2147483648
    %v6018 = vxor.u32 %v5986, 2147483648
    %v6019 = vmul.f32 %v6015, 1.442695
    %v6020 = vpow.pop %v6019
    %v6021 = vmul.f32 %v6016, 1.442695
    %v6022 = vpow.pop %v6021
    %v6023 = vmul.f32 %v6017, 1.442695
    %v6024 = vpow.pop %v6023
    %v6025 = vmul.f32 %v6018, 1.442695
    %v6026 = vpow.pop %v6025
    %v6027 = vadd.f32 %v6020, 1.0
    %v6028 = vadd.f32 %v6022, 1.0
    %v6029 = vadd.f32 %v6024, 1.0
    %v6030 = vadd.f32 %v6026, 1.0
    %v6031 = vrcp.pop %v6027
    %v6032 = vmul.f32 1.0, %v6031
    %v6033 = vrcp.pop %v6028
    %v6034 = vmul.f32 1.0, %v6033
    %v6035 = vrcp.pop %v6029
    %v6036 = vmul.f32 1.0, %v6035
    %v6037 = vrcp.pop %v6030
    %v6038 = vmul.f32 1.0, %v6037
    %v6039 = vtanh.pop %v5979
    %v6040 = vtanh.pop %v5980
    %v6041 = vtanh.pop %v5987
    %v6042 = vtanh.pop %v5988
    %v6043 = vxor.u32 %v5981, 2147483648
    %v6044 = vxor.u32 %v5982, 2147483648
    %v6045 = vxor.u32 %v5989, 2147483648
    %v6046 = vxor.u32 %v5990, 2147483648
    %v6047 = vmul.f32 %v6043, 1.442695
    %v6048 = vpow.pop %v6047
    %v6049 = vmul.f32 %v6044, 1.442695
    %v6050 = vpow.pop %v6049
    %v6051 = vmul.f32 %v6045, 1.442695
    %v6052 = vpow.pop %v6051
    %v6053 = vmul.f32 %v6046, 1.442695
    %v6054 = vpow.pop %v6053
    %v6055 = vadd.f32 %v6048, 1.0
    %v6056 = vadd.f32 %v6050, 1.0
    %v6057 = vadd.f32 %v6052, 1.0
    %v6058 = vadd.f32 %v6054, 1.0
    %v6059 = vrcp.pop %v6055
    %v6060 = vmul.f32 1.0, %v6059
    %v6061 = vrcp.pop %v6056
    %v6062 = vmul.f32 1.0, %v6061
    %v6063 = vrcp.pop %v6057
    %v6064 = vmul.f32 1.0, %v6063
    %v6065 = vrcp.pop %v6058
    %v6066 = vmul.f32 1.0, %v6065
    %v6067 = vmul.f32 %v6032, %v5314
    %v6068 = vmul.f32 %v6034, %v5315
    %v6069 = vmul.f32 %v6036, %v5316
    %v6070 = vmul.f32 %v6038, %v5317
    %v6071 = vmul.f32 %v6008, %v6039
    %v6072 = vmul.f32 %v6010, %v6040
    %v6073 = vmul.f32 %v6012, %v6041
    %v6074 = vmul.f32 %v6014, %v6042
    %v6075 = vadd.f32 %v6067, %v6071
    %v6076 = vadd.f32 %v6068, %v6072
    %v6077 = vadd.f32 %v6069, %v6073
    %v6078 = vadd.f32 %v6070, %v6074
    %v6079 = vtanh.pop %v6075
    %v6080 = vtanh.pop %v6076
    %v6081 = vtanh.pop %v6077
    %v6082 = vtanh.pop %v6078
    %v6083 = vmul.f32 %v6060, %v6079
    %v6084 = vmul.f32 %v6062, %v6080
    %v6085 = vmul.f32 %v6064, %v6081
    %v6086 = vmul.f32 %v6066, %v6082
    %v6087 = vpack.c.bf16 %v5782, %v5780
    %v6088 = vpack.c.bf16 %v5783, %v5781
    %6089 = vmatprep.subr.bf16.mxu0 %v2150
    %6090 = vmatpush1.bf16.msra.mxu0 %v2149
    %6091 = vmatprep.subr.bf16.mxu0 %v2158
    %6092 = vmatpush1.bf16.msra.mxu0 %v2157
    %6093 = vmatprep.subr.bf16.mxu0 %v2166
    %6094 = vmatpush1.bf16.msra.mxu0 %v2165
    %6095 = vmatprep.subr.bf16.mxu0 %v2174
    %6096 = vmatpush1.bf16.msra.mxu0 %v2173
    %6097 = vmatprep.subr.bf16.mxu0 %v2182
    %6098 = vmatpush1.bf16.msra.mxu0 %v2181
    %6099 = vmatprep.subr.bf16.mxu0 %v2190
    %6100 = vmatpush1.bf16.msra.mxu0 %v2189
    %6101 = vmatprep.subr.bf16.mxu0 %v2198
    %6102 = vmatpush1.bf16.msra.mxu0 %v2197
    %6103 = vmatprep.subr.bf16.mxu0 %v2206
    %6104 = vmatpush1.bf16.msra.mxu0 %v2205
    %6105 = vmatprep.subr.bf16.mxu0 %v2214
    %6106 = vmatpush1.bf16.msra.mxu0 %v2213
    %6107 = vmatprep.subr.bf16.mxu0 %v2222
    %6108 = vmatpush1.bf16.msra.mxu0 %v2221
    %6109 = vmatprep.subr.bf16.mxu0 %v2230
    %6110 = vmatpush1.bf16.msra.mxu0 %v2229
    %6111 = vmatprep.subr.bf16.mxu0 %v2238
    %6112 = vmatpush1.bf16.msra.mxu0 %v2237
    %6113 = vmatprep.subr.bf16.mxu0 %v2246
    %6114 = vmatpush1.bf16.msra.mxu0 %v2245
    %6115 = vmatprep.subr.bf16.mxu0 %v2254
    %6116 = vmatpush1.bf16.msra.mxu0 %v2253
    %6117 = vmatprep.subr.bf16.mxu0 %v2262
    %6118 = vmatpush1.bf16.msra.mxu0 %v2261
    %6119 = vmatprep.subr.bf16.mxu0 %v2270
    %6120 = vmatpush1.bf16.msra.mxu0 %v2269
    %6121 = vmatprep.mubr.bf16.mxu0 %v6088
    %6122 = vmatmul.mubr.bf16.gmra.mrb[0].mxu0 %v6087
    %v6123 = vpop.f32.mrb[0].mxu0
    %v6124 = vadd.f32 0.0, %v6123
    %v6125 = vpop.f32.mrb[0].mxu0
    %v6126 = vadd.f32 0.0, %v6125
    %v6127 = vpop.f32.mrb[0].mxu0
    %v6128 = vadd.f32 0.0, %v6127
    %v6129 = vpop.f32.mrb[0].mxu0
    %v6130 = vadd.f32 0.0, %v6129
    %6131 = vdwg.mxu0
    %6132 = vmatprep.subr.bf16.mxu0 %v2152
    %6133 = vmatpush1.bf16.msra.mxu0 %v2151
    %6134 = vmatprep.subr.bf16.mxu0 %v2160
    %6135 = vmatpush1.bf16.msra.mxu0 %v2159
    %6136 = vmatprep.subr.bf16.mxu0 %v2168
    %6137 = vmatpush1.bf16.msra.mxu0 %v2167
    %6138 = vmatprep.subr.bf16.mxu0 %v2176
    %6139 = vmatpush1.bf16.msra.mxu0 %v2175
    %6140 = vmatprep.subr.bf16.mxu0 %v2184
    %6141 = vmatpush1.bf16.msra.mxu0 %v2183
    %6142 = vmatprep.subr.bf16.mxu0 %v2192
    %6143 = vmatpush1.bf16.msra.mxu0 %v2191
    %6144 = vmatprep.subr.bf16.mxu0 %v2200
    %6145 = vmatpush1.bf16.msra.mxu0 %v2199
    %6146 = vmatprep.subr.bf16.mxu0 %v2208
    %6147 = vmatpush1.bf16.msra.mxu0 %v2207
    %6148 = vmatprep.subr.bf16.mxu0 %v2216
    %6149 = vmatpush1.bf16.msra.mxu0 %v2215
    %6150 = vmatprep.subr.bf16.mxu0 %v2224
    %6151 = vmatpush1.bf16.msra.mxu0 %v2223
    %6152 = vmatprep.subr.bf16.mxu0 %v2232
    %6153 = vmatpush1.bf16.msra.mxu0 %v2231
    %6154 = vmatprep.subr.bf16.mxu0 %v2240
    %6155 = vmatpush1.bf16.msra.mxu0 %v2239
    %6156 = vmatprep.subr.bf16.mxu0 %v2248
    %6157 = vmatpush1.bf16.msra.mxu0 %v2247
    %6158 = vmatprep.subr.bf16.mxu0 %v2256
    %6159 = vmatpush1.bf16.msra.mxu0 %v2255
    %6160 = vmatprep.subr.bf16.mxu0 %v2264
    %6161 = vmatpush1.bf16.msra.mxu0 %v2263
    %6162 = vmatprep.subr.bf16.mxu0 %v2272
    %6163 = vmatpush1.bf16.msra.mxu0 %v2271
    %6164 = vmatprep.mubr.bf16.mxu0 %v6088
    %6165 = vmatmul.mubr.bf16.gmra.mrb[0].mxu0 %v6087
    %v6166 = vpop.f32.mrb[0].mxu0
    %v6167 = vadd.f32 0.0, %v6166
    %v6168 = vpop.f32.mrb[0].mxu0
    %v6169 = vadd.f32 0.0, %v6168
    %v6170 = vpop.f32.mrb[0].mxu0
    %v6171 = vadd.f32 0.0, %v6170
    %v6172 = vpop.f32.mrb[0].mxu0
    %v6173 = vadd.f32 0.0, %v6172
    %6174 = vdwg.mxu0
    %6175 = vmatprep.subr.bf16.mxu0 %v2154
    %6176 = vmatpush1.bf16.msra.mxu0 %v2153
    %6177 = vmatprep.subr.bf16.mxu0 %v2162
    %6178 = vmatpush1.bf16.msra.mxu0 %v2161
    %6179 = vmatprep.subr.bf16.mxu0 %v2170
    %6180 = vmatpush1.bf16.msra.mxu0 %v2169
    %6181 = vmatprep.subr.bf16.mxu0 %v2178
    %6182 = vmatpush1.bf16.msra.mxu0 %v2177
    %6183 = vmatprep.subr.bf16.mxu0 %v2186
    %6184 = vmatpush1.bf16.msra.mxu0 %v2185
    %6185 = vmatprep.subr.bf16.mxu0 %v2194
    %6186 = vmatpush1.bf16.msra.mxu0 %v2193
    %6187 = vmatprep.subr.bf16.mxu0 %v2202
    %6188 = vmatpush1.bf16.msra.mxu0 %v2201
    %6189 = vmatprep.subr.bf16.mxu0 %v2210
    %6190 = vmatpush1.bf16.msra.mxu0 %v2209
    %6191 = vmatprep.subr.bf16.mxu0 %v2218
    %6192 = vmatpush1.bf16.msra.mxu0 %v2217
    %6193 = vmatprep.subr.bf16.mxu0 %v2226
    %6194 = vmatpush1.bf16.msra.mxu0 %v2225
    %6195 = vmatprep.subr.bf16.mxu0 %v2234
    %6196 = vmatpush1.bf16.msra.mxu0 %v2233
    %6197 = vmatprep.subr.bf16.mxu0 %v2242
    %6198 = vmatpush1.bf16.msra.mxu0 %v2241
    %6199 = vmatprep.subr.bf16.mxu0 %v2250
    %6200 = vmatpush1.bf16.msra.mxu0 %v2249
    %6201 = vmatprep.subr.bf16.mxu0 %v2258
    %6202 = vmatpush1.bf16.msra.mxu0 %v2257
    %6203 = vmatprep.subr.bf16.mxu0 %v2266
    %6204 = vmatpush1.bf16.msra.mxu0 %v2265
    %6205 = vmatprep.subr.bf16.mxu0 %v2274
    %6206 = vmatpush1.bf16.msra.mxu0 %v2273
    %6207 = vmatprep.mubr.bf16.mxu0 %v6088
    %6208 = vmatmul.mubr.bf16.gmra.mrb[0].mxu0 %v6087
    %v6209 = vpop.f32.mrb[0].mxu0
    %v6210 = vadd.f32 0.0, %v6209
    %v6211 = vpop.f32.mrb[0].mxu0
    %v6212 = vadd.f32 0.0, %v6211
    %v6213 = vpop.f32.mrb[0].mxu0
    %v6214 = vadd.f32 0.0, %v6213
    %v6215 = vpop.f32.mrb[0].mxu0
    %v6216 = vadd.f32 0.0, %v6215
    %6217 = vdwg.mxu0
    %6218 = vmatprep.subr.bf16.mxu0 %v2156
    %6219 = vmatpush1.bf16.msra.mxu0 %v2155
    %6220 = vmatprep.subr.bf16.mxu0 %v2164
    %6221 = vmatpush1.bf16.msra.mxu0 %v2163
    %6222 = vmatprep.subr.bf16.mxu0 %v2172
    %6223 = vmatpush1.bf16.msra.mxu0 %v2171
    %6224 = vmatprep.subr.bf16.mxu0 %v2180
    %6225 = vmatpush1.bf16.msra.mxu0 %v2179
    %6226 = vmatprep.subr.bf16.mxu0 %v2188
    %6227 = vmatpush1.bf16.msra.mxu0 %v2187
    %6228 = vmatprep.subr.bf16.mxu0 %v2196
    %6229 = vmatpush1.bf16.msra.mxu0 %v2195
    %6230 = vmatprep.subr.bf16.mxu0 %v2204
    %6231 = vmatpush1.bf16.msra.mxu0 %v2203
    %6232 = vmatprep.subr.bf16.mxu0 %v2212
    %6233 = vmatpush1.bf16.msra.mxu0 %v2211
    %6234 = vmatprep.subr.bf16.mxu0 %v2220
    %6235 = vmatpush1.bf16.msra.mxu0 %v2219
    %6236 = vmatprep.subr.bf16.mxu0 %v2228
    %6237 = vmatpush1.bf16.msra.mxu0 %v2227
    %6238 = vmatprep.subr.bf16.mxu0 %v2236
    %6239 = vmatpush1.bf16.msra.mxu0 %v2235
    %6240 = vmatprep.subr.bf16.mxu0 %v2244
    %6241 = vmatpush1.bf16.msra.mxu0 %v2243
    %6242 = vmatprep.subr.bf16.mxu0 %v2252
    %6243 = vmatpush1.bf16.msra.mxu0 %v2251
    %6244 = vmatprep.subr.bf16.mxu0 %v2260
    %6245 = vmatpush1.bf16.msra.mxu0 %v2259
    %6246 = vmatprep.subr.bf16.mxu0 %v2268
    %6247 = vmatpush1.bf16.msra.mxu0 %v2267
    %6248 = vmatprep.subr.bf16.mxu0 %v2276
    %6249 = vmatpush1.bf16.msra.mxu0 %v2275
    %6250 = vmatprep.mubr.bf16.mxu0 %v6088
    %6251 = vmatmul.mubr.bf16.gmra.mrb[0].mxu0 %v6087
    %v6252 = vpop.f32.mrb[0].mxu0
    %v6253 = vadd.f32 0.0, %v6252
    %v6254 = vpop.f32.mrb[0].mxu0
    %v6255 = vadd.f32 0.0, %v6254
    %v6256 = vpop.f32.mrb[0].mxu0
    %v6257 = vadd.f32 0.0, %v6256
    %v6258 = vpop.f32.mrb[0].mxu0
    %v6259 = vadd.f32 0.0, %v6258
    %6260 = vdwg.mxu0
    %6261 = vmatprep.subr.bf16.mxu0 %v2962
    %6262 = vmatpush1.bf16.msra.mxu0 %v2961
    %6263 = vmatprep.subr.bf16.mxu0 %v2970
    %6264 = vmatpush1.bf16.msra.mxu0 %v2969
    %6265 = vmatprep.subr.bf16.mxu0 %v2978
    %6266 = vmatpush1.bf16.msra.mxu0 %v2977
    %6267 = vmatprep.subr.bf16.mxu0 %v2986
    %6268 = vmatpush1.bf16.msra.mxu0 %v2985
    %6269 = vmatprep.subr.bf16.mxu0 %v2994
    %6270 = vmatpush1.bf16.msra.mxu0 %v2993
    %6271 = vmatprep.subr.bf16.mxu0 %v3002
    %6272 = vmatpush1.bf16.msra.mxu0 %v3001
    %6273 = vmatprep.subr.bf16.mxu0 %v3010
    %6274 = vmatpush1.bf16.msra.mxu0 %v3009
    %6275 = vmatprep.subr.bf16.mxu0 %v3018
    %6276 = vmatpush1.bf16.msra.mxu0 %v3017
    %6277 = vmatprep.subr.bf16.mxu0 %v3026
    %6278 = vmatpush1.bf16.msra.mxu0 %v3025
    %6279 = vmatprep.subr.bf16.mxu0 %v3034
    %6280 = vmatpush1.bf16.msra.mxu0 %v3033
    %6281 = vmatprep.subr.bf16.mxu0 %v3042
    %6282 = vmatpush1.bf16.msra.mxu0 %v3041
    %6283 = vmatprep.subr.bf16.mxu0 %v3050
    %6284 = vmatpush1.bf16.msra.mxu0 %v3049
    %6285 = vmatprep.subr.bf16.mxu0 %v3058
    %6286 = vmatpush1.bf16.msra.mxu0 %v3057
    %6287 = vmatprep.subr.bf16.mxu0 %v3066
    %6288 = vmatpush1.bf16.msra.mxu0 %v3065
    %6289 = vmatprep.subr.bf16.mxu0 %v3074
    %6290 = vmatpush1.bf16.msra.mxu0 %v3073
    %6291 = vmatprep.subr.bf16.mxu0 %v3082
    %6292 = vmatpush1.bf16.msra.mxu0 %v3081
    %6293 = vmatprep.mubr.bf16.mxu0 %v5802
    %6294 = vmatmul.mubr.bf16.gmra.mrb[0].mxu0 %v5801
    %v6295 = vpop.f32.mrb[0].mxu0
    %v6296 = vadd.f32 %v6124, %v6295
    %v6297 = vpop.f32.mrb[0].mxu0
    %v6298 = vadd.f32 %v6126, %v6297
    %v6299 = vpop.f32.mrb[0].mxu0
    %v6300 = vadd.f32 %v6128, %v6299
    %v6301 = vpop.f32.mrb[0].mxu0
    %v6302 = vadd.f32 %v6130, %v6301
    %6303 = vdwg.mxu0
    %6304 = vmatprep.subr.bf16.mxu0 %v2964
    %6305 = vmatpush1.bf16.msra.mxu0 %v2963
    %6306 = vmatprep.subr.bf16.mxu0 %v2972
    %6307 = vmatpush1.bf16.msra.mxu0 %v2971
    %6308 = vmatprep.subr.bf16.mxu0 %v2980
    %6309 = vmatpush1.bf16.msra.mxu0 %v2979
    %6310 = vmatprep.subr.bf16.mxu0 %v2988
    %6311 = vmatpush1.bf16.msra.mxu0 %v2987
    %6312 = vmatprep.subr.bf16.mxu0 %v2996
    %6313 = vmatpush1.bf16.msra.mxu0 %v2995
    %6314 = vmatprep.subr.bf16.mxu0 %v3004
    %6315 = vmatpush1.bf16.msra.mxu0 %v3003
    %6316 = vmatprep.subr.bf16.mxu0 %v3012
    %6317 = vmatpush1.bf16.msra.mxu0 %v3011
    %6318 = vmatprep.subr.bf16.mxu0 %v3020
    %6319 = vmatpush1.bf16.msra.mxu0 %v3019
    %6320 = vmatprep.subr.bf16.mxu0 %v3028
    %6321 = vmatpush1.bf16.msra.mxu0 %v3027
    %6322 = vmatprep.subr.bf16.mxu0 %v3036
    %6323 = vmatpush1.bf16.msra.mxu0 %v3035
    %6324 = vmatprep.subr.bf16.mxu0 %v3044
    %6325 = vmatpush1.bf16.msra.mxu0 %v3043
    %6326 = vmatprep.subr.bf16.mxu0 %v3052
    %6327 = vmatpush1.bf16.msra.mxu0 %v3051
    %6328 = vmatprep.subr.bf16.mxu0 %v3060
    %6329 = vmatpush1.bf16.msra.mxu0 %v3059
    %6330 = vmatprep.subr.bf16.mxu0 %v3068
    %6331 = vmatpush1.bf16.msra.mxu0 %v3067
    %6332 = vmatprep.subr.bf16.mxu0 %v3076
    %6333 = vmatpush1.bf16.msra.mxu0 %v3075
    %6334 = vmatprep.subr.bf16.mxu0 %v3084
    %6335 = vmatpush1.bf16.msra.mxu0 %v3083
    %6336 = vmatprep.mubr.bf16.mxu0 %v5802
    %6337 = vmatmul.mubr.bf16.gmra.mrb[0].mxu0 %v5801
    %v6338 = vpop.f32.mrb[0].mxu0
    %v6339 = vadd.f32 %v6167, %v6338
    %v6340 = vpop.f32.mrb[0].mxu0
    %v6341 = vadd.f32 %v6169, %v6340
    %v6342 = vpop.f32.mrb[0].mxu0
    %v6343 = vadd.f32 %v6171, %v6342
    %v6344 = vpop.f32.mrb[0].mxu0
    %v6345 = vadd.f32 %v6173, %v6344
    %6346 = vdwg.mxu0
    %6347 = vmatprep.subr.bf16.mxu0 %v2966
    %6348 = vmatpush1.bf16.msra.mxu0 %v2965
    %6349 = vmatprep.subr.bf16.mxu0 %v2974
    %6350 = vmatpush1.bf16.msra.mxu0 %v2973
    %6351 = vmatprep.subr.bf16.mxu0 %v2982
    %6352 = vmatpush1.bf16.msra.mxu0 %v2981
    %6353 = vmatprep.subr.bf16.mxu0 %v2990
    %6354 = vmatpush1.bf16.msra.mxu0 %v2989
    %6355 = vmatprep.subr.bf16.mxu0 %v2998
    %6356 = vmatpush1.bf16.msra.mxu0 %v2997
    %6357 = vmatprep.subr.bf16.mxu0 %v3006
    %6358 = vmatpush1.bf16.msra.mxu0 %v3005
    %6359 = vmatprep.subr.bf16.mxu0 %v3014
    %6360 = vmatpush1.bf16.msra.mxu0 %v3013
    %6361 = vmatprep.subr.bf16.mxu0 %v3022
    %6362 = vmatpush1.bf16.msra.mxu0 %v3021
    %6363 = vmatprep.subr.bf16.mxu0 %v3030
    %6364 = vmatpush1.bf16.msra.mxu0 %v3029
    %6365 = vmatprep.subr.bf16.mxu0 %v3038
    %6366 = vmatpush1.bf16.msra.mxu0 %v3037
    %6367 = vmatprep.subr.bf16.mxu0 %v3046
    %6368 = vmatpush1.bf16.msra.mxu0 %v3045
    %6369 = vmatprep.subr.bf16.mxu0 %v3054
    %6370 = vmatpush1.bf16.msra.mxu0 %v3053
    %6371 = vmatprep.subr.bf16.mxu0 %v3062
    %6372 = vmatpush1.bf16.msra.mxu0 %v3061
    %6373 = vmatprep.subr.bf16.mxu0 %v3070
    %6374 = vmatpush1.bf16.msra.mxu0 %v3069
    %6375 = vmatprep.subr.bf16.mxu0 %v3078
    %6376 = vmatpush1.bf16.msra.mxu0 %v3077
    %6377 = vmatprep.subr.bf16.mxu0 %v3086
    %6378 = vmatpush1.bf16.msra.mxu0 %v3085
    %6379 = vmatprep.mubr.bf16.mxu0 %v5802
    %6380 = vmatmul.mubr.bf16.gmra.mrb[0].mxu0 %v5801
    %v6381 = vpop.f32.mrb[0].mxu0
    %v6382 = vadd.f32 %v6210, %v6381
    %v6383 = vpop.f32.mrb[0].mxu0
    %v6384 = vadd.f32 %v6212, %v6383
    %v6385 = vpop.f32.mrb[0].mxu0
    %v6386 = vadd.f32 %v6214, %v6385
    %v6387 = vpop.f32.mrb[0].mxu0
    %v6388 = vadd.f32 %v6216, %v6387
    %6389 = vdwg.mxu0
    %6390 = vmatprep.subr.bf16.mxu0 %v2968
    %6391 = vmatpush1.bf16.msra.mxu0 %v2967
    %6392 = vmatprep.subr.bf16.mxu0 %v2976
    %6393 = vmatpush1.bf16.msra.mxu0 %v2975
    %6394 = vmatprep.subr.bf16.mxu0 %v2984
    %6395 = vmatpush1.bf16.msra.mxu0 %v2983
    %6396 = vmatprep.subr.bf16.mxu0 %v2992
    %6397 = vmatpush1.bf16.msra.mxu0 %v2991
    %6398 = vmatprep.subr.bf16.mxu0 %v3000
    %6399 = vmatpush1.bf16.msra.mxu0 %v2999
    %6400 = vmatprep.subr.bf16.mxu0 %v3008
    %6401 = vmatpush1.bf16.msra.mxu0 %v3007
    %6402 = vmatprep.subr.bf16.mxu0 %v3016
    %6403 = vmatpush1.bf16.msra.mxu0 %v3015
    %6404 = vmatprep.subr.bf16.mxu0 %v3024
    %6405 = vmatpush1.bf16.msra.mxu0 %v3023
    %6406 = vmatprep.subr.bf16.mxu0 %v3032
    %6407 = vmatpush1.bf16.msra.mxu0 %v3031
    %6408 = vmatprep.subr.bf16.mxu0 %v3040
    %6409 = vmatpush1.bf16.msra.mxu0 %v3039
    %6410 = vmatprep.subr.bf16.mxu0 %v3048
    %6411 = vmatpush1.bf16.msra.mxu0 %v3047
    %6412 = vmatprep.subr.bf16.mxu0 %v3056
    %6413 = vmatpush1.bf16.msra.mxu0 %v3055
    %6414 = vmatprep.subr.bf16.mxu0 %v3064
    %6415 = vmatpush1.bf16.msra.mxu0 %v3063
    %6416 = vmatprep.subr.bf16.mxu0 %v3072
    %6417 = vmatpush1.bf16.msra.mxu0 %v3071
    %6418 = vmatprep.subr.bf16.mxu0 %v3080
    %6419 = vmatpush1.bf16.msra.mxu0 %v3079
    %6420 = vmatprep.subr.bf16.mxu0 %v3088
    %6421 = vmatpush1.bf16.msra.mxu0 %v3087
    %6422 = vmatprep.mubr.bf16.mxu0 %v5802
    %6423 = vmatmul.mubr.bf16.gmra.mrb[0].mxu0 %v5801
    %v6424 = vpop.f32.mrb[0].mxu0
    %v6425 = vadd.f32 %v6253, %v6424
    %v6426 = vpop.f32.mrb[0].mxu0
    %v6427 = vadd.f32 %v6255, %v6426
    %v6428 = vpop.f32.mrb[0].mxu0
    %v6429 = vadd.f32 %v6257, %v6428
    %v6430 = vpop.f32.mrb[0].mxu0
    %v6431 = vadd.f32 %v6259, %v6430
    %6432 = vdwg.mxu0
    %v6433 = vadd.f32 %v6296, %v101
    %v6434 = vadd.f32 %v6298, %v105
    %v6435 = vadd.f32 %v6339, %v109
    %v6436 = vadd.f32 %v6341, %v113
    %v6437 = vadd.f32 %v6382, %v117
    %v6438 = vadd.f32 %v6384, %v121
    %v6439 = vadd.f32 %v6425, %v125
    %v6440 = vadd.f32 %v6427, %v129
    %v6441 = vadd.f32 %v6300, %v101
    %v6442 = vadd.f32 %v6302, %v105
    %v6443 = vadd.f32 %v6343, %v109
    %v6444 = vadd.f32 %v6345, %v113
    %v6445 = vadd.f32 %v6386, %v117
    %v6446 = vadd.f32 %v6388, %v121
    %v6447 = vadd.f32 %v6429, %v125
    %v6448 = vadd.f32 %v6431, %v129
    %v6449 = vxor.u32 %v6433, 2147483648
    %v6450 = vxor.u32 %v6434, 2147483648
    %v6451 = vxor.u32 %v6441, 2147483648
    %v6452 = vxor.u32 %v6442, 2147483648
    %v6453 = vmul.f32 %v6449, 1.442695
    %v6454 = vpow.pop %v6453
    %v6455 = vmul.f32 %v6450, 1.442695
    %v6456 = vpow.pop %v6455
    %v6457 = vmul.f32 %v6451, 1.442695
    %v6458 = vpow.pop %v6457
    %v6459 = vmul.f32 %v6452, 1.442695
    %v6460 = vpow.pop %v6459
    %v6461 = vadd.f32 %v6454, 1.0
    %v6462 = vadd.f32 %v6456, 1.0
    %v6463 = vadd.f32 %v6458, 1.0
    %v6464 = vadd.f32 %v6460, 1.0
    %v6465 = vrcp.pop %v6461
    %v6466 = vmul.f32 1.0, %v6465
    %v6467 = vrcp.pop %v6462
    %v6468 = vmul.f32 1.0, %v6467
    %v6469 = vrcp.pop %v6463
    %v6470 = vmul.f32 1.0, %v6469
    %v6471 = vrcp.pop %v6464
    %v6472 = vmul.f32 1.0, %v6471
    %v6473 = vxor.u32 %v6435, 2147483648
    %v6474 = vxor.u32 %v6436, 2147483648
    %v6475 = vxor.u32 %v6443, 2147483648
    %v6476 = vxor.u32 %v6444, 2147483648
    %v6477 = vmul.f32 %v6473, 1.442695
    %v6478 = vpow.pop %v6477
    %v6479 = vmul.f32 %v6474, 1.442695
    %v6480 = vpow.pop %v6479
    %v6481 = vmul.f32 %v6475, 1.442695
    %v6482 = vpow.pop %v6481
    %v6483 = vmul.f32 %v6476, 1.442695
    %v6484 = vpow.pop %v6483
    %v6485 = vadd.f32 %v6478, 1.0
    %v6486 = vadd.f32 %v6480, 1.0
    %v6487 = vadd.f32 %v6482, 1.0
    %v6488 = vadd.f32 %v6484, 1.0
    %v6489 = vrcp.pop %v6485
    %v6490 = vmul.f32 1.0, %v6489
    %v6491 = vrcp.pop %v6486
    %v6492 = vmul.f32 1.0, %v6491
    %v6493 = vrcp.pop %v6487
    %v6494 = vmul.f32 1.0, %v6493
    %v6495 = vrcp.pop %v6488
    %v6496 = vmul.f32 1.0, %v6495
    %v6497 = vtanh.pop %v6437
    %v6498 = vtanh.pop %v6438
    %v6499 = vtanh.pop %v6445
    %v6500 = vtanh.pop %v6446
    %v6501 = vxor.u32 %v6439, 2147483648
    %v6502 = vxor.u32 %v6440, 2147483648
    %v6503 = vxor.u32 %v6447, 2147483648
    %v6504 = vxor.u32 %v6448, 2147483648
    %v6505 = vmul.f32 %v6501, 1.442695
    %v6506 = vpow.pop %v6505
    %v6507 = vmul.f32 %v6502, 1.442695
    %v6508 = vpow.pop %v6507
    %v6509 = vmul.f32 %v6503, 1.442695
    %v6510 = vpow.pop %v6509
    %v6511 = vmul.f32 %v6504, 1.442695
    %v6512 = vpow.pop %v6511
    %v6513 = vadd.f32 %v6506, 1.0
    %v6514 = vadd.f32 %v6508, 1.0
    %v6515 = vadd.f32 %v6510, 1.0
    %v6516 = vadd.f32 %v6512, 1.0
    %v6517 = vrcp.pop %v6513
    %v6518 = vmul.f32 1.0, %v6517
    %v6519 = vrcp.pop %v6514
    %v6520 = vmul.f32 1.0, %v6519
    %v6521 = vrcp.pop %v6515
    %v6522 = vmul.f32 1.0, %v6521
    %v6523 = vrcp.pop %v6516
    %v6524 = vmul.f32 1.0, %v6523
    %v6525 = vmul.f32 %v6490, %v5772
    %v6526 = vmul.f32 %v6492, %v5773
    %v6527 = vmul.f32 %v6494, %v5774
    %v6528 = vmul.f32 %v6496, %v5775
    %v6529 = vmul.f32 %v6466, %v6497
    %v6530 = vmul.f32 %v6468, %v6498
    %v6531 = vmul.f32 %v6470, %v6499
    %v6532 = vmul.f32 %v6472, %v6500
    %v6533 = vadd.f32 %v6525, %v6529
    %v6534 = vadd.f32 %v6526, %v6530
    %v6535 = vadd.f32 %v6527, %v6531
    %v6536 = vadd.f32 %v6528, %v6532
    %v6537 = vtanh.pop %v6533
    %v6538 = vtanh.pop %v6534
    %v6539 = vtanh.pop %v6535
    %v6540 = vtanh.pop %v6536
    %v6541 = vmul.f32 %v6518, %v6537
    %v6542 = vmul.f32 %v6520, %v6538
    %v6543 = vmul.f32 %v6522, %v6539
    %v6544 = vmul.f32 %v6524, %v6540
    %s6545 = scalar_lea.vmem [#allocation2], 768
    %v6546 = vld [vmem:[%s6545] sm:$0xff]
    %v6547 = vld [vmem:[%s6545 + $0x8] sm:$0xff]
    %v6548 = vld [vmem:[%s6545 + $0x10] sm:$0xff]
    %v6549 = vld [vmem:[%s6545 + $0x18] sm:$0xff]
    %v6550 = vld [vmem:[%s6545 + $0x20] sm:$0xff]
    %v6551 = vld [vmem:[%s6545 + $0x28] sm:$0xff]
    %v6552 = vld [vmem:[%s6545 + $0x30] sm:$0xff]
    %v6553 = vld [vmem:[%s6545 + $0x38] sm:$0xff]
    %v6554 = vld [vmem:[%s6545 + $0x40] sm:$0xff]
    %v6555 = vld [vmem:[%s6545 + $0x48] sm:$0xff]
    %v6556 = vld [vmem:[%s6545 + $0x50] sm:$0xff]
    %v6557 = vld [vmem:[%s6545 + $0x58] sm:$0xff]
    %v6558 = vld [vmem:[%s6545 + $0x60] sm:$0xff]
    %v6559 = vld [vmem:[%s6545 + $0x68] sm:$0xff]
    %v6560 = vld [vmem:[%s6545 + $0x70] sm:$0xff]
    %v6561 = vld [vmem:[%s6545 + $0x78] sm:$0xff]
    %v6562 = vpack.c.bf16 %v6085, %v6083
    %v6563 = vpack.c.bf16 %v6086, %v6084
    %6564 = vmatprep.subr.bf16.mxu0 %v667
    %6565 = vmatpush1.bf16.msra.mxu0 %v666
    %6566 = vmatprep.subr.bf16.mxu0 %v675
    %6567 = vmatpush1.bf16.msra.mxu0 %v674
    %6568 = vmatprep.subr.bf16.mxu0 %v683
    %6569 = vmatpush1.bf16.msra.mxu0 %v682
    %6570 = vmatprep.subr.bf16.mxu0 %v691
    %6571 = vmatpush1.bf16.msra.mxu0 %v690
    %6572 = vmatprep.subr.bf16.mxu0 %v699
    %6573 = vmatpush1.bf16.msra.mxu0 %v698
    %6574 = vmatprep.subr.bf16.mxu0 %v707
    %6575 = vmatpush1.bf16.msra.mxu0 %v706
    %6576 = vmatprep.subr.bf16.mxu0 %v715
    %6577 = vmatpush1.bf16.msra.mxu0 %v714
    %6578 = vmatprep.subr.bf16.mxu0 %v723
    %6579 = vmatpush1.bf16.msra.mxu0 %v722
    %6580 = vmatprep.subr.bf16.mxu0 %v731
    %6581 = vmatpush1.bf16.msra.mxu0 %v730
    %6582 = vmatprep.subr.bf16.mxu0 %v739
    %6583 = vmatpush1.bf16.msra.mxu0 %v738
    %6584 = vmatprep.subr.bf16.mxu0 %v747
    %6585 = vmatpush1.bf16.msra.mxu0 %v746
    %6586 = vmatprep.subr.bf16.mxu0 %v755
    %6587 = vmatpush1.bf16.msra.mxu0 %v754
    %6588 = vmatprep.subr.bf16.mxu0 %v763
    %6589 = vmatpush1.bf16.msra.mxu0 %v762
    %6590 = vmatprep.subr.bf16.mxu0 %v771
    %6591 = vmatpush1.bf16.msra.mxu0 %v770
    %6592 = vmatprep.subr.bf16.mxu0 %v779
    %6593 = vmatpush1.bf16.msra.mxu0 %v778
    %6594 = vmatprep.subr.bf16.mxu0 %v787
    %6595 = vmatpush1.bf16.msra.mxu0 %v786
    %6596 = vmatprep.mubr.bf16.mxu0 %v6563
    %6597 = vmatmul.mubr.bf16.gmra.mrb[0].mxu0 %v6562
    %v6598 = vpop.f32.mrb[0].mxu0
    %v6599 = vadd.f32 0.0, %v6598
    %v6600 = vpop.f32.mrb[0].mxu0
    %v6601 = vadd.f32 0.0, %v6600
    %v6602 = vpop.f32.mrb[0].mxu0
    %v6603 = vadd.f32 0.0, %v6602
    %v6604 = vpop.f32.mrb[0].mxu0
    %v6605 = vadd.f32 0.0, %v6604
    %6606 = vdwg.mxu0
    %6607 = vmatprep.subr.bf16.mxu0 %v669
    %6608 = vmatpush1.bf16.msra.mxu0 %v668
    %6609 = vmatprep.subr.bf16.mxu0 %v677
    %6610 = vmatpush1.bf16.msra.mxu0 %v676
    %6611 = vmatprep.subr.bf16.mxu0 %v685
    %6612 = vmatpush1.bf16.msra.mxu0 %v684
    %6613 = vmatprep.subr.bf16.mxu0 %v693
    %6614 = vmatpush1.bf16.msra.mxu0 %v692
    %6615 = vmatprep.subr.bf16.mxu0 %v701
    %6616 = vmatpush1.bf16.msra.mxu0 %v700
    %6617 = vmatprep.subr.bf16.mxu0 %v709
    %6618 = vmatpush1.bf16.msra.mxu0 %v708
    %6619 = vmatprep.subr.bf16.mxu0 %v717
    %6620 = vmatpush1.bf16.msra.mxu0 %v716
    %6621 = vmatprep.subr.bf16.mxu0 %v725
    %6622 = vmatpush1.bf16.msra.mxu0 %v724
    %6623 = vmatprep.subr.bf16.mxu0 %v733
    %6624 = vmatpush1.bf16.msra.mxu0 %v732
    %6625 = vmatprep.subr.bf16.mxu0 %v741
    %6626 = vmatpush1.bf16.msra.mxu0 %v740
    %6627 = vmatprep.subr.bf16.mxu0 %v749
    %6628 = vmatpush1.bf16.msra.mxu0 %v748
    %6629 = vmatprep.subr.bf16.mxu0 %v757
    %6630 = vmatpush1.bf16.msra.mxu0 %v756
    %6631 = vmatprep.subr.bf16.mxu0 %v765
    %6632 = vmatpush1.bf16.msra.mxu0 %v764
    %6633 = vmatprep.subr.bf16.mxu0 %v773
    %6634 = vmatpush1.bf16.msra.mxu0 %v772
    %6635 = vmatprep.subr.bf16.mxu0 %v781
    %6636 = vmatpush1.bf16.msra.mxu0 %v780
    %6637 = vmatprep.subr.bf16.mxu0 %v789
    %6638 = vmatpush1.bf16.msra.mxu0 %v788
    %6639 = vmatprep.mubr.bf16.mxu0 %v6563
    %6640 = vmatmul.mubr.bf16.gmra.mrb[0].mxu0 %v6562
    %v6641 = vpop.f32.mrb[0].mxu0
    %v6642 = vadd.f32 0.0, %v6641
    %v6643 = vpop.f32.mrb[0].mxu0
    %v6644 = vadd.f32 0.0, %v6643
    %v6645 = vpop.f32.mrb[0].mxu0
    %v6646 = vadd.f32 0.0, %v6645
    %v6647 = vpop.f32.mrb[0].mxu0
    %v6648 = vadd.f32 0.0, %v6647
    %6649 = vdwg.mxu0
    %6650 = vmatprep.subr.bf16.mxu0 %v671
    %6651 = vmatpush1.bf16.msra.mxu0 %v670
    %6652 = vmatprep.subr.bf16.mxu0 %v679
    %6653 = vmatpush1.bf16.msra.mxu0 %v678
    %6654 = vmatprep.subr.bf16.mxu0 %v687
    %6655 = vmatpush1.bf16.msra.mxu0 %v686
    %6656 = vmatprep.subr.bf16.mxu0 %v695
    %6657 = vmatpush1.bf16.msra.mxu0 %v694
    %6658 = vmatprep.subr.bf16.mxu0 %v703
    %6659 = vmatpush1.bf16.msra.mxu0 %v702
    %6660 = vmatprep.subr.bf16.mxu0 %v711
    %6661 = vmatpush1.bf16.msra.mxu0 %v710
    %6662 = vmatprep.subr.bf16.mxu0 %v719
    %6663 = vmatpush1.bf16.msra.mxu0 %v718
    %6664 = vmatprep.subr.bf16.mxu0 %v727
    %6665 = vmatpush1.bf16.msra.mxu0 %v726
    %6666 = vmatprep.subr.bf16.mxu0 %v735
    %6667 = vmatpush1.bf16.msra.mxu0 %v734
    %6668 = vmatprep.subr.bf16.mxu0 %v743
    %6669 = vmatpush1.bf16.msra.mxu0 %v742
    %6670 = vmatprep.subr.bf16.mxu0 %v751
    %6671 = vmatpush1.bf16.msra.mxu0 %v750
    %6672 = vmatprep.subr.bf16.mxu0 %v759
    %6673 = vmatpush1.bf16.msra.mxu0 %v758
    %6674 = vmatprep.subr.bf16.mxu0 %v767
    %6675 = vmatpush1.bf16.msra.mxu0 %v766
    %6676 = vmatprep.subr.bf16.mxu0 %v775
    %6677 = vmatpush1.bf16.msra.mxu0 %v774
    %6678 = vmatprep.subr.bf16.mxu0 %v783
    %6679 = vmatpush1.bf16.msra.mxu0 %v782
    %6680 = vmatprep.subr.bf16.mxu0 %v791
    %6681 = vmatpush1.bf16.msra.mxu0 %v790
    %6682 = vmatprep.mubr.bf16.mxu0 %v6563
    %6683 = vmatmul.mubr.bf16.gmra.mrb[0].mxu0 %v6562
    %v6684 = vpop.f32.mrb[0].mxu0
    %v6685 = vadd.f32 0.0, %v6684
    %v6686 = vpop.f32.mrb[0].mxu0
    %v6687 = vadd.f32 0.0, %v6686
    %v6688 = vpop.f32.mrb[0].mxu0
    %v6689 = vadd.f32 0.0, %v6688
    %v6690 = vpop.f32.mrb[0].mxu0
    %v6691 = vadd.f32 0.0, %v6690
    %6692 = vdwg.mxu0
    %6693 = vmatprep.subr.bf16.mxu0 %v673
    %6694 = vmatpush1.bf16.msra.mxu0 %v672
    %6695 = vmatprep.subr.bf16.mxu0 %v681
    %6696 = vmatpush1.bf16.msra.mxu0 %v680
    %6697 = vmatprep.subr.bf16.mxu0 %v689
    %6698 = vmatpush1.bf16.msra.mxu0 %v688
    %6699 = vmatprep.subr.bf16.mxu0 %v697
    %6700 = vmatpush1.bf16.msra.mxu0 %v696
    %6701 = vmatprep.subr.bf16.mxu0 %v705
    %6702 = vmatpush1.bf16.msra.mxu0 %v704
    %6703 = vmatprep.subr.bf16.mxu0 %v713
    %6704 = vmatpush1.bf16.msra.mxu0 %v712
    %6705 = vmatprep.subr.bf16.mxu0 %v721
    %6706 = vmatpush1.bf16.msra.mxu0 %v720
    %6707 = vmatprep.subr.bf16.mxu0 %v729
    %6708 = vmatpush1.bf16.msra.mxu0 %v728
    %6709 = vmatprep.subr.bf16.mxu0 %v737
    %6710 = vmatpush1.bf16.msra.mxu0 %v736
    %6711 = vmatprep.subr.bf16.mxu0 %v745
    %6712 = vmatpush1.bf16.msra.mxu0 %v744
    %6713 = vmatprep.subr.bf16.mxu0 %v753
    %6714 = vmatpush1.bf16.msra.mxu0 %v752
    %6715 = vmatprep.subr.bf16.mxu0 %v761
    %6716 = vmatpush1.bf16.msra.mxu0 %v760
    %6717 = vmatprep.subr.bf16.mxu0 %v769
    %6718 = vmatpush1.bf16.msra.mxu0 %v768
    %6719 = vmatprep.subr.bf16.mxu0 %v777
    %6720 = vmatpush1.bf16.msra.mxu0 %v776
    %6721 = vmatprep.subr.bf16.mxu0 %v785
    %6722 = vmatpush1.bf16.msra.mxu0 %v784
    %6723 = vmatprep.subr.bf16.mxu0 %v793
    %6724 = vmatpush1.bf16.msra.mxu0 %v792
    %6725 = vmatprep.mubr.bf16.mxu0 %v6563
    %6726 = vmatmul.mubr.bf16.gmra.mrb[0].mxu0 %v6562
    %v6727 = vpop.f32.mrb[0].mxu0
    %v6728 = vadd.f32 0.0, %v6727
    %v6729 = vpop.f32.mrb[0].mxu0
    %v6730 = vadd.f32 0.0, %v6729
    %v6731 = vpop.f32.mrb[0].mxu0
    %v6732 = vadd.f32 0.0, %v6731
    %v6733 = vpop.f32.mrb[0].mxu0
    %v6734 = vadd.f32 0.0, %v6733
    %6735 = vdwg.mxu0
    %v6736 = vadd.f32 %v6546, %v6599
    %v6737 = vadd.f32 %v6547, %v6601
    %v6738 = vadd.f32 %v6548, %v6642
    %v6739 = vadd.f32 %v6549, %v6644
    %v6740 = vadd.f32 %v6550, %v6685
    %v6741 = vadd.f32 %v6551, %v6687
    %v6742 = vadd.f32 %v6552, %v6728
    %v6743 = vadd.f32 %v6553, %v6730
    %v6744 = vadd.f32 %v6554, %v6603
    %v6745 = vadd.f32 %v6555, %v6605
    %v6746 = vadd.f32 %v6556, %v6646
    %v6747 = vadd.f32 %v6557, %v6648
    %v6748 = vadd.f32 %v6558, %v6689
    %v6749 = vadd.f32 %v6559, %v6691
    %v6750 = vadd.f32 %v6560, %v6732
    %v6751 = vadd.f32 %v6561, %v6734
    %v6752 = vxor.u32 %v6736, 2147483648
    %v6753 = vxor.u32 %v6737, 2147483648
    %v6754 = vxor.u32 %v6744, 2147483648
    %v6755 = vxor.u32 %v6745, 2147483648
    %v6756 = vmul.f32 %v6752, 1.442695
    %v6757 = vpow.pop %v6756
    %v6758 = vmul.f32 %v6753, 1.442695
    %v6759 = vpow.pop %v6758
    %v6760 = vmul.f32 %v6754, 1.442695
    %v6761 = vpow.pop %v6760
    %v6762 = vmul.f32 %v6755, 1.442695
    %v6763 = vpow.pop %v6762
    %v6764 = vadd.f32 %v6757, 1.0
    %v6765 = vadd.f32 %v6759, 1.0
    %v6766 = vadd.f32 %v6761, 1.0
    %v6767 = vadd.f32 %v6763, 1.0
    %v6768 = vrcp.pop %v6764
    %v6769 = vmul.f32 1.0, %v6768
    %v6770 = vrcp.pop %v6765
    %v6771 = vmul.f32 1.0, %v6770
    %v6772 = vrcp.pop %v6766
    %v6773 = vmul.f32 1.0, %v6772
    %v6774 = vrcp.pop %v6767
    %v6775 = vmul.f32 1.0, %v6774
    %v6776 = vxor.u32 %v6738, 2147483648
    %v6777 = vxor.u32 %v6739, 2147483648
    %v6778 = vxor.u32 %v6746, 2147483648
    %v6779 = vxor.u32 %v6747, 2147483648
    %v6780 = vmul.f32 %v6776, 1.442695
    %v6781 = vpow.pop %v6780
    %v6782 = vmul.f32 %v6777, 1.442695
    %v6783 = vpow.pop %v6782
    %v6784 = vmul.f32 %v6778, 1.442695
    %v6785 = vpow.pop %v6784
    %v6786 = vmul.f32 %v6779, 1.442695
    %v6787 = vpow.pop %v6786
    %v6788 = vadd.f32 %v6781, 1.0
    %v6789 = vadd.f32 %v6783, 1.0
    %v6790 = vadd.f32 %v6785, 1.0
    %v6791 = vadd.f32 %v6787, 1.0
    %v6792 = vrcp.pop %v6788
    %v6793 = vmul.f32 1.0, %v6792
    %v6794 = vrcp.pop %v6789
    %v6795 = vmul.f32 1.0, %v6794
    %v6796 = vrcp.pop %v6790
    %v6797 = vmul.f32 1.0, %v6796
    %v6798 = vrcp.pop %v6791
    %v6799 = vmul.f32 1.0, %v6798
    %v6800 = vtanh.pop %v6740
    %v6801 = vtanh.pop %v6741
    %v6802 = vtanh.pop %v6748
    %v6803 = vtanh.pop %v6749
    %v6804 = vxor.u32 %v6742, 2147483648
    %v6805 = vxor.u32 %v6743, 2147483648
    %v6806 = vxor.u32 %v6750, 2147483648
    %v6807 = vxor.u32 %v6751, 2147483648
    %v6808 = vmul.f32 %v6804, 1.442695
    %v6809 = vpow.pop %v6808
    %v6810 = vmul.f32 %v6805, 1.442695
    %v6811 = vpow.pop %v6810
    %v6812 = vmul.f32 %v6806, 1.442695
    %v6813 = vpow.pop %v6812
    %v6814 = vmul.f32 %v6807, 1.442695
    %v6815 = vpow.pop %v6814
    %v6816 = vadd.f32 %v6809, 1.0
    %v6817 = vadd.f32 %v6811, 1.0
    %v6818 = vadd.f32 %v6813, 1.0
    %v6819 = vadd.f32 %v6815, 1.0
    %v6820 = vrcp.pop %v6816
    %v6821 = vmul.f32 1.0, %v6820
    %v6822 = vrcp.pop %v6817
    %v6823 = vmul.f32 1.0, %v6822
    %v6824 = vrcp.pop %v6818
    %v6825 = vmul.f32 1.0, %v6824
    %v6826 = vrcp.pop %v6819
    %v6827 = vmul.f32 1.0, %v6826
    %v6828 = vmul.f32 %v6793, %v6075
    %v6829 = vmul.f32 %v6795, %v6076
    %v6830 = vmul.f32 %v6797, %v6077
    %v6831 = vmul.f32 %v6799, %v6078
    %v6832 = vmul.f32 %v6769, %v6800
    %v6833 = vmul.f32 %v6771, %v6801
    %v6834 = vmul.f32 %v6773, %v6802
    %v6835 = vmul.f32 %v6775, %v6803
    %v6836 = vadd.f32 %v6828, %v6832
    %v6837 = vadd.f32 %v6829, %v6833
    %v6838 = vadd.f32 %v6830, %v6834
    %v6839 = vadd.f32 %v6831, %v6835
    %v6840 = vtanh.pop %v6836
    %v6841 = vtanh.pop %v6837
    %v6842 = vtanh.pop %v6838
    %v6843 = vtanh.pop %v6839
    %v6844 = vmul.f32 %v6821, %v6840
    %v6845 = vmul.f32 %v6823, %v6841
    %v6846 = vmul.f32 %v6825, %v6842
    %v6847 = vmul.f32 %v6827, %v6843
    %v6848 = vpack.c.bf16 %v6543, %v6541
    %v6849 = vpack.c.bf16 %v6544, %v6542
    %6850 = vmatprep.subr.bf16.mxu0 %v2150
    %6851 = vmatpush1.bf16.msra.mxu0 %v2149
    %6852 = vmatprep.subr.bf16.mxu0 %v2158
    %6853 = vmatpush1.bf16.msra.mxu0 %v2157
    %6854 = vmatprep.subr.bf16.mxu0 %v2166
    %6855 = vmatpush1.bf16.msra.mxu0 %v2165
    %6856 = vmatprep.subr.bf16.mxu0 %v2174
    %6857 = vmatpush1.bf16.msra.mxu0 %v2173
    %6858 = vmatprep.subr.bf16.mxu0 %v2182
    %6859 = vmatpush1.bf16.msra.mxu0 %v2181
    %6860 = vmatprep.subr.bf16.mxu0 %v2190
    %6861 = vmatpush1.bf16.msra.mxu0 %v2189
    %6862 = vmatprep.subr.bf16.mxu0 %v2198
    %6863 = vmatpush1.bf16.msra.mxu0 %v2197
    %6864 = vmatprep.subr.bf16.mxu0 %v2206
    %6865 = vmatpush1.bf16.msra.mxu0 %v2205
    %6866 = vmatprep.subr.bf16.mxu0 %v2214
    %6867 = vmatpush1.bf16.msra.mxu0 %v2213
    %6868 = vmatprep.subr.bf16.mxu0 %v2222
    %6869 = vmatpush1.bf16.msra.mxu0 %v2221
    %6870 = vmatprep.subr.bf16.mxu0 %v2230
    %6871 = vmatpush1.bf16.msra.mxu0 %v2229
    %6872 = vmatprep.subr.bf16.mxu0 %v2238
    %6873 = vmatpush1.bf16.msra.mxu0 %v2237
    %6874 = vmatprep.subr.bf16.mxu0 %v2246
    %6875 = vmatpush1.bf16.msra.mxu0 %v2245
    %6876 = vmatprep.subr.bf16.mxu0 %v2254
    %6877 = vmatpush1.bf16.msra.mxu0 %v2253
    %6878 = vmatprep.subr.bf16.mxu0 %v2262
    %6879 = vmatpush1.bf16.msra.mxu0 %v2261
    %6880 = vmatprep.subr.bf16.mxu0 %v2270
    %6881 = vmatpush1.bf16.msra.mxu0 %v2269
    %6882 = vmatprep.mubr.bf16.mxu0 %v6849
    %6883 = vmatmul.mubr.bf16.gmra.mrb[0].mxu0 %v6848
    %v6884 = vpop.f32.mrb[0].mxu0
    %v6885 = vadd.f32 0.0, %v6884
    %v6886 = vpop.f32.mrb[0].mxu0
    %v6887 = vadd.f32 0.0, %v6886
    %v6888 = vpop.f32.mrb[0].mxu0
    %v6889 = vadd.f32 0.0, %v6888
    %v6890 = vpop.f32.mrb[0].mxu0
    %v6891 = vadd.f32 0.0, %v6890
    %6892 = vdwg.mxu0
    %6893 = vmatprep.subr.bf16.mxu0 %v2152
    %6894 = vmatpush1.bf16.msra.mxu0 %v2151
    %6895 = vmatprep.subr.bf16.mxu0 %v2160
    %6896 = vmatpush1.bf16.msra.mxu0 %v2159
    %6897 = vmatprep.subr.bf16.mxu0 %v2168
    %6898 = vmatpush1.bf16.msra.mxu0 %v2167
    %6899 = vmatprep.subr.bf16.mxu0 %v2176
    %6900 = vmatpush1.bf16.msra.mxu0 %v2175
    %6901 = vmatprep.subr.bf16.mxu0 %v2184
    %6902 = vmatpush1.bf16.msra.mxu0 %v2183
    %6903 = vmatprep.subr.bf16.mxu0 %v2192
    %6904 = vmatpush1.bf16.msra.mxu0 %v2191
    %6905 = vmatprep.subr.bf16.mxu0 %v2200
    %6906 = vmatpush1.bf16.msra.mxu0 %v2199
    %6907 = vmatprep.subr.bf16.mxu0 %v2208
    %6908 = vmatpush1.bf16.msra.mxu0 %v2207
    %6909 = vmatprep.subr.bf16.mxu0 %v2216
    %6910 = vmatpush1.bf16.msra.mxu0 %v2215
    %6911 = vmatprep.subr.bf16.mxu0 %v2224
    %6912 = vmatpush1.bf16.msra.mxu0 %v2223
    %6913 = vmatprep.subr.bf16.mxu0 %v2232
    %6914 = vmatpush1.bf16.msra.mxu0 %v2231
    %6915 = vmatprep.subr.bf16.mxu0 %v2240
    %6916 = vmatpush1.bf16.msra.mxu0 %v2239
    %6917 = vmatprep.subr.bf16.mxu0 %v2248
    %6918 = vmatpush1.bf16.msra.mxu0 %v2247
    %6919 = vmatprep.subr.bf16.mxu0 %v2256
    %6920 = vmatpush1.bf16.msra.mxu0 %v2255
    %6921 = vmatprep.subr.bf16.mxu0 %v2264
    %6922 = vmatpush1.bf16.msra.mxu0 %v2263
    %6923 = vmatprep.subr.bf16.mxu0 %v2272
    %6924 = vmatpush1.bf16.msra.mxu0 %v2271
    %6925 = vmatprep.mubr.bf16.mxu0 %v6849
    %6926 = vmatmul.mubr.bf16.gmra.mrb[0].mxu0 %v6848
    %v6927 = vpop.f32.mrb[0].mxu0
    %v6928 = vadd.f32 0.0, %v6927
    %v6929 = vpop.f32.mrb[0].mxu0
    %v6930 = vadd.f32 0.0, %v6929
    %v6931 = vpop.f32.mrb[0].mxu0
    %v6932 = vadd.f32 0.0, %v6931
    %v6933 = vpop.f32.mrb[0].mxu0
    %v6934 = vadd.f32 0.0, %v6933
    %6935 = vdwg.mxu0
    %6936 = vmatprep.subr.bf16.mxu0 %v2154
    %6937 = vmatpush1.bf16.msra.mxu0 %v2153
    %6938 = vmatprep.subr.bf16.mxu0 %v2162
    %6939 = vmatpush1.bf16.msra.mxu0 %v2161
    %6940 = vmatprep.subr.bf16.mxu0 %v2170
    %6941 = vmatpush1.bf16.msra.mxu0 %v2169
    %6942 = vmatprep.subr.bf16.mxu0 %v2178
    %6943 = vmatpush1.bf16.msra.mxu0 %v2177
    %6944 = vmatprep.subr.bf16.mxu0 %v2186
    %6945 = vmatpush1.bf16.msra.mxu0 %v2185
    %6946 = vmatprep.subr.bf16.mxu0 %v2194
    %6947 = vmatpush1.bf16.msra.mxu0 %v2193
    %6948 = vmatprep.subr.bf16.mxu0 %v2202
    %6949 = vmatpush1.bf16.msra.mxu0 %v2201
    %6950 = vmatprep.subr.bf16.mxu0 %v2210
    %6951 = vmatpush1.bf16.msra.mxu0 %v2209
    %6952 = vmatprep.subr.bf16.mxu0 %v2218
    %6953 = vmatpush1.bf16.msra.mxu0 %v2217
    %6954 = vmatprep.subr.bf16.mxu0 %v2226
    %6955 = vmatpush1.bf16.msra.mxu0 %v2225
    %6956 = vmatprep.subr.bf16.mxu0 %v2234
    %6957 = vmatpush1.bf16.msra.mxu0 %v2233
    %6958 = vmatprep.subr.bf16.mxu0 %v2242
    %6959 = vmatpush1.bf16.msra.mxu0 %v2241
    %6960 = vmatprep.subr.bf16.mxu0 %v2250
    %6961 = vmatpush1.bf16.msra.mxu0 %v2249
    %6962 = vmatprep.subr.bf16.mxu0 %v2258
    %6963 = vmatpush1.bf16.msra.mxu0 %v2257
    %6964 = vmatprep.subr.bf16.mxu0 %v2266
    %6965 = vmatpush1.bf16.msra.mxu0 %v2265
    %6966 = vmatprep.subr.bf16.mxu0 %v2274
    %6967 = vmatpush1.bf16.msra.mxu0 %v2273
    %6968 = vmatprep.mubr.bf16.mxu0 %v6849
    %6969 = vmatmul.mubr.bf16.gmra.mrb[0].mxu0 %v6848
    %v6970 = vpop.f32.mrb[0].mxu0
    %v6971 = vadd.f32 0.0, %v6970
    %v6972 = vpop.f32.mrb[0].mxu0
    %v6973 = vadd.f32 0.0, %v6972
    %v6974 = vpop.f32.mrb[0].mxu0
    %v6975 = vadd.f32 0.0, %v6974
    %v6976 = vpop.f32.mrb[0].mxu0
    %v6977 = vadd.f32 0.0, %v6976
    %6978 = vdwg.mxu0
    %6979 = vmatprep.subr.bf16.mxu0 %v2156
    %6980 = vmatpush1.bf16.msra.mxu0 %v2155
    %6981 = vmatprep.subr.bf16.mxu0 %v2164
    %6982 = vmatpush1.bf16.msra.mxu0 %v2163
    %6983 = vmatprep.subr.bf16.mxu0 %v2172
    %6984 = vmatpush1.bf16.msra.mxu0 %v2171
    %6985 = vmatprep.subr.bf16.mxu0 %v2180
    %6986 = vmatpush1.bf16.msra.mxu0 %v2179
    %6987 = vmatprep.subr.bf16.mxu0 %v2188
    %6988 = vmatpush1.bf16.msra.mxu0 %v2187
    %6989 = vmatprep.subr.bf16.mxu0 %v2196
    %6990 = vmatpush1.bf16.msra.mxu0 %v2195
    %6991 = vmatprep.subr.bf16.mxu0 %v2204
    %6992 = vmatpush1.bf16.msra.mxu0 %v2203
    %6993 = vmatprep.subr.bf16.mxu0 %v2212
    %6994 = vmatpush1.bf16.msra.mxu0 %v2211
    %6995 = vmatprep.subr.bf16.mxu0 %v2220
    %6996 = vmatpush1.bf16.msra.mxu0 %v2219
    %6997 = vmatprep.subr.bf16.mxu0 %v2228
    %6998 = vmatpush1.bf16.msra.mxu0 %v2227
    %6999 = vmatprep.subr.bf16.mxu0 %v2236
    %7000 = vmatpush1.bf16.msra.mxu0 %v2235
    %7001 = vmatprep.subr.bf16.mxu0 %v2244
    %7002 = vmatpush1.bf16.msra.mxu0 %v2243
    %7003 = vmatprep.subr.bf16.mxu0 %v2252
    %7004 = vmatpush1.bf16.msra.mxu0 %v2251
    %7005 = vmatprep.subr.bf16.mxu0 %v2260
    %7006 = vmatpush1.bf16.msra.mxu0 %v2259
    %7007 = vmatprep.subr.bf16.mxu0 %v2268
    %7008 = vmatpush1.bf16.msra.mxu0 %v2267
    %7009 = vmatprep.subr.bf16.mxu0 %v2276
    %7010 = vmatpush1.bf16.msra.mxu0 %v2275
    %7011 = vmatprep.mubr.bf16.mxu0 %v6849
    %7012 = vmatmul.mubr.bf16.gmra.mrb[0].mxu0 %v6848
    %v7013 = vpop.f32.mrb[0].mxu0
    %v7014 = vadd.f32 0.0, %v7013
    %v7015 = vpop.f32.mrb[0].mxu0
    %v7016 = vadd.f32 0.0, %v7015
    %v7017 = vpop.f32.mrb[0].mxu0
    %v7018 = vadd.f32 0.0, %v7017
    %v7019 = vpop.f32.mrb[0].mxu0
    %v7020 = vadd.f32 0.0, %v7019
    %7021 = vdwg.mxu0
    %7022 = vmatprep.subr.bf16.mxu0 %v2962
    %7023 = vmatpush1.bf16.msra.mxu0 %v2961
    %7024 = vmatprep.subr.bf16.mxu0 %v2970
    %7025 = vmatpush1.bf16.msra.mxu0 %v2969
    %7026 = vmatprep.subr.bf16.mxu0 %v2978
    %7027 = vmatpush1.bf16.msra.mxu0 %v2977
    %7028 = vmatprep.subr.bf16.mxu0 %v2986
    %7029 = vmatpush1.bf16.msra.mxu0 %v2985
    %7030 = vmatprep.subr.bf16.mxu0 %v2994
    %7031 = vmatpush1.bf16.msra.mxu0 %v2993
    %7032 = vmatprep.subr.bf16.mxu0 %v3002
    %7033 = vmatpush1.bf16.msra.mxu0 %v3001
    %7034 = vmatprep.subr.bf16.mxu0 %v3010
    %7035 = vmatpush1.bf16.msra.mxu0 %v3009
    %7036 = vmatprep.subr.bf16.mxu0 %v3018
    %7037 = vmatpush1.bf16.msra.mxu0 %v3017
    %7038 = vmatprep.subr.bf16.mxu0 %v3026
    %7039 = vmatpush1.bf16.msra.mxu0 %v3025
    %7040 = vmatprep.subr.bf16.mxu0 %v3034
    %7041 = vmatpush1.bf16.msra.mxu0 %v3033
    %7042 = vmatprep.subr.bf16.mxu0 %v3042
    %7043 = vmatpush1.bf16.msra.mxu0 %v3041
    %7044 = vmatprep.subr.bf16.mxu0 %v3050
    %7045 = vmatpush1.bf16.msra.mxu0 %v3049
    %7046 = vmatprep.subr.bf16.mxu0 %v3058
    %7047 = vmatpush1.bf16.msra.mxu0 %v3057
    %7048 = vmatprep.subr.bf16.mxu0 %v3066
    %7049 = vmatpush1.bf16.msra.mxu0 %v3065
    %7050 = vmatprep.subr.bf16.mxu0 %v3074
    %7051 = vmatpush1.bf16.msra.mxu0 %v3073
    %7052 = vmatprep.subr.bf16.mxu0 %v3082
    %7053 = vmatpush1.bf16.msra.mxu0 %v3081
    %7054 = vmatprep.mubr.bf16.mxu0 %v6563
    %7055 = vmatmul.mubr.bf16.gmra.mrb[0].mxu0 %v6562
    %v7056 = vpop.f32.mrb[0].mxu0
    %v7057 = vadd.f32 %v6885, %v7056
    %v7058 = vpop.f32.mrb[0].mxu0
    %v7059 = vadd.f32 %v6887, %v7058
    %v7060 = vpop.f32.mrb[0].mxu0
    %v7061 = vadd.f32 %v6889, %v7060
    %v7062 = vpop.f32.mrb[0].mxu0
    %v7063 = vadd.f32 %v6891, %v7062
    %7064 = vdwg.mxu0
    %7065 = vmatprep.subr.bf16.mxu0 %v2964
    %7066 = vmatpush1.bf16.msra.mxu0 %v2963
    %7067 = vmatprep.subr.bf16.mxu0 %v2972
    %7068 = vmatpush1.bf16.msra.mxu0 %v2971
    %7069 = vmatprep.subr.bf16.mxu0 %v2980
    %7070 = vmatpush1.bf16.msra.mxu0 %v2979
    %7071 = vmatprep.subr.bf16.mxu0 %v2988
    %7072 = vmatpush1.bf16.msra.mxu0 %v2987
    %7073 = vmatprep.subr.bf16.mxu0 %v2996
    %7074 = vmatpush1.bf16.msra.mxu0 %v2995
    %7075 = vmatprep.subr.bf16.mxu0 %v3004
    %7076 = vmatpush1.bf16.msra.mxu0 %v3003
    %7077 = vmatprep.subr.bf16.mxu0 %v3012
    %7078 = vmatpush1.bf16.msra.mxu0 %v3011
    %7079 = vmatprep.subr.bf16.mxu0 %v3020
    %7080 = vmatpush1.bf16.msra.mxu0 %v3019
    %7081 = vmatprep.subr.bf16.mxu0 %v3028
    %7082 = vmatpush1.bf16.msra.mxu0 %v3027
    %7083 = vmatprep.subr.bf16.mxu0 %v3036
    %7084 = vmatpush1.bf16.msra.mxu0 %v3035
    %7085 = vmatprep.subr.bf16.mxu0 %v3044
    %7086 = vmatpush1.bf16.msra.mxu0 %v3043
    %7087 = vmatprep.subr.bf16.mxu0 %v3052
    %7088 = vmatpush1.bf16.msra.mxu0 %v3051
    %7089 = vmatprep.subr.bf16.mxu0 %v3060
    %7090 = vmatpush1.bf16.msra.mxu0 %v3059
    %7091 = vmatprep.subr.bf16.mxu0 %v3068
    %7092 = vmatpush1.bf16.msra.mxu0 %v3067
    %7093 = vmatprep.subr.bf16.mxu0 %v3076
    %7094 = vmatpush1.bf16.msra.mxu0 %v3075
    %7095 = vmatprep.subr.bf16.mxu0 %v3084
    %7096 = vmatpush1.bf16.msra.mxu0 %v3083
    %7097 = vmatprep.mubr.bf16.mxu0 %v6563
    %7098 = vmatmul.mubr.bf16.gmra.mrb[0].mxu0 %v6562
    %v7099 = vpop.f32.mrb[0].mxu0
    %v7100 = vadd.f32 %v6928, %v7099
    %v7101 = vpop.f32.mrb[0].mxu0
    %v7102 = vadd.f32 %v6930, %v7101
    %v7103 = vpop.f32.mrb[0].mxu0
    %v7104 = vadd.f32 %v6932, %v7103
    %v7105 = vpop.f32.mrb[0].mxu0
    %v7106 = vadd.f32 %v6934, %v7105
    %7107 = vdwg.mxu0
    %7108 = vmatprep.subr.bf16.mxu0 %v2966
    %7109 = vmatpush1.bf16.msra.mxu0 %v2965
    %7110 = vmatprep.subr.bf16.mxu0 %v2974
    %7111 = vmatpush1.bf16.msra.mxu0 %v2973
    %7112 = vmatprep.subr.bf16.mxu0 %v2982
    %7113 = vmatpush1.bf16.msra.mxu0 %v2981
    %7114 = vmatprep.subr.bf16.mxu0 %v2990
    %7115 = vmatpush1.bf16.msra.mxu0 %v2989
    %7116 = vmatprep.subr.bf16.mxu0 %v2998
    %7117 = vmatpush1.bf16.msra.mxu0 %v2997
    %7118 = vmatprep.subr.bf16.mxu0 %v3006
    %7119 = vmatpush1.bf16.msra.mxu0 %v3005
    %7120 = vmatprep.subr.bf16.mxu0 %v3014
    %7121 = vmatpush1.bf16.msra.mxu0 %v3013
    %7122 = vmatprep.subr.bf16.mxu0 %v3022
    %7123 = vmatpush1.bf16.msra.mxu0 %v3021
    %7124 = vmatprep.subr.bf16.mxu0 %v3030
    %7125 = vmatpush1.bf16.msra.mxu0 %v3029
    %7126 = vmatprep.subr.bf16.mxu0 %v3038
    %7127 = vmatpush1.bf16.msra.mxu0 %v3037
    %7128 = vmatprep.subr.bf16.mxu0 %v3046
    %7129 = vmatpush1.bf16.msra.mxu0 %v3045
    %7130 = vmatprep.subr.bf16.mxu0 %v3054
    %7131 = vmatpush1.bf16.msra.mxu0 %v3053
    %7132 = vmatprep.subr.bf16.mxu0 %v3062
    %7133 = vmatpush1.bf16.msra.mxu0 %v3061
    %7134 = vmatprep.subr.bf16.mxu0 %v3070
    %7135 = vmatpush1.bf16.msra.mxu0 %v3069
    %7136 = vmatprep.subr.bf16.mxu0 %v3078
    %7137 = vmatpush1.bf16.msra.mxu0 %v3077
    %7138 = vmatprep.subr.bf16.mxu0 %v3086
    %7139 = vmatpush1.bf16.msra.mxu0 %v3085
    %7140 = vmatprep.mubr.bf16.mxu0 %v6563
    %7141 = vmatmul.mubr.bf16.gmra.mrb[0].mxu0 %v6562
    %v7142 = vpop.f32.mrb[0].mxu0
    %v7143 = vadd.f32 %v6971, %v7142
    %v7144 = vpop.f32.mrb[0].mxu0
    %v7145 = vadd.f32 %v6973, %v7144
    %v7146 = vpop.f32.mrb[0].mxu0
    %v7147 = vadd.f32 %v6975, %v7146
    %v7148 = vpop.f32.mrb[0].mxu0
    %v7149 = vadd.f32 %v6977, %v7148
    %7150 = vdwg.mxu0
    %7151 = vmatprep.subr.bf16.mxu0 %v2968
    %7152 = vmatpush1.bf16.msra.mxu0 %v2967
    %7153 = vmatprep.subr.bf16.mxu0 %v2976
    %7154 = vmatpush1.bf16.msra.mxu0 %v2975
    %7155 = vmatprep.subr.bf16.mxu0 %v2984
    %7156 = vmatpush1.bf16.msra.mxu0 %v2983
    %7157 = vmatprep.subr.bf16.mxu0 %v2992
    %7158 = vmatpush1.bf16.msra.mxu0 %v2991
    %7159 = vmatprep.subr.bf16.mxu0 %v3000
    %7160 = vmatpush1.bf16.msra.mxu0 %v2999
    %7161 = vmatprep.subr.bf16.mxu0 %v3008
    %7162 = vmatpush1.bf16.msra.mxu0 %v3007
    %7163 = vmatprep.subr.bf16.mxu0 %v3016
    %7164 = vmatpush1.bf16.msra.mxu0 %v3015
    %7165 = vmatprep.subr.bf16.mxu0 %v3024
    %7166 = vmatpush1.bf16.msra.mxu0 %v3023
    %7167 = vmatprep.subr.bf16.mxu0 %v3032
    %7168 = vmatpush1.bf16.msra.mxu0 %v3031
    %7169 = vmatprep.subr.bf16.mxu0 %v3040
    %7170 = vmatpush1.bf16.msra.mxu0 %v3039
    %7171 = vmatprep.subr.bf16.mxu0 %v3048
    %7172 = vmatpush1.bf16.msra.mxu0 %v3047
    %7173 = vmatprep.subr.bf16.mxu0 %v3056
    %7174 = vmatpush1.bf16.msra.mxu0 %v3055
    %7175 = vmatprep.subr.bf16.mxu0 %v3064
    %7176 = vmatpush1.bf16.msra.mxu0 %v3063
    %7177 = vmatprep.subr.bf16.mxu0 %v3072
    %7178 = vmatpush1.bf16.msra.mxu0 %v3071
    %7179 = vmatprep.subr.bf16.mxu0 %v3080
    %7180 = vmatpush1.bf16.msra.mxu0 %v3079
    %7181 = vmatprep.subr.bf16.mxu0 %v3088
    %7182 = vmatpush1.bf16.msra.mxu0 %v3087
    %7183 = vmatprep.mubr.bf16.mxu0 %v6563
    %7184 = vmatmul.mubr.bf16.gmra.mrb[0].mxu0 %v6562
    %v7185 = vpop.f32.mrb[0].mxu0
    %v7186 = vadd.f32 %v7014, %v7185
    %v7187 = vpop.f32.mrb[0].mxu0
    %v7188 = vadd.f32 %v7016, %v7187
    %v7189 = vpop.f32.mrb[0].mxu0
    %v7190 = vadd.f32 %v7018, %v7189
    %v7191 = vpop.f32.mrb[0].mxu0
    %v7192 = vadd.f32 %v7020, %v7191
    %7193 = vdwg.mxu0
    %v7194 = vadd.f32 %v7057, %v101
    %v7195 = vadd.f32 %v7059, %v105
    %v7196 = vadd.f32 %v7100, %v109
    %v7197 = vadd.f32 %v7102, %v113
    %v7198 = vadd.f32 %v7143, %v117
    %v7199 = vadd.f32 %v7145, %v121
    %v7200 = vadd.f32 %v7186, %v125
    %v7201 = vadd.f32 %v7188, %v129
    %v7202 = vadd.f32 %v7061, %v101
    %v7203 = vadd.f32 %v7063, %v105
    %v7204 = vadd.f32 %v7104, %v109
    %v7205 = vadd.f32 %v7106, %v113
    %v7206 = vadd.f32 %v7147, %v117
    %v7207 = vadd.f32 %v7149, %v121
    %v7208 = vadd.f32 %v7190, %v125
    %v7209 = vadd.f32 %v7192, %v129
    %v7210 = vxor.u32 %v7194, 2147483648
    %v7211 = vxor.u32 %v7195, 2147483648
    %v7212 = vxor.u32 %v7202, 2147483648
    %v7213 = vxor.u32 %v7203, 2147483648
    %v7214 = vmul.f32 %v7210, 1.442695
    %v7215 = vpow.pop %v7214
    %v7216 = vmul.f32 %v7211, 1.442695
    %v7217 = vpow.pop %v7216
    %v7218 = vmul.f32 %v7212, 1.442695
    %v7219 = vpow.pop %v7218
    %v7220 = vmul.f32 %v7213, 1.442695
    %v7221 = vpow.pop %v7220
    %v7222 = vadd.f32 %v7215, 1.0
    %v7223 = vadd.f32 %v7217, 1.0
    %v7224 = vadd.f32 %v7219, 1.0
    %v7225 = vadd.f32 %v7221, 1.0
    %v7226 = vrcp.pop %v7222
    %v7227 = vmul.f32 1.0, %v7226
    %v7228 = vrcp.pop %v7223
    %v7229 = vmul.f32 1.0, %v7228
    %v7230 = vrcp.pop %v7224
    %v7231 = vmul.f32 1.0, %v7230
    %v7232 = vrcp.pop %v7225
    %v7233 = vmul.f32 1.0, %v7232
    %v7234 = vxor.u32 %v7196, 2147483648
    %v7235 = vxor.u32 %v7197, 2147483648
    %v7236 = vxor.u32 %v7204, 2147483648
    %v7237 = vxor.u32 %v7205, 2147483648
    %v7238 = vmul.f32 %v7234, 1.442695
    %v7239 = vpow.pop %v7238
    %v7240 = vmul.f32 %v7235, 1.442695
    %v7241 = vpow.pop %v7240
    %v7242 = vmul.f32 %v7236, 1.442695
    %v7243 = vpow.pop %v7242
    %v7244 = vmul.f32 %v7237, 1.442695
    %v7245 = vpow.pop %v7244
    %v7246 = vadd.f32 %v7239, 1.0
    %v7247 = vadd.f32 %v7241, 1.0
    %v7248 = vadd.f32 %v7243, 1.0
    %v7249 = vadd.f32 %v7245, 1.0
    %v7250 = vrcp.pop %v7246
    %v7251 = vmul.f32 1.0, %v7250
    %v7252 = vrcp.pop %v7247
    %v7253 = vmul.f32 1.0, %v7252
    %v7254 = vrcp.pop %v7248
    %v7255 = vmul.f32 1.0, %v7254
    %v7256 = vrcp.pop %v7249
    %v7257 = vmul.f32 1.0, %v7256
    %v7258 = vtanh.pop %v7198
    %v7259 = vtanh.pop %v7199
    %v7260 = vtanh.pop %v7206
    %v7261 = vtanh.pop %v7207
    %v7262 = vxor.u32 %v7200, 2147483648
    %v7263 = vxor.u32 %v7201, 2147483648
    %v7264 = vxor.u32 %v7208, 2147483648
    %v7265 = vxor.u32 %v7209, 2147483648
    %v7266 = vmul.f32 %v7262, 1.442695
    %v7267 = vpow.pop %v7266
    %v7268 = vmul.f32 %v7263, 1.442695
    %v7269 = vpow.pop %v7268
    %v7270 = vmul.f32 %v7264, 1.442695
    %v7271 = vpow.pop %v7270
    %v7272 = vmul.f32 %v7265, 1.442695
    %v7273 = vpow.pop %v7272
    %v7274 = vadd.f32 %v7267, 1.0
    %v7275 = vadd.f32 %v7269, 1.0
    %v7276 = vadd.f32 %v7271, 1.0
    %v7277 = vadd.f32 %v7273, 1.0
    %v7278 = vrcp.pop %v7274
    %v7279 = vmul.f32 1.0, %v7278
    %v7280 = vrcp.pop %v7275
    %v7281 = vmul.f32 1.0, %v7280
    %v7282 = vrcp.pop %v7276
    %v7283 = vmul.f32 1.0, %v7282
    %v7284 = vrcp.pop %v7277
    %v7285 = vmul.f32 1.0, %v7284
    %v7286 = vmul.f32 %v7251, %v6533
    %v7287 = vmul.f32 %v7253, %v6534
    %v7288 = vmul.f32 %v7255, %v6535
    %v7289 = vmul.f32 %v7257, %v6536
    %v7290 = vmul.f32 %v7227, %v7258
    %v7291 = vmul.f32 %v7229, %v7259
    %v7292 = vmul.f32 %v7231, %v7260
    %v7293 = vmul.f32 %v7233, %v7261
    %v7294 = vadd.f32 %v7286, %v7290
    %v7295 = vadd.f32 %v7287, %v7291
    %v7296 = vadd.f32 %v7288, %v7292
    %v7297 = vadd.f32 %v7289, %v7293
    %v7298 = vtanh.pop %v7294
    %v7299 = vtanh.pop %v7295
    %v7300 = vtanh.pop %v7296
    %v7301 = vtanh.pop %v7297
    %v7302 = vmul.f32 %v7279, %v7298
    %v7303 = vmul.f32 %v7281, %v7299
    %v7304 = vmul.f32 %v7283, %v7300
    %v7305 = vmul.f32 %v7285, %v7301
    %s7306 = scalar_lea.vmem [#allocation2], 896
    %v7307 = vld [vmem:[%s7306] sm:$0xff]
    %v7308 = vld [vmem:[%s7306 + $0x8] sm:$0xff]
    %v7309 = vld [vmem:[%s7306 + $0x10] sm:$0xff]
    %v7310 = vld [vmem:[%s7306 + $0x18] sm:$0xff]
    %v7311 = vld [vmem:[%s7306 + $0x20] sm:$0xff]
    %v7312 = vld [vmem:[%s7306 + $0x28] sm:$0xff]
    %v7313 = vld [vmem:[%s7306 + $0x30] sm:$0xff]
    %v7314 = vld [vmem:[%s7306 + $0x38] sm:$0xff]
    %v7315 = vld [vmem:[%s7306 + $0x40] sm:$0xff]
    %v7316 = vld [vmem:[%s7306 + $0x48] sm:$0xff]
    %v7317 = vld [vmem:[%s7306 + $0x50] sm:$0xff]
    %v7318 = vld [vmem:[%s7306 + $0x58] sm:$0xff]
    %v7319 = vld [vmem:[%s7306 + $0x60] sm:$0xff]
    %v7320 = vld [vmem:[%s7306 + $0x68] sm:$0xff]
    %v7321 = vld [vmem:[%s7306 + $0x70] sm:$0xff]
    %v7322 = vld [vmem:[%s7306 + $0x78] sm:$0xff]
    %v7323 = vpack.c.bf16 %v6846, %v6844
    %v7324 = vpack.c.bf16 %v6847, %v6845
    %7325 = vmatprep.subr.bf16.mxu0 %v667
    %7326 = vmatpush1.bf16.msra.mxu0 %v666
    %7327 = vmatprep.subr.bf16.mxu0 %v675
    %7328 = vmatpush1.bf16.msra.mxu0 %v674
    %7329 = vmatprep.subr.bf16.mxu0 %v683
    %7330 = vmatpush1.bf16.msra.mxu0 %v682
    %7331 = vmatprep.subr.bf16.mxu0 %v691
    %7332 = vmatpush1.bf16.msra.mxu0 %v690
    %7333 = vmatprep.subr.bf16.mxu0 %v699
    %7334 = vmatpush1.bf16.msra.mxu0 %v698
    %7335 = vmatprep.subr.bf16.mxu0 %v707
    %7336 = vmatpush1.bf16.msra.mxu0 %v706
    %7337 = vmatprep.subr.bf16.mxu0 %v715
    %7338 = vmatpush1.bf16.msra.mxu0 %v714
    %7339 = vmatprep.subr.bf16.mxu0 %v723
    %7340 = vmatpush1.bf16.msra.mxu0 %v722
    %7341 = vmatprep.subr.bf16.mxu0 %v731
    %7342 = vmatpush1.bf16.msra.mxu0 %v730
    %7343 = vmatprep.subr.bf16.mxu0 %v739
    %7344 = vmatpush1.bf16.msra.mxu0 %v738
    %7345 = vmatprep.subr.bf16.mxu0 %v747
    %7346 = vmatpush1.bf16.msra.mxu0 %v746
    %7347 = vmatprep.subr.bf16.mxu0 %v755
    %7348 = vmatpush1.bf16.msra.mxu0 %v754
    %7349 = vmatprep.subr.bf16.mxu0 %v763
    %7350 = vmatpush1.bf16.msra.mxu0 %v762
    %7351 = vmatprep.subr.bf16.mxu0 %v771
    %7352 = vmatpush1.bf16.msra.mxu0 %v770
    %7353 = vmatprep.subr.bf16.mxu0 %v779
    %7354 = vmatpush1.bf16.msra.mxu0 %v778
    %7355 = vmatprep.subr.bf16.mxu0 %v787
    %7356 = vmatpush1.bf16.msra.mxu0 %v786
    %7357 = vmatprep.mubr.bf16.mxu0 %v7324
    %7358 = vmatmul.mubr.bf16.gmra.mrb[0].mxu0 %v7323
    %v7359 = vpop.f32.mrb[0].mxu0
    %v7360 = vadd.f32 0.0, %v7359
    %v7361 = vpop.f32.mrb[0].mxu0
    %v7362 = vadd.f32 0.0, %v7361
    %v7363 = vpop.f32.mrb[0].mxu0
    %v7364 = vadd.f32 0.0, %v7363
    %v7365 = vpop.f32.mrb[0].mxu0
    %v7366 = vadd.f32 0.0, %v7365
    %7367 = vdwg.mxu0
    %7368 = vmatprep.subr.bf16.mxu0 %v669
    %7369 = vmatpush1.bf16.msra.mxu0 %v668
    %7370 = vmatprep.subr.bf16.mxu0 %v677
    %7371 = vmatpush1.bf16.msra.mxu0 %v676
    %7372 = vmatprep.subr.bf16.mxu0 %v685
    %7373 = vmatpush1.bf16.msra.mxu0 %v684
    %7374 = vmatprep.subr.bf16.mxu0 %v693
    %7375 = vmatpush1.bf16.msra.mxu0 %v692
    %7376 = vmatprep.subr.bf16.mxu0 %v701
    %7377 = vmatpush1.bf16.msra.mxu0 %v700
    %7378 = vmatprep.subr.bf16.mxu0 %v709
    %7379 = vmatpush1.bf16.msra.mxu0 %v708
    %7380 = vmatprep.subr.bf16.mxu0 %v717
    %7381 = vmatpush1.bf16.msra.mxu0 %v716
    %7382 = vmatprep.subr.bf16.mxu0 %v725
    %7383 = vmatpush1.bf16.msra.mxu0 %v724
    %7384 = vmatprep.subr.bf16.mxu0 %v733
    %7385 = vmatpush1.bf16.msra.mxu0 %v732
    %7386 = vmatprep.subr.bf16.mxu0 %v741
    %7387 = vmatpush1.bf16.msra.mxu0 %v740
    %7388 = vmatprep.subr.bf16.mxu0 %v749
    %7389 = vmatpush1.bf16.msra.mxu0 %v748
    %7390 = vmatprep.subr.bf16.mxu0 %v757
    %7391 = vmatpush1.bf16.msra.mxu0 %v756
    %7392 = vmatprep.subr.bf16.mxu0 %v765
    %7393 = vmatpush1.bf16.msra.mxu0 %v764
    %7394 = vmatprep.subr.bf16.mxu0 %v773
    %7395 = vmatpush1.bf16.msra.mxu0 %v772
    %7396 = vmatprep.subr.bf16.mxu0 %v781
    %7397 = vmatpush1.bf16.msra.mxu0 %v780
    %7398 = vmatprep.subr.bf16.mxu0 %v789
    %7399 = vmatpush1.bf16.msra.mxu0 %v788
    %7400 = vmatprep.mubr.bf16.mxu0 %v7324
    %7401 = vmatmul.mubr.bf16.gmra.mrb[0].mxu0 %v7323
    %v7402 = vpop.f32.mrb[0].mxu0
    %v7403 = vadd.f32 0.0, %v7402
    %v7404 = vpop.f32.mrb[0].mxu0
    %v7405 = vadd.f32 0.0, %v7404
    %v7406 = vpop.f32.mrb[0].mxu0
    %v7407 = vadd.f32 0.0, %v7406
    %v7408 = vpop.f32.mrb[0].mxu0
    %v7409 = vadd.f32 0.0, %v7408
    %7410 = vdwg.mxu0
    %7411 = vmatprep.subr.bf16.mxu0 %v671
    %7412 = vmatpush1.bf16.msra.mxu0 %v670
    %7413 = vmatprep.subr.bf16.mxu0 %v679
    %7414 = vmatpush1.bf16.msra.mxu0 %v678
    %7415 = vmatprep.subr.bf16.mxu0 %v687
    %7416 = vmatpush1.bf16.msra.mxu0 %v686
    %7417 = vmatprep.subr.bf16.mxu0 %v695
    %7418 = vmatpush1.bf16.msra.mxu0 %v694
    %7419 = vmatprep.subr.bf16.mxu0 %v703
    %7420 = vmatpush1.bf16.msra.mxu0 %v702
    %7421 = vmatprep.subr.bf16.mxu0 %v711
    %7422 = vmatpush1.bf16.msra.mxu0 %v710
    %7423 = vmatprep.subr.bf16.mxu0 %v719
    %7424 = vmatpush1.bf16.msra.mxu0 %v718
    %7425 = vmatprep.subr.bf16.mxu0 %v727
    %7426 = vmatpush1.bf16.msra.mxu0 %v726
    %7427 = vmatprep.subr.bf16.mxu0 %v735
    %7428 = vmatpush1.bf16.msra.mxu0 %v734
    %7429 = vmatprep.subr.bf16.mxu0 %v743
    %7430 = vmatpush1.bf16.msra.mxu0 %v742
    %7431 = vmatprep.subr.bf16.mxu0 %v751
    %7432 = vmatpush1.bf16.msra.mxu0 %v750
    %7433 = vmatprep.subr.bf16.mxu0 %v759
    %7434 = vmatpush1.bf16.msra.mxu0 %v758
    %7435 = vmatprep.subr.bf16.mxu0 %v767
    %7436 = vmatpush1.bf16.msra.mxu0 %v766
    %7437 = vmatprep.subr.bf16.mxu0 %v775
    %7438 = vmatpush1.bf16.msra.mxu0 %v774
    %7439 = vmatprep.subr.bf16.mxu0 %v783
    %7440 = vmatpush1.bf16.msra.mxu0 %v782
    %7441 = vmatprep.subr.bf16.mxu0 %v791
    %7442 = vmatpush1.bf16.msra.mxu0 %v790
    %7443 = vmatprep.mubr.bf16.mxu0 %v7324
    %7444 = vmatmul.mubr.bf16.gmra.mrb[0].mxu0 %v7323
    %v7445 = vpop.f32.mrb[0].mxu0
    %v7446 = vadd.f32 0.0, %v7445
    %v7447 = vpop.f32.mrb[0].mxu0
    %v7448 = vadd.f32 0.0, %v7447
    %v7449 = vpop.f32.mrb[0].mxu0
    %v7450 = vadd.f32 0.0, %v7449
    %v7451 = vpop.f32.mrb[0].mxu0
    %v7452 = vadd.f32 0.0, %v7451
    %7453 = vdwg.mxu0
    %7454 = vmatprep.subr.bf16.mxu0 %v673
    %7455 = vmatpush1.bf16.msra.mxu0 %v672
    %7456 = vmatprep.subr.bf16.mxu0 %v681
    %7457 = vmatpush1.bf16.msra.mxu0 %v680
    %7458 = vmatprep.subr.bf16.mxu0 %v689
    %7459 = vmatpush1.bf16.msra.mxu0 %v688
    %7460 = vmatprep.subr.bf16.mxu0 %v697
    %7461 = vmatpush1.bf16.msra.mxu0 %v696
    %7462 = vmatprep.subr.bf16.mxu0 %v705
    %7463 = vmatpush1.bf16.msra.mxu0 %v704
    %7464 = vmatprep.subr.bf16.mxu0 %v713
    %7465 = vmatpush1.bf16.msra.mxu0 %v712
    %7466 = vmatprep.subr.bf16.mxu0 %v721
    %7467 = vmatpush1.bf16.msra.mxu0 %v720
    %7468 = vmatprep.subr.bf16.mxu0 %v729
    %7469 = vmatpush1.bf16.msra.mxu0 %v728
    %7470 = vmatprep.subr.bf16.mxu0 %v737
    %7471 = vmatpush1.bf16.msra.mxu0 %v736
    %7472 = vmatprep.subr.bf16.mxu0 %v745
    %7473 = vmatpush1.bf16.msra.mxu0 %v744
    %7474 = vmatprep.subr.bf16.mxu0 %v753
    %7475 = vmatpush1.bf16.msra.mxu0 %v752
    %7476 = vmatprep.subr.bf16.mxu0 %v761
    %7477 = vmatpush1.bf16.msra.mxu0 %v760
    %7478 = vmatprep.subr.bf16.mxu0 %v769
    %7479 = vmatpush1.bf16.msra.mxu0 %v768
    %7480 = vmatprep.subr.bf16.mxu0 %v777
    %7481 = vmatpush1.bf16.msra.mxu0 %v776
    %7482 = vmatprep.subr.bf16.mxu0 %v785
    %7483 = vmatpush1.bf16.msra.mxu0 %v784
    %7484 = vmatprep.subr.bf16.mxu0 %v793
    %7485 = vmatpush1.bf16.msra.mxu0 %v792
    %7486 = vmatprep.mubr.bf16.mxu0 %v7324
    %7487 = vmatmul.mubr.bf16.gmra.mrb[0].mxu0 %v7323
    %v7488 = vpop.f32.mrb[0].mxu0
    %v7489 = vadd.f32 0.0, %v7488
    %v7490 = vpop.f32.mrb[0].mxu0
    %v7491 = vadd.f32 0.0, %v7490
    %v7492 = vpop.f32.mrb[0].mxu0
    %v7493 = vadd.f32 0.0, %v7492
    %v7494 = vpop.f32.mrb[0].mxu0
    %v7495 = vadd.f32 0.0, %v7494
    %7496 = vdwg.mxu0
    %v7497 = vadd.f32 %v7307, %v7360
    %v7498 = vadd.f32 %v7308, %v7362
    %v7499 = vadd.f32 %v7309, %v7403
    %v7500 = vadd.f32 %v7310, %v7405
    %v7501 = vadd.f32 %v7311, %v7446
    %v7502 = vadd.f32 %v7312, %v7448
    %v7503 = vadd.f32 %v7313, %v7489
    %v7504 = vadd.f32 %v7314, %v7491
    %v7505 = vadd.f32 %v7315, %v7364
    %v7506 = vadd.f32 %v7316, %v7366
    %v7507 = vadd.f32 %v7317, %v7407
    %v7508 = vadd.f32 %v7318, %v7409
    %v7509 = vadd.f32 %v7319, %v7450
    %v7510 = vadd.f32 %v7320, %v7452
    %v7511 = vadd.f32 %v7321, %v7493
    %v7512 = vadd.f32 %v7322, %v7495
    %v7513 = vxor.u32 %v7497, 2147483648
    %v7514 = vxor.u32 %v7498, 2147483648
    %v7515 = vxor.u32 %v7505, 2147483648
    %v7516 = vxor.u32 %v7506, 2147483648
    %v7517 = vmul.f32 %v7513, 1.442695
    %v7518 = vpow.pop %v7517
    %v7519 = vmul.f32 %v7514, 1.442695
    %v7520 = vpow.pop %v7519
    %v7521 = vmul.f32 %v7515, 1.442695
    %v7522 = vpow.pop %v7521
    %v7523 = vmul.f32 %v7516, 1.442695
    %v7524 = vpow.pop %v7523
    %v7525 = vadd.f32 %v7518, 1.0
    %v7526 = vadd.f32 %v7520, 1.0
    %v7527 = vadd.f32 %v7522, 1.0
    %v7528 = vadd.f32 %v7524, 1.0
    %v7529 = vrcp.pop %v7525
    %v7530 = vmul.f32 1.0, %v7529
    %v7531 = vrcp.pop %v7526
    %v7532 = vmul.f32 1.0, %v7531
    %v7533 = vrcp.pop %v7527
    %v7534 = vmul.f32 1.0, %v7533
    %v7535 = vrcp.pop %v7528
    %v7536 = vmul.f32 1.0, %v7535
    %v7537 = vxor.u32 %v7499, 2147483648
    %v7538 = vxor.u32 %v7500, 2147483648
    %v7539 = vxor.u32 %v7507, 2147483648
    %v7540 = vxor.u32 %v7508, 2147483648
    %v7541 = vmul.f32 %v7537, 1.442695
    %v7542 = vpow.pop %v7541
    %v7543 = vmul.f32 %v7538, 1.442695
    %v7544 = vpow.pop %v7543
    %v7545 = vmul.f32 %v7539, 1.442695
    %v7546 = vpow.pop %v7545
    %v7547 = vmul.f32 %v7540, 1.442695
    %v7548 = vpow.pop %v7547
    %v7549 = vadd.f32 %v7542, 1.0
    %v7550 = vadd.f32 %v7544, 1.0
    %v7551 = vadd.f32 %v7546, 1.0
    %v7552 = vadd.f32 %v7548, 1.0
    %v7553 = vrcp.pop %v7549
    %v7554 = vmul.f32 1.0, %v7553
    %v7555 = vrcp.pop %v7550
    %v7556 = vmul.f32 1.0, %v7555
    %v7557 = vrcp.pop %v7551
    %v7558 = vmul.f32 1.0, %v7557
    %v7559 = vrcp.pop %v7552
    %v7560 = vmul.f32 1.0, %v7559
    %v7561 = vtanh.pop %v7501
    %v7562 = vtanh.pop %v7502
    %v7563 = vtanh.pop %v7509
    %v7564 = vtanh.pop %v7510
    %v7565 = vxor.u32 %v7503, 2147483648
    %v7566 = vxor.u32 %v7504, 2147483648
    %v7567 = vxor.u32 %v7511, 2147483648
    %v7568 = vxor.u32 %v7512, 2147483648
    %v7569 = vmul.f32 %v7565, 1.442695
    %v7570 = vpow.pop %v7569
    %v7571 = vmul.f32 %v7566, 1.442695
    %v7572 = vpow.pop %v7571
    %v7573 = vmul.f32 %v7567, 1.442695
    %v7574 = vpow.pop %v7573
    %v7575 = vmul.f32 %v7568, 1.442695
    %v7576 = vpow.pop %v7575
    %v7577 = vadd.f32 %v7570, 1.0
    %v7578 = vadd.f32 %v7572, 1.0
    %v7579 = vadd.f32 %v7574, 1.0
    %v7580 = vadd.f32 %v7576, 1.0
    %v7581 = vrcp.pop %v7577
    %v7582 = vmul.f32 1.0, %v7581
    %v7583 = vrcp.pop %v7578
    %v7584 = vmul.f32 1.0, %v7583
    %v7585 = vrcp.pop %v7579
    %v7586 = vmul.f32 1.0, %v7585
    %v7587 = vrcp.pop %v7580
    %v7588 = vmul.f32 1.0, %v7587
    %v7589 = vmul.f32 %v7554, %v6836
    %v7590 = vmul.f32 %v7556, %v6837
    %v7591 = vmul.f32 %v7558, %v6838
    %v7592 = vmul.f32 %v7560, %v6839
    %v7593 = vmul.f32 %v7530, %v7561
    %v7594 = vmul.f32 %v7532, %v7562
    %v7595 = vmul.f32 %v7534, %v7563
    %v7596 = vmul.f32 %v7536, %v7564
    %v7597 = vadd.f32 %v7589, %v7593
    %v7598 = vadd.f32 %v7590, %v7594
    %v7599 = vadd.f32 %v7591, %v7595
    %v7600 = vadd.f32 %v7592, %v7596
    %v7601 = vtanh.pop %v7597
    %v7602 = vtanh.pop %v7598
    %v7603 = vtanh.pop %v7599
    %v7604 = vtanh.pop %v7600
    %v7605 = vmul.f32 %v7582, %v7601
    %v7606 = vmul.f32 %v7584, %v7602
    %v7607 = vmul.f32 %v7586, %v7603
    %v7608 = vmul.f32 %v7588, %v7604
    %v7609 = vpack.c.bf16 %v7304, %v7302
    %v7610 = vpack.c.bf16 %v7305, %v7303
    %7611 = vmatprep.subr.bf16.mxu0 %v2150
    %7612 = vmatpush1.bf16.msra.mxu0 %v2149
    %7613 = vmatprep.subr.bf16.mxu0 %v2158
    %7614 = vmatpush1.bf16.msra.mxu0 %v2157
    %7615 = vmatprep.subr.bf16.mxu0 %v2166
    %7616 = vmatpush1.bf16.msra.mxu0 %v2165
    %7617 = vmatprep.subr.bf16.mxu0 %v2174
    %7618 = vmatpush1.bf16.msra.mxu0 %v2173
    %7619 = vmatprep.subr.bf16.mxu0 %v2182
    %7620 = vmatpush1.bf16.msra.mxu0 %v2181
    %7621 = vmatprep.subr.bf16.mxu0 %v2190
    %7622 = vmatpush1.bf16.msra.mxu0 %v2189
    %7623 = vmatprep.subr.bf16.mxu0 %v2198
    %7624 = vmatpush1.bf16.msra.mxu0 %v2197
    %7625 = vmatprep.subr.bf16.mxu0 %v2206
    %7626 = vmatpush1.bf16.msra.mxu0 %v2205
    %7627 = vmatprep.subr.bf16.mxu0 %v2214
    %7628 = vmatpush1.bf16.msra.mxu0 %v2213
    %7629 = vmatprep.subr.bf16.mxu0 %v2222
    %7630 = vmatpush1.bf16.msra.mxu0 %v2221
    %7631 = vmatprep.subr.bf16.mxu0 %v2230
    %7632 = vmatpush1.bf16.msra.mxu0 %v2229
    %7633 = vmatprep.subr.bf16.mxu0 %v2238
    %7634 = vmatpush1.bf16.msra.mxu0 %v2237
    %7635 = vmatprep.subr.bf16.mxu0 %v2246
    %7636 = vmatpush1.bf16.msra.mxu0 %v2245
    %7637 = vmatprep.subr.bf16.mxu0 %v2254
    %7638 = vmatpush1.bf16.msra.mxu0 %v2253
    %7639 = vmatprep.subr.bf16.mxu0 %v2262
    %7640 = vmatpush1.bf16.msra.mxu0 %v2261
    %7641 = vmatprep.subr.bf16.mxu0 %v2270
    %7642 = vmatpush1.bf16.msra.mxu0 %v2269
    %7643 = vmatprep.mubr.bf16.mxu0 %v7610
    %7644 = vmatmul.mubr.bf16.gmra.mrb[0].mxu0 %v7609
    %v7645 = vpop.f32.mrb[0].mxu0
    %v7646 = vadd.f32 0.0, %v7645
    %v7647 = vpop.f32.mrb[0].mxu0
    %v7648 = vadd.f32 0.0, %v7647
    %v7649 = vpop.f32.mrb[0].mxu0
    %v7650 = vadd.f32 0.0, %v7649
    %v7651 = vpop.f32.mrb[0].mxu0
    %v7652 = vadd.f32 0.0, %v7651
    %7653 = vdwg.mxu0
    %7654 = vmatprep.subr.bf16.mxu0 %v2152
    %7655 = vmatpush1.bf16.msra.mxu0 %v2151
    %7656 = vmatprep.subr.bf16.mxu0 %v2160
    %7657 = vmatpush1.bf16.msra.mxu0 %v2159
    %7658 = vmatprep.subr.bf16.mxu0 %v2168
    %7659 = vmatpush1.bf16.msra.mxu0 %v2167
    %7660 = vmatprep.subr.bf16.mxu0 %v2176
    %7661 = vmatpush1.bf16.msra.mxu0 %v2175
    %7662 = vmatprep.subr.bf16.mxu0 %v2184
    %7663 = vmatpush1.bf16.msra.mxu0 %v2183
    %7664 = vmatprep.subr.bf16.mxu0 %v2192
    %7665 = vmatpush1.bf16.msra.mxu0 %v2191
    %7666 = vmatprep.subr.bf16.mxu0 %v2200
    %7667 = vmatpush1.bf16.msra.mxu0 %v2199
    %7668 = vmatprep.subr.bf16.mxu0 %v2208
    %7669 = vmatpush1.bf16.msra.mxu0 %v2207
    %7670 = vmatprep.subr.bf16.mxu0 %v2216
    %7671 = vmatpush1.bf16.msra.mxu0 %v2215
    %7672 = vmatprep.subr.bf16.mxu0 %v2224
    %7673 = vmatpush1.bf16.msra.mxu0 %v2223
    %7674 = vmatprep.subr.bf16.mxu0 %v2232
    %7675 = vmatpush1.bf16.msra.mxu0 %v2231
    %7676 = vmatprep.subr.bf16.mxu0 %v2240
    %7677 = vmatpush1.bf16.msra.mxu0 %v2239
    %7678 = vmatprep.subr.bf16.mxu0 %v2248
    %7679 = vmatpush1.bf16.msra.mxu0 %v2247
    %7680 = vmatprep.subr.bf16.mxu0 %v2256
    %7681 = vmatpush1.bf16.msra.mxu0 %v2255
    %7682 = vmatprep.subr.bf16.mxu0 %v2264
    %7683 = vmatpush1.bf16.msra.mxu0 %v2263
    %7684 = vmatprep.subr.bf16.mxu0 %v2272
    %7685 = vmatpush1.bf16.msra.mxu0 %v2271
    %7686 = vmatprep.mubr.bf16.mxu0 %v7610
    %7687 = vmatmul.mubr.bf16.gmra.mrb[0].mxu0 %v7609
    %v7688 = vpop.f32.mrb[0].mxu0
    %v7689 = vadd.f32 0.0, %v7688
    %v7690 = vpop.f32.mrb[0].mxu0
    %v7691 = vadd.f32 0.0, %v7690
    %v7692 = vpop.f32.mrb[0].mxu0
    %v7693 = vadd.f32 0.0, %v7692
    %v7694 = vpop.f32.mrb[0].mxu0
    %v7695 = vadd.f32 0.0, %v7694
    %7696 = vdwg.mxu0
    %7697 = vmatprep.subr.bf16.mxu0 %v2154
    %7698 = vmatpush1.bf16.msra.mxu0 %v2153
    %7699 = vmatprep.subr.bf16.mxu0 %v2162
    %7700 = vmatpush1.bf16.msra.mxu0 %v2161
    %7701 = vmatprep.subr.bf16.mxu0 %v2170
    %7702 = vmatpush1.bf16.msra.mxu0 %v2169
    %7703 = vmatprep.subr.bf16.mxu0 %v2178
    %7704 = vmatpush1.bf16.msra.mxu0 %v2177
    %7705 = vmatprep.subr.bf16.mxu0 %v2186
    %7706 = vmatpush1.bf16.msra.mxu0 %v2185
    %7707 = vmatprep.subr.bf16.mxu0 %v2194
    %7708 = vmatpush1.bf16.msra.mxu0 %v2193
    %7709 = vmatprep.subr.bf16.mxu0 %v2202
    %7710 = vmatpush1.bf16.msra.mxu0 %v2201
    %7711 = vmatprep.subr.bf16.mxu0 %v2210
    %7712 = vmatpush1.bf16.msra.mxu0 %v2209
    %7713 = vmatprep.subr.bf16.mxu0 %v2218
    %7714 = vmatpush1.bf16.msra.mxu0 %v2217
    %7715 = vmatprep.subr.bf16.mxu0 %v2226
    %7716 = vmatpush1.bf16.msra.mxu0 %v2225
    %7717 = vmatprep.subr.bf16.mxu0 %v2234
    %7718 = vmatpush1.bf16.msra.mxu0 %v2233
    %7719 = vmatprep.subr.bf16.mxu0 %v2242
    %7720 = vmatpush1.bf16.msra.mxu0 %v2241
    %7721 = vmatprep.subr.bf16.mxu0 %v2250
    %7722 = vmatpush1.bf16.msra.mxu0 %v2249
    %7723 = vmatprep.subr.bf16.mxu0 %v2258
    %7724 = vmatpush1.bf16.msra.mxu0 %v2257
    %7725 = vmatprep.subr.bf16.mxu0 %v2266
    %7726 = vmatpush1.bf16.msra.mxu0 %v2265
    %7727 = vmatprep.subr.bf16.mxu0 %v2274
    %7728 = vmatpush1.bf16.msra.mxu0 %v2273
    %7729 = vmatprep.mubr.bf16.mxu0 %v7610
    %7730 = vmatmul.mubr.bf16.gmra.mrb[0].mxu0 %v7609
    %v7731 = vpop.f32.mrb[0].mxu0
    %v7732 = vadd.f32 0.0, %v7731
    %v7733 = vpop.f32.mrb[0].mxu0
    %v7734 = vadd.f32 0.0, %v7733
    %v7735 = vpop.f32.mrb[0].mxu0
    %v7736 = vadd.f32 0.0, %v7735
    %v7737 = vpop.f32.mrb[0].mxu0
    %v7738 = vadd.f32 0.0, %v7737
    %7739 = vdwg.mxu0
    %7740 = vmatprep.subr.bf16.mxu0 %v2156
    %7741 = vmatpush1.bf16.msra.mxu0 %v2155
    %7742 = vmatprep.subr.bf16.mxu0 %v2164
    %7743 = vmatpush1.bf16.msra.mxu0 %v2163
    %7744 = vmatprep.subr.bf16.mxu0 %v2172
    %7745 = vmatpush1.bf16.msra.mxu0 %v2171
    %7746 = vmatprep.subr.bf16.mxu0 %v2180
    %7747 = vmatpush1.bf16.msra.mxu0 %v2179
    %7748 = vmatprep.subr.bf16.mxu0 %v2188
    %7749 = vmatpush1.bf16.msra.mxu0 %v2187
    %7750 = vmatprep.subr.bf16.mxu0 %v2196
    %7751 = vmatpush1.bf16.msra.mxu0 %v2195
    %7752 = vmatprep.subr.bf16.mxu0 %v2204
    %7753 = vmatpush1.bf16.msra.mxu0 %v2203
    %7754 = vmatprep.subr.bf16.mxu0 %v2212
    %7755 = vmatpush1.bf16.msra.mxu0 %v2211
    %7756 = vmatprep.subr.bf16.mxu0 %v2220
    %7757 = vmatpush1.bf16.msra.mxu0 %v2219
    %7758 = vmatprep.subr.bf16.mxu0 %v2228
    %7759 = vmatpush1.bf16.msra.mxu0 %v2227
    %7760 = vmatprep.subr.bf16.mxu0 %v2236
    %7761 = vmatpush1.bf16.msra.mxu0 %v2235
    %7762 = vmatprep.subr.bf16.mxu0 %v2244
    %7763 = vmatpush1.bf16.msra.mxu0 %v2243
    %7764 = vmatprep.subr.bf16.mxu0 %v2252
    %7765 = vmatpush1.bf16.msra.mxu0 %v2251
    %7766 = vmatprep.subr.bf16.mxu0 %v2260
    %7767 = vmatpush1.bf16.msra.mxu0 %v2259
    %7768 = vmatprep.subr.bf16.mxu0 %v2268
    %7769 = vmatpush1.bf16.msra.mxu0 %v2267
    %7770 = vmatprep.subr.bf16.mxu0 %v2276
    %7771 = vmatpush1.bf16.msra.mxu0 %v2275
    %7772 = vmatprep.mubr.bf16.mxu0 %v7610
    %7773 = vmatmul.mubr.bf16.gmra.mrb[0].mxu0 %v7609
    %v7774 = vpop.f32.mrb[0].mxu0
    %v7775 = vadd.f32 0.0, %v7774
    %v7776 = vpop.f32.mrb[0].mxu0
    %v7777 = vadd.f32 0.0, %v7776
    %v7778 = vpop.f32.mrb[0].mxu0
    %v7779 = vadd.f32 0.0, %v7778
    %v7780 = vpop.f32.mrb[0].mxu0
    %v7781 = vadd.f32 0.0, %v7780
    %7782 = vdwg.mxu0
    %7783 = vmatprep.subr.bf16.mxu0 %v2962
    %7784 = vmatpush1.bf16.msra.mxu0 %v2961
    %7785 = vmatprep.subr.bf16.mxu0 %v2970
    %7786 = vmatpush1.bf16.msra.mxu0 %v2969
    %7787 = vmatprep.subr.bf16.mxu0 %v2978
    %7788 = vmatpush1.bf16.msra.mxu0 %v2977
    %7789 = vmatprep.subr.bf16.mxu0 %v2986
    %7790 = vmatpush1.bf16.msra.mxu0 %v2985
    %7791 = vmatprep.subr.bf16.mxu0 %v2994
    %7792 = vmatpush1.bf16.msra.mxu0 %v2993
    %7793 = vmatprep.subr.bf16.mxu0 %v3002
    %7794 = vmatpush1.bf16.msra.mxu0 %v3001
    %7795 = vmatprep.subr.bf16.mxu0 %v3010
    %7796 = vmatpush1.bf16.msra.mxu0 %v3009
    %7797 = vmatprep.subr.bf16.mxu0 %v3018
    %7798 = vmatpush1.bf16.msra.mxu0 %v3017
    %7799 = vmatprep.subr.bf16.mxu0 %v3026
    %7800 = vmatpush1.bf16.msra.mxu0 %v3025
    %7801 = vmatprep.subr.bf16.mxu0 %v3034
    %7802 = vmatpush1.bf16.msra.mxu0 %v3033
    %7803 = vmatprep.subr.bf16.mxu0 %v3042
    %7804 = vmatpush1.bf16.msra.mxu0 %v3041
    %7805 = vmatprep.subr.bf16.mxu0 %v3050
    %7806 = vmatpush1.bf16.msra.mxu0 %v3049
    %7807 = vmatprep.subr.bf16.mxu0 %v3058
    %7808 = vmatpush1.bf16.msra.mxu0 %v3057
    %7809 = vmatprep.subr.bf16.mxu0 %v3066
    %7810 = vmatpush1.bf16.msra.mxu0 %v3065
    %7811 = vmatprep.subr.bf16.mxu0 %v3074
    %7812 = vmatpush1.bf16.msra.mxu0 %v3073
    %7813 = vmatprep.subr.bf16.mxu0 %v3082
    %7814 = vmatpush1.bf16.msra.mxu0 %v3081
    %7815 = vmatprep.mubr.bf16.mxu0 %v7324
    %7816 = vmatmul.mubr.bf16.gmra.mrb[0].mxu0 %v7323
    %v7817 = vpop.f32.mrb[0].mxu0
    %v7818 = vadd.f32 %v7646, %v7817
    %v7819 = vpop.f32.mrb[0].mxu0
    %v7820 = vadd.f32 %v7648, %v7819
    %v7821 = vpop.f32.mrb[0].mxu0
    %v7822 = vadd.f32 %v7650, %v7821
    %v7823 = vpop.f32.mrb[0].mxu0
    %v7824 = vadd.f32 %v7652, %v7823
    %7825 = vdwg.mxu0
    %7826 = vmatprep.subr.bf16.mxu0 %v2964
    %7827 = vmatpush1.bf16.msra.mxu0 %v2963
    %7828 = vmatprep.subr.bf16.mxu0 %v2972
    %7829 = vmatpush1.bf16.msra.mxu0 %v2971
    %7830 = vmatprep.subr.bf16.mxu0 %v2980
    %7831 = vmatpush1.bf16.msra.mxu0 %v2979
    %7832 = vmatprep.subr.bf16.mxu0 %v2988
    %7833 = vmatpush1.bf16.msra.mxu0 %v2987
    %7834 = vmatprep.subr.bf16.mxu0 %v2996
    %7835 = vmatpush1.bf16.msra.mxu0 %v2995
    %7836 = vmatprep.subr.bf16.mxu0 %v3004
    %7837 = vmatpush1.bf16.msra.mxu0 %v3003
    %7838 = vmatprep.subr.bf16.mxu0 %v3012
    %7839 = vmatpush1.bf16.msra.mxu0 %v3011
    %7840 = vmatprep.subr.bf16.mxu0 %v3020
    %7841 = vmatpush1.bf16.msra.mxu0 %v3019
    %7842 = vmatprep.subr.bf16.mxu0 %v3028
    %7843 = vmatpush1.bf16.msra.mxu0 %v3027
    %7844 = vmatprep.subr.bf16.mxu0 %v3036
    %7845 = vmatpush1.bf16.msra.mxu0 %v3035
    %7846 = vmatprep.subr.bf16.mxu0 %v3044
    %7847 = vmatpush1.bf16.msra.mxu0 %v3043
    %7848 = vmatprep.subr.bf16.mxu0 %v3052
    %7849 = vmatpush1.bf16.msra.mxu0 %v3051
    %7850 = vmatprep.subr.bf16.mxu0 %v3060
    %7851 = vmatpush1.bf16.msra.mxu0 %v3059
    %7852 = vmatprep.subr.bf16.mxu0 %v3068
    %7853 = vmatpush1.bf16.msra.mxu0 %v3067
    %7854 = vmatprep.subr.bf16.mxu0 %v3076
    %7855 = vmatpush1.bf16.msra.mxu0 %v3075
    %7856 = vmatprep.subr.bf16.mxu0 %v3084
    %7857 = vmatpush1.bf16.msra.mxu0 %v3083
    %7858 = vmatprep.mubr.bf16.mxu0 %v7324
    %7859 = vmatmul.mubr.bf16.gmra.mrb[0].mxu0 %v7323
    %v7860 = vpop.f32.mrb[0].mxu0
    %v7861 = vadd.f32 %v7689, %v7860
    %v7862 = vpop.f32.mrb[0].mxu0
    %v7863 = vadd.f32 %v7691, %v7862
    %v7864 = vpop.f32.mrb[0].mxu0
    %v7865 = vadd.f32 %v7693, %v7864
    %v7866 = vpop.f32.mrb[0].mxu0
    %v7867 = vadd.f32 %v7695, %v7866
    %7868 = vdwg.mxu0
    %7869 = vmatprep.subr.bf16.mxu0 %v2966
    %7870 = vmatpush1.bf16.msra.mxu0 %v2965
    %7871 = vmatprep.subr.bf16.mxu0 %v2974
    %7872 = vmatpush1.bf16.msra.mxu0 %v2973
    %7873 = vmatprep.subr.bf16.mxu0 %v2982
    %7874 = vmatpush1.bf16.msra.mxu0 %v2981
    %7875 = vmatprep.subr.bf16.mxu0 %v2990
    %7876 = vmatpush1.bf16.msra.mxu0 %v2989
    %7877 = vmatprep.subr.bf16.mxu0 %v2998
    %7878 = vmatpush1.bf16.msra.mxu0 %v2997
    %7879 = vmatprep.subr.bf16.mxu0 %v3006
    %7880 = vmatpush1.bf16.msra.mxu0 %v3005
    %7881 = vmatprep.subr.bf16.mxu0 %v3014
    %7882 = vmatpush1.bf16.msra.mxu0 %v3013
    %7883 = vmatprep.subr.bf16.mxu0 %v3022
    %7884 = vmatpush1.bf16.msra.mxu0 %v3021
    %7885 = vmatprep.subr.bf16.mxu0 %v3030
    %7886 = vmatpush1.bf16.msra.mxu0 %v3029
    %7887 = vmatprep.subr.bf16.mxu0 %v3038
    %7888 = vmatpush1.bf16.msra.mxu0 %v3037
    %7889 = vmatprep.subr.bf16.mxu0 %v3046
    %7890 = vmatpush1.bf16.msra.mxu0 %v3045
    %7891 = vmatprep.subr.bf16.mxu0 %v3054
    %7892 = vmatpush1.bf16.msra.mxu0 %v3053
    %7893 = vmatprep.subr.bf16.mxu0 %v3062
    %7894 = vmatpush1.bf16.msra.mxu0 %v3061
    %7895 = vmatprep.subr.bf16.mxu0 %v3070
    %7896 = vmatpush1.bf16.msra.mxu0 %v3069
    %7897 = vmatprep.subr.bf16.mxu0 %v3078
    %7898 = vmatpush1.bf16.msra.mxu0 %v3077
    %7899 = vmatprep.subr.bf16.mxu0 %v3086
    %7900 = vmatpush1.bf16.msra.mxu0 %v3085
    %7901 = vmatprep.mubr.bf16.mxu0 %v7324
    %7902 = vmatmul.mubr.bf16.gmra.mrb[0].mxu0 %v7323
    %v7903 = vpop.f32.mrb[0].mxu0
    %v7904 = vadd.f32 %v7732, %v7903
    %v7905 = vpop.f32.mrb[0].mxu0
    %v7906 = vadd.f32 %v7734, %v7905
    %v7907 = vpop.f32.mrb[0].mxu0
    %v7908 = vadd.f32 %v7736, %v7907
    %v7909 = vpop.f32.mrb[0].mxu0
    %v7910 = vadd.f32 %v7738, %v7909
    %7911 = vdwg.mxu0
    %7912 = vmatprep.subr.bf16.mxu0 %v2968
    %7913 = vmatpush1.bf16.msra.mxu0 %v2967
    %7914 = vmatprep.subr.bf16.mxu0 %v2976
    %7915 = vmatpush1.bf16.msra.mxu0 %v2975
    %7916 = vmatprep.subr.bf16.mxu0 %v2984
    %7917 = vmatpush1.bf16.msra.mxu0 %v2983
    %7918 = vmatprep.subr.bf16.mxu0 %v2992
    %7919 = vmatpush1.bf16.msra.mxu0 %v2991
    %7920 = vmatprep.subr.bf16.mxu0 %v3000
    %7921 = vmatpush1.bf16.msra.mxu0 %v2999
    %7922 = vmatprep.subr.bf16.mxu0 %v3008
    %7923 = vmatpush1.bf16.msra.mxu0 %v3007
    %7924 = vmatprep.subr.bf16.mxu0 %v3016
    %7925 = vmatpush1.bf16.msra.mxu0 %v3015
    %7926 = vmatprep.subr.bf16.mxu0 %v3024
    %7927 = vmatpush1.bf16.msra.mxu0 %v3023
    %7928 = vmatprep.subr.bf16.mxu0 %v3032
    %7929 = vmatpush1.bf16.msra.mxu0 %v3031
    %7930 = vmatprep.subr.bf16.mxu0 %v3040
    %7931 = vmatpush1.bf16.msra.mxu0 %v3039
    %7932 = vmatprep.subr.bf16.mxu0 %v3048
    %7933 = vmatpush1.bf16.msra.mxu0 %v3047
    %7934 = vmatprep.subr.bf16.mxu0 %v3056
    %7935 = vmatpush1.bf16.msra.mxu0 %v3055
    %7936 = vmatprep.subr.bf16.mxu0 %v3064
    %7937 = vmatpush1.bf16.msra.mxu0 %v3063
    %7938 = vmatprep.subr.bf16.mxu0 %v3072
    %7939 = vmatpush1.bf16.msra.mxu0 %v3071
    %7940 = vmatprep.subr.bf16.mxu0 %v3080
    %7941 = vmatpush1.bf16.msra.mxu0 %v3079
    %7942 = vmatprep.subr.bf16.mxu0 %v3088
    %7943 = vmatpush1.bf16.msra.mxu0 %v3087
    %7944 = vmatprep.mubr.bf16.mxu0 %v7324
    %7945 = vmatmul.mubr.bf16.gmra.mrb[0].mxu0 %v7323
    %v7946 = vpop.f32.mrb[0].mxu0
    %v7947 = vadd.f32 %v7775, %v7946
    %v7948 = vpop.f32.mrb[0].mxu0
    %v7949 = vadd.f32 %v7777, %v7948
    %v7950 = vpop.f32.mrb[0].mxu0
    %v7951 = vadd.f32 %v7779, %v7950
    %v7952 = vpop.f32.mrb[0].mxu0
    %v7953 = vadd.f32 %v7781, %v7952
    %7954 = vdwg.mxu0
    %v7955 = vadd.f32 %v7818, %v101
    %v7956 = vadd.f32 %v7820, %v105
    %v7957 = vadd.f32 %v7861, %v109
    %v7958 = vadd.f32 %v7863, %v113
    %v7959 = vadd.f32 %v7904, %v117
    %v7960 = vadd.f32 %v7906, %v121
    %v7961 = vadd.f32 %v7947, %v125
    %v7962 = vadd.f32 %v7949, %v129
    %v7963 = vadd.f32 %v7822, %v101
    %v7964 = vadd.f32 %v7824, %v105
    %v7965 = vadd.f32 %v7865, %v109
    %v7966 = vadd.f32 %v7867, %v113
    %v7967 = vadd.f32 %v7908, %v117
    %v7968 = vadd.f32 %v7910, %v121
    %v7969 = vadd.f32 %v7951, %v125
    %v7970 = vadd.f32 %v7953, %v129
    %v7971 = vxor.u32 %v7955, 2147483648
    %v7972 = vxor.u32 %v7956, 2147483648
    %v7973 = vxor.u32 %v7963, 2147483648
    %v7974 = vxor.u32 %v7964, 2147483648
    %v7975 = vmul.f32 %v7971, 1.442695
    %v7976 = vpow.pop %v7975
    %v7977 = vmul.f32 %v7972, 1.442695
    %v7978 = vpow.pop %v7977
    %v7979 = vmul.f32 %v7973, 1.442695
    %v7980 = vpow.pop %v7979
    %v7981 = vmul.f32 %v7974, 1.442695
    %v7982 = vpow.pop %v7981
    %v7983 = vadd.f32 %v7976, 1.0
    %v7984 = vadd.f32 %v7978, 1.0
    %v7985 = vadd.f32 %v7980, 1.0
    %v7986 = vadd.f32 %v7982, 1.0
    %v7987 = vrcp.pop %v7983
    %v7988 = vmul.f32 1.0, %v7987
    %v7989 = vrcp.pop %v7984
    %v7990 = vmul.f32 1.0, %v7989
    %v7991 = vrcp.pop %v7985
    %v7992 = vmul.f32 1.0, %v7991
    %v7993 = vrcp.pop %v7986
    %v7994 = vmul.f32 1.0, %v7993
    %v7995 = vxor.u32 %v7957, 2147483648
    %v7996 = vxor.u32 %v7958, 2147483648
    %v7997 = vxor.u32 %v7965, 2147483648
    %v7998 = vxor.u32 %v7966, 2147483648
    %v7999 = vmul.f32 %v7995, 1.442695
    %v8000 = vpow.pop %v7999
    %v8001 = vmul.f32 %v7996, 1.442695
    %v8002 = vpow.pop %v8001
    %v8003 = vmul.f32 %v7997, 1.442695
    %v8004 = vpow.pop %v8003
    %v8005 = vmul.f32 %v7998, 1.442695
    %v8006 = vpow.pop %v8005
    %v8007 = vadd.f32 %v8000, 1.0
    %v8008 = vadd.f32 %v8002, 1.0
    %v8009 = vadd.f32 %v8004, 1.0
    %v8010 = vadd.f32 %v8006, 1.0
    %v8011 = vrcp.pop %v8007
    %v8012 = vmul.f32 1.0, %v8011
    %v8013 = vrcp.pop %v8008
    %v8014 = vmul.f32 1.0, %v8013
    %v8015 = vrcp.pop %v8009
    %v8016 = vmul.f32 1.0, %v8015
    %v8017 = vrcp.pop %v8010
    %v8018 = vmul.f32 1.0, %v8017
    %v8019 = vtanh.pop %v7959
    %v8020 = vtanh.pop %v7960
    %v8021 = vtanh.pop %v7967
    %v8022 = vtanh.pop %v7968
    %v8023 = vxor.u32 %v7961, 2147483648
    %v8024 = vxor.u32 %v7962, 2147483648
    %v8025 = vxor.u32 %v7969, 2147483648
    %v8026 = vxor.u32 %v7970, 2147483648
    %v8027 = vmul.f32 %v8023, 1.442695
    %v8028 = vpow.pop %v8027
    %v8029 = vmul.f32 %v8024, 1.442695
    %v8030 = vpow.pop %v8029
    %v8031 = vmul.f32 %v8025, 1.442695
    %v8032 = vpow.pop %v8031
    %v8033 = vmul.f32 %v8026, 1.442695
    %v8034 = vpow.pop %v8033
    %v8035 = vadd.f32 %v8028, 1.0
    %v8036 = vadd.f32 %v8030, 1.0
    %v8037 = vadd.f32 %v8032, 1.0
    %v8038 = vadd.f32 %v8034, 1.0
    %v8039 = vrcp.pop %v8035
    %v8040 = vmul.f32 1.0, %v8039
    %v8041 = vrcp.pop %v8036
    %v8042 = vmul.f32 1.0, %v8041
    %v8043 = vrcp.pop %v8037
    %v8044 = vmul.f32 1.0, %v8043
    %v8045 = vrcp.pop %v8038
    %v8046 = vmul.f32 1.0, %v8045
    %v8047 = vmul.f32 %v8012, %v7294
    %v8048 = vmul.f32 %v8014, %v7295
    %v8049 = vmul.f32 %v8016, %v7296
    %v8050 = vmul.f32 %v8018, %v7297
    %v8051 = vmul.f32 %v7988, %v8019
    %v8052 = vmul.f32 %v7990, %v8020
    %v8053 = vmul.f32 %v7992, %v8021
    %v8054 = vmul.f32 %v7994, %v8022
    %v8055 = vadd.f32 %v8047, %v8051
    %v8056 = vadd.f32 %v8048, %v8052
    %v8057 = vadd.f32 %v8049, %v8053
    %v8058 = vadd.f32 %v8050, %v8054
    %v8059 = vtanh.pop %v8055
    %v8060 = vtanh.pop %v8056
    %v8061 = vtanh.pop %v8057
    %v8062 = vtanh.pop %v8058
    %v8063 = vmul.f32 %v8040, %v8059
    %v8064 = vmul.f32 %v8042, %v8060
    %v8065 = vmul.f32 %v8044, %v8061
    %v8066 = vmul.f32 %v8046, %v8062
    %v8067 = vpack.c.bf16 %v7607, %v7605
    %v8068 = vpack.c.bf16 %v7608, %v7606
    %v8069 = vpack.c.bf16 %v8065, %v8063
    %v8070 = vpack.c.bf16 %v8066, %v8064
    %8071 = vmatprep.subr.bf16.mxu0 %v2150
    %8072 = vmatpush1.bf16.msra.mxu0 %v2149
    %8073 = vmatprep.subr.bf16.mxu0 %v2158
    %8074 = vmatpush1.bf16.msra.mxu0 %v2157
    %8075 = vmatprep.subr.bf16.mxu0 %v2166
    %8076 = vmatpush1.bf16.msra.mxu0 %v2165
    %8077 = vmatprep.subr.bf16.mxu0 %v2174
    %8078 = vmatpush1.bf16.msra.mxu0 %v2173
    %8079 = vmatprep.subr.bf16.mxu0 %v2182
    %8080 = vmatpush1.bf16.msra.mxu0 %v2181
    %8081 = vmatprep.subr.bf16.mxu0 %v2190
    %8082 = vmatpush1.bf16.msra.mxu0 %v2189
    %8083 = vmatprep.subr.bf16.mxu0 %v2198
    %8084 = vmatpush1.bf16.msra.mxu0 %v2197
    %8085 = vmatprep.subr.bf16.mxu0 %v2206
    %8086 = vmatpush1.bf16.msra.mxu0 %v2205
    %8087 = vmatprep.subr.bf16.mxu0 %v2214
    %8088 = vmatpush1.bf16.msra.mxu0 %v2213
    %8089 = vmatprep.subr.bf16.mxu0 %v2222
    %8090 = vmatpush1.bf16.msra.mxu0 %v2221
    %8091 = vmatprep.subr.bf16.mxu0 %v2230
    %8092 = vmatpush1.bf16.msra.mxu0 %v2229
    %8093 = vmatprep.subr.bf16.mxu0 %v2238
    %8094 = vmatpush1.bf16.msra.mxu0 %v2237
    %8095 = vmatprep.subr.bf16.mxu0 %v2246
    %8096 = vmatpush1.bf16.msra.mxu0 %v2245
    %8097 = vmatprep.subr.bf16.mxu0 %v2254
    %8098 = vmatpush1.bf16.msra.mxu0 %v2253
    %8099 = vmatprep.subr.bf16.mxu0 %v2262
    %8100 = vmatpush1.bf16.msra.mxu0 %v2261
    %8101 = vmatprep.subr.bf16.mxu0 %v2270
    %8102 = vmatpush1.bf16.msra.mxu0 %v2269
    %8103 = vmatprep.mubr.bf16.mxu0 %v8070
    %8104 = vmatmul.mubr.bf16.gmra.mrb[0].mxu0 %v8069
    %v8105 = vpop.f32.mrb[0].mxu0
    %v8106 = vadd.f32 0.0, %v8105
    %v8107 = vpop.f32.mrb[0].mxu0
    %v8108 = vadd.f32 0.0, %v8107
    %v8109 = vpop.f32.mrb[0].mxu0
    %v8110 = vadd.f32 0.0, %v8109
    %v8111 = vpop.f32.mrb[0].mxu0
    %v8112 = vadd.f32 0.0, %v8111
    %8113 = vdwg.mxu0
    %8114 = vmatprep.subr.bf16.mxu0 %v2152
    %8115 = vmatpush1.bf16.msra.mxu0 %v2151
    %8116 = vmatprep.subr.bf16.mxu0 %v2160
    %8117 = vmatpush1.bf16.msra.mxu0 %v2159
    %8118 = vmatprep.subr.bf16.mxu0 %v2168
    %8119 = vmatpush1.bf16.msra.mxu0 %v2167
    %8120 = vmatprep.subr.bf16.mxu0 %v2176
    %8121 = vmatpush1.bf16.msra.mxu0 %v2175
    %8122 = vmatprep.subr.bf16.mxu0 %v2184
    %8123 = vmatpush1.bf16.msra.mxu0 %v2183
    %8124 = vmatprep.subr.bf16.mxu0 %v2192
    %8125 = vmatpush1.bf16.msra.mxu0 %v2191
    %8126 = vmatprep.subr.bf16.mxu0 %v2200
    %8127 = vmatpush1.bf16.msra.mxu0 %v2199
    %8128 = vmatprep.subr.bf16.mxu0 %v2208
    %8129 = vmatpush1.bf16.msra.mxu0 %v2207
    %8130 = vmatprep.subr.bf16.mxu0 %v2216
    %8131 = vmatpush1.bf16.msra.mxu0 %v2215
    %8132 = vmatprep.subr.bf16.mxu0 %v2224
    %8133 = vmatpush1.bf16.msra.mxu0 %v2223
    %8134 = vmatprep.subr.bf16.mxu0 %v2232
    %8135 = vmatpush1.bf16.msra.mxu0 %v2231
    %8136 = vmatprep.subr.bf16.mxu0 %v2240
    %8137 = vmatpush1.bf16.msra.mxu0 %v2239
    %8138 = vmatprep.subr.bf16.mxu0 %v2248
    %8139 = vmatpush1.bf16.msra.mxu0 %v2247
    %8140 = vmatprep.subr.bf16.mxu0 %v2256
    %8141 = vmatpush1.bf16.msra.mxu0 %v2255
    %8142 = vmatprep.subr.bf16.mxu0 %v2264
    %8143 = vmatpush1.bf16.msra.mxu0 %v2263
    %8144 = vmatprep.subr.bf16.mxu0 %v2272
    %8145 = vmatpush1.bf16.msra.mxu0 %v2271
    %8146 = vmatprep.mubr.bf16.mxu0 %v8070
    %8147 = vmatmul.mubr.bf16.gmra.mrb[0].mxu0 %v8069
    %v8148 = vpop.f32.mrb[0].mxu0
    %v8149 = vadd.f32 0.0, %v8148
    %v8150 = vpop.f32.mrb[0].mxu0
    %v8151 = vadd.f32 0.0, %v8150
    %v8152 = vpop.f32.mrb[0].mxu0
    %v8153 = vadd.f32 0.0, %v8152
    %v8154 = vpop.f32.mrb[0].mxu0
    %v8155 = vadd.f32 0.0, %v8154
    %8156 = vdwg.mxu0
    %8157 = vmatprep.subr.bf16.mxu0 %v2154
    %8158 = vmatpush1.bf16.msra.mxu0 %v2153
    %8159 = vmatprep.subr.bf16.mxu0 %v2162
    %8160 = vmatpush1.bf16.msra.mxu0 %v2161
    %8161 = vmatprep.subr.bf16.mxu0 %v2170
    %8162 = vmatpush1.bf16.msra.mxu0 %v2169
    %8163 = vmatprep.subr.bf16.mxu0 %v2178
    %8164 = vmatpush1.bf16.msra.mxu0 %v2177
    %8165 = vmatprep.subr.bf16.mxu0 %v2186
    %8166 = vmatpush1.bf16.msra.mxu0 %v2185
    %8167 = vmatprep.subr.bf16.mxu0 %v2194
    %8168 = vmatpush1.bf16.msra.mxu0 %v2193
    %8169 = vmatprep.subr.bf16.mxu0 %v2202
    %8170 = vmatpush1.bf16.msra.mxu0 %v2201
    %8171 = vmatprep.subr.bf16.mxu0 %v2210
    %8172 = vmatpush1.bf16.msra.mxu0 %v2209
    %8173 = vmatprep.subr.bf16.mxu0 %v2218
    %8174 = vmatpush1.bf16.msra.mxu0 %v2217
    %8175 = vmatprep.subr.bf16.mxu0 %v2226
    %8176 = vmatpush1.bf16.msra.mxu0 %v2225
    %8177 = vmatprep.subr.bf16.mxu0 %v2234
    %8178 = vmatpush1.bf16.msra.mxu0 %v2233
    %8179 = vmatprep.subr.bf16.mxu0 %v2242
    %8180 = vmatpush1.bf16.msra.mxu0 %v2241
    %8181 = vmatprep.subr.bf16.mxu0 %v2250
    %8182 = vmatpush1.bf16.msra.mxu0 %v2249
    %8183 = vmatprep.subr.bf16.mxu0 %v2258
    %8184 = vmatpush1.bf16.msra.mxu0 %v2257
    %8185 = vmatprep.subr.bf16.mxu0 %v2266
    %8186 = vmatpush1.bf16.msra.mxu0 %v2265
    %8187 = vmatprep.subr.bf16.mxu0 %v2274
    %8188 = vmatpush1.bf16.msra.mxu0 %v2273
    %8189 = vmatprep.mubr.bf16.mxu0 %v8070
    %8190 = vmatmul.mubr.bf16.gmra.mrb[0].mxu0 %v8069
    %v8191 = vpop.f32.mrb[0].mxu0
    %v8192 = vadd.f32 0.0, %v8191
    %v8193 = vpop.f32.mrb[0].mxu0
    %v8194 = vadd.f32 0.0, %v8193
    %v8195 = vpop.f32.mrb[0].mxu0
    %v8196 = vadd.f32 0.0, %v8195
    %v8197 = vpop.f32.mrb[0].mxu0
    %v8198 = vadd.f32 0.0, %v8197
    %8199 = vdwg.mxu0
    %8200 = vmatprep.subr.bf16.mxu0 %v2156
    %8201 = vmatpush1.bf16.msra.mxu0 %v2155
    %8202 = vmatprep.subr.bf16.mxu0 %v2164
    %8203 = vmatpush1.bf16.msra.mxu0 %v2163
    %8204 = vmatprep.subr.bf16.mxu0 %v2172
    %8205 = vmatpush1.bf16.msra.mxu0 %v2171
    %8206 = vmatprep.subr.bf16.mxu0 %v2180
    %8207 = vmatpush1.bf16.msra.mxu0 %v2179
    %8208 = vmatprep.subr.bf16.mxu0 %v2188
    %8209 = vmatpush1.bf16.msra.mxu0 %v2187
    %8210 = vmatprep.subr.bf16.mxu0 %v2196
    %8211 = vmatpush1.bf16.msra.mxu0 %v2195
    %8212 = vmatprep.subr.bf16.mxu0 %v2204
    %8213 = vmatpush1.bf16.msra.mxu0 %v2203
    %8214 = vmatprep.subr.bf16.mxu0 %v2212
    %8215 = vmatpush1.bf16.msra.mxu0 %v2211
    %8216 = vmatprep.subr.bf16.mxu0 %v2220
    %8217 = vmatpush1.bf16.msra.mxu0 %v2219
    %8218 = vmatprep.subr.bf16.mxu0 %v2228
    %8219 = vmatpush1.bf16.msra.mxu0 %v2227
    %8220 = vmatprep.subr.bf16.mxu0 %v2236
    %8221 = vmatpush1.bf16.msra.mxu0 %v2235
    %8222 = vmatprep.subr.bf16.mxu0 %v2244
    %8223 = vmatpush1.bf16.msra.mxu0 %v2243
    %8224 = vmatprep.subr.bf16.mxu0 %v2252
    %8225 = vmatpush1.bf16.msra.mxu0 %v2251
    %8226 = vmatprep.subr.bf16.mxu0 %v2260
    %8227 = vmatpush1.bf16.msra.mxu0 %v2259
    %8228 = vmatprep.subr.bf16.mxu0 %v2268
    %8229 = vmatpush1.bf16.msra.mxu0 %v2267
    %8230 = vmatprep.subr.bf16.mxu0 %v2276
    %8231 = vmatpush1.bf16.msra.mxu0 %v2275
    %8232 = vmatprep.mubr.bf16.mxu0 %v8070
    %8233 = vmatmul.mubr.bf16.gmra.mrb[0].mxu0 %v8069
    %v8234 = vpop.f32.mrb[0].mxu0
    %v8235 = vadd.f32 0.0, %v8234
    %v8236 = vpop.f32.mrb[0].mxu0
    %v8237 = vadd.f32 0.0, %v8236
    %v8238 = vpop.f32.mrb[0].mxu0
    %v8239 = vadd.f32 0.0, %v8238
    %v8240 = vpop.f32.mrb[0].mxu0
    %v8241 = vadd.f32 0.0, %v8240
    %8242 = vdwg.mxu0
    %8243 = vmatprep.subr.bf16.mxu0 %v2962
    %8244 = vmatpush1.bf16.msra.mxu0 %v2961
    %8245 = vmatprep.subr.bf16.mxu0 %v2970
    %8246 = vmatpush1.bf16.msra.mxu0 %v2969
    %8247 = vmatprep.subr.bf16.mxu0 %v2978
    %8248 = vmatpush1.bf16.msra.mxu0 %v2977
    %8249 = vmatprep.subr.bf16.mxu0 %v2986
    %8250 = vmatpush1.bf16.msra.mxu0 %v2985
    %8251 = vmatprep.subr.bf16.mxu0 %v2994
    %8252 = vmatpush1.bf16.msra.mxu0 %v2993
    %8253 = vmatprep.subr.bf16.mxu0 %v3002
    %8254 = vmatpush1.bf16.msra.mxu0 %v3001
    %8255 = vmatprep.subr.bf16.mxu0 %v3010
    %8256 = vmatpush1.bf16.msra.mxu0 %v3009
    %8257 = vmatprep.subr.bf16.mxu0 %v3018
    %8258 = vmatpush1.bf16.msra.mxu0 %v3017
    %8259 = vmatprep.subr.bf16.mxu0 %v3026
    %8260 = vmatpush1.bf16.msra.mxu0 %v3025
    %8261 = vmatprep.subr.bf16.mxu0 %v3034
    %8262 = vmatpush1.bf16.msra.mxu0 %v3033
    %8263 = vmatprep.subr.bf16.mxu0 %v3042
    %8264 = vmatpush1.bf16.msra.mxu0 %v3041
    %8265 = vmatprep.subr.bf16.mxu0 %v3050
    %8266 = vmatpush1.bf16.msra.mxu0 %v3049
    %8267 = vmatprep.subr.bf16.mxu0 %v3058
    %8268 = vmatpush1.bf16.msra.mxu0 %v3057
    %8269 = vmatprep.subr.bf16.mxu0 %v3066
    %8270 = vmatpush1.bf16.msra.mxu0 %v3065
    %8271 = vmatprep.subr.bf16.mxu0 %v3074
    %8272 = vmatpush1.bf16.msra.mxu0 %v3073
    %8273 = vmatprep.subr.bf16.mxu0 %v3082
    %8274 = vmatpush1.bf16.msra.mxu0 %v3081
    %8275 = vmatprep.mubr.bf16.mxu0 %v8068
    %8276 = vmatmul.mubr.bf16.gmra.mrb[0].mxu0 %v8067
    %v8277 = vpop.f32.mrb[0].mxu0
    %v8278 = vadd.f32 %v8106, %v8277
    %v8279 = vpop.f32.mrb[0].mxu0
    %v8280 = vadd.f32 %v8108, %v8279
    %v8281 = vpop.f32.mrb[0].mxu0
    %v8282 = vadd.f32 %v8110, %v8281
    %v8283 = vpop.f32.mrb[0].mxu0
    %v8284 = vadd.f32 %v8112, %v8283
    %8285 = vdwg.mxu0
    %8286 = vmatprep.subr.bf16.mxu0 %v2964
    %8287 = vmatpush1.bf16.msra.mxu0 %v2963
    %8288 = vmatprep.subr.bf16.mxu0 %v2972
    %8289 = vmatpush1.bf16.msra.mxu0 %v2971
    %8290 = vmatprep.subr.bf16.mxu0 %v2980
    %8291 = vmatpush1.bf16.msra.mxu0 %v2979
    %8292 = vmatprep.subr.bf16.mxu0 %v2988
    %8293 = vmatpush1.bf16.msra.mxu0 %v2987
    %8294 = vmatprep.subr.bf16.mxu0 %v2996
    %8295 = vmatpush1.bf16.msra.mxu0 %v2995
    %8296 = vmatprep.subr.bf16.mxu0 %v3004
    %8297 = vmatpush1.bf16.msra.mxu0 %v3003
    %8298 = vmatprep.subr.bf16.mxu0 %v3012
    %8299 = vmatpush1.bf16.msra.mxu0 %v3011
    %8300 = vmatprep.subr.bf16.mxu0 %v3020
    %8301 = vmatpush1.bf16.msra.mxu0 %v3019
    %8302 = vmatprep.subr.bf16.mxu0 %v3028
    %8303 = vmatpush1.bf16.msra.mxu0 %v3027
    %8304 = vmatprep.subr.bf16.mxu0 %v3036
    %8305 = vmatpush1.bf16.msra.mxu0 %v3035
    %8306 = vmatprep.subr.bf16.mxu0 %v3044
    %8307 = vmatpush1.bf16.msra.mxu0 %v3043
    %8308 = vmatprep.subr.bf16.mxu0 %v3052
    %8309 = vmatpush1.bf16.msra.mxu0 %v3051
    %8310 = vmatprep.subr.bf16.mxu0 %v3060
    %8311 = vmatpush1.bf16.msra.mxu0 %v3059
    %8312 = vmatprep.subr.bf16.mxu0 %v3068
    %8313 = vmatpush1.bf16.msra.mxu0 %v3067
    %8314 = vmatprep.subr.bf16.mxu0 %v3076
    %8315 = vmatpush1.bf16.msra.mxu0 %v3075
    %8316 = vmatprep.subr.bf16.mxu0 %v3084
    %8317 = vmatpush1.bf16.msra.mxu0 %v3083
    %8318 = vmatprep.mubr.bf16.mxu0 %v8068
    %8319 = vmatmul.mubr.bf16.gmra.mrb[0].mxu0 %v8067
    %v8320 = vpop.f32.mrb[0].mxu0
    %v8321 = vadd.f32 %v8149, %v8320
    %v8322 = vpop.f32.mrb[0].mxu0
    %v8323 = vadd.f32 %v8151, %v8322
    %v8324 = vpop.f32.mrb[0].mxu0
    %v8325 = vadd.f32 %v8153, %v8324
    %v8326 = vpop.f32.mrb[0].mxu0
    %v8327 = vadd.f32 %v8155, %v8326
    %8328 = vdwg.mxu0
    %8329 = vmatprep.subr.bf16.mxu0 %v2966
    %8330 = vmatpush1.bf16.msra.mxu0 %v2965
    %8331 = vmatprep.subr.bf16.mxu0 %v2974
    %8332 = vmatpush1.bf16.msra.mxu0 %v2973
    %8333 = vmatprep.subr.bf16.mxu0 %v2982
    %8334 = vmatpush1.bf16.msra.mxu0 %v2981
    %8335 = vmatprep.subr.bf16.mxu0 %v2990
    %8336 = vmatpush1.bf16.msra.mxu0 %v2989
    %8337 = vmatprep.subr.bf16.mxu0 %v2998
    %8338 = vmatpush1.bf16.msra.mxu0 %v2997
    %8339 = vmatprep.subr.bf16.mxu0 %v3006
    %8340 = vmatpush1.bf16.msra.mxu0 %v3005
    %8341 = vmatprep.subr.bf16.mxu0 %v3014
    %8342 = vmatpush1.bf16.msra.mxu0 %v3013
    %8343 = vmatprep.subr.bf16.mxu0 %v3022
    %8344 = vmatpush1.bf16.msra.mxu0 %v3021
    %8345 = vmatprep.subr.bf16.mxu0 %v3030
    %8346 = vmatpush1.bf16.msra.mxu0 %v3029
    %8347 = vmatprep.subr.bf16.mxu0 %v3038
    %8348 = vmatpush1.bf16.msra.mxu0 %v3037
    %8349 = vmatprep.subr.bf16.mxu0 %v3046
    %8350 = vmatpush1.bf16.msra.mxu0 %v3045
    %8351 = vmatprep.subr.bf16.mxu0 %v3054
    %8352 = vmatpush1.bf16.msra.mxu0 %v3053
    %8353 = vmatprep.subr.bf16.mxu0 %v3062
    %8354 = vmatpush1.bf16.msra.mxu0 %v3061
    %8355 = vmatprep.subr.bf16.mxu0 %v3070
    %8356 = vmatpush1.bf16.msra.mxu0 %v3069
    %8357 = vmatprep.subr.bf16.mxu0 %v3078
    %8358 = vmatpush1.bf16.msra.mxu0 %v3077
    %8359 = vmatprep.subr.bf16.mxu0 %v3086
    %8360 = vmatpush1.bf16.msra.mxu0 %v3085
    %8361 = vmatprep.mubr.bf16.mxu0 %v8068
    %8362 = vmatmul.mubr.bf16.gmra.mrb[0].mxu0 %v8067
    %v8363 = vpop.f32.mrb[0].mxu0
    %v8364 = vadd.f32 %v8192, %v8363
    %v8365 = vpop.f32.mrb[0].mxu0
    %v8366 = vadd.f32 %v8194, %v8365
    %v8367 = vpop.f32.mrb[0].mxu0
    %v8368 = vadd.f32 %v8196, %v8367
    %v8369 = vpop.f32.mrb[0].mxu0
    %v8370 = vadd.f32 %v8198, %v8369
    %8371 = vdwg.mxu0
    %8372 = vmatprep.subr.bf16.mxu0 %v2968
    %8373 = vmatpush1.bf16.msra.mxu0 %v2967
    %8374 = vmatprep.subr.bf16.mxu0 %v2976
    %8375 = vmatpush1.bf16.msra.mxu0 %v2975
    %8376 = vmatprep.subr.bf16.mxu0 %v2984
    %8377 = vmatpush1.bf16.msra.mxu0 %v2983
    %8378 = vmatprep.subr.bf16.mxu0 %v2992
    %8379 = vmatpush1.bf16.msra.mxu0 %v2991
    %8380 = vmatprep.subr.bf16.mxu0 %v3000
    %8381 = vmatpush1.bf16.msra.mxu0 %v2999
    %8382 = vmatprep.subr.bf16.mxu0 %v3008
    %8383 = vmatpush1.bf16.msra.mxu0 %v3007
    %8384 = vmatprep.subr.bf16.mxu0 %v3016
    %8385 = vmatpush1.bf16.msra.mxu0 %v3015
    %8386 = vmatprep.subr.bf16.mxu0 %v3024
    %8387 = vmatpush1.bf16.msra.mxu0 %v3023
    %8388 = vmatprep.subr.bf16.mxu0 %v3032
    %8389 = vmatpush1.bf16.msra.mxu0 %v3031
    %8390 = vmatprep.subr.bf16.mxu0 %v3040
    %8391 = vmatpush1.bf16.msra.mxu0 %v3039
    %8392 = vmatprep.subr.bf16.mxu0 %v3048
    %8393 = vmatpush1.bf16.msra.mxu0 %v3047
    %8394 = vmatprep.subr.bf16.mxu0 %v3056
    %8395 = vmatpush1.bf16.msra.mxu0 %v3055
    %8396 = vmatprep.subr.bf16.mxu0 %v3064
    %8397 = vmatpush1.bf16.msra.mxu0 %v3063
    %8398 = vmatprep.subr.bf16.mxu0 %v3072
    %8399 = vmatpush1.bf16.msra.mxu0 %v3071
    %8400 = vmatprep.subr.bf16.mxu0 %v3080
    %8401 = vmatpush1.bf16.msra.mxu0 %v3079
    %8402 = vmatprep.subr.bf16.mxu0 %v3088
    %8403 = vmatpush1.bf16.msra.mxu0 %v3087
    %8404 = vmatprep.mubr.bf16.mxu0 %v8068
    %8405 = vmatmul.mubr.bf16.gmra.mrb[0].mxu0 %v8067
    %v8406 = vpop.f32.mrb[0].mxu0
    %v8407 = vadd.f32 %v8235, %v8406
    %v8408 = vpop.f32.mrb[0].mxu0
    %v8409 = vadd.f32 %v8237, %v8408
    %v8410 = vpop.f32.mrb[0].mxu0
    %v8411 = vadd.f32 %v8239, %v8410
    %v8412 = vpop.f32.mrb[0].mxu0
    %v8413 = vadd.f32 %v8241, %v8412
    %8414 = vdwg.mxu0
    %v8415 = vadd.f32 %v8278, %v101
    %v8416 = vadd.f32 %v8280, %v105
    %v8417 = vadd.f32 %v8321, %v109
    %v8418 = vadd.f32 %v8323, %v113
    %v8419 = vadd.f32 %v8364, %v117
    %v8420 = vadd.f32 %v8366, %v121
    %v8421 = vadd.f32 %v8407, %v125
    %v8422 = vadd.f32 %v8409, %v129
    %v8423 = vadd.f32 %v8282, %v101
    %v8424 = vadd.f32 %v8284, %v105
    %v8425 = vadd.f32 %v8325, %v109
    %v8426 = vadd.f32 %v8327, %v113
    %v8427 = vadd.f32 %v8368, %v117
    %v8428 = vadd.f32 %v8370, %v121
    %v8429 = vadd.f32 %v8411, %v125
    %v8430 = vadd.f32 %v8413, %v129
    %v8431 = vxor.u32 %v8415, 2147483648
    %v8432 = vxor.u32 %v8416, 2147483648
    %v8433 = vxor.u32 %v8423, 2147483648
    %v8434 = vxor.u32 %v8424, 2147483648
    %v8435 = vmul.f32 %v8431, 1.442695
    %v8436 = vpow.pop %v8435
    %v8437 = vmul.f32 %v8432, 1.442695
    %v8438 = vpow.pop %v8437
    %v8439 = vmul.f32 %v8433, 1.442695
    %v8440 = vpow.pop %v8439
    %v8441 = vmul.f32 %v8434, 1.442695
    %v8442 = vpow.pop %v8441
    %v8443 = vadd.f32 %v8436, 1.0
    %v8444 = vadd.f32 %v8438, 1.0
    %v8445 = vadd.f32 %v8440, 1.0
    %v8446 = vadd.f32 %v8442, 1.0
    %v8447 = vrcp.pop %v8443
    %v8448 = vmul.f32 1.0, %v8447
    %v8449 = vrcp.pop %v8444
    %v8450 = vmul.f32 1.0, %v8449
    %v8451 = vrcp.pop %v8445
    %v8452 = vmul.f32 1.0, %v8451
    %v8453 = vrcp.pop %v8446
    %v8454 = vmul.f32 1.0, %v8453
    %v8455 = vxor.u32 %v8417, 2147483648
    %v8456 = vxor.u32 %v8418, 2147483648
    %v8457 = vxor.u32 %v8425, 2147483648
    %v8458 = vxor.u32 %v8426, 2147483648
    %v8459 = vmul.f32 %v8455, 1.442695
    %v8460 = vpow.pop %v8459
    %v8461 = vmul.f32 %v8456, 1.442695
    %v8462 = vpow.pop %v8461
    %v8463 = vmul.f32 %v8457, 1.442695
    %v8464 = vpow.pop %v8463
    %v8465 = vmul.f32 %v8458, 1.442695
    %v8466 = vpow.pop %v8465
    %v8467 = vadd.f32 %v8460, 1.0
    %v8468 = vadd.f32 %v8462, 1.0
    %v8469 = vadd.f32 %v8464, 1.0
    %v8470 = vadd.f32 %v8466, 1.0
    %v8471 = vrcp.pop %v8467
    %v8472 = vmul.f32 1.0, %v8471
    %v8473 = vrcp.pop %v8468
    %v8474 = vmul.f32 1.0, %v8473
    %v8475 = vrcp.pop %v8469
    %v8476 = vmul.f32 1.0, %v8475
    %v8477 = vrcp.pop %v8470
    %v8478 = vmul.f32 1.0, %v8477
    %v8479 = vtanh.pop %v8419
    %v8480 = vtanh.pop %v8420
    %v8481 = vtanh.pop %v8427
    %v8482 = vtanh.pop %v8428
    %v8483 = vxor.u32 %v8421, 2147483648
    %v8484 = vxor.u32 %v8422, 2147483648
    %v8485 = vxor.u32 %v8429, 2147483648
    %v8486 = vxor.u32 %v8430, 2147483648
    %v8487 = vmul.f32 %v8483, 1.442695
    %v8488 = vpow.pop %v8487
    %v8489 = vmul.f32 %v8484, 1.442695
    %v8490 = vpow.pop %v8489
    %v8491 = vmul.f32 %v8485, 1.442695
    %v8492 = vpow.pop %v8491
    %v8493 = vmul.f32 %v8486, 1.442695
    %v8494 = vpow.pop %v8493
    %v8495 = vadd.f32 %v8488, 1.0
    %v8496 = vadd.f32 %v8490, 1.0
    %v8497 = vadd.f32 %v8492, 1.0
    %v8498 = vadd.f32 %v8494, 1.0
    %v8499 = vrcp.pop %v8495
    %v8500 = vmul.f32 1.0, %v8499
    %v8501 = vrcp.pop %v8496
    %v8502 = vmul.f32 1.0, %v8501
    %v8503 = vrcp.pop %v8497
    %v8504 = vmul.f32 1.0, %v8503
    %v8505 = vrcp.pop %v8498
    %v8506 = vmul.f32 1.0, %v8505
    %v8507 = vmul.f32 %v8472, %v8055
    %v8508 = vmul.f32 %v8474, %v8056
    %v8509 = vmul.f32 %v8476, %v8057
    %v8510 = vmul.f32 %v8478, %v8058
    %v8511 = vmul.f32 %v8448, %v8479
    %v8512 = vmul.f32 %v8450, %v8480
    %v8513 = vmul.f32 %v8452, %v8481
    %v8514 = vmul.f32 %v8454, %v8482
    %v8515 = vadd.f32 %v8507, %v8511
    %v8516 = vadd.f32 %v8508, %v8512
    %v8517 = vadd.f32 %v8509, %v8513
    %v8518 = vadd.f32 %v8510, %v8514
    %v8519 = vtanh.pop %v8515
    %v8520 = vtanh.pop %v8516
    %v8521 = vtanh.pop %v8517
    %v8522 = vtanh.pop %v8518
    %v8523 = vmul.f32 %v8500, %v8519
    %v8524 = vmul.f32 %v8502, %v8520
    %v8525 = vmul.f32 %v8504, %v8521
    %v8526 = vmul.f32 %v8506, %v8522
    %v8527 = vpack.c.bf16 %v8525, %v8523
    %v8528 = vpack.c.bf16 %v8526, %v8524
    %v8529 = vld [vmem:[#allocation10] sm:$0xf]
    %v8530 = vld [vmem:[#allocation10 + $0x4] sm:$0xf]
    %v8531 = vld [vmem:[#allocation10 + $0x8] sm:$0xf]
    %v8532 = vld [vmem:[#allocation10 + $0xc] sm:$0xf]
    %v8533 = vld [vmem:[#allocation10 + $0x10] sm:$0xf]
    %v8534 = vld [vmem:[#allocation10 + $0x14] sm:$0xf]
    %v8535 = vld [vmem:[#allocation10 + $0x18] sm:$0xf]
    %v8536 = vld [vmem:[#allocation10 + $0x1c] sm:$0xf]
    %v8537 = vld [vmem:[#allocation10 + $0x20] sm:$0xf]
    %v8538 = vld [vmem:[#allocation10 + $0x24] sm:$0xf]
    %v8539 = vld [vmem:[#allocation10 + $0x28] sm:$0xf]
    %v8540 = vld [vmem:[#allocation10 + $0x2c] sm:$0xf]
    %v8541 = vld [vmem:[#allocation10 + $0x30] sm:$0xf]
    %v8542 = vld [vmem:[#allocation10 + $0x34] sm:$0xf]
    %v8543 = vld [vmem:[#allocation10 + $0x38] sm:$0xf]
    %v8544 = vld [vmem:[#allocation10 + $0x3c] sm:$0xf]
    %v8545 = vld [vmem:[#allocation10 + $0x40] sm:$0xf]
    %v8546 = vld [vmem:[#allocation10 + $0x44] sm:$0xf]
    %v8547 = vld [vmem:[#allocation10 + $0x48] sm:$0xf]
    %v8548 = vld [vmem:[#allocation10 + $0x4c] sm:$0xf]
    %v8549 = vld [vmem:[#allocation10 + $0x50] sm:$0xf]
    %v8550 = vld [vmem:[#allocation10 + $0x54] sm:$0xf]
    %v8551 = vld [vmem:[#allocation10 + $0x58] sm:$0xf]
    %v8552 = vld [vmem:[#allocation10 + $0x5c] sm:$0xf]
    %v8553 = vld [vmem:[#allocation10 + $0x60] sm:$0xf]
    %v8554 = vld [vmem:[#allocation10 + $0x64] sm:$0xf]
    %v8555 = vld [vmem:[#allocation10 + $0x68] sm:$0xf]
    %v8556 = vld [vmem:[#allocation10 + $0x6c] sm:$0xf]
    %v8557 = vld [vmem:[#allocation10 + $0x70] sm:$0xf]
    %v8558 = vld [vmem:[#allocation10 + $0x74] sm:$0xf]
    %v8559 = vld [vmem:[#allocation10 + $0x78] sm:$0xf]
    %v8560 = vld [vmem:[#allocation10 + $0x7c] sm:$0xf]
    %v8561 = vld [vmem:[%s6] sm:$0x1]
    %v8563 = vlaneseq
    %v8564 = vshrl.u32 %v8563, 7
    %v8565 = vsub.s32 0, %v8564
    %v8566 = vrot.slane %v8561, %v8565
    %v8600 = vunpack.c.l.b16 %v8529
    %v8601 = vunpack.c.l.b16 %v8530
    %v8602 = vunpack.c.l.b16 %v8531
    %v8603 = vunpack.c.l.b16 %v8532
    %v8604 = vunpack.c.l.b16 %v8533
    %v8605 = vunpack.c.l.b16 %v8534
    %v8606 = vunpack.c.l.b16 %v8535
    %v8607 = vunpack.c.l.b16 %v8536
    %v8608 = vunpack.c.l.b16 %v8537
    %v8609 = vunpack.c.l.b16 %v8538
    %v8610 = vunpack.c.l.b16 %v8539
    %v8611 = vunpack.c.l.b16 %v8540
    %v8612 = vunpack.c.l.b16 %v8541
    %v8613 = vunpack.c.l.b16 %v8542
    %v8614 = vunpack.c.l.b16 %v8543
    %v8615 = vunpack.c.l.b16 %v8544
    %v8616 = vunpack.c.l.b16 %v8545
    %v8617 = vunpack.c.l.b16 %v8546
    %v8618 = vunpack.c.l.b16 %v8547
    %v8619 = vunpack.c.l.b16 %v8548
    %v8620 = vunpack.c.l.b16 %v8549
    %v8621 = vunpack.c.l.b16 %v8550
    %v8622 = vunpack.c.l.b16 %v8551
    %v8623 = vunpack.c.l.b16 %v8552
    %v8624 = vunpack.c.l.b16 %v8553
    %v8625 = vunpack.c.l.b16 %v8554
    %v8626 = vunpack.c.l.b16 %v8555
    %v8627 = vunpack.c.l.b16 %v8556
    %v8628 = vunpack.c.l.b16 %v8557
    %v8629 = vunpack.c.l.b16 %v8558
    %v8630 = vunpack.c.l.b16 %v8559
    %v8631 = vunpack.c.l.b16 %v8560
    %v8632 = vpack.c.b16 %v8601, %v8600
    %v8633 = vpack.c.b16 %v8603, %v8602
    %v8634 = vpack.c.b16 %v8605, %v8604
    %v8635 = vpack.c.b16 %v8607, %v8606
    %v8636 = vpack.c.b16 %v8609, %v8608
    %v8637 = vpack.c.b16 %v8611, %v8610
    %v8638 = vpack.c.b16 %v8613, %v8612
    %v8639 = vpack.c.b16 %v8615, %v8614
    %v8640 = vpack.c.b16 %v8617, %v8616
    %v8641 = vpack.c.b16 %v8619, %v8618
    %v8642 = vpack.c.b16 %v8621, %v8620
    %v8643 = vpack.c.b16 %v8623, %v8622
    %v8644 = vpack.c.b16 %v8625, %v8624
    %v8645 = vpack.c.b16 %v8627, %v8626
    %v8646 = vpack.c.b16 %v8629, %v8628
    %v8647 = vpack.c.b16 %v8631, %v8630
    %8664 = vmatprep.subr.bf16.mxu0 0
    %8665 = vmatpush1.bf16.msra.mxu0 %v8632
    %8666 = vmatprep.subr.bf16.mxu0 0
    %8667 = vmatpush1.bf16.msra.mxu0 %v8633
    %8668 = vmatprep.subr.bf16.mxu0 0
    %8669 = vmatpush1.bf16.msra.mxu0 %v8634
    %8670 = vmatprep.subr.bf16.mxu0 0
    %8671 = vmatpush1.bf16.msra.mxu0 %v8635
    %8672 = vmatprep.subr.bf16.mxu0 0
    %8673 = vmatpush1.bf16.msra.mxu0 %v8636
    %8674 = vmatprep.subr.bf16.mxu0 0
    %8675 = vmatpush1.bf16.msra.mxu0 %v8637
    %8676 = vmatprep.subr.bf16.mxu0 0
    %8677 = vmatpush1.bf16.msra.mxu0 %v8638
    %8678 = vmatprep.subr.bf16.mxu0 0
    %8679 = vmatpush1.bf16.msra.mxu0 %v8639
    %8680 = vmatprep.subr.bf16.mxu0 0
    %8681 = vmatpush1.bf16.msra.mxu0 %v8640
    %8682 = vmatprep.subr.bf16.mxu0 0
    %8683 = vmatpush1.bf16.msra.mxu0 %v8641
    %8684 = vmatprep.subr.bf16.mxu0 0
    %8685 = vmatpush1.bf16.msra.mxu0 %v8642
    %8686 = vmatprep.subr.bf16.mxu0 0
    %8687 = vmatpush1.bf16.msra.mxu0 %v8643
    %8688 = vmatprep.subr.bf16.mxu0 0
    %8689 = vmatpush1.bf16.msra.mxu0 %v8644
    %8690 = vmatprep.subr.bf16.mxu0 0
    %8691 = vmatpush1.bf16.msra.mxu0 %v8645
    %8692 = vmatprep.subr.bf16.mxu0 0
    %8693 = vmatpush1.bf16.msra.mxu0 %v8646
    %8694 = vmatprep.subr.bf16.mxu0 0
    %8695 = vmatpush1.bf16.msra.mxu0 %v8647
    %8696 = vmatprep.mubr.bf16.mxu0 %v8528
    %8697 = vmatmul.mubr.bf16.gmra.mrb[0].mxu0 %v8527
    %v8698 = vpop.f32.mrb[0].mxu0
    %v8699 = vadd.f32 %v8566, %v8698
    %v8700 = vpop.f32.mrb[0].mxu0
    %v8701 = vpop.f32.mrb[0].mxu0
    %v8702 = vadd.f32 %v8566, %v8701
    %v8703 = vpop.f32.mrb[0].mxu0
    %8704 = vdwg.mxu0
    %8705 = vst [vmem:[#allocation11] sm:$0xff] %v8699
    %8706 = vst [vmem:[#allocation11 + $0x8] sm:$0xff] %v8702
    // Predicated region
    $region50: #{tpu_custom_call.1} parent=1 // pred_check
      _
    $region51: #{tpu_custom_call.1} parent=1 // pred_check_branch
      %8708 = sbr.rel (0) target = $region53
    $region52: #{tpu_custom_call.1} parent=1 // pred_region
      %s8710 = ssub.s32 256, 256
      %8711 = vsyncadd [#allocation4], %s8710
      %s8712 = sshll.u32 [#allocation11], 4
      %s8713 = int_to_ptr.vmem [resolvable:$true] %s8712
      %8718 = dma.vmem_to_hbm [thread:$0]  %s8713, 256, %s7, [#allocation4], 128, 128, 8
    $region53: #{tpu_custom_call.1} parent=1 // pred_fallthru
      _
    // Predicated region
    $region54: #{tpu_custom_call.1} parent=1 // pred_check
      _
    $region55: #{tpu_custom_call.1} parent=1 // pred_check_branch
      %8720 = sbr.rel (0) target = $region57
    $region56: #{tpu_custom_call.1} parent=1 // pred_region
      %8721 = dma.done [#allocation4], 256
    $region57: #{tpu_custom_call.1} parent=1 // pred_fallthru
      _
    %8722 = vsyncpa [#allocation3], 1
    %8723 = vsyncpa [#allocation6], 1
    %8724 = vsyncpa [#allocation9], 1
    %8725 = vsyncpa [#allocation4], 1

</llo_original>
